<compile_context>
chip_gen: v6e
topology: v6e:2x2x1
jax: 0.10.0
libtpu: 0.0.40
codegen_flags: <defaults>
</compile_context>

<pallas_src>
import math

import jax
import jax.numpy as jnp
from jax.experimental import pallas as pl
from jax.experimental.pallas import tpu as pltpu

NEG_SLOPE = 0.2
SQRT2 = 2.0 ** 0.5


# ----------------------------------------------------------------------------- kernel body
def _two_conv1x1_kernel(x_ref, w1_ref, b1_ref, w2_ref, b2_ref, o_ref):
    """Fused per-tile block: two 1x1 convs (bf16 MXU, f32 accumulate), each followed by leaky-ReLU.
    All sqrt(2) activation gains are folded into w2/b2 on the host."""
    x = x_ref[...]                                             # (C, T)
    if x.dtype != jnp.bfloat16:                                # static (trace-time) branch
        x = x.astype(jnp.bfloat16)
    h = jnp.dot(w1_ref[...], x, preferred_element_type=jnp.float32) + b1_ref[...]
    h = jnp.where(h >= 0.0, h, NEG_SLOPE * h)                  # 3-op leaky; gain folded into W2
    y = jnp.dot(w2_ref[...], h.astype(jnp.bfloat16),
                preferred_element_type=jnp.float32) + b2_ref[...]
    y = jnp.where(y >= 0.0, y, NEG_SLOPE * y)                  # gain folded into W2/b2
    o_ref[...] = y.astype(o_ref.dtype)


# ----------------------------------------------------------------------------- tiling helpers
def _chip_config(io_itemsize):
    """(pixel-tile cap, vmem_limit_bytes or None) per TPU generation."""
    try:
        kind = jax.devices()[0].device_kind.lower()
    except Exception:
        kind = ""
    if "v6" in kind:          # 128 MiB VMEM: grow tiles and raise the scoped limit
        return (2048 if io_itemsize <= 2 else 1024), 64 << 20
    if "v7" in kind:          # 64 MiB per-TC VMEM: stay within default scoped headroom
        return (2048 if io_itemsize <= 2 else 1024), None
    if "v5" in kind:          # v5e: MXU saturates before HBM at C=512; 512 fits 16 MiB scoped default
        return 512, None
    return 512, None          # unknown / older: conservative


def _pick_tile(p, cap, prefer_split=False):
    """Largest multiple of 128 dividing p, capped at `cap`; tiny axes are taken as one full-dim block
    (legal since the block equals the full array dim).  With prefer_split, keep >=2 grid steps when
    possible so v7x can shard the parallel axis across its 2 TensorCores."""
    if p % 128 != 0:
        return p
    t = min(cap, p)
    t -= t % 128
    while p % t:
        t -= 128
    if prefer_split and t == p and p >= 256 and (p // 2) % 128 == 0:
        t = p // 2
    return t


def _const_spec(shape2d, buffered):
    """BlockSpec for a grid-resident (constant index map) operand."""
    idx = lambda *_: (0, 0)
    if buffered:
        # Constant index map -> single-buffer it; frees ~1 MiB of VMEM at C=512.
        return pl.BlockSpec(shape2d, idx, pipeline_mode=pl.Buffered(1))
    return pl.BlockSpec(shape2d, idx)


# ----------------------------------------------------------------------------- wrapper
def fused_two_conv1x1(x, w1, b1, w2, b2):
    """x: (N, C, H, W); w*: (C, C) bf16 (out, in), pre-scaled; b*: (C, 1) f32, pre-scaled.
    Output dtype matches x (pass bf16 activations to halve HBM traffic on the mem-bound scales)."""
    N, C, H, W = x.shape
    HW = H * W
    itemsize = jnp.dtype(x.dtype).itemsize
    cap, vmem_limit = _chip_config(itemsize)

    fold_batch = (HW % 128) != 0   # small maps (8x8, 4x4): fold batch into the lane axis

    if fold_batch:
        P = N * HW
        # Tiny tensors -> the transpose is negligible; payoff is lane-dense, unmasked stores.
        x2 = jnp.transpose(x.reshape(N, C, HW), (1, 0, 2)).reshape(C, P)
        tp = _pick_tile(P, cap, prefer_split=True)
        grid = (P // tp,)
        x_spec = pl.BlockSpec((C, tp), lambda t: (0, t))
        o_spec = pl.BlockSpec((C, tp), lambda t: (0, t))
        semantics = ("parallel",)
        out_shape = jax.ShapeDtypeStruct((C, P), x.dtype)
    else:
        x2 = x.reshape(N, C, HW)   # free: merges contiguous trailing dims
        thw = _pick_tile(HW, cap)
        grid = (N, HW // thw)
        x_spec = pl.BlockSpec((None, C, thw), lambda n, t: (n, 0, t))
        o_spec = pl.BlockSpec((None, C, thw), lambda n, t: (n, 0, t))
        semantics = ("parallel", "parallel")
        out_shape = jax.ShapeDtypeStruct((N, C, HW), x.dtype)

    flops = 4 * N * HW * C * C                                    # two (C,C)@(C,T) matmuls
    bytes_accessed = 2 * N * C * HW * itemsize + 2 * C * C * 2 + 2 * C * 4

    def _call(buffered):
        cp = dict(dimension_semantics=semantics)
        if vmem_limit is not None:
            cp["vmem_limit_bytes"] = vmem_limit
        w_spec = _const_spec((C, C), buffered)
        b_spec = _const_spec((C, 1), buffered)
        return pl.pallas_call(
            _two_conv1x1_kernel,
            out_shape=out_shape,
            grid=grid,
            in_specs=[x_spec, w_spec, b_spec, w_spec, b_spec],
            out_specs=o_spec,
            compiler_params=pltpu.CompilerParams(**cp),
            cost_estimate=pl.CostEstimate(flops=flops, transcendentals=0,
                                          bytes_accessed=bytes_accessed),
        )(x2, w1, b1, w2, b2)

    try:
        y = _call(buffered=True)
    except Exception:
        y = _call(buffered=False)   # fallback if pipeline_mode=pl.Buffered is unsupported

    if fold_batch:
        return jnp.transpose(y.reshape(C, N, HW), (1, 0, 2)).reshape(N, C, H, W)
    return y.reshape(N, C, H, W)


# ----------------------------------------------------------------------------- params / forward
def make_channels(channel_multiplier=2):
    return {
        4: 512, 8: 512, 16: 512, 32: 512,
        64: 256 * channel_multiplier, 128: 128 * channel_multiplier,
        256: 64 * channel_multiplier, 512: 32 * channel_multiplier,
        1024: 16 * channel_multiplier,
    }


def init_contrastive_predictor_params(size, channel_multiplier=2, seed=0, random_bias=False):
    """Mirrors ContrastivePredictor.__init__: one (ConvLayer, ConvLayer) pair per scale.
    Keeps the raw (PyTorch-equivalent) params and the kernel-ready folded bf16/f32 params.
    random_bias=True uses nonzero biases (module init is zeros) so the b2 gain folding is tested."""
    channels = make_channels(channel_multiplier)
    log_size = int(math.log(size, 2))
    key = jax.random.PRNGKey(seed)
    params = []
    scale_channels = []
    for i in range(log_size, 2, -1):
        c = channels[2 ** (i - 1)]
        key, k1, k2, kb1, kb2 = jax.random.split(key, 5)
        eq_scale = 1.0 / math.sqrt(c * 1 * 1)                      # EqualConv2d scale, kernel_size=1
        w1_raw = jax.random.normal(k1, (c, c), jnp.float32)        # (out, in), 1x1 spatial folded
        w2_raw = jax.random.normal(k2, (c, c), jnp.float32)
        if random_bias:
            b1_raw = 0.1 * jax.random.normal(kb1, (c,), jnp.float32)
            b2_raw = 0.1 * jax.random.normal(kb2, (c,), jnp.float32)
        else:
            b1_raw = jnp.zeros((c,), jnp.float32)                  # FusedLeakyReLU bias init = zeros
            b2_raw = jnp.zeros((c,), jnp.float32)
        # Kernel-ready folding:
        #   W1_eff = s*W1 ; W2_eff = sqrt2(layer-1 gain)*sqrt2(layer-2 gain)*s*W2 = 2*s*W2 ;
        #   b2_eff = sqrt2*b2 (layer-2 gain, leaky is positively homogeneous); b1 unchanged.
        w1_k = (w1_raw * eq_scale).astype(jnp.bfloat16)
        w2_k = (w2_raw * (2.0 * eq_scale)).astype(jnp.bfloat16)
        b1_k = b1_raw.reshape(c, 1)
        b2_k = (SQRT2 * b2_raw).reshape(c, 1)
        params.append(dict(
            w1=w1_k, b1=b1_k, w2=w2_k, b2=b2_k,
            w1_raw=w1_raw, w2_raw=w2_raw, b1_raw=b1_raw, b2_raw=b2_raw, eq_scale=eq_scale,
        ))
        scale_channels.append(c)
    return params, scale_channels


def contrastive_predictor_forward(inputs, params):
    """inputs: list of NCHW feature maps, one per scale. Returns list of NCHW outputs."""
    return [fused_two_conv1x1(x, p["w1"], p["b1"], p["w2"], p["b2"])
            for x, p in zip(inputs, params)]


def _reference_forward(inputs, params):
    """Pure-JAX f32 reference of the exact module math (unfolded weights/gains)."""
    outs = []
    for x, p in zip(inputs, params):
        N, C, H, W = x.shape
        x3 = x.reshape(N, C, H * W).astype(jnp.float32)
        s = p["eq_scale"]
        h = jnp.einsum("oi,nij->noj", p["w1_raw"] * s, x3,
                       precision=jax.lax.Precision.HIGHEST) + p["b1_raw"][None, :, None]
        h = jnp.where(h >= 0, h, NEG_SLOPE * h) * SQRT2
        y = jnp.einsum("oi,nij->noj", p["w2_raw"] * s, h,
                       precision=jax.lax.Precision.HIGHEST) + p["b2_raw"][None, :, None]
        y = jnp.where(y >= 0, y, NEG_SLOPE * y) * SQRT2
        outs.append(y.reshape(N, C, H, W))
    return outs


# ----------------------------------------------------------------------------- demo / test
if __name__ == "__main__":
    # size=32 -> 3 scales (channels 512 each), feature maps 16x16 / 8x8 / 4x4:
    # exercises both the per-batch tiling path (HW=256) and the batch-folded lane-dense path (HW=64, 16).
    SIZE = 32
    BATCH = 2
    params, scale_channels = init_contrastive_predictor_params(
        SIZE, channel_multiplier=2, seed=0, random_bias=True)

    key = jax.random.PRNGKey(0)
    inputs = []
    spatial = SIZE // 2
    for c in scale_channels:
        key, sub = jax.random.split(key)
        inputs.append(jax.random.normal(sub, (BATCH, c, spatial, spatial), jnp.float32))
        spatial = max(spatial // 2, 1)

    outs = contrastive_predictor_forward(inputs, params)
    outs = [jax.block_until_ready(o) for o in outs]

    refs = _reference_forward(inputs, params)
    for o, r, x in zip(outs, refs, inputs):
        assert o.shape == x.shape and o.dtype == x.dtype
        # Kernel uses bf16 MXU matmuls (f32 accumulate) vs a pure-f32 reference -> relaxed tolerance.
        max_err = float(jnp.max(jnp.abs(o - r)))
        assert jnp.allclose(o, r, atol=5e-2, rtol=5e-2), f"max abs err {max_err}"

    # Optional bf16 activation I/O (halves HBM traffic on the mem-bound scales); same kernel, no cast.
    p0 = params[0]
    o_bf16 = fused_two_conv1x1(inputs[0].astype(jnp.bfloat16),
                               p0["w1"], p0["b1"], p0["w2"], p0["b2"])
    o_bf16 = jax.block_until_ready(o_bf16)
    assert o_bf16.shape == inputs[0].shape and o_bf16.dtype == jnp.bfloat16
    max_err_bf16 = float(jnp.max(jnp.abs(o_bf16.astype(jnp.float32) - refs[0])))
    assert max_err_bf16 < 0.25, f"bf16 I/O max abs err {max_err_bf16}"

    print("KERNEL_OK")
</pallas_src>

<mosaic_0001>
module attributes {stable_mosaic.version = 11 : i64} {
  func.func @_two_conv1x1_kernel(%arg0: i32, %arg1: i32, %arg2: memref<1x512x256xf32, #tpu.memory_space<vmem>>, %arg3: memref<512x512xbf16, #tpu.memory_space<vmem>>, %arg4: memref<512x1xf32, #tpu.memory_space<vmem>>, %arg5: memref<512x512xbf16, #tpu.memory_space<vmem>>, %arg6: memref<512x1xf32, #tpu.memory_space<vmem>>, %arg7: memref<1x512x256xf32, #tpu.memory_space<vmem>>) attributes {dimension_semantics = [#tpu.dimension_semantics<parallel>, #tpu.dimension_semantics<parallel>], iteration_bounds = array<i64: 2, 1>, scalar_prefetch = 0 : i64, scratch_operands = 0 : i64, tpu.core_type = #tpu.core_type<tc>, window_params = [{transform_indices = @transform_0, window_bounds = array<i64: 1, 512, 256>}, {pipeline_mode = #tpu.pipeline_mode<synchronous>, transform_indices = @transform_1, window_bounds = array<i64: 512, 512>}, {pipeline_mode = #tpu.pipeline_mode<synchronous>, transform_indices = @transform_2, window_bounds = array<i64: 512, 1>}, {pipeline_mode = #tpu.pipeline_mode<synchronous>, transform_indices = @transform_3, window_bounds = array<i64: 512, 512>}, {pipeline_mode = #tpu.pipeline_mode<synchronous>, transform_indices = @transform_4, window_bounds = array<i64: 512, 1>}, {transform_indices = @transform_5, window_bounds = array<i64: 1, 512, 256>}]} {
    %c0 = arith.constant 0 : index
    %c0_0 = arith.constant 0 : index
    %c0_1 = arith.constant 0 : index
    %0 = vector.load %arg2[%c0, %c0_0, %c0_1] : memref<1x512x256xf32, #tpu.memory_space<vmem>>, vector<1x512x256xf32>
    %1 = vector.shape_cast %0 : vector<1x512x256xf32> to vector<512x256xf32>
    %2 = arith.truncf %1 : vector<512x256xf32> to vector<512x256xbf16>
    %c0_2 = arith.constant 0 : index
    %c0_3 = arith.constant 0 : index
    %3 = vector.load %arg3[%c0_2, %c0_3] : memref<512x512xbf16, #tpu.memory_space<vmem>>, vector<512x512xbf16>
    %cst = arith.constant dense<0.000000e+00> : vector<512x256xf32>
    %4 = tpu.matmul %3, %2, %cst {dimension_numbers = #tpu.dot_dimension_numbers<[1], [0], [0], [1], [0, 0, 1, 1], [], []>} : vector<512x512xbf16>, vector<512x256xbf16>, vector<512x256xf32> -> vector<512x256xf32>
    %c0_4 = arith.constant 0 : index
    %c0_5 = arith.constant 0 : index
    %5 = vector.load %arg4[%c0_4, %c0_5] : memref<512x1xf32, #tpu.memory_space<vmem>>, vector<512x1xf32>
    %6 = vector.broadcast %5 : vector<512x1xf32> to vector<512x256xf32>
    %7 = arith.addf %4, %6 : vector<512x256xf32>
    %cst_6 = arith.constant 0.000000e+00 : f32
    %8 = vector.broadcast %cst_6 : f32 to vector<512x256xf32>
    %9 = arith.cmpf oge, %7, %8 : vector<512x256xf32>
    %cst_7 = arith.constant 2.000000e-01 : f32
    %10 = vector.broadcast %cst_7 : f32 to vector<512x256xf32>
    %11 = arith.mulf %10, %7 : vector<512x256xf32>
    %12 = arith.select %9, %7, %11 : vector<512x256xi1>, vector<512x256xf32>
    %c0_8 = arith.constant 0 : index
    %c0_9 = arith.constant 0 : index
    %13 = vector.load %arg5[%c0_8, %c0_9] : memref<512x512xbf16, #tpu.memory_space<vmem>>, vector<512x512xbf16>
    %14 = arith.truncf %12 : vector<512x256xf32> to vector<512x256xbf16>
    %cst_10 = arith.constant dense<0.000000e+00> : vector<512x256xf32>
    %15 = tpu.matmul %13, %14, %cst_10 {dimension_numbers = #tpu.dot_dimension_numbers<[1], [0], [0], [1], [0, 0, 1, 1], [], []>} : vector<512x512xbf16>, vector<512x256xbf16>, vector<512x256xf32> -> vector<512x256xf32>
    %c0_11 = arith.constant 0 : index
    %c0_12 = arith.constant 0 : index
    %16 = vector.load %arg6[%c0_11, %c0_12] : memref<512x1xf32, #tpu.memory_space<vmem>>, vector<512x1xf32>
    %17 = vector.broadcast %16 : vector<512x1xf32> to vector<512x256xf32>
    %18 = arith.addf %15, %17 : vector<512x256xf32>
    %cst_13 = arith.constant 0.000000e+00 : f32
    %19 = vector.broadcast %cst_13 : f32 to vector<512x256xf32>
    %20 = arith.cmpf oge, %18, %19 : vector<512x256xf32>
    %cst_14 = arith.constant 2.000000e-01 : f32
    %21 = vector.broadcast %cst_14 : f32 to vector<512x256xf32>
    %22 = arith.mulf %21, %18 : vector<512x256xf32>
    %23 = arith.select %20, %18, %22 : vector<512x256xi1>, vector<512x256xf32>
    %c0_15 = arith.constant 0 : index
    %c0_16 = arith.constant 0 : index
    %c0_17 = arith.constant 0 : index
    %24 = vector.load %arg7[%c0_15, %c0_16, %c0_17] : memref<1x512x256xf32, #tpu.memory_space<vmem>>, vector<1x512x256xf32>
    %25 = vector.shape_cast %24 : vector<1x512x256xf32> to vector<512x256xf32>
    %26 = vector.shape_cast %23 : vector<512x256xf32> to vector<1x512x256xf32>
    tpu.vector_store %arg7[%c0_15, %c0_16, %c0_17], %26 {strides = array<i32>} : memref<1x512x256xf32, #tpu.memory_space<vmem>>, vector<1x512x256xf32>,
    return
  }
  func.func @transform_0(%arg0: i32, %arg1: i32) -> (i32, i32, i32) {
    %c0_i32 = arith.constant 0 : i32
    %c0_i32_0 = arith.constant 0 : i32
    return %arg0, %c0_i32, %arg1 : i32, i32, i32
  }
  func.func @transform_1(%arg0: i32, %arg1: i32) -> (i32, i32) {
    %c0_i32 = arith.constant 0 : i32
    %c0_i32_0 = arith.constant 0 : i32
    %c0_i32_1 = arith.constant 0 : i32
    return %c0_i32, %c0_i32_0 : i32, i32
  }
  func.func @transform_2(%arg0: i32, %arg1: i32) -> (i32, i32) {
    %c0_i32 = arith.constant 0 : i32
    %c0_i32_0 = arith.constant 0 : i32
    %c0_i32_1 = arith.constant 0 : i32
    return %c0_i32, %c0_i32_0 : i32, i32
  }
  func.func @transform_3(%arg0: i32, %arg1: i32) -> (i32, i32) {
    %c0_i32 = arith.constant 0 : i32
    %c0_i32_0 = arith.constant 0 : i32
    %c0_i32_1 = arith.constant 0 : i32
    return %c0_i32, %c0_i32_0 : i32, i32
  }
  func.func @transform_4(%arg0: i32, %arg1: i32) -> (i32, i32) {
    %c0_i32 = arith.constant 0 : i32
    %c0_i32_0 = arith.constant 0 : i32
    %c0_i32_1 = arith.constant 0 : i32
    return %c0_i32, %c0_i32_0 : i32, i32
  }
  func.func @transform_5(%arg0: i32, %arg1: i32) -> (i32, i32, i32) {
    %c0_i32 = arith.constant 0 : i32
    %c0_i32_0 = arith.constant 0 : i32
    return %arg0, %c0_i32, %arg1 : i32, i32, i32
  }
}

module attributes {stable_mosaic.version = 11 : i64} {
  func.func @_two_conv1x1_kernel(%arg0: i32, %arg1: i32, %arg2: memref<1x512x256xf32, #tpu.memory_space<vmem>>, %arg3: memref<512x512xbf16, #tpu.memory_space<vmem>>, %arg4: memref<512x1xf32, #tpu.memory_space<vmem>>, %arg5: memref<512x512xbf16, #tpu.memory_space<vmem>>, %arg6: memref<512x1xf32, #tpu.memory_space<vmem>>, %arg7: memref<1x512x256xf32, #tpu.memory_space<vmem>>) attributes {dimension_semantics = [#tpu.dimension_semantics<parallel>, #tpu.dimension_semantics<parallel>], iteration_bounds = array<i64: 2, 1>, scalar_prefetch = 0 : i64, scratch_operands = 0 : i64, tpu.core_type = #tpu.core_type<tc>, window_params = [{transform_indices = @transform_0, window_bounds = array<i64: 1, 512, 256>}, {pipeline_mode = #tpu.pipeline_mode<synchronous>, transform_indices = @transform_1, window_bounds = array<i64: 512, 512>}, {pipeline_mode = #tpu.pipeline_mode<synchronous>, transform_indices = @transform_2, window_bounds = array<i64: 512, 1>}, {pipeline_mode = #tpu.pipeline_mode<synchronous>, transform_indices = @transform_3, window_bounds = array<i64: 512, 512>}, {pipeline_mode = #tpu.pipeline_mode<synchronous>, transform_indices = @transform_4, window_bounds = array<i64: 512, 1>}, {transform_indices = @transform_5, window_bounds = array<i64: 1, 512, 256>}]} {
    %c0 = arith.constant 0 : index
    %c0_0 = arith.constant 0 : index
    %c0_1 = arith.constant 0 : index
    %0 = vector.load %arg2[%c0, %c0_0, %c0_1] : memref<1x512x256xf32, #tpu.memory_space<vmem>>, vector<1x512x256xf32>
    %1 = vector.shape_cast %0 : vector<1x512x256xf32> to vector<512x256xf32>
    %2 = arith.truncf %1 : vector<512x256xf32> to vector<512x256xbf16>
    %c0_2 = arith.constant 0 : index
    %c0_3 = arith.constant 0 : index
    %3 = vector.load %arg3[%c0_2, %c0_3] : memref<512x512xbf16, #tpu.memory_space<vmem>>, vector<512x512xbf16>
    %cst = arith.constant dense<0.000000e+00> : vector<512x256xf32>
    %4 = tpu.matmul %3, %2, %cst {dimension_numbers = #tpu.dot_dimension_numbers<[1], [0], [0], [1], [0, 0, 1, 1], [], []>} : vector<512x512xbf16>, vector<512x256xbf16>, vector<512x256xf32> -> vector<512x256xf32>
    %c0_4 = arith.constant 0 : index
    %c0_5 = arith.constant 0 : index
    %5 = vector.load %arg4[%c0_4, %c0_5] : memref<512x1xf32, #tpu.memory_space<vmem>>, vector<512x1xf32>
    %6 = vector.broadcast %5 : vector<512x1xf32> to vector<512x256xf32>
    %7 = arith.addf %4, %6 : vector<512x256xf32>
    %cst_6 = arith.constant 0.000000e+00 : f32
    %8 = vector.broadcast %cst_6 : f32 to vector<512x256xf32>
    %9 = arith.cmpf oge, %7, %8 : vector<512x256xf32>
    %cst_7 = arith.constant 2.000000e-01 : f32
    %10 = vector.broadcast %cst_7 : f32 to vector<512x256xf32>
    %11 = arith.mulf %10, %7 : vector<512x256xf32>
    %12 = arith.select %9, %7, %11 : vector<512x256xi1>, vector<512x256xf32>
    %c0_8 = arith.constant 0 : index
    %c0_9 = arith.constant 0 : index
    %13 = vector.load %arg5[%c0_8, %c0_9] : memref<512x512xbf16, #tpu.memory_space<vmem>>, vector<512x512xbf16>
    %14 = arith.truncf %12 : vector<512x256xf32> to vector<512x256xbf16>
    %cst_10 = arith.constant dense<0.000000e+00> : vector<512x256xf32>
    %15 = tpu.matmul %13, %14, %cst_10 {dimension_numbers = #tpu.dot_dimension_numbers<[1], [0], [0], [1], [0, 0, 1, 1], [], []>} : vector<512x512xbf16>, vector<512x256xbf16>, vector<512x256xf32> -> vector<512x256xf32>
    %c0_11 = arith.constant 0 : index
    %c0_12 = arith.constant 0 : index
    %16 = vector.load %arg6[%c0_11, %c0_12] : memref<512x1xf32, #tpu.memory_space<vmem>>, vector<512x1xf32>
    %17 = vector.broadcast %16 : vector<512x1xf32> to vector<512x256xf32>
    %18 = arith.addf %15, %17 : vector<512x256xf32>
    %cst_13 = arith.constant 0.000000e+00 : f32
    %19 = vector.broadcast %cst_13 : f32 to vector<512x256xf32>
    %20 = arith.cmpf oge, %18, %19 : vector<512x256xf32>
    %cst_14 = arith.constant 2.000000e-01 : f32
    %21 = vector.broadcast %cst_14 : f32 to vector<512x256xf32>
    %22 = arith.mulf %21, %18 : vector<512x256xf32>
    %23 = arith.select %20, %18, %22 : vector<512x256xi1>, vector<512x256xf32>
    %c0_15 = arith.constant 0 : index
    %c0_16 = arith.constant 0 : index
    %c0_17 = arith.constant 0 : index
    %24 = vector.load %arg7[%c0_15, %c0_16, %c0_17] : memref<1x512x256xf32, #tpu.memory_space<vmem>>, vector<1x512x256xf32>
    %25 = vector.shape_cast %24 : vector<1x512x256xf32> to vector<512x256xf32>
    %26 = vector.shape_cast %23 : vector<512x256xf32> to vector<1x512x256xf32>
    tpu.vector_store %arg7[%c0_15, %c0_16, %c0_17], %26 {strides = array<i32>} : memref<1x512x256xf32, #tpu.memory_space<vmem>>, vector<1x512x256xf32>,
    return
  }
  func.func @transform_0(%arg0: i32, %arg1: i32) -> (i32, i32, i32) {
    %c0_i32 = arith.constant 0 : i32
    %c0_i32_0 = arith.constant 0 : i32
    return %arg0, %c0_i32, %arg1 : i32, i32, i32
  }
  func.func @transform_1(%arg0: i32, %arg1: i32) -> (i32, i32) {
    %c0_i32 = arith.constant 0 : i32
    %c0_i32_0 = arith.constant 0 : i32
    %c0_i32_1 = arith.constant 0 : i32
    return %c0_i32, %c0_i32_0 : i32, i32
  }
  func.func @transform_2(%arg0: i32, %arg1: i32) -> (i32, i32) {
    %c0_i32 = arith.constant 0 : i32
    %c0_i32_0 = arith.constant 0 : i32
    %c0_i32_1 = arith.constant 0 : i32
    return %c0_i32, %c0_i32_0 : i32, i32
  }
  func.func @transform_3(%arg0: i32, %arg1: i32) -> (i32, i32) {
    %c0_i32 = arith.constant 0 : i32
    %c0_i32_0 = arith.constant 0 : i32
    %c0_i32_1 = arith.constant 0 : i32
    return %c0_i32, %c0_i32_0 : i32, i32
  }
  func.func @transform_4(%arg0: i32, %arg1: i32) -> (i32, i32) {
    %c0_i32 = arith.constant 0 : i32
    %c0_i32_0 = arith.constant 0 : i32
    %c0_i32_1 = arith.constant 0 : i32
    return %c0_i32, %c0_i32_0 : i32, i32
  }
  func.func @transform_5(%arg0: i32, %arg1: i32) -> (i32, i32, i32) {
    %c0_i32 = arith.constant 0 : i32
    %c0_i32_0 = arith.constant 0 : i32
    return %arg0, %c0_i32, %arg1 : i32, i32, i32
  }
}

</mosaic_0001>

<llo_original>
// kernel: tpu_custom_call.1
$region0: #{tpu_custom_call.1}
  #allocation0 [shape = 'u32[]', space=smem, size = 0x4, offset = 0x4, fixed_abs, tag = 'smem constant byte address 0x4 - core index']
  #allocation1 [shape = 'u32[144,128]{1,0:T(1,128)}', space=vmem, size = 0x12000, scoped, tag = 'internal scratch']
  %s0 = inlined_call_operand.hbm [shape: f32[2,512,256], index: 0, kind: input, shape index: {}]
  %s1 = inlined_call_operand.vmem [shape: bf16[512,512], index: 1, kind: input, shape index: {}]
  %s2 = inlined_call_operand.vmem [shape: f32[512,1], index: 2, kind: input, shape index: {}]
  %s3 = inlined_call_operand.hbm [shape: bf16[512,512], index: 3, kind: input, shape index: {}]
  %s4 = inlined_call_operand.vmem [shape: f32[512,1], index: 4, kind: input, shape index: {}]
  %s5 = inlined_call_operand.hbm [shape: f32[2,512,256], index: 5, kind: output, shape index: {}]
  %s6 = sld [smem:[#allocation0]]
  $region61: #{tpu_custom_call.1} parent=0
    _
  %s8 = ssub.s32 1, %s6
  %s9 = scalar_select 0, %s8, %s6
  $region1: #{tpu_custom_call.1} parent=0
    #allocation2 [shape = 'u8[1048576]{0}', space=vmem, size = 0x100000, scoped, tag = 'input window, operand 0']
    #allocation3 [shape = 's32[2]{0}', space=sflag, size = 0x8, scoped, tag = 'scoped memory for tpu_custom_call.1']
    #allocation4 [shape = 's32[2]{0}', space=sflag, size = 0x8, scoped, tag = 'scoped memory for tpu_custom_call.1']
    #allocation5 [shape = 'u8[524288]{0}', space=vmem, size = 0x80000, scoped, tag = 'input window, operand 3, single buffered']
    #allocation6 [shape = 's32[1]{0}', space=sflag, size = 0x4, scoped, tag = 'scoped memory for tpu_custom_call.1']
    #allocation7 [shape = 'u8[1048576]{0}', space=vmem, size = 0x100000, scoped, tag = 'output window, operand 0']
    %10 = vsyncpa [#allocation3], 0
    %s11 = scalar_lea.sflag [#allocation3], 1
    %12 = vsyncpa %s11, 0
    %13 = vsyncpa [#allocation6], 0
    %14 = vsyncpa [#allocation4], 0
    %s15 = scalar_lea.sflag [#allocation4], 1
    %16 = vsyncpa %s15, 0
    loop: start=0, step=1, limit=4
    $region2: #{tpu_custom_call.1} parent=1 // loop_pre_header
      _
    $region3: #{tpu_custom_call.1} parent=1 // loop_header
      %s18 = sphi 0, %s22
      %p19 = scmp.ge.s32.totalorder %s18, 4
      %s25 = sphi 0, %s37
      %s26 = sphi 0, %s33
      %s27 = sphi 0, %s25
      %s28 = sphi 0, %s26
      %s29 = sphi 0, %s27
      %s30 = sphi 0, %s28
      %s42 = sphi 0, %s44
      %s45 = sphi 0, %s42
      %s46 = sphi 0, %s45
      %s62 = sphi 0, %s46
      %s66 = sphi 0, %s66
      %s68 = sphi 0, %s66
      %s69 = sphi 0, %s68
      %s83 = sphi 0, %s69
      %s87 = sphi 0, %s87
      %s89 = sphi 0, %s87
      %s90 = sphi 0, %s89
      %s104 = sphi 0, %s90
      %s108 = sphi 0, %s108
      %s110 = sphi 0, %s108
      %s111 = sphi 0, %s110
      %s125 = sphi 0, %s111
      %s129 = sphi 0, %s129
      %s131 = sphi 0, %s129
      %s132 = sphi 0, %s131
      %s146 = sphi 0, %s132
      %s154 = sphi 0, %s156
      %s157 = sphi 0, %s154
      %s158 = sphi 0, %s157
      %s174 = sphi 0, %s158
    $region4: #{tpu_custom_call.1} parent=1 // loop_header_branch
      %21 = sbr.rel (%p19) target = $region8
    $region5: #{tpu_custom_call.1} parent=1 // loop_body
      %s23 = ssub.s32 %s18, 1
      %s24 = ssub.s32 %s18, 2
      %s31 = sadd.s32 1, %s26
      %p32 = scmp.ge.s32.totalorder %s31, 1
      %s33 = scalar_select %p32, 0, %s31
      %s34 = sadd.s32 1, %s25
      %s35 = scalar_select %p32, %s34, %s25
      %p36 = scmp.ge.s32.totalorder %s35, 2
      %s37 = scalar_select %p36, 0, %s35
      %s38 = ssub.s32 %s25, %s37
      %s39 = ssub.s32 %s26, %s33
      %s40 = sor.u32 %s38, %s39
      %p41 = scmp.eq.s32.totalorder %s40, 0
      %s43 = sadd.s32 %s42, 1
      %s44 = scalar_select %p41, %s42, %s43
      %p47 = pneg %p41
      %p48 = scmp.eq.s32.totalorder %s18, 1
      %p49 = por %p47, %p48
      %p50 = scmp.ne.s32.totalorder %s42, %s45
      %p51 = scmp.eq.s32.totalorder %s18, 0
      %p52 = por %p50, %p51
      %p53 = scmp.ne.s32.totalorder %s42, %s45
      %p54 = scmp.eq.s32.totalorder %s23, 1
      %p55 = por %p53, %p54
      %p56 = scmp.ne.s32.totalorder %s45, %s46
      %p57 = scmp.eq.s32.totalorder %s23, 0
      %p58 = por %p56, %p57
      %p59 = scmp.ne.s32.totalorder %s45, %s46
      %p60 = scmp.eq.s32.totalorder %s24, 1
      %p61 = por %p59, %p60
      %p63 = scmp.ne.s32.totalorder %s46, %s62
      %p64 = scmp.eq.s32.totalorder %s24, 0
      %p65 = por %p63, %p64
      %s67 = sadd.s32 %s66, 1
      %p70 = scmp.eq.s32.totalorder %s18, 1
      %p71 = scmp.ne.s32.totalorder %s66, %s68
      %p72 = scmp.eq.s32.totalorder %s18, 0
      %p73 = por %p71, %p72
      %p74 = scmp.ne.s32.totalorder %s66, %s68
      %p75 = scmp.eq.s32.totalorder %s23, 1
      %p76 = por %p74, %p75
      %p77 = scmp.ne.s32.totalorder %s68, %s69
      %p78 = scmp.eq.s32.totalorder %s23, 0
      %p79 = por %p77, %p78
      %p80 = scmp.ne.s32.totalorder %s68, %s69
      %p81 = scmp.eq.s32.totalorder %s24, 1
      %p82 = por %p80, %p81
      %p84 = scmp.ne.s32.totalorder %s69, %s83
      %p85 = scmp.eq.s32.totalorder %s24, 0
      %p86 = por %p84, %p85
      %s88 = sadd.s32 %s87, 1
      %p91 = scmp.eq.s32.totalorder %s18, 1
      %p92 = scmp.ne.s32.totalorder %s87, %s89
      %p93 = scmp.eq.s32.totalorder %s18, 0
      %p94 = por %p92, %p93
      %p95 = scmp.ne.s32.totalorder %s87, %s89
      %p96 = scmp.eq.s32.totalorder %s23, 1
      %p97 = por %p95, %p96
      %p98 = scmp.ne.s32.totalorder %s89, %s90
      %p99 = scmp.eq.s32.totalorder %s23, 0
      %p100 = por %p98, %p99
      %p101 = scmp.ne.s32.totalorder %s89, %s90
      %p102 = scmp.eq.s32.totalorder %s24, 1
      %p103 = por %p101, %p102
      %p105 = scmp.ne.s32.totalorder %s90, %s104
      %p106 = scmp.eq.s32.totalorder %s24, 0
      %p107 = por %p105, %p106
      %s109 = sadd.s32 %s108, 1
      %p112 = scmp.eq.s32.totalorder %s18, 1
      %p113 = scmp.ne.s32.totalorder %s108, %s110
      %p114 = scmp.eq.s32.totalorder %s18, 0
      %p115 = por %p113, %p114
      %p116 = scmp.ne.s32.totalorder %s108, %s110
      %p117 = scmp.eq.s32.totalorder %s23, 1
      %p118 = por %p116, %p117
      %p119 = scmp.ne.s32.totalorder %s110, %s111
      %p120 = scmp.eq.s32.totalorder %s23, 0
      %p121 = por %p119, %p120
      %p122 = scmp.ne.s32.totalorder %s110, %s111
      %p123 = scmp.eq.s32.totalorder %s24, 1
      %p124 = por %p122, %p123
      %p126 = scmp.ne.s32.totalorder %s111, %s125
      %p127 = scmp.eq.s32.totalorder %s24, 0
      %p128 = por %p126, %p127
      %s130 = sadd.s32 %s129, 1
      %p133 = scmp.eq.s32.totalorder %s18, 1
      %p134 = scmp.ne.s32.totalorder %s129, %s131
      %p135 = scmp.eq.s32.totalorder %s18, 0
      %p136 = por %p134, %p135
      %p137 = scmp.ne.s32.totalorder %s129, %s131
      %p138 = scmp.eq.s32.totalorder %s23, 1
      %p139 = por %p137, %p138
      %p140 = scmp.ne.s32.totalorder %s131, %s132
      %p141 = scmp.eq.s32.totalorder %s23, 0
      %p142 = por %p140, %p141
      %p143 = scmp.ne.s32.totalorder %s131, %s132
      %p144 = scmp.eq.s32.totalorder %s24, 1
      %p145 = por %p143, %p144
      %p147 = scmp.ne.s32.totalorder %s132, %s146
      %p148 = scmp.eq.s32.totalorder %s24, 0
      %p149 = por %p147, %p148
      %s150 = ssub.s32 %s25, %s37
      %s151 = ssub.s32 %s26, %s33
      %s152 = sor.u32 %s150, %s151
      %p153 = scmp.eq.s32.totalorder %s152, 0
      %s155 = sadd.s32 %s154, 1
      %s156 = scalar_select %p153, %s154, %s155
      %p159 = pneg %p153
      %p160 = scmp.eq.s32.totalorder %s18, 1
      %p161 = por %p159, %p160
      %p162 = scmp.ne.s32.totalorder %s154, %s157
      %p163 = scmp.eq.s32.totalorder %s18, 0
      %p164 = por %p162, %p163
      %p165 = scmp.ne.s32.totalorder %s154, %s157
      %p166 = scmp.eq.s32.totalorder %s23, 1
      %p167 = por %p165, %p166
      %p168 = scmp.ne.s32.totalorder %s157, %s158
      %p169 = scmp.eq.s32.totalorder %s23, 0
      %p170 = por %p168, %p169
      %p171 = scmp.ne.s32.totalorder %s157, %s158
      %p172 = scmp.eq.s32.totalorder %s24, 1
      %p173 = por %p171, %p172
      %p175 = scmp.ne.s32.totalorder %s158, %s174
      %p176 = scmp.eq.s32.totalorder %s24, 0
      %p177 = por %p175, %p176
      %p178 = scmp.le.s32.totalorder 1, %s18
      %p179 = scmp.lt.s32.totalorder %s18, 3
      %p180 = pnand %p178, %p179
      %p181 = pneg %p180
      // Predicated region
      $region9: #{tpu_custom_call.1} parent=5 // pred_check
        _
      $region10: #{tpu_custom_call.1} parent=5 // pred_check_branch
        %183 = sbr.rel (%p180) target = $region12
      $region11: #{tpu_custom_call.1} parent=5 // pred_region
        %s184 = ssub.s32 %s18, 1
        // Predicated region
        $region13: #{tpu_custom_call.1} parent=11 // pred_check
          %p185 = pneg %p79
        $region14: #{tpu_custom_call.1} parent=11 // pred_check_branch
          %187 = sbr.rel (%p185) target = $region16
        $region15: #{tpu_custom_call.1} parent=11 // pred_region
          _
        $region16: #{tpu_custom_call.1} parent=11 // pred_fallthru
          _
        // Predicated region
        $region17: #{tpu_custom_call.1} parent=11 // pred_check
          %p188 = pneg %p100
        $region18: #{tpu_custom_call.1} parent=11 // pred_check_branch
          %190 = sbr.rel (%p188) target = $region20
        $region19: #{tpu_custom_call.1} parent=11 // pred_region
          _
        $region20: #{tpu_custom_call.1} parent=11 // pred_fallthru
          _
        // Predicated region
        $region21: #{tpu_custom_call.1} parent=11 // pred_check
          %p191 = pneg %p121
        $region22: #{tpu_custom_call.1} parent=11 // pred_check_branch
          %193 = sbr.rel (%p191) target = $region24
        $region23: #{tpu_custom_call.1} parent=11 // pred_region
          %s195 = ssub.s32 16384, 16384
          %196 = vsyncadd [#allocation6], %s195
          %s197 = sshll.u32 [#allocation5], 4
          %s198 = int_to_ptr.vmem [resolvable:$true] %s197
          %203 = dma.hbm_to_vmem [thread:$0]  %s3, 16384, %s198, [#allocation6], 256, 256, 16
        $region24: #{tpu_custom_call.1} parent=11 // pred_fallthru
          _
        // Predicated region
        $region25: #{tpu_custom_call.1} parent=11 // pred_check
          %p204 = pneg %p142
        $region26: #{tpu_custom_call.1} parent=11 // pred_check_branch
          %206 = sbr.rel (%p204) target = $region28
        $region27: #{tpu_custom_call.1} parent=11 // pred_region
          _
        $region28: #{tpu_custom_call.1} parent=11 // pred_fallthru
          _
      $region12: #{tpu_custom_call.1} parent=5 // pred_fallthru
        _
      %p207 = scmp.lt.s32.totalorder %s18, 2
      // Predicated region
      $region29: #{tpu_custom_call.1} parent=5 // pred_check
        %p208 = pneg %p207
      $region30: #{tpu_custom_call.1} parent=5 // pred_check_branch
        %210 = sbr.rel (%p208) target = $region32
      $region31: #{tpu_custom_call.1} parent=5 // pred_region
        // Predicated region
        $region33: #{tpu_custom_call.1} parent=31 // pred_check
          %p211 = pneg %p52
        $region34: #{tpu_custom_call.1} parent=31 // pred_check_branch
          %213 = sbr.rel (%p211) target = $region36
        $region35: #{tpu_custom_call.1} parent=31 // pred_region
          %s214 = sand.u32 %s42, 1
          %s215 = scalar_lea.sflag [#allocation3], %s214
          %s216 = sand.u32 %s42, 1
          %s217 = smul.addr %s216, 1024
          %s218 = scalar_lea.vmem [#allocation2], %s217
          %s219 = smul.u32 2, %s26
          %s221 = ssub.s32 16384, 16384
          %222 = vsyncadd %s215, %s221
          %s223 = smul.addr %s25, 128
          %s224 = sadd.s32 %s219, %s223
          %s225 = smul.addr %s224, 128
          %s226 = scalar_lea.hbm %s0, %s225
          %s227 = sshll.u32 %s218, 4
          %s228 = int_to_ptr.vmem [resolvable:$true] %s227
          %233 = dma.hbm_to_vmem [thread:$0]  %s226, 16384, %s228, %s215, 256, 256, 16
        $region36: #{tpu_custom_call.1} parent=31 // pred_fallthru
          _
      $region32: #{tpu_custom_call.1} parent=5 // pred_fallthru
        _
      %p234 = scmp.le.s32.totalorder 1, %s18
      %p235 = scmp.lt.s32.totalorder %s18, 3
      %p236 = pnand %p234, %p235
      %p237 = pneg %p236
      // Predicated region
      $region37: #{tpu_custom_call.1} parent=5 // pred_check
        _
      $region38: #{tpu_custom_call.1} parent=5 // pred_check_branch
        %239 = sbr.rel (%p236) target = $region40
      $region39: #{tpu_custom_call.1} parent=5 // pred_region
        %s240 = ssub.s32 %s18, 1
        %s241 = sand.u32 %s45, 1
        %s242 = scalar_lea.sflag [#allocation3], %s241
        %s243 = sand.u32 %s45, 1
        %s244 = smul.addr %s243, 1024
        %s245 = scalar_lea.vmem [#allocation2], %s244
        // Predicated region
        $region41: #{tpu_custom_call.1} parent=39 // pred_check
          %p246 = pneg %p58
        $region42: #{tpu_custom_call.1} parent=39 // pred_check_branch
          %248 = sbr.rel (%p246) target = $region44
        $region43: #{tpu_custom_call.1} parent=39 // pred_region
          %249 = dma.done %s242, 16384
        $region44: #{tpu_custom_call.1} parent=39 // pred_fallthru
          _
        // Predicated region
        $region45: #{tpu_custom_call.1} parent=39 // pred_check
          %p250 = pneg %p121
        $region46: #{tpu_custom_call.1} parent=39 // pred_check_branch
          %252 = sbr.rel (%p250) target = $region48
        $region47: #{tpu_custom_call.1} parent=39 // pred_region
          %253 = dma.done [#allocation6], 16384
        $region48: #{tpu_custom_call.1} parent=39 // pred_fallthru
          _
        %s254 = sand.u32 %s45, 1
        %s255 = scalar_lea.sflag [#allocation3], %s254
        %s256 = sand.u32 %s45, 1
        %s257 = smul.addr %s256, 1024
        %s258 = scalar_lea.vmem [#allocation2], %s257
        %p259 = pneg %p58
        %p260 = pneg %p55
        %p261 = pneg %p79
        %p262 = pneg %p76
        %p263 = pneg %p100
        %p264 = pneg %p97
        %p265 = pneg %p121
        %p266 = pneg %p118
        %p267 = pneg %p142
        %p268 = pneg %p139
        %p269 = pneg %p170
        %p270 = pneg %p167
        %s271 = sand.u32 %s157, 1
        %s272 = scalar_lea.sflag [#allocation4], %s271
        %s273 = sand.u32 %s157, 1
        %s274 = smul.addr %s273, 1024
        %s275 = scalar_lea.vmem [#allocation7], %s274
        %s276 = smul.u32 2, %s28
        %s277 = smul.u32 2, %s28
        %v278 = vld [vmem:[%s245] sm:$0xff]
        %v279 = vld [vmem:[%s245 + $0x8] sm:$0xff]
        %v280 = vld [vmem:[%s245 + $0x10] sm:$0xff]
        %v281 = vld [vmem:[%s245 + $0x18] sm:$0xff]
        %v282 = vld [vmem:[%s245 + $0x20] sm:$0xff]
        %v283 = vld [vmem:[%s245 + $0x28] sm:$0xff]
        %v284 = vld [vmem:[%s245 + $0x30] sm:$0xff]
        %v285 = vld [vmem:[%s245 + $0x38] sm:$0xff]
        %v286 = vld [vmem:[%s245 + $0x40] sm:$0xff]
        %v287 = vld [vmem:[%s245 + $0x48] sm:$0xff]
        %v288 = vld [vmem:[%s245 + $0x50] sm:$0xff]
        %v289 = vld [vmem:[%s245 + $0x58] sm:$0xff]
        %v290 = vld [vmem:[%s245 + $0x60] sm:$0xff]
        %v291 = vld [vmem:[%s245 + $0x68] sm:$0xff]
        %v292 = vld [vmem:[%s245 + $0x70] sm:$0xff]
        %v293 = vld [vmem:[%s245 + $0x78] sm:$0xff]
        %v294 = vld [vmem:[%s245 + $0x80] sm:$0xff]
        %v295 = vld [vmem:[%s245 + $0x88] sm:$0xff]
        %v296 = vld [vmem:[%s245 + $0x90] sm:$0xff]
        %v297 = vld [vmem:[%s245 + $0x98] sm:$0xff]
        %v298 = vld [vmem:[%s245 + $0xa0] sm:$0xff]
        %v299 = vld [vmem:[%s245 + $0xa8] sm:$0xff]
        %v300 = vld [vmem:[%s245 + $0xb0] sm:$0xff]
        %v301 = vld [vmem:[%s245 + $0xb8] sm:$0xff]
        %v302 = vld [vmem:[%s245 + $0xc0] sm:$0xff]
        %v303 = vld [vmem:[%s245 + $0xc8] sm:$0xff]
        %v304 = vld [vmem:[%s245 + $0xd0] sm:$0xff]
        %v305 = vld [vmem:[%s245 + $0xd8] sm:$0xff]
        %v306 = vld [vmem:[%s245 + $0xe0] sm:$0xff]
        %v307 = vld [vmem:[%s245 + $0xe8] sm:$0xff]
        %v308 = vld [vmem:[%s245 + $0xf0] sm:$0xff]
        %v309 = vld [vmem:[%s245 + $0xf8] sm:$0xff]
        %v310 = vld [vmem:[%s245 + $0x100] sm:$0xff]
        %v311 = vld [vmem:[%s245 + $0x108] sm:$0xff]
        %v312 = vld [vmem:[%s245 + $0x110] sm:$0xff]
        %v313 = vld [vmem:[%s245 + $0x118] sm:$0xff]
        %v314 = vld [vmem:[%s245 + $0x120] sm:$0xff]
        %v315 = vld [vmem:[%s245 + $0x128] sm:$0xff]
        %v316 = vld [vmem:[%s245 + $0x130] sm:$0xff]
        %v317 = vld [vmem:[%s245 + $0x138] sm:$0xff]
        %v318 = vld [vmem:[%s245 + $0x140] sm:$0xff]
        %v319 = vld [vmem:[%s245 + $0x148] sm:$0xff]
        %v320 = vld [vmem:[%s245 + $0x150] sm:$0xff]
        %v321 = vld [vmem:[%s245 + $0x158] sm:$0xff]
        %v322 = vld [vmem:[%s245 + $0x160] sm:$0xff]
        %v323 = vld [vmem:[%s245 + $0x168] sm:$0xff]
        %v324 = vld [vmem:[%s245 + $0x170] sm:$0xff]
        %v325 = vld [vmem:[%s245 + $0x178] sm:$0xff]
        %v326 = vld [vmem:[%s245 + $0x180] sm:$0xff]
        %v327 = vld [vmem:[%s245 + $0x188] sm:$0xff]
        %v328 = vld [vmem:[%s245 + $0x190] sm:$0xff]
        %v329 = vld [vmem:[%s245 + $0x198] sm:$0xff]
        %v330 = vld [vmem:[%s245 + $0x1a0] sm:$0xff]
        %v331 = vld [vmem:[%s245 + $0x1a8] sm:$0xff]
        %v332 = vld [vmem:[%s245 + $0x1b0] sm:$0xff]
        %v333 = vld [vmem:[%s245 + $0x1b8] sm:$0xff]
        %v334 = vld [vmem:[%s245 + $0x1c0] sm:$0xff]
        %v335 = vld [vmem:[%s245 + $0x1c8] sm:$0xff]
        %v336 = vld [vmem:[%s245 + $0x1d0] sm:$0xff]
        %v337 = vld [vmem:[%s245 + $0x1d8] sm:$0xff]
        %v338 = vld [vmem:[%s245 + $0x1e0] sm:$0xff]
        %v339 = vld [vmem:[%s245 + $0x1e8] sm:$0xff]
        %v340 = vld [vmem:[%s245 + $0x1f0] sm:$0xff]
        %v341 = vld [vmem:[%s245 + $0x1f8] sm:$0xff]
        %v342 = vld [vmem:[%s245 + $0x200] sm:$0xff]
        %v343 = vld [vmem:[%s245 + $0x208] sm:$0xff]
        %v344 = vld [vmem:[%s245 + $0x210] sm:$0xff]
        %v345 = vld [vmem:[%s245 + $0x218] sm:$0xff]
        %v346 = vld [vmem:[%s245 + $0x220] sm:$0xff]
        %v347 = vld [vmem:[%s245 + $0x228] sm:$0xff]
        %v348 = vld [vmem:[%s245 + $0x230] sm:$0xff]
        %v349 = vld [vmem:[%s245 + $0x238] sm:$0xff]
        %v350 = vld [vmem:[%s245 + $0x240] sm:$0xff]
        %v351 = vld [vmem:[%s245 + $0x248] sm:$0xff]
        %v352 = vld [vmem:[%s245 + $0x250] sm:$0xff]
        %v353 = vld [vmem:[%s245 + $0x258] sm:$0xff]
        %v354 = vld [vmem:[%s245 + $0x260] sm:$0xff]
        %v355 = vld [vmem:[%s245 + $0x268] sm:$0xff]
        %v356 = vld [vmem:[%s245 + $0x270] sm:$0xff]
        %v357 = vld [vmem:[%s245 + $0x278] sm:$0xff]
        %v358 = vld [vmem:[%s245 + $0x280] sm:$0xff]
        %v359 = vld [vmem:[%s245 + $0x288] sm:$0xff]
        %v360 = vld [vmem:[%s245 + $0x290] sm:$0xff]
        %v361 = vld [vmem:[%s245 + $0x298] sm:$0xff]
        %v362 = vld [vmem:[%s245 + $0x2a0] sm:$0xff]
        %v363 = vld [vmem:[%s245 + $0x2a8] sm:$0xff]
        %v364 = vld [vmem:[%s245 + $0x2b0] sm:$0xff]
        %v365 = vld [vmem:[%s245 + $0x2b8] sm:$0xff]
        %v366 = vld [vmem:[%s245 + $0x2c0] sm:$0xff]
        %v367 = vld [vmem:[%s245 + $0x2c8] sm:$0xff]
        %v368 = vld [vmem:[%s245 + $0x2d0] sm:$0xff]
        %v369 = vld [vmem:[%s245 + $0x2d8] sm:$0xff]
        %v370 = vld [vmem:[%s245 + $0x2e0] sm:$0xff]
        %v371 = vld [vmem:[%s245 + $0x2e8] sm:$0xff]
        %v372 = vld [vmem:[%s245 + $0x2f0] sm:$0xff]
        %v373 = vld [vmem:[%s245 + $0x2f8] sm:$0xff]
        %v374 = vld [vmem:[%s245 + $0x300] sm:$0xff]
        %v375 = vld [vmem:[%s245 + $0x308] sm:$0xff]
        %v376 = vld [vmem:[%s245 + $0x310] sm:$0xff]
        %v377 = vld [vmem:[%s245 + $0x318] sm:$0xff]
        %v378 = vld [vmem:[%s245 + $0x320] sm:$0xff]
        %v379 = vld [vmem:[%s245 + $0x328] sm:$0xff]
        %v380 = vld [vmem:[%s245 + $0x330] sm:$0xff]
        %v381 = vld [vmem:[%s245 + $0x338] sm:$0xff]
        %v382 = vld [vmem:[%s245 + $0x340] sm:$0xff]
        %v383 = vld [vmem:[%s245 + $0x348] sm:$0xff]
        %v384 = vld [vmem:[%s245 + $0x350] sm:$0xff]
        %v385 = vld [vmem:[%s245 + $0x358] sm:$0xff]
        %v386 = vld [vmem:[%s245 + $0x360] sm:$0xff]
        %v387 = vld [vmem:[%s245 + $0x368] sm:$0xff]
        %v388 = vld [vmem:[%s245 + $0x370] sm:$0xff]
        %v389 = vld [vmem:[%s245 + $0x378] sm:$0xff]
        %v390 = vld [vmem:[%s245 + $0x380] sm:$0xff]
        %v391 = vld [vmem:[%s245 + $0x388] sm:$0xff]
        %v392 = vld [vmem:[%s245 + $0x390] sm:$0xff]
        %v393 = vld [vmem:[%s245 + $0x398] sm:$0xff]
        %v394 = vld [vmem:[%s245 + $0x3a0] sm:$0xff]
        %v395 = vld [vmem:[%s245 + $0x3a8] sm:$0xff]
        %v396 = vld [vmem:[%s245 + $0x3b0] sm:$0xff]
        %v397 = vld [vmem:[%s245 + $0x3b8] sm:$0xff]
        %v398 = vld [vmem:[%s245 + $0x3c0] sm:$0xff]
        %v399 = vld [vmem:[%s245 + $0x3c8] sm:$0xff]
        %v400 = vld [vmem:[%s245 + $0x3d0] sm:$0xff]
        %v401 = vld [vmem:[%s245 + $0x3d8] sm:$0xff]
        %v402 = vld [vmem:[%s245 + $0x3e0] sm:$0xff]
        %v403 = vld [vmem:[%s245 + $0x3e8] sm:$0xff]
        %v404 = vld [vmem:[%s245 + $0x3f0] sm:$0xff]
        %v405 = vld [vmem:[%s245 + $0x3f8] sm:$0xff]
        %v406 = vpack.c.bf16 %v280, %v278
        %v407 = vpack.c.bf16 %v281, %v279
        %v408 = vpack.c.bf16 %v284, %v282
        %v409 = vpack.c.bf16 %v285, %v283
        %v410 = vpack.c.bf16 %v288, %v286
        %v411 = vpack.c.bf16 %v289, %v287
        %v412 = vpack.c.bf16 %v292, %v290
        %v413 = vpack.c.bf16 %v293, %v291
        %v414 = vpack.c.bf16 %v296, %v294
        %v415 = vpack.c.bf16 %v297, %v295
        %v416 = vpack.c.bf16 %v300, %v298
        %v417 = vpack.c.bf16 %v301, %v299
        %v418 = vpack.c.bf16 %v304, %v302
        %v419 = vpack.c.bf16 %v305, %v303
        %v420 = vpack.c.bf16 %v308, %v306
        %v421 = vpack.c.bf16 %v309, %v307
        %v422 = vpack.c.bf16 %v312, %v310
        %v423 = vpack.c.bf16 %v313, %v311
        %v424 = vpack.c.bf16 %v316, %v314
        %v425 = vpack.c.bf16 %v317, %v315
        %v426 = vpack.c.bf16 %v320, %v318
        %v427 = vpack.c.bf16 %v321, %v319
        %v428 = vpack.c.bf16 %v324, %v322
        %v429 = vpack.c.bf16 %v325, %v323
        %v430 = vpack.c.bf16 %v328, %v326
        %v431 = vpack.c.bf16 %v329, %v327
        %v432 = vpack.c.bf16 %v332, %v330
        %v433 = vpack.c.bf16 %v333, %v331
        %v434 = vpack.c.bf16 %v336, %v334
        %v435 = vpack.c.bf16 %v337, %v335
        %v436 = vpack.c.bf16 %v340, %v338
        %v437 = vpack.c.bf16 %v341, %v339
        %v438 = vpack.c.bf16 %v344, %v342
        %v439 = vpack.c.bf16 %v345, %v343
        %v440 = vpack.c.bf16 %v348, %v346
        %v441 = vpack.c.bf16 %v349, %v347
        %v442 = vpack.c.bf16 %v352, %v350
        %v443 = vpack.c.bf16 %v353, %v351
        %v444 = vpack.c.bf16 %v356, %v354
        %v445 = vpack.c.bf16 %v357, %v355
        %v446 = vpack.c.bf16 %v360, %v358
        %v447 = vpack.c.bf16 %v361, %v359
        %v448 = vpack.c.bf16 %v364, %v362
        %v449 = vpack.c.bf16 %v365, %v363
        %v450 = vpack.c.bf16 %v368, %v366
        %v451 = vpack.c.bf16 %v369, %v367
        %v452 = vpack.c.bf16 %v372, %v370
        %v453 = vpack.c.bf16 %v373, %v371
        %v454 = vpack.c.bf16 %v376, %v374
        %v455 = vpack.c.bf16 %v377, %v375
        %v456 = vpack.c.bf16 %v380, %v378
        %v457 = vpack.c.bf16 %v381, %v379
        %v458 = vpack.c.bf16 %v384, %v382
        %v459 = vpack.c.bf16 %v385, %v383
        %v460 = vpack.c.bf16 %v388, %v386
        %v461 = vpack.c.bf16 %v389, %v387
        %v462 = vpack.c.bf16 %v392, %v390
        %v463 = vpack.c.bf16 %v393, %v391
        %v464 = vpack.c.bf16 %v396, %v394
        %v465 = vpack.c.bf16 %v397, %v395
        %v466 = vpack.c.bf16 %v400, %v398
        %v467 = vpack.c.bf16 %v401, %v399
        %v468 = vpack.c.bf16 %v404, %v402
        %v469 = vpack.c.bf16 %v405, %v403
        %v470 = vld [vmem:[%s1] sm:$0xff]
        %v471 = vld [vmem:[%s1 + $0x8] sm:$0xff]
        %v472 = vld [vmem:[%s1 + $0x10] sm:$0xff]
        %v473 = vld [vmem:[%s1 + $0x18] sm:$0xff]
        %v474 = vld [vmem:[%s1 + $0x20] sm:$0xff]
        %v475 = vld [vmem:[%s1 + $0x28] sm:$0xff]
        %v476 = vld [vmem:[%s1 + $0x30] sm:$0xff]
        %v477 = vld [vmem:[%s1 + $0x38] sm:$0xff]
        %v478 = vld [vmem:[%s1 + $0x40] sm:$0xff]
        %v479 = vld [vmem:[%s1 + $0x48] sm:$0xff]
        %v480 = vld [vmem:[%s1 + $0x50] sm:$0xff]
        %v481 = vld [vmem:[%s1 + $0x58] sm:$0xff]
        %v482 = vld [vmem:[%s1 + $0x60] sm:$0xff]
        %v483 = vld [vmem:[%s1 + $0x68] sm:$0xff]
        %v484 = vld [vmem:[%s1 + $0x70] sm:$0xff]
        %v485 = vld [vmem:[%s1 + $0x78] sm:$0xff]
        %v486 = vld [vmem:[%s1 + $0x80] sm:$0xff]
        %v487 = vld [vmem:[%s1 + $0x88] sm:$0xff]
        %v488 = vld [vmem:[%s1 + $0x90] sm:$0xff]
        %v489 = vld [vmem:[%s1 + $0x98] sm:$0xff]
        %v490 = vld [vmem:[%s1 + $0xa0] sm:$0xff]
        %v491 = vld [vmem:[%s1 + $0xa8] sm:$0xff]
        %v492 = vld [vmem:[%s1 + $0xb0] sm:$0xff]
        %v493 = vld [vmem:[%s1 + $0xb8] sm:$0xff]
        %v494 = vld [vmem:[%s1 + $0xc0] sm:$0xff]
        %v495 = vld [vmem:[%s1 + $0xc8] sm:$0xff]
        %v496 = vld [vmem:[%s1 + $0xd0] sm:$0xff]
        %v497 = vld [vmem:[%s1 + $0xd8] sm:$0xff]
        %v498 = vld [vmem:[%s1 + $0xe0] sm:$0xff]
        %v499 = vld [vmem:[%s1 + $0xe8] sm:$0xff]
        %v500 = vld [vmem:[%s1 + $0xf0] sm:$0xff]
        %v501 = vld [vmem:[%s1 + $0xf8] sm:$0xff]
        %v502 = vld [vmem:[%s1 + $0x100] sm:$0xff]
        %v503 = vld [vmem:[%s1 + $0x108] sm:$0xff]
        %v504 = vld [vmem:[%s1 + $0x110] sm:$0xff]
        %v505 = vld [vmem:[%s1 + $0x118] sm:$0xff]
        %v506 = vld [vmem:[%s1 + $0x120] sm:$0xff]
        %v507 = vld [vmem:[%s1 + $0x128] sm:$0xff]
        %v508 = vld [vmem:[%s1 + $0x130] sm:$0xff]
        %v509 = vld [vmem:[%s1 + $0x138] sm:$0xff]
        %v510 = vld [vmem:[%s1 + $0x140] sm:$0xff]
        %v511 = vld [vmem:[%s1 + $0x148] sm:$0xff]
        %v512 = vld [vmem:[%s1 + $0x150] sm:$0xff]
        %v513 = vld [vmem:[%s1 + $0x158] sm:$0xff]
        %v514 = vld [vmem:[%s1 + $0x160] sm:$0xff]
        %v515 = vld [vmem:[%s1 + $0x168] sm:$0xff]
        %v516 = vld [vmem:[%s1 + $0x170] sm:$0xff]
        %v517 = vld [vmem:[%s1 + $0x178] sm:$0xff]
        %v518 = vld [vmem:[%s1 + $0x180] sm:$0xff]
        %v519 = vld [vmem:[%s1 + $0x188] sm:$0xff]
        %v520 = vld [vmem:[%s1 + $0x190] sm:$0xff]
        %v521 = vld [vmem:[%s1 + $0x198] sm:$0xff]
        %v522 = vld [vmem:[%s1 + $0x1a0] sm:$0xff]
        %v523 = vld [vmem:[%s1 + $0x1a8] sm:$0xff]
        %v524 = vld [vmem:[%s1 + $0x1b0] sm:$0xff]
        %v525 = vld [vmem:[%s1 + $0x1b8] sm:$0xff]
        %v526 = vld [vmem:[%s1 + $0x1c0] sm:$0xff]
        %v527 = vld [vmem:[%s1 + $0x1c8] sm:$0xff]
        %v528 = vld [vmem:[%s1 + $0x1d0] sm:$0xff]
        %v529 = vld [vmem:[%s1 + $0x1d8] sm:$0xff]
        %v530 = vld [vmem:[%s1 + $0x1e0] sm:$0xff]
        %v531 = vld [vmem:[%s1 + $0x1e8] sm:$0xff]
        %v532 = vld [vmem:[%s1 + $0x1f0] sm:$0xff]
        %v533 = vld [vmem:[%s1 + $0x1f8] sm:$0xff]
        %v534 = vld [vmem:[%s1 + $0x200] sm:$0xff]
        %v535 = vld [vmem:[%s1 + $0x208] sm:$0xff]
        %v536 = vld [vmem:[%s1 + $0x210] sm:$0xff]
        %v537 = vld [vmem:[%s1 + $0x218] sm:$0xff]
        %v538 = vld [vmem:[%s1 + $0x220] sm:$0xff]
        %v539 = vld [vmem:[%s1 + $0x228] sm:$0xff]
        %v540 = vld [vmem:[%s1 + $0x230] sm:$0xff]
        %v541 = vld [vmem:[%s1 + $0x238] sm:$0xff]
        %v542 = vld [vmem:[%s1 + $0x240] sm:$0xff]
        %v543 = vld [vmem:[%s1 + $0x248] sm:$0xff]
        %v544 = vld [vmem:[%s1 + $0x250] sm:$0xff]
        %v545 = vld [vmem:[%s1 + $0x258] sm:$0xff]
        %v546 = vld [vmem:[%s1 + $0x260] sm:$0xff]
        %v547 = vld [vmem:[%s1 + $0x268] sm:$0xff]
        %v548 = vld [vmem:[%s1 + $0x270] sm:$0xff]
        %v549 = vld [vmem:[%s1 + $0x278] sm:$0xff]
        %v550 = vld [vmem:[%s1 + $0x280] sm:$0xff]
        %v551 = vld [vmem:[%s1 + $0x288] sm:$0xff]
        %v552 = vld [vmem:[%s1 + $0x290] sm:$0xff]
        %v553 = vld [vmem:[%s1 + $0x298] sm:$0xff]
        %v554 = vld [vmem:[%s1 + $0x2a0] sm:$0xff]
        %v555 = vld [vmem:[%s1 + $0x2a8] sm:$0xff]
        %v556 = vld [vmem:[%s1 + $0x2b0] sm:$0xff]
        %v557 = vld [vmem:[%s1 + $0x2b8] sm:$0xff]
        %v558 = vld [vmem:[%s1 + $0x2c0] sm:$0xff]
        %v559 = vld [vmem:[%s1 + $0x2c8] sm:$0xff]
        %v560 = vld [vmem:[%s1 + $0x2d0] sm:$0xff]
        %v561 = vld [vmem:[%s1 + $0x2d8] sm:$0xff]
        %v562 = vld [vmem:[%s1 + $0x2e0] sm:$0xff]
        %v563 = vld [vmem:[%s1 + $0x2e8] sm:$0xff]
        %v564 = vld [vmem:[%s1 + $0x2f0] sm:$0xff]
        %v565 = vld [vmem:[%s1 + $0x2f8] sm:$0xff]
        %v566 = vld [vmem:[%s1 + $0x300] sm:$0xff]
        %v567 = vld [vmem:[%s1 + $0x308] sm:$0xff]
        %v568 = vld [vmem:[%s1 + $0x310] sm:$0xff]
        %v569 = vld [vmem:[%s1 + $0x318] sm:$0xff]
        %v570 = vld [vmem:[%s1 + $0x320] sm:$0xff]
        %v571 = vld [vmem:[%s1 + $0x328] sm:$0xff]
        %v572 = vld [vmem:[%s1 + $0x330] sm:$0xff]
        %v573 = vld [vmem:[%s1 + $0x338] sm:$0xff]
        %v574 = vld [vmem:[%s1 + $0x340] sm:$0xff]
        %v575 = vld [vmem:[%s1 + $0x348] sm:$0xff]
        %v576 = vld [vmem:[%s1 + $0x350] sm:$0xff]
        %v577 = vld [vmem:[%s1 + $0x358] sm:$0xff]
        %v578 = vld [vmem:[%s1 + $0x360] sm:$0xff]
        %v579 = vld [vmem:[%s1 + $0x368] sm:$0xff]
        %v580 = vld [vmem:[%s1 + $0x370] sm:$0xff]
        %v581 = vld [vmem:[%s1 + $0x378] sm:$0xff]
        %v582 = vld [vmem:[%s1 + $0x380] sm:$0xff]
        %v583 = vld [vmem:[%s1 + $0x388] sm:$0xff]
        %v584 = vld [vmem:[%s1 + $0x390] sm:$0xff]
        %v585 = vld [vmem:[%s1 + $0x398] sm:$0xff]
        %v586 = vld [vmem:[%s1 + $0x3a0] sm:$0xff]
        %v587 = vld [vmem:[%s1 + $0x3a8] sm:$0xff]
        %v588 = vld [vmem:[%s1 + $0x3b0] sm:$0xff]
        %v589 = vld [vmem:[%s1 + $0x3b8] sm:$0xff]
        %v590 = vld [vmem:[%s1 + $0x3c0] sm:$0xff]
        %v591 = vld [vmem:[%s1 + $0x3c8] sm:$0xff]
        %v592 = vld [vmem:[%s1 + $0x3d0] sm:$0xff]
        %v593 = vld [vmem:[%s1 + $0x3d8] sm:$0xff]
        %v594 = vld [vmem:[%s1 + $0x3e0] sm:$0xff]
        %v595 = vld [vmem:[%s1 + $0x3e8] sm:$0xff]
        %v596 = vld [vmem:[%s1 + $0x3f0] sm:$0xff]
        %v597 = vld [vmem:[%s1 + $0x3f8] sm:$0xff]
        %v598 = vld [vmem:[%s2] sm:$0xff]
        %v599 = vld [vmem:[%s2 + $0x8] sm:$0xff]
        %v600 = vld [vmem:[%s2 + $0x10] sm:$0xff]
        %v601 = vld [vmem:[%s2 + $0x18] sm:$0xff]
        %v602 = vld [vmem:[%s2 + $0x20] sm:$0xff]
        %v603 = vld [vmem:[%s2 + $0x28] sm:$0xff]
        %v604 = vld [vmem:[%s2 + $0x30] sm:$0xff]
        %v605 = vld [vmem:[%s2 + $0x38] sm:$0xff]
        %v606 = vld [vmem:[%s2 + $0x40] sm:$0xff]
        %v607 = vld [vmem:[%s2 + $0x48] sm:$0xff]
        %v608 = vld [vmem:[%s2 + $0x50] sm:$0xff]
        %v609 = vld [vmem:[%s2 + $0x58] sm:$0xff]
        %v610 = vld [vmem:[%s2 + $0x60] sm:$0xff]
        %v611 = vld [vmem:[%s2 + $0x68] sm:$0xff]
        %v612 = vld [vmem:[%s2 + $0x70] sm:$0xff]
        %v613 = vld [vmem:[%s2 + $0x78] sm:$0xff]
        %v614 = vld [vmem:[%s2 + $0x80] sm:$0xff]
        %v615 = vld [vmem:[%s2 + $0x88] sm:$0xff]
        %v616 = vld [vmem:[%s2 + $0x90] sm:$0xff]
        %v617 = vld [vmem:[%s2 + $0x98] sm:$0xff]
        %v618 = vld [vmem:[%s2 + $0xa0] sm:$0xff]
        %v619 = vld [vmem:[%s2 + $0xa8] sm:$0xff]
        %v620 = vld [vmem:[%s2 + $0xb0] sm:$0xff]
        %v621 = vld [vmem:[%s2 + $0xb8] sm:$0xff]
        %v622 = vld [vmem:[%s2 + $0xc0] sm:$0xff]
        %v623 = vld [vmem:[%s2 + $0xc8] sm:$0xff]
        %v624 = vld [vmem:[%s2 + $0xd0] sm:$0xff]
        %v625 = vld [vmem:[%s2 + $0xd8] sm:$0xff]
        %v626 = vld [vmem:[%s2 + $0xe0] sm:$0xff]
        %v627 = vld [vmem:[%s2 + $0xe8] sm:$0xff]
        %v628 = vld [vmem:[%s2 + $0xf0] sm:$0xff]
        %v629 = vld [vmem:[%s2 + $0xf8] sm:$0xff]
        %v630 = vld [vmem:[%s2 + $0x100] sm:$0xff]
        %v631 = vld [vmem:[%s2 + $0x108] sm:$0xff]
        %v632 = vld [vmem:[%s2 + $0x110] sm:$0xff]
        %v633 = vld [vmem:[%s2 + $0x118] sm:$0xff]
        %v634 = vld [vmem:[%s2 + $0x120] sm:$0xff]
        %v635 = vld [vmem:[%s2 + $0x128] sm:$0xff]
        %v636 = vld [vmem:[%s2 + $0x130] sm:$0xff]
        %v637 = vld [vmem:[%s2 + $0x138] sm:$0xff]
        %v638 = vld [vmem:[%s2 + $0x140] sm:$0xff]
        %v639 = vld [vmem:[%s2 + $0x148] sm:$0xff]
        %v640 = vld [vmem:[%s2 + $0x150] sm:$0xff]
        %v641 = vld [vmem:[%s2 + $0x158] sm:$0xff]
        %v642 = vld [vmem:[%s2 + $0x160] sm:$0xff]
        %v643 = vld [vmem:[%s2 + $0x168] sm:$0xff]
        %v644 = vld [vmem:[%s2 + $0x170] sm:$0xff]
        %v645 = vld [vmem:[%s2 + $0x178] sm:$0xff]
        %v646 = vld [vmem:[%s2 + $0x180] sm:$0xff]
        %v647 = vld [vmem:[%s2 + $0x188] sm:$0xff]
        %v648 = vld [vmem:[%s2 + $0x190] sm:$0xff]
        %v649 = vld [vmem:[%s2 + $0x198] sm:$0xff]
        %v650 = vld [vmem:[%s2 + $0x1a0] sm:$0xff]
        %v651 = vld [vmem:[%s2 + $0x1a8] sm:$0xff]
        %v652 = vld [vmem:[%s2 + $0x1b0] sm:$0xff]
        %v653 = vld [vmem:[%s2 + $0x1b8] sm:$0xff]
        %v654 = vld [vmem:[%s2 + $0x1c0] sm:$0xff]
        %v655 = vld [vmem:[%s2 + $0x1c8] sm:$0xff]
        %v656 = vld [vmem:[%s2 + $0x1d0] sm:$0xff]
        %v657 = vld [vmem:[%s2 + $0x1d8] sm:$0xff]
        %v658 = vld [vmem:[%s2 + $0x1e0] sm:$0xff]
        %v659 = vld [vmem:[%s2 + $0x1e8] sm:$0xff]
        %v660 = vld [vmem:[%s2 + $0x1f0] sm:$0xff]
        %v661 = vld [vmem:[%s2 + $0x1f8] sm:$0xff]
        %663 = vset.pattern.permute.xlu0 0
        %664 = vperm.xlu0 %663, %v598
        %v665 = vpop.permute.xlu0 %664
        %668 = vset.pattern.permute.xlu0 0
        %669 = vperm.xlu0 %668, %v599
        %v670 = vpop.permute.xlu0 %669
        %673 = vset.pattern.permute.xlu0 0
        %674 = vperm.xlu0 %673, %v600
        %v675 = vpop.permute.xlu0 %674
        %678 = vset.pattern.permute.xlu0 0
        %679 = vperm.xlu0 %678, %v601
        %v680 = vpop.permute.xlu0 %679
        %683 = vset.pattern.permute.xlu0 0
        %684 = vperm.xlu0 %683, %v602
        %v685 = vpop.permute.xlu0 %684
        %688 = vset.pattern.permute.xlu0 0
        %689 = vperm.xlu0 %688, %v603
        %v690 = vpop.permute.xlu0 %689
        %693 = vset.pattern.permute.xlu0 0
        %694 = vperm.xlu0 %693, %v604
        %v695 = vpop.permute.xlu0 %694
        %698 = vset.pattern.permute.xlu0 0
        %699 = vperm.xlu0 %698, %v605
        %v700 = vpop.permute.xlu0 %699
        %703 = vset.pattern.permute.xlu0 0
        %704 = vperm.xlu0 %703, %v606
        %v705 = vpop.permute.xlu0 %704
        %708 = vset.pattern.permute.xlu0 0
        %709 = vperm.xlu0 %708, %v607
        %v710 = vpop.permute.xlu0 %709
        %713 = vset.pattern.permute.xlu0 0
        %714 = vperm.xlu0 %713, %v608
        %v715 = vpop.permute.xlu0 %714
        %718 = vset.pattern.permute.xlu0 0
        %719 = vperm.xlu0 %718, %v609
        %v720 = vpop.permute.xlu0 %719
        %723 = vset.pattern.permute.xlu0 0
        %724 = vperm.xlu0 %723, %v610
        %v725 = vpop.permute.xlu0 %724
        %728 = vset.pattern.permute.xlu0 0
        %729 = vperm.xlu0 %728, %v611
        %v730 = vpop.permute.xlu0 %729
        %733 = vset.pattern.permute.xlu0 0
        %734 = vperm.xlu0 %733, %v612
        %v735 = vpop.permute.xlu0 %734
        %738 = vset.pattern.permute.xlu0 0
        %739 = vperm.xlu0 %738, %v613
        %v740 = vpop.permute.xlu0 %739
        %743 = vset.pattern.permute.xlu0 0
        %744 = vperm.xlu0 %743, %v614
        %v745 = vpop.permute.xlu0 %744
        %748 = vset.pattern.permute.xlu0 0
        %749 = vperm.xlu0 %748, %v615
        %v750 = vpop.permute.xlu0 %749
        %753 = vset.pattern.permute.xlu0 0
        %754 = vperm.xlu0 %753, %v616
        %v755 = vpop.permute.xlu0 %754
        %758 = vset.pattern.permute.xlu0 0
        %759 = vperm.xlu0 %758, %v617
        %v760 = vpop.permute.xlu0 %759
        %763 = vset.pattern.permute.xlu0 0
        %764 = vperm.xlu0 %763, %v618
        %v765 = vpop.permute.xlu0 %764
        %768 = vset.pattern.permute.xlu0 0
        %769 = vperm.xlu0 %768, %v619
        %v770 = vpop.permute.xlu0 %769
        %773 = vset.pattern.permute.xlu0 0
        %774 = vperm.xlu0 %773, %v620
        %v775 = vpop.permute.xlu0 %774
        %778 = vset.pattern.permute.xlu0 0
        %779 = vperm.xlu0 %778, %v621
        %v780 = vpop.permute.xlu0 %779
        %783 = vset.pattern.permute.xlu0 0
        %784 = vperm.xlu0 %783, %v622
        %v785 = vpop.permute.xlu0 %784
        %788 = vset.pattern.permute.xlu0 0
        %789 = vperm.xlu0 %788, %v623
        %v790 = vpop.permute.xlu0 %789
        %793 = vset.pattern.permute.xlu0 0
        %794 = vperm.xlu0 %793, %v624
        %v795 = vpop.permute.xlu0 %794
        %798 = vset.pattern.permute.xlu0 0
        %799 = vperm.xlu0 %798, %v625
        %v800 = vpop.permute.xlu0 %799
        %803 = vset.pattern.permute.xlu0 0
        %804 = vperm.xlu0 %803, %v626
        %v805 = vpop.permute.xlu0 %804
        %808 = vset.pattern.permute.xlu0 0
        %809 = vperm.xlu0 %808, %v627
        %v810 = vpop.permute.xlu0 %809
        %813 = vset.pattern.permute.xlu0 0
        %814 = vperm.xlu0 %813, %v628
        %v815 = vpop.permute.xlu0 %814
        %818 = vset.pattern.permute.xlu0 0
        %819 = vperm.xlu0 %818, %v629
        %v820 = vpop.permute.xlu0 %819
        %823 = vset.pattern.permute.xlu0 0
        %824 = vperm.xlu0 %823, %v630
        %v825 = vpop.permute.xlu0 %824
        %828 = vset.pattern.permute.xlu0 0
        %829 = vperm.xlu0 %828, %v631
        %v830 = vpop.permute.xlu0 %829
        %833 = vset.pattern.permute.xlu0 0
        %834 = vperm.xlu0 %833, %v632
        %v835 = vpop.permute.xlu0 %834
        %838 = vset.pattern.permute.xlu0 0
        %839 = vperm.xlu0 %838, %v633
        %v840 = vpop.permute.xlu0 %839
        %843 = vset.pattern.permute.xlu0 0
        %844 = vperm.xlu0 %843, %v634
        %v845 = vpop.permute.xlu0 %844
        %848 = vset.pattern.permute.xlu0 0
        %849 = vperm.xlu0 %848, %v635
        %v850 = vpop.permute.xlu0 %849
        %853 = vset.pattern.permute.xlu0 0
        %854 = vperm.xlu0 %853, %v636
        %v855 = vpop.permute.xlu0 %854
        %858 = vset.pattern.permute.xlu0 0
        %859 = vperm.xlu0 %858, %v637
        %v860 = vpop.permute.xlu0 %859
        %863 = vset.pattern.permute.xlu0 0
        %864 = vperm.xlu0 %863, %v638
        %v865 = vpop.permute.xlu0 %864
        %868 = vset.pattern.permute.xlu0 0
        %869 = vperm.xlu0 %868, %v639
        %v870 = vpop.permute.xlu0 %869
        %873 = vset.pattern.permute.xlu0 0
        %874 = vperm.xlu0 %873, %v640
        %v875 = vpop.permute.xlu0 %874
        %878 = vset.pattern.permute.xlu0 0
        %879 = vperm.xlu0 %878, %v641
        %v880 = vpop.permute.xlu0 %879
        %883 = vset.pattern.permute.xlu0 0
        %884 = vperm.xlu0 %883, %v642
        %v885 = vpop.permute.xlu0 %884
        %888 = vset.pattern.permute.xlu0 0
        %889 = vperm.xlu0 %888, %v643
        %v890 = vpop.permute.xlu0 %889
        %893 = vset.pattern.permute.xlu0 0
        %894 = vperm.xlu0 %893, %v644
        %v895 = vpop.permute.xlu0 %894
        %898 = vset.pattern.permute.xlu0 0
        %899 = vperm.xlu0 %898, %v645
        %v900 = vpop.permute.xlu0 %899
        %903 = vset.pattern.permute.xlu0 0
        %904 = vperm.xlu0 %903, %v646
        %v905 = vpop.permute.xlu0 %904
        %908 = vset.pattern.permute.xlu0 0
        %909 = vperm.xlu0 %908, %v647
        %v910 = vpop.permute.xlu0 %909
        %913 = vset.pattern.permute.xlu0 0
        %914 = vperm.xlu0 %913, %v648
        %v915 = vpop.permute.xlu0 %914
        %918 = vset.pattern.permute.xlu0 0
        %919 = vperm.xlu0 %918, %v649
        %v920 = vpop.permute.xlu0 %919
        %923 = vset.pattern.permute.xlu0 0
        %924 = vperm.xlu0 %923, %v650
        %v925 = vpop.permute.xlu0 %924
        %928 = vset.pattern.permute.xlu0 0
        %929 = vperm.xlu0 %928, %v651
        %v930 = vpop.permute.xlu0 %929
        %933 = vset.pattern.permute.xlu0 0
        %934 = vperm.xlu0 %933, %v652
        %v935 = vpop.permute.xlu0 %934
        %938 = vset.pattern.permute.xlu0 0
        %939 = vperm.xlu0 %938, %v653
        %v940 = vpop.permute.xlu0 %939
        %943 = vset.pattern.permute.xlu0 0
        %944 = vperm.xlu0 %943, %v654
        %v945 = vpop.permute.xlu0 %944
        %948 = vset.pattern.permute.xlu0 0
        %949 = vperm.xlu0 %948, %v655
        %v950 = vpop.permute.xlu0 %949
        %953 = vset.pattern.permute.xlu0 0
        %954 = vperm.xlu0 %953, %v656
        %v955 = vpop.permute.xlu0 %954
        %958 = vset.pattern.permute.xlu0 0
        %959 = vperm.xlu0 %958, %v657
        %v960 = vpop.permute.xlu0 %959
        %963 = vset.pattern.permute.xlu0 0
        %964 = vperm.xlu0 %963, %v658
        %v965 = vpop.permute.xlu0 %964
        %968 = vset.pattern.permute.xlu0 0
        %969 = vperm.xlu0 %968, %v659
        %v970 = vpop.permute.xlu0 %969
        %973 = vset.pattern.permute.xlu0 0
        %974 = vperm.xlu0 %973, %v660
        %v975 = vpop.permute.xlu0 %974
        %978 = vset.pattern.permute.xlu0 0
        %979 = vperm.xlu0 %978, %v661
        %v980 = vpop.permute.xlu0 %979
        %v1110 = vunpack.c.l.b16 %v470
        %v1111 = vunpack.c.h.b16 %v470
        %v1112 = vunpack.c.l.b16 %v471
        %v1113 = vunpack.c.h.b16 %v471
        %v1114 = vunpack.c.l.b16 %v472
        %v1115 = vunpack.c.h.b16 %v472
        %v1116 = vunpack.c.l.b16 %v473
        %v1117 = vunpack.c.h.b16 %v473
        %v1118 = vunpack.c.l.b16 %v474
        %v1119 = vunpack.c.h.b16 %v474
        %v1120 = vunpack.c.l.b16 %v475
        %v1121 = vunpack.c.h.b16 %v475
        %v1122 = vunpack.c.l.b16 %v476
        %v1123 = vunpack.c.h.b16 %v476
        %v1124 = vunpack.c.l.b16 %v477
        %v1125 = vunpack.c.h.b16 %v477
        %v1126 = vunpack.c.l.b16 %v478
        %v1127 = vunpack.c.h.b16 %v478
        %v1128 = vunpack.c.l.b16 %v479
        %v1129 = vunpack.c.h.b16 %v479
        %v1130 = vunpack.c.l.b16 %v480
        %v1131 = vunpack.c.h.b16 %v480
        %v1132 = vunpack.c.l.b16 %v481
        %v1133 = vunpack.c.h.b16 %v481
        %v1134 = vunpack.c.l.b16 %v482
        %v1135 = vunpack.c.h.b16 %v482
        %v1136 = vunpack.c.l.b16 %v483
        %v1137 = vunpack.c.h.b16 %v483
        %v1138 = vunpack.c.l.b16 %v484
        %v1139 = vunpack.c.h.b16 %v484
        %v1140 = vunpack.c.l.b16 %v485
        %v1141 = vunpack.c.h.b16 %v485
        %v1142 = vunpack.c.l.b16 %v486
        %v1143 = vunpack.c.h.b16 %v486
        %v1144 = vunpack.c.l.b16 %v487
        %v1145 = vunpack.c.h.b16 %v487
        %v1146 = vunpack.c.l.b16 %v488
        %v1147 = vunpack.c.h.b16 %v488
        %v1148 = vunpack.c.l.b16 %v489
        %v1149 = vunpack.c.h.b16 %v489
        %v1150 = vunpack.c.l.b16 %v490
        %v1151 = vunpack.c.h.b16 %v490
        %v1152 = vunpack.c.l.b16 %v491
        %v1153 = vunpack.c.h.b16 %v491
        %v1154 = vunpack.c.l.b16 %v492
        %v1155 = vunpack.c.h.b16 %v492
        %v1156 = vunpack.c.l.b16 %v493
        %v1157 = vunpack.c.h.b16 %v493
        %v1158 = vunpack.c.l.b16 %v494
        %v1159 = vunpack.c.h.b16 %v494
        %v1160 = vunpack.c.l.b16 %v495
        %v1161 = vunpack.c.h.b16 %v495
        %v1162 = vunpack.c.l.b16 %v496
        %v1163 = vunpack.c.h.b16 %v496
        %v1164 = vunpack.c.l.b16 %v497
        %v1165 = vunpack.c.h.b16 %v497
        %v1166 = vunpack.c.l.b16 %v498
        %v1167 = vunpack.c.h.b16 %v498
        %v1168 = vunpack.c.l.b16 %v499
        %v1169 = vunpack.c.h.b16 %v499
        %v1170 = vunpack.c.l.b16 %v500
        %v1171 = vunpack.c.h.b16 %v500
        %v1172 = vunpack.c.l.b16 %v501
        %v1173 = vunpack.c.h.b16 %v501
        %v1174 = vunpack.c.l.b16 %v502
        %v1175 = vunpack.c.h.b16 %v502
        %v1176 = vunpack.c.l.b16 %v503
        %v1177 = vunpack.c.h.b16 %v503
        %v1178 = vunpack.c.l.b16 %v504
        %v1179 = vunpack.c.h.b16 %v504
        %v1180 = vunpack.c.l.b16 %v505
        %v1181 = vunpack.c.h.b16 %v505
        %v1182 = vunpack.c.l.b16 %v506
        %v1183 = vunpack.c.h.b16 %v506
        %v1184 = vunpack.c.l.b16 %v507
        %v1185 = vunpack.c.h.b16 %v507
        %v1186 = vunpack.c.l.b16 %v508
        %v1187 = vunpack.c.h.b16 %v508
        %v1188 = vunpack.c.l.b16 %v509
        %v1189 = vunpack.c.h.b16 %v509
        %v1190 = vunpack.c.l.b16 %v510
        %v1191 = vunpack.c.h.b16 %v510
        %v1192 = vunpack.c.l.b16 %v511
        %v1193 = vunpack.c.h.b16 %v511
        %v1194 = vunpack.c.l.b16 %v512
        %v1195 = vunpack.c.h.b16 %v512
        %v1196 = vunpack.c.l.b16 %v513
        %v1197 = vunpack.c.h.b16 %v513
        %v1198 = vunpack.c.l.b16 %v514
        %v1199 = vunpack.c.h.b16 %v514
        %v1200 = vunpack.c.l.b16 %v515
        %v1201 = vunpack.c.h.b16 %v515
        %v1202 = vunpack.c.l.b16 %v516
        %v1203 = vunpack.c.h.b16 %v516
        %v1204 = vunpack.c.l.b16 %v517
        %v1205 = vunpack.c.h.b16 %v517
        %v1206 = vunpack.c.l.b16 %v518
        %v1207 = vunpack.c.h.b16 %v518
        %v1208 = vunpack.c.l.b16 %v519
        %v1209 = vunpack.c.h.b16 %v519
        %v1210 = vunpack.c.l.b16 %v520
        %v1211 = vunpack.c.h.b16 %v520
        %v1212 = vunpack.c.l.b16 %v521
        %v1213 = vunpack.c.h.b16 %v521
        %v1214 = vunpack.c.l.b16 %v522
        %v1215 = vunpack.c.h.b16 %v522
        %v1216 = vunpack.c.l.b16 %v523
        %v1217 = vunpack.c.h.b16 %v523
        %v1218 = vunpack.c.l.b16 %v524
        %v1219 = vunpack.c.h.b16 %v524
        %v1220 = vunpack.c.l.b16 %v525
        %v1221 = vunpack.c.h.b16 %v525
        %v1222 = vunpack.c.l.b16 %v526
        %v1223 = vunpack.c.h.b16 %v526
        %v1224 = vunpack.c.l.b16 %v527
        %v1225 = vunpack.c.h.b16 %v527
        %v1226 = vunpack.c.l.b16 %v528
        %v1227 = vunpack.c.h.b16 %v528
        %v1228 = vunpack.c.l.b16 %v529
        %v1229 = vunpack.c.h.b16 %v529
        %v1230 = vunpack.c.l.b16 %v530
        %v1231 = vunpack.c.h.b16 %v530
        %v1232 = vunpack.c.l.b16 %v531
        %v1233 = vunpack.c.h.b16 %v531
        %v1234 = vunpack.c.l.b16 %v532
        %v1235 = vunpack.c.h.b16 %v532
        %v1236 = vunpack.c.l.b16 %v533
        %v1237 = vunpack.c.h.b16 %v533
        %v1238 = vunpack.c.l.b16 %v534
        %v1239 = vunpack.c.h.b16 %v534
        %v1240 = vunpack.c.l.b16 %v535
        %v1241 = vunpack.c.h.b16 %v535
        %v1242 = vunpack.c.l.b16 %v536
        %v1243 = vunpack.c.h.b16 %v536
        %v1244 = vunpack.c.l.b16 %v537
        %v1245 = vunpack.c.h.b16 %v537
        %v1246 = vunpack.c.l.b16 %v538
        %v1247 = vunpack.c.h.b16 %v538
        %v1248 = vunpack.c.l.b16 %v539
        %v1249 = vunpack.c.h.b16 %v539
        %v1250 = vunpack.c.l.b16 %v540
        %v1251 = vunpack.c.h.b16 %v540
        %v1252 = vunpack.c.l.b16 %v541
        %v1253 = vunpack.c.h.b16 %v541
        %v1254 = vunpack.c.l.b16 %v542
        %v1255 = vunpack.c.h.b16 %v542
        %v1256 = vunpack.c.l.b16 %v543
        %v1257 = vunpack.c.h.b16 %v543
        %v1258 = vunpack.c.l.b16 %v544
        %v1259 = vunpack.c.h.b16 %v544
        %v1260 = vunpack.c.l.b16 %v545
        %v1261 = vunpack.c.h.b16 %v545
        %v1262 = vunpack.c.l.b16 %v546
        %v1263 = vunpack.c.h.b16 %v546
        %v1264 = vunpack.c.l.b16 %v547
        %v1265 = vunpack.c.h.b16 %v547
        %v1266 = vunpack.c.l.b16 %v548
        %v1267 = vunpack.c.h.b16 %v548
        %v1268 = vunpack.c.l.b16 %v549
        %v1269 = vunpack.c.h.b16 %v549
        %v1270 = vunpack.c.l.b16 %v550
        %v1271 = vunpack.c.h.b16 %v550
        %v1272 = vunpack.c.l.b16 %v551
        %v1273 = vunpack.c.h.b16 %v551
        %v1274 = vunpack.c.l.b16 %v552
        %v1275 = vunpack.c.h.b16 %v552
        %v1276 = vunpack.c.l.b16 %v553
        %v1277 = vunpack.c.h.b16 %v553
        %v1278 = vunpack.c.l.b16 %v554
        %v1279 = vunpack.c.h.b16 %v554
        %v1280 = vunpack.c.l.b16 %v555
        %v1281 = vunpack.c.h.b16 %v555
        %v1282 = vunpack.c.l.b16 %v556
        %v1283 = vunpack.c.h.b16 %v556
        %v1284 = vunpack.c.l.b16 %v557
        %v1285 = vunpack.c.h.b16 %v557
        %v1286 = vunpack.c.l.b16 %v558
        %v1287 = vunpack.c.h.b16 %v558
        %v1288 = vunpack.c.l.b16 %v559
        %v1289 = vunpack.c.h.b16 %v559
        %v1290 = vunpack.c.l.b16 %v560
        %v1291 = vunpack.c.h.b16 %v560
        %v1292 = vunpack.c.l.b16 %v561
        %v1293 = vunpack.c.h.b16 %v561
        %v1294 = vunpack.c.l.b16 %v562
        %v1295 = vunpack.c.h.b16 %v562
        %v1296 = vunpack.c.l.b16 %v563
        %v1297 = vunpack.c.h.b16 %v563
        %v1298 = vunpack.c.l.b16 %v564
        %v1299 = vunpack.c.h.b16 %v564
        %v1300 = vunpack.c.l.b16 %v565
        %v1301 = vunpack.c.h.b16 %v565
        %v1302 = vunpack.c.l.b16 %v566
        %v1303 = vunpack.c.h.b16 %v566
        %v1304 = vunpack.c.l.b16 %v567
        %v1305 = vunpack.c.h.b16 %v567
        %v1306 = vunpack.c.l.b16 %v568
        %v1307 = vunpack.c.h.b16 %v568
        %v1308 = vunpack.c.l.b16 %v569
        %v1309 = vunpack.c.h.b16 %v569
        %v1310 = vunpack.c.l.b16 %v570
        %v1311 = vunpack.c.h.b16 %v570
        %v1312 = vunpack.c.l.b16 %v571
        %v1313 = vunpack.c.h.b16 %v571
        %v1314 = vunpack.c.l.b16 %v572
        %v1315 = vunpack.c.h.b16 %v572
        %v1316 = vunpack.c.l.b16 %v573
        %v1317 = vunpack.c.h.b16 %v573
        %v1318 = vunpack.c.l.b16 %v574
        %v1319 = vunpack.c.h.b16 %v574
        %v1320 = vunpack.c.l.b16 %v575
        %v1321 = vunpack.c.h.b16 %v575
        %v1322 = vunpack.c.l.b16 %v576
        %v1323 = vunpack.c.h.b16 %v576
        %v1324 = vunpack.c.l.b16 %v577
        %v1325 = vunpack.c.h.b16 %v577
        %v1326 = vunpack.c.l.b16 %v578
        %v1327 = vunpack.c.h.b16 %v578
        %v1328 = vunpack.c.l.b16 %v579
        %v1329 = vunpack.c.h.b16 %v579
        %v1330 = vunpack.c.l.b16 %v580
        %v1331 = vunpack.c.h.b16 %v580
        %v1332 = vunpack.c.l.b16 %v581
        %v1333 = vunpack.c.h.b16 %v581
        %v1334 = vunpack.c.l.b16 %v582
        %v1335 = vunpack.c.h.b16 %v582
        %v1336 = vunpack.c.l.b16 %v583
        %v1337 = vunpack.c.h.b16 %v583
        %v1338 = vunpack.c.l.b16 %v584
        %v1339 = vunpack.c.h.b16 %v584
        %v1340 = vunpack.c.l.b16 %v585
        %v1341 = vunpack.c.h.b16 %v585
        %v1342 = vunpack.c.l.b16 %v586
        %v1343 = vunpack.c.h.b16 %v586
        %v1344 = vunpack.c.l.b16 %v587
        %v1345 = vunpack.c.h.b16 %v587
        %v1346 = vunpack.c.l.b16 %v588
        %v1347 = vunpack.c.h.b16 %v588
        %v1348 = vunpack.c.l.b16 %v589
        %v1349 = vunpack.c.h.b16 %v589
        %v1350 = vunpack.c.l.b16 %v590
        %v1351 = vunpack.c.h.b16 %v590
        %v1352 = vunpack.c.l.b16 %v591
        %v1353 = vunpack.c.h.b16 %v591
        %v1354 = vunpack.c.l.b16 %v592
        %v1355 = vunpack.c.h.b16 %v592
        %v1356 = vunpack.c.l.b16 %v593
        %v1357 = vunpack.c.h.b16 %v593
        %v1358 = vunpack.c.l.b16 %v594
        %v1359 = vunpack.c.h.b16 %v594
        %v1360 = vunpack.c.l.b16 %v595
        %v1361 = vunpack.c.h.b16 %v595
        %v1362 = vunpack.c.l.b16 %v596
        %v1363 = vunpack.c.h.b16 %v596
        %v1364 = vunpack.c.l.b16 %v597
        %v1365 = vunpack.c.h.b16 %v597
        %v1366 = vpack.c.b16 %v1114, %v1110
        %v1367 = vpack.c.b16 %v1115, %v1111
        %v1368 = vpack.c.b16 %v1116, %v1112
        %v1369 = vpack.c.b16 %v1117, %v1113
        %v1370 = vpack.c.b16 %v1122, %v1118
        %v1371 = vpack.c.b16 %v1123, %v1119
        %v1372 = vpack.c.b16 %v1124, %v1120
        %v1373 = vpack.c.b16 %v1125, %v1121
        %v1374 = vpack.c.b16 %v1130, %v1126
        %v1375 = vpack.c.b16 %v1131, %v1127
        %v1376 = vpack.c.b16 %v1132, %v1128
        %v1377 = vpack.c.b16 %v1133, %v1129
        %v1378 = vpack.c.b16 %v1138, %v1134
        %v1379 = vpack.c.b16 %v1139, %v1135
        %v1380 = vpack.c.b16 %v1140, %v1136
        %v1381 = vpack.c.b16 %v1141, %v1137
        %v1382 = vpack.c.b16 %v1146, %v1142
        %v1383 = vpack.c.b16 %v1147, %v1143
        %v1384 = vpack.c.b16 %v1148, %v1144
        %v1385 = vpack.c.b16 %v1149, %v1145
        %v1386 = vpack.c.b16 %v1154, %v1150
        %v1387 = vpack.c.b16 %v1155, %v1151
        %v1388 = vpack.c.b16 %v1156, %v1152
        %v1389 = vpack.c.b16 %v1157, %v1153
        %v1390 = vpack.c.b16 %v1162, %v1158
        %v1391 = vpack.c.b16 %v1163, %v1159
        %v1392 = vpack.c.b16 %v1164, %v1160
        %v1393 = vpack.c.b16 %v1165, %v1161
        %v1394 = vpack.c.b16 %v1170, %v1166
        %v1395 = vpack.c.b16 %v1171, %v1167
        %v1396 = vpack.c.b16 %v1172, %v1168
        %v1397 = vpack.c.b16 %v1173, %v1169
        %v1398 = vpack.c.b16 %v1178, %v1174
        %v1399 = vpack.c.b16 %v1179, %v1175
        %v1400 = vpack.c.b16 %v1180, %v1176
        %v1401 = vpack.c.b16 %v1181, %v1177
        %v1402 = vpack.c.b16 %v1186, %v1182
        %v1403 = vpack.c.b16 %v1187, %v1183
        %v1404 = vpack.c.b16 %v1188, %v1184
        %v1405 = vpack.c.b16 %v1189, %v1185
        %v1406 = vpack.c.b16 %v1194, %v1190
        %v1407 = vpack.c.b16 %v1195, %v1191
        %v1408 = vpack.c.b16 %v1196, %v1192
        %v1409 = vpack.c.b16 %v1197, %v1193
        %v1410 = vpack.c.b16 %v1202, %v1198
        %v1411 = vpack.c.b16 %v1203, %v1199
        %v1412 = vpack.c.b16 %v1204, %v1200
        %v1413 = vpack.c.b16 %v1205, %v1201
        %v1414 = vpack.c.b16 %v1210, %v1206
        %v1415 = vpack.c.b16 %v1211, %v1207
        %v1416 = vpack.c.b16 %v1212, %v1208
        %v1417 = vpack.c.b16 %v1213, %v1209
        %v1418 = vpack.c.b16 %v1218, %v1214
        %v1419 = vpack.c.b16 %v1219, %v1215
        %v1420 = vpack.c.b16 %v1220, %v1216
        %v1421 = vpack.c.b16 %v1221, %v1217
        %v1422 = vpack.c.b16 %v1226, %v1222
        %v1423 = vpack.c.b16 %v1227, %v1223
        %v1424 = vpack.c.b16 %v1228, %v1224
        %v1425 = vpack.c.b16 %v1229, %v1225
        %v1426 = vpack.c.b16 %v1234, %v1230
        %v1427 = vpack.c.b16 %v1235, %v1231
        %v1428 = vpack.c.b16 %v1236, %v1232
        %v1429 = vpack.c.b16 %v1237, %v1233
        %v1430 = vpack.c.b16 %v1242, %v1238
        %v1431 = vpack.c.b16 %v1243, %v1239
        %v1432 = vpack.c.b16 %v1244, %v1240
        %v1433 = vpack.c.b16 %v1245, %v1241
        %v1434 = vpack.c.b16 %v1250, %v1246
        %v1435 = vpack.c.b16 %v1251, %v1247
        %v1436 = vpack.c.b16 %v1252, %v1248
        %v1437 = vpack.c.b16 %v1253, %v1249
        %v1438 = vpack.c.b16 %v1258, %v1254
        %v1439 = vpack.c.b16 %v1259, %v1255
        %v1440 = vpack.c.b16 %v1260, %v1256
        %v1441 = vpack.c.b16 %v1261, %v1257
        %v1442 = vpack.c.b16 %v1266, %v1262
        %v1443 = vpack.c.b16 %v1267, %v1263
        %v1444 = vpack.c.b16 %v1268, %v1264
        %v1445 = vpack.c.b16 %v1269, %v1265
        %v1446 = vpack.c.b16 %v1274, %v1270
        %v1447 = vpack.c.b16 %v1275, %v1271
        %v1448 = vpack.c.b16 %v1276, %v1272
        %v1449 = vpack.c.b16 %v1277, %v1273
        %v1450 = vpack.c.b16 %v1282, %v1278
        %v1451 = vpack.c.b16 %v1283, %v1279
        %v1452 = vpack.c.b16 %v1284, %v1280
        %v1453 = vpack.c.b16 %v1285, %v1281
        %v1454 = vpack.c.b16 %v1290, %v1286
        %v1455 = vpack.c.b16 %v1291, %v1287
        %v1456 = vpack.c.b16 %v1292, %v1288
        %v1457 = vpack.c.b16 %v1293, %v1289
        %v1458 = vpack.c.b16 %v1298, %v1294
        %v1459 = vpack.c.b16 %v1299, %v1295
        %v1460 = vpack.c.b16 %v1300, %v1296
        %v1461 = vpack.c.b16 %v1301, %v1297
        %v1462 = vpack.c.b16 %v1306, %v1302
        %v1463 = vpack.c.b16 %v1307, %v1303
        %v1464 = vpack.c.b16 %v1308, %v1304
        %v1465 = vpack.c.b16 %v1309, %v1305
        %v1466 = vpack.c.b16 %v1314, %v1310
        %v1467 = vpack.c.b16 %v1315, %v1311
        %v1468 = vpack.c.b16 %v1316, %v1312
        %v1469 = vpack.c.b16 %v1317, %v1313
        %v1470 = vpack.c.b16 %v1322, %v1318
        %v1471 = vpack.c.b16 %v1323, %v1319
        %v1472 = vpack.c.b16 %v1324, %v1320
        %v1473 = vpack.c.b16 %v1325, %v1321
        %v1474 = vpack.c.b16 %v1330, %v1326
        %v1475 = vpack.c.b16 %v1331, %v1327
        %v1476 = vpack.c.b16 %v1332, %v1328
        %v1477 = vpack.c.b16 %v1333, %v1329
        %v1478 = vpack.c.b16 %v1338, %v1334
        %v1479 = vpack.c.b16 %v1339, %v1335
        %v1480 = vpack.c.b16 %v1340, %v1336
        %v1481 = vpack.c.b16 %v1341, %v1337
        %v1482 = vpack.c.b16 %v1346, %v1342
        %v1483 = vpack.c.b16 %v1347, %v1343
        %v1484 = vpack.c.b16 %v1348, %v1344
        %v1485 = vpack.c.b16 %v1349, %v1345
        %v1486 = vpack.c.b16 %v1354, %v1350
        %v1487 = vpack.c.b16 %v1355, %v1351
        %v1488 = vpack.c.b16 %v1356, %v1352
        %v1489 = vpack.c.b16 %v1357, %v1353
        %v1490 = vpack.c.b16 %v1362, %v1358
        %v1491 = vpack.c.b16 %v1363, %v1359
        %v1492 = vpack.c.b16 %v1364, %v1360
        %v1493 = vpack.c.b16 %v1365, %v1361
        %1622 = vmatprep.subr.bf16.mxu0 %v421
        %1623 = vmatpush1.bf16.msra.mxu0 %v420
        %1624 = vmatprep.subr.bf16.mxu0 %v419
        %1625 = vmatpush1.bf16.msra.mxu0 %v418
        %1626 = vmatprep.subr.bf16.mxu0 %v417
        %1627 = vmatpush1.bf16.msra.mxu0 %v416
        %1628 = vmatprep.subr.bf16.mxu0 %v415
        %1629 = vmatpush1.bf16.msra.mxu0 %v414
        %1630 = vmatprep.subr.bf16.mxu0 %v413
        %1631 = vmatpush1.bf16.msra.mxu0 %v412
        %1632 = vmatprep.subr.bf16.mxu0 %v411
        %1633 = vmatpush1.bf16.msra.mxu0 %v410
        %1634 = vmatprep.subr.bf16.mxu0 %v409
        %1635 = vmatpush1.bf16.msra.mxu0 %v408
        %1636 = vmatprep.subr.bf16.mxu0 %v407
        %1637 = vmatpush1.bf16.msra.mxu0 %v406
        %1638 = vmatprep.subr.bf16.mxu0 %v437
        %1639 = vmatpush2.bf16.msra.mxu0 %v436
        %1640 = vmatprep.subr.bf16.mxu0 %v435
        %1641 = vmatpush2.bf16.msra.mxu0 %v434
        %1642 = vmatprep.subr.bf16.mxu0 %v433
        %1643 = vmatpush2.bf16.msra.mxu0 %v432
        %1644 = vmatprep.subr.bf16.mxu0 %v431
        %1645 = vmatpush2.bf16.msra.mxu0 %v430
        %1646 = vmatprep.subr.bf16.mxu0 %v429
        %1647 = vmatpush2.bf16.msra.mxu0 %v428
        %1648 = vmatprep.subr.bf16.mxu0 %v427
        %1649 = vmatpush2.bf16.msra.mxu0 %v426
        %1650 = vmatprep.subr.bf16.mxu0 %v425
        %1651 = vmatpush2.bf16.msra.mxu0 %v424
        %1652 = vmatprep.subr.bf16.mxu0 %v423
        %1653 = vmatpush2.bf16.msra.mxu0 %v422
        %1654 = vmatprep.mubr.bf16.mxu0 %v1367
        %1655 = vmatmul.mubr.bf16.gmra.mxu0 %v1366
        %v1656 = vpop.f32.mrf.mxu0
        %v1657 = vadd.f32 %v665, %v1656
        %v1658 = vpop.f32.mrf.mxu0
        %v1659 = vadd.f32 %v665, %v1658
        %v1660 = vpop.f32.mrf.mxu0
        %v1661 = vadd.f32 %v670, %v1660
        %v1662 = vpop.f32.mrf.mxu0
        %v1663 = vadd.f32 %v670, %v1662
        %1664 = vmatprep.mubr.bf16.mxu0 %v1371
        %1665 = vmatmul.mubr.bf16.gmra.mxu0 %v1370
        %v1666 = vpop.f32.mrf.mxu0
        %v1667 = vadd.f32 %v675, %v1666
        %v1668 = vpop.f32.mrf.mxu0
        %v1669 = vadd.f32 %v675, %v1668
        %v1670 = vpop.f32.mrf.mxu0
        %v1671 = vadd.f32 %v680, %v1670
        %v1672 = vpop.f32.mrf.mxu0
        %v1673 = vadd.f32 %v680, %v1672
        %1674 = vmatprep.mubr.bf16.mxu0 %v1375
        %1675 = vmatmul.mubr.bf16.gmra.mxu0 %v1374
        %v1676 = vpop.f32.mrf.mxu0
        %v1677 = vadd.f32 %v685, %v1676
        %v1678 = vpop.f32.mrf.mxu0
        %v1679 = vadd.f32 %v685, %v1678
        %v1680 = vpop.f32.mrf.mxu0
        %v1681 = vadd.f32 %v690, %v1680
        %v1682 = vpop.f32.mrf.mxu0
        %v1683 = vadd.f32 %v690, %v1682
        %1684 = vmatprep.mubr.bf16.mxu0 %v1379
        %1685 = vmatmul.mubr.bf16.gmra.mxu0 %v1378
        %v1686 = vpop.f32.mrf.mxu0
        %v1687 = vadd.f32 %v695, %v1686
        %v1688 = vpop.f32.mrf.mxu0
        %v1689 = vadd.f32 %v695, %v1688
        %v1690 = vpop.f32.mrf.mxu0
        %v1691 = vadd.f32 %v700, %v1690
        %v1692 = vpop.f32.mrf.mxu0
        %v1693 = vadd.f32 %v700, %v1692
        %1694 = vmatprep.mubr.bf16.mxu0 %v1383
        %1695 = vmatmul.mubr.bf16.gmra.mxu0 %v1382
        %v1696 = vpop.f32.mrf.mxu0
        %v1697 = vadd.f32 %v705, %v1696
        %v1698 = vpop.f32.mrf.mxu0
        %v1699 = vadd.f32 %v705, %v1698
        %v1700 = vpop.f32.mrf.mxu0
        %v1701 = vadd.f32 %v710, %v1700
        %v1702 = vpop.f32.mrf.mxu0
        %v1703 = vadd.f32 %v710, %v1702
        %1704 = vmatprep.mubr.bf16.mxu0 %v1387
        %1705 = vmatmul.mubr.bf16.gmra.mxu0 %v1386
        %v1706 = vpop.f32.mrf.mxu0
        %v1707 = vadd.f32 %v715, %v1706
        %v1708 = vpop.f32.mrf.mxu0
        %v1709 = vadd.f32 %v715, %v1708
        %v1710 = vpop.f32.mrf.mxu0
        %v1711 = vadd.f32 %v720, %v1710
        %v1712 = vpop.f32.mrf.mxu0
        %v1713 = vadd.f32 %v720, %v1712
        %1714 = vmatprep.mubr.bf16.mxu0 %v1391
        %1715 = vmatmul.mubr.bf16.gmra.mxu0 %v1390
        %v1716 = vpop.f32.mrf.mxu0
        %v1717 = vadd.f32 %v725, %v1716
        %v1718 = vpop.f32.mrf.mxu0
        %v1719 = vadd.f32 %v725, %v1718
        %v1720 = vpop.f32.mrf.mxu0
        %v1721 = vadd.f32 %v730, %v1720
        %v1722 = vpop.f32.mrf.mxu0
        %v1723 = vadd.f32 %v730, %v1722
        %1724 = vmatprep.mubr.bf16.mxu0 %v1395
        %1725 = vmatmul.mubr.bf16.gmra.mxu0 %v1394
        %v1726 = vpop.f32.mrf.mxu0
        %v1727 = vadd.f32 %v735, %v1726
        %v1728 = vpop.f32.mrf.mxu0
        %v1729 = vadd.f32 %v735, %v1728
        %v1730 = vpop.f32.mrf.mxu0
        %v1731 = vadd.f32 %v740, %v1730
        %v1732 = vpop.f32.mrf.mxu0
        %v1733 = vadd.f32 %v740, %v1732
        %1734 = vmatprep.mubr.bf16.mxu0 %v1399
        %1735 = vmatmul.mubr.bf16.gmra.mxu0 %v1398
        %v1736 = vpop.f32.mrf.mxu0
        %v1737 = vadd.f32 %v745, %v1736
        %v1738 = vpop.f32.mrf.mxu0
        %v1739 = vadd.f32 %v745, %v1738
        %v1740 = vpop.f32.mrf.mxu0
        %v1741 = vadd.f32 %v750, %v1740
        %v1742 = vpop.f32.mrf.mxu0
        %v1743 = vadd.f32 %v750, %v1742
        %1744 = vmatprep.mubr.bf16.mxu0 %v1403
        %1745 = vmatmul.mubr.bf16.gmra.mxu0 %v1402
        %v1746 = vpop.f32.mrf.mxu0
        %v1747 = vadd.f32 %v755, %v1746
        %v1748 = vpop.f32.mrf.mxu0
        %v1749 = vadd.f32 %v755, %v1748
        %v1750 = vpop.f32.mrf.mxu0
        %v1751 = vadd.f32 %v760, %v1750
        %v1752 = vpop.f32.mrf.mxu0
        %v1753 = vadd.f32 %v760, %v1752
        %1754 = vmatprep.mubr.bf16.mxu0 %v1407
        %1755 = vmatmul.mubr.bf16.gmra.mxu0 %v1406
        %v1756 = vpop.f32.mrf.mxu0
        %v1757 = vadd.f32 %v765, %v1756
        %v1758 = vpop.f32.mrf.mxu0
        %v1759 = vadd.f32 %v765, %v1758
        %v1760 = vpop.f32.mrf.mxu0
        %v1761 = vadd.f32 %v770, %v1760
        %v1762 = vpop.f32.mrf.mxu0
        %v1763 = vadd.f32 %v770, %v1762
        %1764 = vmatprep.mubr.bf16.mxu0 %v1411
        %1765 = vmatmul.mubr.bf16.gmra.mxu0 %v1410
        %v1766 = vpop.f32.mrf.mxu0
        %v1767 = vadd.f32 %v775, %v1766
        %v1768 = vpop.f32.mrf.mxu0
        %v1769 = vadd.f32 %v775, %v1768
        %v1770 = vpop.f32.mrf.mxu0
        %v1771 = vadd.f32 %v780, %v1770
        %v1772 = vpop.f32.mrf.mxu0
        %v1773 = vadd.f32 %v780, %v1772
        %1774 = vmatprep.mubr.bf16.mxu0 %v1415
        %1775 = vmatmul.mubr.bf16.gmra.mxu0 %v1414
        %v1776 = vpop.f32.mrf.mxu0
        %v1777 = vadd.f32 %v785, %v1776
        %v1778 = vpop.f32.mrf.mxu0
        %v1779 = vadd.f32 %v785, %v1778
        %v1780 = vpop.f32.mrf.mxu0
        %v1781 = vadd.f32 %v790, %v1780
        %v1782 = vpop.f32.mrf.mxu0
        %v1783 = vadd.f32 %v790, %v1782
        %1784 = vmatprep.mubr.bf16.mxu0 %v1419
        %1785 = vmatmul.mubr.bf16.gmra.mxu0 %v1418
        %v1786 = vpop.f32.mrf.mxu0
        %v1787 = vadd.f32 %v795, %v1786
        %v1788 = vpop.f32.mrf.mxu0
        %v1789 = vadd.f32 %v795, %v1788
        %v1790 = vpop.f32.mrf.mxu0
        %v1791 = vadd.f32 %v800, %v1790
        %v1792 = vpop.f32.mrf.mxu0
        %v1793 = vadd.f32 %v800, %v1792
        %1794 = vmatprep.mubr.bf16.mxu0 %v1423
        %1795 = vmatmul.mubr.bf16.gmra.mxu0 %v1422
        %v1796 = vpop.f32.mrf.mxu0
        %v1797 = vadd.f32 %v805, %v1796
        %v1798 = vpop.f32.mrf.mxu0
        %v1799 = vadd.f32 %v805, %v1798
        %v1800 = vpop.f32.mrf.mxu0
        %v1801 = vadd.f32 %v810, %v1800
        %v1802 = vpop.f32.mrf.mxu0
        %v1803 = vadd.f32 %v810, %v1802
        %1804 = vmatprep.mubr.bf16.mxu0 %v1427
        %1805 = vmatmul.mubr.bf16.gmra.mxu0 %v1426
        %v1806 = vpop.f32.mrf.mxu0
        %v1807 = vadd.f32 %v815, %v1806
        %v1808 = vpop.f32.mrf.mxu0
        %v1809 = vadd.f32 %v815, %v1808
        %v1810 = vpop.f32.mrf.mxu0
        %v1811 = vadd.f32 %v820, %v1810
        %v1812 = vpop.f32.mrf.mxu0
        %v1813 = vadd.f32 %v820, %v1812
        %1814 = vmatprep.mubr.bf16.mxu0 %v1431
        %1815 = vmatmul.mubr.bf16.gmra.mxu0 %v1430
        %v1816 = vpop.f32.mrf.mxu0
        %v1817 = vadd.f32 %v825, %v1816
        %v1818 = vpop.f32.mrf.mxu0
        %v1819 = vadd.f32 %v825, %v1818
        %v1820 = vpop.f32.mrf.mxu0
        %v1821 = vadd.f32 %v830, %v1820
        %v1822 = vpop.f32.mrf.mxu0
        %v1823 = vadd.f32 %v830, %v1822
        %1824 = vmatprep.mubr.bf16.mxu0 %v1435
        %1825 = vmatmul.mubr.bf16.gmra.mxu0 %v1434
        %v1826 = vpop.f32.mrf.mxu0
        %v1827 = vadd.f32 %v835, %v1826
        %v1828 = vpop.f32.mrf.mxu0
        %v1829 = vadd.f32 %v835, %v1828
        %v1830 = vpop.f32.mrf.mxu0
        %v1831 = vadd.f32 %v840, %v1830
        %v1832 = vpop.f32.mrf.mxu0
        %v1833 = vadd.f32 %v840, %v1832
        %1834 = vmatprep.mubr.bf16.mxu0 %v1439
        %1835 = vmatmul.mubr.bf16.gmra.mxu0 %v1438
        %v1836 = vpop.f32.mrf.mxu0
        %v1837 = vadd.f32 %v845, %v1836
        %v1838 = vpop.f32.mrf.mxu0
        %v1839 = vadd.f32 %v845, %v1838
        %v1840 = vpop.f32.mrf.mxu0
        %v1841 = vadd.f32 %v850, %v1840
        %v1842 = vpop.f32.mrf.mxu0
        %v1843 = vadd.f32 %v850, %v1842
        %1844 = vmatprep.mubr.bf16.mxu0 %v1443
        %1845 = vmatmul.mubr.bf16.gmra.mxu0 %v1442
        %v1846 = vpop.f32.mrf.mxu0
        %v1847 = vadd.f32 %v855, %v1846
        %v1848 = vpop.f32.mrf.mxu0
        %v1849 = vadd.f32 %v855, %v1848
        %v1850 = vpop.f32.mrf.mxu0
        %v1851 = vadd.f32 %v860, %v1850
        %v1852 = vpop.f32.mrf.mxu0
        %v1853 = vadd.f32 %v860, %v1852
        %1854 = vmatprep.mubr.bf16.mxu0 %v1447
        %1855 = vmatmul.mubr.bf16.gmra.mxu0 %v1446
        %v1856 = vpop.f32.mrf.mxu0
        %v1857 = vadd.f32 %v865, %v1856
        %v1858 = vpop.f32.mrf.mxu0
        %v1859 = vadd.f32 %v865, %v1858
        %v1860 = vpop.f32.mrf.mxu0
        %v1861 = vadd.f32 %v870, %v1860
        %v1862 = vpop.f32.mrf.mxu0
        %v1863 = vadd.f32 %v870, %v1862
        %1864 = vmatprep.mubr.bf16.mxu0 %v1451
        %1865 = vmatmul.mubr.bf16.gmra.mxu0 %v1450
        %v1866 = vpop.f32.mrf.mxu0
        %v1867 = vadd.f32 %v875, %v1866
        %v1868 = vpop.f32.mrf.mxu0
        %v1869 = vadd.f32 %v875, %v1868
        %v1870 = vpop.f32.mrf.mxu0
        %v1871 = vadd.f32 %v880, %v1870
        %v1872 = vpop.f32.mrf.mxu0
        %v1873 = vadd.f32 %v880, %v1872
        %1874 = vmatprep.mubr.bf16.mxu0 %v1455
        %1875 = vmatmul.mubr.bf16.gmra.mxu0 %v1454
        %v1876 = vpop.f32.mrf.mxu0
        %v1877 = vadd.f32 %v885, %v1876
        %v1878 = vpop.f32.mrf.mxu0
        %v1879 = vadd.f32 %v885, %v1878
        %v1880 = vpop.f32.mrf.mxu0
        %v1881 = vadd.f32 %v890, %v1880
        %v1882 = vpop.f32.mrf.mxu0
        %v1883 = vadd.f32 %v890, %v1882
        %1884 = vmatprep.mubr.bf16.mxu0 %v1459
        %1885 = vmatmul.mubr.bf16.gmra.mxu0 %v1458
        %v1886 = vpop.f32.mrf.mxu0
        %v1887 = vadd.f32 %v895, %v1886
        %v1888 = vpop.f32.mrf.mxu0
        %v1889 = vadd.f32 %v895, %v1888
        %v1890 = vpop.f32.mrf.mxu0
        %v1891 = vadd.f32 %v900, %v1890
        %v1892 = vpop.f32.mrf.mxu0
        %v1893 = vadd.f32 %v900, %v1892
        %1894 = vmatprep.mubr.bf16.mxu0 %v1463
        %1895 = vmatmul.mubr.bf16.gmra.mxu0 %v1462
        %v1896 = vpop.f32.mrf.mxu0
        %v1897 = vadd.f32 %v905, %v1896
        %v1898 = vpop.f32.mrf.mxu0
        %v1899 = vadd.f32 %v905, %v1898
        %v1900 = vpop.f32.mrf.mxu0
        %v1901 = vadd.f32 %v910, %v1900
        %v1902 = vpop.f32.mrf.mxu0
        %v1903 = vadd.f32 %v910, %v1902
        %1904 = vmatprep.mubr.bf16.mxu0 %v1467
        %1905 = vmatmul.mubr.bf16.gmra.mxu0 %v1466
        %v1906 = vpop.f32.mrf.mxu0
        %v1907 = vadd.f32 %v915, %v1906
        %v1908 = vpop.f32.mrf.mxu0
        %v1909 = vadd.f32 %v915, %v1908
        %v1910 = vpop.f32.mrf.mxu0
        %v1911 = vadd.f32 %v920, %v1910
        %v1912 = vpop.f32.mrf.mxu0
        %v1913 = vadd.f32 %v920, %v1912
        %1914 = vmatprep.mubr.bf16.mxu0 %v1471
        %1915 = vmatmul.mubr.bf16.gmra.mxu0 %v1470
        %v1916 = vpop.f32.mrf.mxu0
        %v1917 = vadd.f32 %v925, %v1916
        %v1918 = vpop.f32.mrf.mxu0
        %v1919 = vadd.f32 %v925, %v1918
        %v1920 = vpop.f32.mrf.mxu0
        %v1921 = vadd.f32 %v930, %v1920
        %v1922 = vpop.f32.mrf.mxu0
        %v1923 = vadd.f32 %v930, %v1922
        %1924 = vmatprep.mubr.bf16.mxu0 %v1475
        %1925 = vmatmul.mubr.bf16.gmra.mxu0 %v1474
        %v1926 = vpop.f32.mrf.mxu0
        %v1927 = vadd.f32 %v935, %v1926
        %v1928 = vpop.f32.mrf.mxu0
        %v1929 = vadd.f32 %v935, %v1928
        %v1930 = vpop.f32.mrf.mxu0
        %v1931 = vadd.f32 %v940, %v1930
        %v1932 = vpop.f32.mrf.mxu0
        %v1933 = vadd.f32 %v940, %v1932
        %1934 = vmatprep.mubr.bf16.mxu0 %v1479
        %1935 = vmatmul.mubr.bf16.gmra.mxu0 %v1478
        %v1936 = vpop.f32.mrf.mxu0
        %v1937 = vadd.f32 %v945, %v1936
        %v1938 = vpop.f32.mrf.mxu0
        %v1939 = vadd.f32 %v945, %v1938
        %v1940 = vpop.f32.mrf.mxu0
        %v1941 = vadd.f32 %v950, %v1940
        %v1942 = vpop.f32.mrf.mxu0
        %v1943 = vadd.f32 %v950, %v1942
        %1944 = vmatprep.mubr.bf16.mxu0 %v1483
        %1945 = vmatmul.mubr.bf16.gmra.mxu0 %v1482
        %v1946 = vpop.f32.mrf.mxu0
        %v1947 = vadd.f32 %v955, %v1946
        %v1948 = vpop.f32.mrf.mxu0
        %v1949 = vadd.f32 %v955, %v1948
        %v1950 = vpop.f32.mrf.mxu0
        %v1951 = vadd.f32 %v960, %v1950
        %v1952 = vpop.f32.mrf.mxu0
        %v1953 = vadd.f32 %v960, %v1952
        %1954 = vmatprep.mubr.bf16.mxu0 %v1487
        %1955 = vmatmul.mubr.bf16.gmra.mxu0 %v1486
        %v1956 = vpop.f32.mrf.mxu0
        %v1957 = vadd.f32 %v965, %v1956
        %v1958 = vpop.f32.mrf.mxu0
        %v1959 = vadd.f32 %v965, %v1958
        %v1960 = vpop.f32.mrf.mxu0
        %v1961 = vadd.f32 %v970, %v1960
        %v1962 = vpop.f32.mrf.mxu0
        %v1963 = vadd.f32 %v970, %v1962
        %1964 = vmatprep.mubr.bf16.mxu0 %v1491
        %1965 = vmatmul.mubr.bf16.gmra.mxu0 %v1490
        %v1966 = vpop.f32.mrf.mxu0
        %v1967 = vadd.f32 %v975, %v1966
        %v1968 = vpop.f32.mrf.mxu0
        %v1969 = vadd.f32 %v975, %v1968
        %v1970 = vpop.f32.mrf.mxu0
        %v1971 = vadd.f32 %v980, %v1970
        %v1972 = vpop.f32.mrf.mxu0
        %v1973 = vadd.f32 %v980, %v1972
        %1974 = vdwg.mxu0
        %1975 = vmatprep.subr.bf16.mxu0 %v453
        %1976 = vmatpush1.bf16.msra.mxu0 %v452
        %1977 = vmatprep.subr.bf16.mxu0 %v451
        %1978 = vmatpush1.bf16.msra.mxu0 %v450
        %1979 = vmatprep.subr.bf16.mxu0 %v449
        %1980 = vmatpush1.bf16.msra.mxu0 %v448
        %1981 = vmatprep.subr.bf16.mxu0 %v447
        %1982 = vmatpush1.bf16.msra.mxu0 %v446
        %1983 = vmatprep.subr.bf16.mxu0 %v445
        %1984 = vmatpush1.bf16.msra.mxu0 %v444
        %1985 = vmatprep.subr.bf16.mxu0 %v443
        %1986 = vmatpush1.bf16.msra.mxu0 %v442
        %1987 = vmatprep.subr.bf16.mxu0 %v441
        %1988 = vmatpush1.bf16.msra.mxu0 %v440
        %1989 = vmatprep.subr.bf16.mxu0 %v439
        %1990 = vmatpush1.bf16.msra.mxu0 %v438
        %1991 = vmatprep.subr.bf16.mxu0 %v469
        %1992 = vmatpush2.bf16.msra.mxu0 %v468
        %1993 = vmatprep.subr.bf16.mxu0 %v467
        %1994 = vmatpush2.bf16.msra.mxu0 %v466
        %1995 = vmatprep.subr.bf16.mxu0 %v465
        %1996 = vmatpush2.bf16.msra.mxu0 %v464
        %1997 = vmatprep.subr.bf16.mxu0 %v463
        %1998 = vmatpush2.bf16.msra.mxu0 %v462
        %1999 = vmatprep.subr.bf16.mxu0 %v461
        %2000 = vmatpush2.bf16.msra.mxu0 %v460
        %2001 = vmatprep.subr.bf16.mxu0 %v459
        %2002 = vmatpush2.bf16.msra.mxu0 %v458
        %2003 = vmatprep.subr.bf16.mxu0 %v457
        %2004 = vmatpush2.bf16.msra.mxu0 %v456
        %2005 = vmatprep.subr.bf16.mxu0 %v455
        %2006 = vmatpush2.bf16.msra.mxu0 %v454
        %2007 = vmatprep.mubr.bf16.mxu0 %v1369
        %2008 = vmatmul.mubr.bf16.gmra.mxu0 %v1368
        %v2009 = vpop.f32.mrf.mxu0
        %v2010 = vadd.f32 %v1657, %v2009
        %v2011 = vpop.f32.mrf.mxu0
        %v2012 = vadd.f32 %v1659, %v2011
        %v2013 = vpop.f32.mrf.mxu0
        %v2014 = vadd.f32 %v1661, %v2013
        %v2015 = vpop.f32.mrf.mxu0
        %v2016 = vadd.f32 %v1663, %v2015
        %2017 = vmatprep.mubr.bf16.mxu0 %v1373
        %2018 = vmatmul.mubr.bf16.gmra.mxu0 %v1372
        %v2019 = vpop.f32.mrf.mxu0
        %v2020 = vadd.f32 %v1667, %v2019
        %v2021 = vpop.f32.mrf.mxu0
        %v2022 = vadd.f32 %v1669, %v2021
        %v2023 = vpop.f32.mrf.mxu0
        %v2024 = vadd.f32 %v1671, %v2023
        %v2025 = vpop.f32.mrf.mxu0
        %v2026 = vadd.f32 %v1673, %v2025
        %2027 = vmatprep.mubr.bf16.mxu0 %v1377
        %2028 = vmatmul.mubr.bf16.gmra.mxu0 %v1376
        %v2029 = vpop.f32.mrf.mxu0
        %v2030 = vadd.f32 %v1677, %v2029
        %v2031 = vpop.f32.mrf.mxu0
        %v2032 = vadd.f32 %v1679, %v2031
        %v2033 = vpop.f32.mrf.mxu0
        %v2034 = vadd.f32 %v1681, %v2033
        %v2035 = vpop.f32.mrf.mxu0
        %v2036 = vadd.f32 %v1683, %v2035
        %2037 = vmatprep.mubr.bf16.mxu0 %v1381
        %2038 = vmatmul.mubr.bf16.gmra.mxu0 %v1380
        %v2039 = vpop.f32.mrf.mxu0
        %v2040 = vadd.f32 %v1687, %v2039
        %v2041 = vpop.f32.mrf.mxu0
        %v2042 = vadd.f32 %v1689, %v2041
        %v2043 = vpop.f32.mrf.mxu0
        %v2044 = vadd.f32 %v1691, %v2043
        %v2045 = vpop.f32.mrf.mxu0
        %v2046 = vadd.f32 %v1693, %v2045
        %2047 = vmatprep.mubr.bf16.mxu0 %v1385
        %2048 = vmatmul.mubr.bf16.gmra.mxu0 %v1384
        %v2049 = vpop.f32.mrf.mxu0
        %v2050 = vadd.f32 %v1697, %v2049
        %v2051 = vpop.f32.mrf.mxu0
        %v2052 = vadd.f32 %v1699, %v2051
        %v2053 = vpop.f32.mrf.mxu0
        %v2054 = vadd.f32 %v1701, %v2053
        %v2055 = vpop.f32.mrf.mxu0
        %v2056 = vadd.f32 %v1703, %v2055
        %2057 = vmatprep.mubr.bf16.mxu0 %v1389
        %2058 = vmatmul.mubr.bf16.gmra.mxu0 %v1388
        %v2059 = vpop.f32.mrf.mxu0
        %v2060 = vadd.f32 %v1707, %v2059
        %v2061 = vpop.f32.mrf.mxu0
        %v2062 = vadd.f32 %v1709, %v2061
        %v2063 = vpop.f32.mrf.mxu0
        %v2064 = vadd.f32 %v1711, %v2063
        %v2065 = vpop.f32.mrf.mxu0
        %v2066 = vadd.f32 %v1713, %v2065
        %2067 = vmatprep.mubr.bf16.mxu0 %v1393
        %2068 = vmatmul.mubr.bf16.gmra.mxu0 %v1392
        %v2069 = vpop.f32.mrf.mxu0
        %v2070 = vadd.f32 %v1717, %v2069
        %v2071 = vpop.f32.mrf.mxu0
        %v2072 = vadd.f32 %v1719, %v2071
        %v2073 = vpop.f32.mrf.mxu0
        %v2074 = vadd.f32 %v1721, %v2073
        %v2075 = vpop.f32.mrf.mxu0
        %v2076 = vadd.f32 %v1723, %v2075
        %2077 = vmatprep.mubr.bf16.mxu0 %v1397
        %2078 = vmatmul.mubr.bf16.gmra.mxu0 %v1396
        %v2079 = vpop.f32.mrf.mxu0
        %v2080 = vadd.f32 %v1727, %v2079
        %v2081 = vpop.f32.mrf.mxu0
        %v2082 = vadd.f32 %v1729, %v2081
        %v2083 = vpop.f32.mrf.mxu0
        %v2084 = vadd.f32 %v1731, %v2083
        %v2085 = vpop.f32.mrf.mxu0
        %v2086 = vadd.f32 %v1733, %v2085
        %2087 = vmatprep.mubr.bf16.mxu0 %v1401
        %2088 = vmatmul.mubr.bf16.gmra.mxu0 %v1400
        %v2089 = vpop.f32.mrf.mxu0
        %v2090 = vadd.f32 %v1737, %v2089
        %v2091 = vpop.f32.mrf.mxu0
        %v2092 = vadd.f32 %v1739, %v2091
        %v2093 = vpop.f32.mrf.mxu0
        %v2094 = vadd.f32 %v1741, %v2093
        %v2095 = vpop.f32.mrf.mxu0
        %v2096 = vadd.f32 %v1743, %v2095
        %2097 = vmatprep.mubr.bf16.mxu0 %v1405
        %2098 = vmatmul.mubr.bf16.gmra.mxu0 %v1404
        %v2099 = vpop.f32.mrf.mxu0
        %v2100 = vadd.f32 %v1747, %v2099
        %v2101 = vpop.f32.mrf.mxu0
        %v2102 = vadd.f32 %v1749, %v2101
        %v2103 = vpop.f32.mrf.mxu0
        %v2104 = vadd.f32 %v1751, %v2103
        %v2105 = vpop.f32.mrf.mxu0
        %v2106 = vadd.f32 %v1753, %v2105
        %2107 = vmatprep.mubr.bf16.mxu0 %v1409
        %2108 = vmatmul.mubr.bf16.gmra.mxu0 %v1408
        %v2109 = vpop.f32.mrf.mxu0
        %v2110 = vadd.f32 %v1757, %v2109
        %v2111 = vpop.f32.mrf.mxu0
        %v2112 = vadd.f32 %v1759, %v2111
        %v2113 = vpop.f32.mrf.mxu0
        %v2114 = vadd.f32 %v1761, %v2113
        %v2115 = vpop.f32.mrf.mxu0
        %v2116 = vadd.f32 %v1763, %v2115
        %2117 = vmatprep.mubr.bf16.mxu0 %v1413
        %2118 = vmatmul.mubr.bf16.gmra.mxu0 %v1412
        %v2119 = vpop.f32.mrf.mxu0
        %v2120 = vadd.f32 %v1767, %v2119
        %v2121 = vpop.f32.mrf.mxu0
        %v2122 = vadd.f32 %v1769, %v2121
        %v2123 = vpop.f32.mrf.mxu0
        %v2124 = vadd.f32 %v1771, %v2123
        %v2125 = vpop.f32.mrf.mxu0
        %v2126 = vadd.f32 %v1773, %v2125
        %2127 = vmatprep.mubr.bf16.mxu0 %v1417
        %2128 = vmatmul.mubr.bf16.gmra.mxu0 %v1416
        %v2129 = vpop.f32.mrf.mxu0
        %v2130 = vadd.f32 %v1777, %v2129
        %v2131 = vpop.f32.mrf.mxu0
        %v2132 = vadd.f32 %v1779, %v2131
        %v2133 = vpop.f32.mrf.mxu0
        %v2134 = vadd.f32 %v1781, %v2133
        %v2135 = vpop.f32.mrf.mxu0
        %v2136 = vadd.f32 %v1783, %v2135
        %2137 = vmatprep.mubr.bf16.mxu0 %v1421
        %2138 = vmatmul.mubr.bf16.gmra.mxu0 %v1420
        %v2139 = vpop.f32.mrf.mxu0
        %v2140 = vadd.f32 %v1787, %v2139
        %v2141 = vpop.f32.mrf.mxu0
        %v2142 = vadd.f32 %v1789, %v2141
        %v2143 = vpop.f32.mrf.mxu0
        %v2144 = vadd.f32 %v1791, %v2143
        %v2145 = vpop.f32.mrf.mxu0
        %v2146 = vadd.f32 %v1793, %v2145
        %2147 = vmatprep.mubr.bf16.mxu0 %v1425
        %2148 = vmatmul.mubr.bf16.gmra.mxu0 %v1424
        %v2149 = vpop.f32.mrf.mxu0
        %v2150 = vadd.f32 %v1797, %v2149
        %v2151 = vpop.f32.mrf.mxu0
        %v2152 = vadd.f32 %v1799, %v2151
        %v2153 = vpop.f32.mrf.mxu0
        %v2154 = vadd.f32 %v1801, %v2153
        %v2155 = vpop.f32.mrf.mxu0
        %v2156 = vadd.f32 %v1803, %v2155
        %2157 = vmatprep.mubr.bf16.mxu0 %v1429
        %2158 = vmatmul.mubr.bf16.gmra.mxu0 %v1428
        %v2159 = vpop.f32.mrf.mxu0
        %v2160 = vadd.f32 %v1807, %v2159
        %v2161 = vpop.f32.mrf.mxu0
        %v2162 = vadd.f32 %v1809, %v2161
        %v2163 = vpop.f32.mrf.mxu0
        %v2164 = vadd.f32 %v1811, %v2163
        %v2165 = vpop.f32.mrf.mxu0
        %v2166 = vadd.f32 %v1813, %v2165
        %2167 = vmatprep.mubr.bf16.mxu0 %v1433
        %2168 = vmatmul.mubr.bf16.gmra.mxu0 %v1432
        %v2169 = vpop.f32.mrf.mxu0
        %v2170 = vadd.f32 %v1817, %v2169
        %v2171 = vpop.f32.mrf.mxu0
        %v2172 = vadd.f32 %v1819, %v2171
        %v2173 = vpop.f32.mrf.mxu0
        %v2174 = vadd.f32 %v1821, %v2173
        %v2175 = vpop.f32.mrf.mxu0
        %v2176 = vadd.f32 %v1823, %v2175
        %2177 = vmatprep.mubr.bf16.mxu0 %v1437
        %2178 = vmatmul.mubr.bf16.gmra.mxu0 %v1436
        %v2179 = vpop.f32.mrf.mxu0
        %v2180 = vadd.f32 %v1827, %v2179
        %v2181 = vpop.f32.mrf.mxu0
        %v2182 = vadd.f32 %v1829, %v2181
        %v2183 = vpop.f32.mrf.mxu0
        %v2184 = vadd.f32 %v1831, %v2183
        %v2185 = vpop.f32.mrf.mxu0
        %v2186 = vadd.f32 %v1833, %v2185
        %2187 = vmatprep.mubr.bf16.mxu0 %v1441
        %2188 = vmatmul.mubr.bf16.gmra.mxu0 %v1440
        %v2189 = vpop.f32.mrf.mxu0
        %v2190 = vadd.f32 %v1837, %v2189
        %v2191 = vpop.f32.mrf.mxu0
        %v2192 = vadd.f32 %v1839, %v2191
        %v2193 = vpop.f32.mrf.mxu0
        %v2194 = vadd.f32 %v1841, %v2193
        %v2195 = vpop.f32.mrf.mxu0
        %v2196 = vadd.f32 %v1843, %v2195
        %2197 = vmatprep.mubr.bf16.mxu0 %v1445
        %2198 = vmatmul.mubr.bf16.gmra.mxu0 %v1444
        %v2199 = vpop.f32.mrf.mxu0
        %v2200 = vadd.f32 %v1847, %v2199
        %v2201 = vpop.f32.mrf.mxu0
        %v2202 = vadd.f32 %v1849, %v2201
        %v2203 = vpop.f32.mrf.mxu0
        %v2204 = vadd.f32 %v1851, %v2203
        %v2205 = vpop.f32.mrf.mxu0
        %v2206 = vadd.f32 %v1853, %v2205
        %2207 = vmatprep.mubr.bf16.mxu0 %v1449
        %2208 = vmatmul.mubr.bf16.gmra.mxu0 %v1448
        %v2209 = vpop.f32.mrf.mxu0
        %v2210 = vadd.f32 %v1857, %v2209
        %v2211 = vpop.f32.mrf.mxu0
        %v2212 = vadd.f32 %v1859, %v2211
        %v2213 = vpop.f32.mrf.mxu0
        %v2214 = vadd.f32 %v1861, %v2213
        %v2215 = vpop.f32.mrf.mxu0
        %v2216 = vadd.f32 %v1863, %v2215
        %2217 = vmatprep.mubr.bf16.mxu0 %v1453
        %2218 = vmatmul.mubr.bf16.gmra.mxu0 %v1452
        %v2219 = vpop.f32.mrf.mxu0
        %v2220 = vadd.f32 %v1867, %v2219
        %v2221 = vpop.f32.mrf.mxu0
        %v2222 = vadd.f32 %v1869, %v2221
        %v2223 = vpop.f32.mrf.mxu0
        %v2224 = vadd.f32 %v1871, %v2223
        %v2225 = vpop.f32.mrf.mxu0
        %v2226 = vadd.f32 %v1873, %v2225
        %2227 = vmatprep.mubr.bf16.mxu0 %v1457
        %2228 = vmatmul.mubr.bf16.gmra.mxu0 %v1456
        %v2229 = vpop.f32.mrf.mxu0
        %v2230 = vadd.f32 %v1877, %v2229
        %v2231 = vpop.f32.mrf.mxu0
        %v2232 = vadd.f32 %v1879, %v2231
        %v2233 = vpop.f32.mrf.mxu0
        %v2234 = vadd.f32 %v1881, %v2233
        %v2235 = vpop.f32.mrf.mxu0
        %v2236 = vadd.f32 %v1883, %v2235
        %2237 = vmatprep.mubr.bf16.mxu0 %v1461
        %2238 = vmatmul.mubr.bf16.gmra.mxu0 %v1460
        %v2239 = vpop.f32.mrf.mxu0
        %v2240 = vadd.f32 %v1887, %v2239
        %v2241 = vpop.f32.mrf.mxu0
        %v2242 = vadd.f32 %v1889, %v2241
        %v2243 = vpop.f32.mrf.mxu0
        %v2244 = vadd.f32 %v1891, %v2243
        %v2245 = vpop.f32.mrf.mxu0
        %v2246 = vadd.f32 %v1893, %v2245
        %2247 = vmatprep.mubr.bf16.mxu0 %v1465
        %2248 = vmatmul.mubr.bf16.gmra.mxu0 %v1464
        %v2249 = vpop.f32.mrf.mxu0
        %v2250 = vadd.f32 %v1897, %v2249
        %v2251 = vpop.f32.mrf.mxu0
        %v2252 = vadd.f32 %v1899, %v2251
        %v2253 = vpop.f32.mrf.mxu0
        %v2254 = vadd.f32 %v1901, %v2253
        %v2255 = vpop.f32.mrf.mxu0
        %v2256 = vadd.f32 %v1903, %v2255
        %2257 = vmatprep.mubr.bf16.mxu0 %v1469
        %2258 = vmatmul.mubr.bf16.gmra.mxu0 %v1468
        %v2259 = vpop.f32.mrf.mxu0
        %v2260 = vadd.f32 %v1907, %v2259
        %v2261 = vpop.f32.mrf.mxu0
        %v2262 = vadd.f32 %v1909, %v2261
        %v2263 = vpop.f32.mrf.mxu0
        %v2264 = vadd.f32 %v1911, %v2263
        %v2265 = vpop.f32.mrf.mxu0
        %v2266 = vadd.f32 %v1913, %v2265
        %2267 = vmatprep.mubr.bf16.mxu0 %v1473
        %2268 = vmatmul.mubr.bf16.gmra.mxu0 %v1472
        %v2269 = vpop.f32.mrf.mxu0
        %v2270 = vadd.f32 %v1917, %v2269
        %v2271 = vpop.f32.mrf.mxu0
        %v2272 = vadd.f32 %v1919, %v2271
        %v2273 = vpop.f32.mrf.mxu0
        %v2274 = vadd.f32 %v1921, %v2273
        %v2275 = vpop.f32.mrf.mxu0
        %v2276 = vadd.f32 %v1923, %v2275
        %2277 = vmatprep.mubr.bf16.mxu0 %v1477
        %2278 = vmatmul.mubr.bf16.gmra.mxu0 %v1476
        %v2279 = vpop.f32.mrf.mxu0
        %v2280 = vadd.f32 %v1927, %v2279
        %v2281 = vpop.f32.mrf.mxu0
        %v2282 = vadd.f32 %v1929, %v2281
        %v2283 = vpop.f32.mrf.mxu0
        %v2284 = vadd.f32 %v1931, %v2283
        %v2285 = vpop.f32.mrf.mxu0
        %v2286 = vadd.f32 %v1933, %v2285
        %2287 = vmatprep.mubr.bf16.mxu0 %v1481
        %2288 = vmatmul.mubr.bf16.gmra.mxu0 %v1480
        %v2289 = vpop.f32.mrf.mxu0
        %v2290 = vadd.f32 %v1937, %v2289
        %v2291 = vpop.f32.mrf.mxu0
        %v2292 = vadd.f32 %v1939, %v2291
        %v2293 = vpop.f32.mrf.mxu0
        %v2294 = vadd.f32 %v1941, %v2293
        %v2295 = vpop.f32.mrf.mxu0
        %v2296 = vadd.f32 %v1943, %v2295
        %2297 = vmatprep.mubr.bf16.mxu0 %v1485
        %2298 = vmatmul.mubr.bf16.gmra.mxu0 %v1484
        %v2299 = vpop.f32.mrf.mxu0
        %v2300 = vadd.f32 %v1947, %v2299
        %v2301 = vpop.f32.mrf.mxu0
        %v2302 = vadd.f32 %v1949, %v2301
        %v2303 = vpop.f32.mrf.mxu0
        %v2304 = vadd.f32 %v1951, %v2303
        %v2305 = vpop.f32.mrf.mxu0
        %v2306 = vadd.f32 %v1953, %v2305
        %2307 = vmatprep.mubr.bf16.mxu0 %v1489
        %2308 = vmatmul.mubr.bf16.gmra.mxu0 %v1488
        %v2309 = vpop.f32.mrf.mxu0
        %v2310 = vadd.f32 %v1957, %v2309
        %v2311 = vpop.f32.mrf.mxu0
        %v2312 = vadd.f32 %v1959, %v2311
        %v2313 = vpop.f32.mrf.mxu0
        %v2314 = vadd.f32 %v1961, %v2313
        %v2315 = vpop.f32.mrf.mxu0
        %v2316 = vadd.f32 %v1963, %v2315
        %2317 = vmatprep.mubr.bf16.mxu0 %v1493
        %2318 = vmatmul.mubr.bf16.gmra.mxu0 %v1492
        %v2319 = vpop.f32.mrf.mxu0
        %v2320 = vadd.f32 %v1967, %v2319
        %v2321 = vpop.f32.mrf.mxu0
        %v2322 = vadd.f32 %v1969, %v2321
        %v2323 = vpop.f32.mrf.mxu0
        %v2324 = vadd.f32 %v1971, %v2323
        %v2325 = vpop.f32.mrf.mxu0
        %v2326 = vadd.f32 %v1973, %v2325
        %2327 = vdwg.mxu0
        %vm2328 = vcmp.ge.f32.partialorder %v2010, 0.0
        %vm2329 = vcmp.ge.f32.partialorder %v2012, 0.0
        %vm2330 = vcmp.ge.f32.partialorder %v2014, 0.0
        %vm2331 = vcmp.ge.f32.partialorder %v2016, 0.0
        %vm2332 = vcmp.ge.f32.partialorder %v2020, 0.0
        %vm2333 = vcmp.ge.f32.partialorder %v2022, 0.0
        %vm2334 = vcmp.ge.f32.partialorder %v2024, 0.0
        %vm2335 = vcmp.ge.f32.partialorder %v2026, 0.0
        %vm2336 = vcmp.ge.f32.partialorder %v2030, 0.0
        %vm2337 = vcmp.ge.f32.partialorder %v2032, 0.0
        %vm2338 = vcmp.ge.f32.partialorder %v2034, 0.0
        %vm2339 = vcmp.ge.f32.partialorder %v2036, 0.0
        %vm2340 = vcmp.ge.f32.partialorder %v2040, 0.0
        %vm2341 = vcmp.ge.f32.partialorder %v2042, 0.0
        %vm2342 = vcmp.ge.f32.partialorder %v2044, 0.0
        %vm2343 = vcmp.ge.f32.partialorder %v2046, 0.0
        %vm2344 = vcmp.ge.f32.partialorder %v2050, 0.0
        %vm2345 = vcmp.ge.f32.partialorder %v2052, 0.0
        %vm2346 = vcmp.ge.f32.partialorder %v2054, 0.0
        %vm2347 = vcmp.ge.f32.partialorder %v2056, 0.0
        %vm2348 = vcmp.ge.f32.partialorder %v2060, 0.0
        %vm2349 = vcmp.ge.f32.partialorder %v2062, 0.0
        %vm2350 = vcmp.ge.f32.partialorder %v2064, 0.0
        %vm2351 = vcmp.ge.f32.partialorder %v2066, 0.0
        %vm2352 = vcmp.ge.f32.partialorder %v2070, 0.0
        %vm2353 = vcmp.ge.f32.partialorder %v2072, 0.0
        %vm2354 = vcmp.ge.f32.partialorder %v2074, 0.0
        %vm2355 = vcmp.ge.f32.partialorder %v2076, 0.0
        %vm2356 = vcmp.ge.f32.partialorder %v2080, 0.0
        %vm2357 = vcmp.ge.f32.partialorder %v2082, 0.0
        %vm2358 = vcmp.ge.f32.partialorder %v2084, 0.0
        %vm2359 = vcmp.ge.f32.partialorder %v2086, 0.0
        %vm2360 = vcmp.ge.f32.partialorder %v2090, 0.0
        %vm2361 = vcmp.ge.f32.partialorder %v2092, 0.0
        %vm2362 = vcmp.ge.f32.partialorder %v2094, 0.0
        %vm2363 = vcmp.ge.f32.partialorder %v2096, 0.0
        %vm2364 = vcmp.ge.f32.partialorder %v2100, 0.0
        %vm2365 = vcmp.ge.f32.partialorder %v2102, 0.0
        %vm2366 = vcmp.ge.f32.partialorder %v2104, 0.0
        %vm2367 = vcmp.ge.f32.partialorder %v2106, 0.0
        %vm2368 = vcmp.ge.f32.partialorder %v2110, 0.0
        %vm2369 = vcmp.ge.f32.partialorder %v2112, 0.0
        %vm2370 = vcmp.ge.f32.partialorder %v2114, 0.0
        %vm2371 = vcmp.ge.f32.partialorder %v2116, 0.0
        %vm2372 = vcmp.ge.f32.partialorder %v2120, 0.0
        %vm2373 = vcmp.ge.f32.partialorder %v2122, 0.0
        %vm2374 = vcmp.ge.f32.partialorder %v2124, 0.0
        %vm2375 = vcmp.ge.f32.partialorder %v2126, 0.0
        %vm2376 = vcmp.ge.f32.partialorder %v2130, 0.0
        %vm2377 = vcmp.ge.f32.partialorder %v2132, 0.0
        %vm2378 = vcmp.ge.f32.partialorder %v2134, 0.0
        %vm2379 = vcmp.ge.f32.partialorder %v2136, 0.0
        %vm2380 = vcmp.ge.f32.partialorder %v2140, 0.0
        %vm2381 = vcmp.ge.f32.partialorder %v2142, 0.0
        %vm2382 = vcmp.ge.f32.partialorder %v2144, 0.0
        %vm2383 = vcmp.ge.f32.partialorder %v2146, 0.0
        %vm2384 = vcmp.ge.f32.partialorder %v2150, 0.0
        %vm2385 = vcmp.ge.f32.partialorder %v2152, 0.0
        %vm2386 = vcmp.ge.f32.partialorder %v2154, 0.0
        %vm2387 = vcmp.ge.f32.partialorder %v2156, 0.0
        %vm2388 = vcmp.ge.f32.partialorder %v2160, 0.0
        %vm2389 = vcmp.ge.f32.partialorder %v2162, 0.0
        %vm2390 = vcmp.ge.f32.partialorder %v2164, 0.0
        %vm2391 = vcmp.ge.f32.partialorder %v2166, 0.0
        %vm2392 = vcmp.ge.f32.partialorder %v2170, 0.0
        %vm2393 = vcmp.ge.f32.partialorder %v2172, 0.0
        %vm2394 = vcmp.ge.f32.partialorder %v2174, 0.0
        %vm2395 = vcmp.ge.f32.partialorder %v2176, 0.0
        %vm2396 = vcmp.ge.f32.partialorder %v2180, 0.0
        %vm2397 = vcmp.ge.f32.partialorder %v2182, 0.0
        %vm2398 = vcmp.ge.f32.partialorder %v2184, 0.0
        %vm2399 = vcmp.ge.f32.partialorder %v2186, 0.0
        %vm2400 = vcmp.ge.f32.partialorder %v2190, 0.0
        %vm2401 = vcmp.ge.f32.partialorder %v2192, 0.0
        %vm2402 = vcmp.ge.f32.partialorder %v2194, 0.0
        %vm2403 = vcmp.ge.f32.partialorder %v2196, 0.0
        %vm2404 = vcmp.ge.f32.partialorder %v2200, 0.0
        %vm2405 = vcmp.ge.f32.partialorder %v2202, 0.0
        %vm2406 = vcmp.ge.f32.partialorder %v2204, 0.0
        %vm2407 = vcmp.ge.f32.partialorder %v2206, 0.0
        %vm2408 = vcmp.ge.f32.partialorder %v2210, 0.0
        %vm2409 = vcmp.ge.f32.partialorder %v2212, 0.0
        %vm2410 = vcmp.ge.f32.partialorder %v2214, 0.0
        %vm2411 = vcmp.ge.f32.partialorder %v2216, 0.0
        %vm2412 = vcmp.ge.f32.partialorder %v2220, 0.0
        %vm2413 = vcmp.ge.f32.partialorder %v2222, 0.0
        %vm2414 = vcmp.ge.f32.partialorder %v2224, 0.0
        %vm2415 = vcmp.ge.f32.partialorder %v2226, 0.0
        %vm2416 = vcmp.ge.f32.partialorder %v2230, 0.0
        %vm2417 = vcmp.ge.f32.partialorder %v2232, 0.0
        %vm2418 = vcmp.ge.f32.partialorder %v2234, 0.0
        %vm2419 = vcmp.ge.f32.partialorder %v2236, 0.0
        %vm2420 = vcmp.ge.f32.partialorder %v2240, 0.0
        %vm2421 = vcmp.ge.f32.partialorder %v2242, 0.0
        %vm2422 = vcmp.ge.f32.partialorder %v2244, 0.0
        %vm2423 = vcmp.ge.f32.partialorder %v2246, 0.0
        %vm2424 = vcmp.ge.f32.partialorder %v2250, 0.0
        %vm2425 = vcmp.ge.f32.partialorder %v2252, 0.0
        %vm2426 = vcmp.ge.f32.partialorder %v2254, 0.0
        %vm2427 = vcmp.ge.f32.partialorder %v2256, 0.0
        %vm2428 = vcmp.ge.f32.partialorder %v2260, 0.0
        %vm2429 = vcmp.ge.f32.partialorder %v2262, 0.0
        %vm2430 = vcmp.ge.f32.partialorder %v2264, 0.0
        %vm2431 = vcmp.ge.f32.partialorder %v2266, 0.0
        %vm2432 = vcmp.ge.f32.partialorder %v2270, 0.0
        %vm2433 = vcmp.ge.f32.partialorder %v2272, 0.0
        %vm2434 = vcmp.ge.f32.partialorder %v2274, 0.0
        %vm2435 = vcmp.ge.f32.partialorder %v2276, 0.0
        %vm2436 = vcmp.ge.f32.partialorder %v2280, 0.0
        %vm2437 = vcmp.ge.f32.partialorder %v2282, 0.0
        %vm2438 = vcmp.ge.f32.partialorder %v2284, 0.0
        %vm2439 = vcmp.ge.f32.partialorder %v2286, 0.0
        %vm2440 = vcmp.ge.f32.partialorder %v2290, 0.0
        %vm2441 = vcmp.ge.f32.partialorder %v2292, 0.0
        %vm2442 = vcmp.ge.f32.partialorder %v2294, 0.0
        %vm2443 = vcmp.ge.f32.partialorder %v2296, 0.0
        %vm2444 = vcmp.ge.f32.partialorder %v2300, 0.0
        %vm2445 = vcmp.ge.f32.partialorder %v2302, 0.0
        %vm2446 = vcmp.ge.f32.partialorder %v2304, 0.0
        %vm2447 = vcmp.ge.f32.partialorder %v2306, 0.0
        %vm2448 = vcmp.ge.f32.partialorder %v2310, 0.0
        %vm2449 = vcmp.ge.f32.partialorder %v2312, 0.0
        %vm2450 = vcmp.ge.f32.partialorder %v2314, 0.0
        %vm2451 = vcmp.ge.f32.partialorder %v2316, 0.0
        %vm2452 = vcmp.ge.f32.partialorder %v2320, 0.0
        %vm2453 = vcmp.ge.f32.partialorder %v2322, 0.0
        %vm2454 = vcmp.ge.f32.partialorder %v2324, 0.0
        %vm2455 = vcmp.ge.f32.partialorder %v2326, 0.0
        %v2456 = vmul.f32 %v2010, 0.2
        %v2457 = vmul.f32 %v2012, 0.2
        %v2458 = vmul.f32 %v2014, 0.2
        %v2459 = vmul.f32 %v2016, 0.2
        %v2460 = vmul.f32 %v2020, 0.2
        %v2461 = vmul.f32 %v2022, 0.2
        %v2462 = vmul.f32 %v2024, 0.2
        %v2463 = vmul.f32 %v2026, 0.2
        %v2464 = vmul.f32 %v2030, 0.2
        %v2465 = vmul.f32 %v2032, 0.2
        %v2466 = vmul.f32 %v2034, 0.2
        %v2467 = vmul.f32 %v2036, 0.2
        %v2468 = vmul.f32 %v2040, 0.2
        %v2469 = vmul.f32 %v2042, 0.2
        %v2470 = vmul.f32 %v2044, 0.2
        %v2471 = vmul.f32 %v2046, 0.2
        %v2472 = vmul.f32 %v2050, 0.2
        %v2473 = vmul.f32 %v2052, 0.2
        %v2474 = vmul.f32 %v2054, 0.2
        %v2475 = vmul.f32 %v2056, 0.2
        %v2476 = vmul.f32 %v2060, 0.2
        %v2477 = vmul.f32 %v2062, 0.2
        %v2478 = vmul.f32 %v2064, 0.2
        %v2479 = vmul.f32 %v2066, 0.2
        %v2480 = vmul.f32 %v2070, 0.2
        %v2481 = vmul.f32 %v2072, 0.2
        %v2482 = vmul.f32 %v2074, 0.2
        %v2483 = vmul.f32 %v2076, 0.2
        %v2484 = vmul.f32 %v2080, 0.2
        %v2485 = vmul.f32 %v2082, 0.2
        %v2486 = vmul.f32 %v2084, 0.2
        %v2487 = vmul.f32 %v2086, 0.2
        %v2488 = vmul.f32 %v2090, 0.2
        %v2489 = vmul.f32 %v2092, 0.2
        %v2490 = vmul.f32 %v2094, 0.2
        %v2491 = vmul.f32 %v2096, 0.2
        %v2492 = vmul.f32 %v2100, 0.2
        %v2493 = vmul.f32 %v2102, 0.2
        %v2494 = vmul.f32 %v2104, 0.2
        %v2495 = vmul.f32 %v2106, 0.2
        %v2496 = vmul.f32 %v2110, 0.2
        %v2497 = vmul.f32 %v2112, 0.2
        %v2498 = vmul.f32 %v2114, 0.2
        %v2499 = vmul.f32 %v2116, 0.2
        %v2500 = vmul.f32 %v2120, 0.2
        %v2501 = vmul.f32 %v2122, 0.2
        %v2502 = vmul.f32 %v2124, 0.2
        %v2503 = vmul.f32 %v2126, 0.2
        %v2504 = vmul.f32 %v2130, 0.2
        %v2505 = vmul.f32 %v2132, 0.2
        %v2506 = vmul.f32 %v2134, 0.2
        %v2507 = vmul.f32 %v2136, 0.2
        %v2508 = vmul.f32 %v2140, 0.2
        %v2509 = vmul.f32 %v2142, 0.2
        %v2510 = vmul.f32 %v2144, 0.2
        %v2511 = vmul.f32 %v2146, 0.2
        %v2512 = vmul.f32 %v2150, 0.2
        %v2513 = vmul.f32 %v2152, 0.2
        %v2514 = vmul.f32 %v2154, 0.2
        %v2515 = vmul.f32 %v2156, 0.2
        %v2516 = vmul.f32 %v2160, 0.2
        %v2517 = vmul.f32 %v2162, 0.2
        %v2518 = vmul.f32 %v2164, 0.2
        %v2519 = vmul.f32 %v2166, 0.2
        %v2520 = vmul.f32 %v2170, 0.2
        %v2521 = vmul.f32 %v2172, 0.2
        %v2522 = vmul.f32 %v2174, 0.2
        %v2523 = vmul.f32 %v2176, 0.2
        %v2524 = vmul.f32 %v2180, 0.2
        %v2525 = vmul.f32 %v2182, 0.2
        %v2526 = vmul.f32 %v2184, 0.2
        %v2527 = vmul.f32 %v2186, 0.2
        %v2528 = vmul.f32 %v2190, 0.2
        %v2529 = vmul.f32 %v2192, 0.2
        %v2530 = vmul.f32 %v2194, 0.2
        %v2531 = vmul.f32 %v2196, 0.2
        %v2532 = vmul.f32 %v2200, 0.2
        %v2533 = vmul.f32 %v2202, 0.2
        %v2534 = vmul.f32 %v2204, 0.2
        %v2535 = vmul.f32 %v2206, 0.2
        %v2536 = vmul.f32 %v2210, 0.2
        %v2537 = vmul.f32 %v2212, 0.2
        %v2538 = vmul.f32 %v2214, 0.2
        %v2539 = vmul.f32 %v2216, 0.2
        %v2540 = vmul.f32 %v2220, 0.2
        %v2541 = vmul.f32 %v2222, 0.2
        %v2542 = vmul.f32 %v2224, 0.2
        %v2543 = vmul.f32 %v2226, 0.2
        %v2544 = vmul.f32 %v2230, 0.2
        %v2545 = vmul.f32 %v2232, 0.2
        %v2546 = vmul.f32 %v2234, 0.2
        %v2547 = vmul.f32 %v2236, 0.2
        %v2548 = vmul.f32 %v2240, 0.2
        %v2549 = vmul.f32 %v2242, 0.2
        %v2550 = vmul.f32 %v2244, 0.2
        %v2551 = vmul.f32 %v2246, 0.2
        %v2552 = vmul.f32 %v2250, 0.2
        %v2553 = vmul.f32 %v2252, 0.2
        %v2554 = vmul.f32 %v2254, 0.2
        %v2555 = vmul.f32 %v2256, 0.2
        %v2556 = vmul.f32 %v2260, 0.2
        %v2557 = vmul.f32 %v2262, 0.2
        %v2558 = vmul.f32 %v2264, 0.2
        %v2559 = vmul.f32 %v2266, 0.2
        %v2560 = vmul.f32 %v2270, 0.2
        %v2561 = vmul.f32 %v2272, 0.2
        %v2562 = vmul.f32 %v2274, 0.2
        %v2563 = vmul.f32 %v2276, 0.2
        %v2564 = vmul.f32 %v2280, 0.2
        %v2565 = vmul.f32 %v2282, 0.2
        %v2566 = vmul.f32 %v2284, 0.2
        %v2567 = vmul.f32 %v2286, 0.2
        %v2568 = vmul.f32 %v2290, 0.2
        %v2569 = vmul.f32 %v2292, 0.2
        %v2570 = vmul.f32 %v2294, 0.2
        %v2571 = vmul.f32 %v2296, 0.2
        %v2572 = vmul.f32 %v2300, 0.2
        %v2573 = vmul.f32 %v2302, 0.2
        %v2574 = vmul.f32 %v2304, 0.2
        %v2575 = vmul.f32 %v2306, 0.2
        %v2576 = vmul.f32 %v2310, 0.2
        %v2577 = vmul.f32 %v2312, 0.2
        %v2578 = vmul.f32 %v2314, 0.2
        %v2579 = vmul.f32 %v2316, 0.2
        %v2580 = vmul.f32 %v2320, 0.2
        %v2581 = vmul.f32 %v2322, 0.2
        %v2582 = vmul.f32 %v2324, 0.2
        %v2583 = vmul.f32 %v2326, 0.2
        %v2584 = vsel %vm2328, %v2010, %v2456
        %v2585 = vsel %vm2329, %v2012, %v2457
        %v2586 = vsel %vm2330, %v2014, %v2458
        %v2587 = vsel %vm2331, %v2016, %v2459
        %v2588 = vsel %vm2332, %v2020, %v2460
        %v2589 = vsel %vm2333, %v2022, %v2461
        %v2590 = vsel %vm2334, %v2024, %v2462
        %v2591 = vsel %vm2335, %v2026, %v2463
        %v2592 = vsel %vm2336, %v2030, %v2464
        %v2593 = vsel %vm2337, %v2032, %v2465
        %v2594 = vsel %vm2338, %v2034, %v2466
        %v2595 = vsel %vm2339, %v2036, %v2467
        %v2596 = vsel %vm2340, %v2040, %v2468
        %v2597 = vsel %vm2341, %v2042, %v2469
        %v2598 = vsel %vm2342, %v2044, %v2470
        %v2599 = vsel %vm2343, %v2046, %v2471
        %v2600 = vsel %vm2344, %v2050, %v2472
        %v2601 = vsel %vm2345, %v2052, %v2473
        %v2602 = vsel %vm2346, %v2054, %v2474
        %v2603 = vsel %vm2347, %v2056, %v2475
        %v2604 = vsel %vm2348, %v2060, %v2476
        %v2605 = vsel %vm2349, %v2062, %v2477
        %v2606 = vsel %vm2350, %v2064, %v2478
        %v2607 = vsel %vm2351, %v2066, %v2479
        %v2608 = vsel %vm2352, %v2070, %v2480
        %v2609 = vsel %vm2353, %v2072, %v2481
        %v2610 = vsel %vm2354, %v2074, %v2482
        %v2611 = vsel %vm2355, %v2076, %v2483
        %v2612 = vsel %vm2356, %v2080, %v2484
        %v2613 = vsel %vm2357, %v2082, %v2485
        %v2614 = vsel %vm2358, %v2084, %v2486
        %v2615 = vsel %vm2359, %v2086, %v2487
        %v2616 = vsel %vm2360, %v2090, %v2488
        %v2617 = vsel %vm2361, %v2092, %v2489
        %v2618 = vsel %vm2362, %v2094, %v2490
        %v2619 = vsel %vm2363, %v2096, %v2491
        %v2620 = vsel %vm2364, %v2100, %v2492
        %v2621 = vsel %vm2365, %v2102, %v2493
        %v2622 = vsel %vm2366, %v2104, %v2494
        %v2623 = vsel %vm2367, %v2106, %v2495
        %v2624 = vsel %vm2368, %v2110, %v2496
        %v2625 = vsel %vm2369, %v2112, %v2497
        %v2626 = vsel %vm2370, %v2114, %v2498
        %v2627 = vsel %vm2371, %v2116, %v2499
        %v2628 = vsel %vm2372, %v2120, %v2500
        %v2629 = vsel %vm2373, %v2122, %v2501
        %v2630 = vsel %vm2374, %v2124, %v2502
        %v2631 = vsel %vm2375, %v2126, %v2503
        %v2632 = vsel %vm2376, %v2130, %v2504
        %v2633 = vsel %vm2377, %v2132, %v2505
        %v2634 = vsel %vm2378, %v2134, %v2506
        %v2635 = vsel %vm2379, %v2136, %v2507
        %v2636 = vsel %vm2380, %v2140, %v2508
        %v2637 = vsel %vm2381, %v2142, %v2509
        %v2638 = vsel %vm2382, %v2144, %v2510
        %v2639 = vsel %vm2383, %v2146, %v2511
        %v2640 = vsel %vm2384, %v2150, %v2512
        %v2641 = vsel %vm2385, %v2152, %v2513
        %v2642 = vsel %vm2386, %v2154, %v2514
        %v2643 = vsel %vm2387, %v2156, %v2515
        %v2644 = vsel %vm2388, %v2160, %v2516
        %v2645 = vsel %vm2389, %v2162, %v2517
        %v2646 = vsel %vm2390, %v2164, %v2518
        %v2647 = vsel %vm2391, %v2166, %v2519
        %v2648 = vsel %vm2392, %v2170, %v2520
        %v2649 = vsel %vm2393, %v2172, %v2521
        %v2650 = vsel %vm2394, %v2174, %v2522
        %v2651 = vsel %vm2395, %v2176, %v2523
        %v2652 = vsel %vm2396, %v2180, %v2524
        %v2653 = vsel %vm2397, %v2182, %v2525
        %v2654 = vsel %vm2398, %v2184, %v2526
        %v2655 = vsel %vm2399, %v2186, %v2527
        %v2656 = vsel %vm2400, %v2190, %v2528
        %v2657 = vsel %vm2401, %v2192, %v2529
        %v2658 = vsel %vm2402, %v2194, %v2530
        %v2659 = vsel %vm2403, %v2196, %v2531
        %v2660 = vsel %vm2404, %v2200, %v2532
        %v2661 = vsel %vm2405, %v2202, %v2533
        %v2662 = vsel %vm2406, %v2204, %v2534
        %v2663 = vsel %vm2407, %v2206, %v2535
        %v2664 = vsel %vm2408, %v2210, %v2536
        %v2665 = vsel %vm2409, %v2212, %v2537
        %v2666 = vsel %vm2410, %v2214, %v2538
        %v2667 = vsel %vm2411, %v2216, %v2539
        %v2668 = vsel %vm2412, %v2220, %v2540
        %v2669 = vsel %vm2413, %v2222, %v2541
        %v2670 = vsel %vm2414, %v2224, %v2542
        %v2671 = vsel %vm2415, %v2226, %v2543
        %v2672 = vsel %vm2416, %v2230, %v2544
        %v2673 = vsel %vm2417, %v2232, %v2545
        %v2674 = vsel %vm2418, %v2234, %v2546
        %v2675 = vsel %vm2419, %v2236, %v2547
        %v2676 = vsel %vm2420, %v2240, %v2548
        %v2677 = vsel %vm2421, %v2242, %v2549
        %v2678 = vsel %vm2422, %v2244, %v2550
        %v2679 = vsel %vm2423, %v2246, %v2551
        %v2680 = vsel %vm2424, %v2250, %v2552
        %v2681 = vsel %vm2425, %v2252, %v2553
        %v2682 = vsel %vm2426, %v2254, %v2554
        %v2683 = vsel %vm2427, %v2256, %v2555
        %v2684 = vsel %vm2428, %v2260, %v2556
        %v2685 = vsel %vm2429, %v2262, %v2557
        %v2686 = vsel %vm2430, %v2264, %v2558
        %v2687 = vsel %vm2431, %v2266, %v2559
        %v2688 = vsel %vm2432, %v2270, %v2560
        %v2689 = vsel %vm2433, %v2272, %v2561
        %v2690 = vsel %vm2434, %v2274, %v2562
        %v2691 = vsel %vm2435, %v2276, %v2563
        %v2692 = vsel %vm2436, %v2280, %v2564
        %v2693 = vsel %vm2437, %v2282, %v2565
        %v2694 = vsel %vm2438, %v2284, %v2566
        %v2695 = vsel %vm2439, %v2286, %v2567
        %v2696 = vsel %vm2440, %v2290, %v2568
        %v2697 = vsel %vm2441, %v2292, %v2569
        %v2698 = vsel %vm2442, %v2294, %v2570
        %v2699 = vsel %vm2443, %v2296, %v2571
        %v2700 = vsel %vm2444, %v2300, %v2572
        %v2701 = vsel %vm2445, %v2302, %v2573
        %v2702 = vsel %vm2446, %v2304, %v2574
        %v2703 = vsel %vm2447, %v2306, %v2575
        %v2704 = vsel %vm2448, %v2310, %v2576
        %v2705 = vsel %vm2449, %v2312, %v2577
        %v2706 = vsel %vm2450, %v2314, %v2578
        %v2707 = vsel %vm2451, %v2316, %v2579
        %v2708 = vsel %vm2452, %v2320, %v2580
        %v2709 = vsel %vm2453, %v2322, %v2581
        %v2710 = vsel %vm2454, %v2324, %v2582
        %v2711 = vsel %vm2455, %v2326, %v2583
        %v2712 = vld [vmem:[#allocation5] sm:$0xff]
        %v2713 = vld [vmem:[#allocation5 + $0x8] sm:$0xff]
        %v2714 = vld [vmem:[#allocation5 + $0x10] sm:$0xff]
        %v2715 = vld [vmem:[#allocation5 + $0x18] sm:$0xff]
        %v2716 = vld [vmem:[#allocation5 + $0x20] sm:$0xff]
        %v2717 = vld [vmem:[#allocation5 + $0x28] sm:$0xff]
        %v2718 = vld [vmem:[#allocation5 + $0x30] sm:$0xff]
        %v2719 = vld [vmem:[#allocation5 + $0x38] sm:$0xff]
        %v2720 = vld [vmem:[#allocation5 + $0x40] sm:$0xff]
        %v2721 = vld [vmem:[#allocation5 + $0x48] sm:$0xff]
        %v2722 = vld [vmem:[#allocation5 + $0x50] sm:$0xff]
        %v2723 = vld [vmem:[#allocation5 + $0x58] sm:$0xff]
        %v2724 = vld [vmem:[#allocation5 + $0x60] sm:$0xff]
        %v2725 = vld [vmem:[#allocation5 + $0x68] sm:$0xff]
        %v2726 = vld [vmem:[#allocation5 + $0x70] sm:$0xff]
        %v2727 = vld [vmem:[#allocation5 + $0x78] sm:$0xff]
        %v2728 = vld [vmem:[#allocation5 + $0x80] sm:$0xff]
        %v2729 = vld [vmem:[#allocation5 + $0x88] sm:$0xff]
        %v2730 = vld [vmem:[#allocation5 + $0x90] sm:$0xff]
        %v2731 = vld [vmem:[#allocation5 + $0x98] sm:$0xff]
        %v2732 = vld [vmem:[#allocation5 + $0xa0] sm:$0xff]
        %v2733 = vld [vmem:[#allocation5 + $0xa8] sm:$0xff]
        %v2734 = vld [vmem:[#allocation5 + $0xb0] sm:$0xff]
        %v2735 = vld [vmem:[#allocation5 + $0xb8] sm:$0xff]
        %v2736 = vld [vmem:[#allocation5 + $0xc0] sm:$0xff]
        %v2737 = vld [vmem:[#allocation5 + $0xc8] sm:$0xff]
        %v2738 = vld [vmem:[#allocation5 + $0xd0] sm:$0xff]
        %v2739 = vld [vmem:[#allocation5 + $0xd8] sm:$0xff]
        %v2740 = vld [vmem:[#allocation5 + $0xe0] sm:$0xff]
        %v2741 = vld [vmem:[#allocation5 + $0xe8] sm:$0xff]
        %v2742 = vld [vmem:[#allocation5 + $0xf0] sm:$0xff]
        %v2743 = vld [vmem:[#allocation5 + $0xf8] sm:$0xff]
        %v2744 = vld [vmem:[#allocation5 + $0x100] sm:$0xff]
        %v2745 = vld [vmem:[#allocation5 + $0x108] sm:$0xff]
        %v2746 = vld [vmem:[#allocation5 + $0x110] sm:$0xff]
        %v2747 = vld [vmem:[#allocation5 + $0x118] sm:$0xff]
        %v2748 = vld [vmem:[#allocation5 + $0x120] sm:$0xff]
        %v2749 = vld [vmem:[#allocation5 + $0x128] sm:$0xff]
        %v2750 = vld [vmem:[#allocation5 + $0x130] sm:$0xff]
        %v2751 = vld [vmem:[#allocation5 + $0x138] sm:$0xff]
        %v2752 = vld [vmem:[#allocation5 + $0x140] sm:$0xff]
        %v2753 = vld [vmem:[#allocation5 + $0x148] sm:$0xff]
        %v2754 = vld [vmem:[#allocation5 + $0x150] sm:$0xff]
        %v2755 = vld [vmem:[#allocation5 + $0x158] sm:$0xff]
        %v2756 = vld [vmem:[#allocation5 + $0x160] sm:$0xff]
        %v2757 = vld [vmem:[#allocation5 + $0x168] sm:$0xff]
        %v2758 = vld [vmem:[#allocation5 + $0x170] sm:$0xff]
        %v2759 = vld [vmem:[#allocation5 + $0x178] sm:$0xff]
        %v2760 = vld [vmem:[#allocation5 + $0x180] sm:$0xff]
        %v2761 = vld [vmem:[#allocation5 + $0x188] sm:$0xff]
        %v2762 = vld [vmem:[#allocation5 + $0x190] sm:$0xff]
        %v2763 = vld [vmem:[#allocation5 + $0x198] sm:$0xff]
        %v2764 = vld [vmem:[#allocation5 + $0x1a0] sm:$0xff]
        %v2765 = vld [vmem:[#allocation5 + $0x1a8] sm:$0xff]
        %v2766 = vld [vmem:[#allocation5 + $0x1b0] sm:$0xff]
        %v2767 = vld [vmem:[#allocation5 + $0x1b8] sm:$0xff]
        %v2768 = vld [vmem:[#allocation5 + $0x1c0] sm:$0xff]
        %v2769 = vld [vmem:[#allocation5 + $0x1c8] sm:$0xff]
        %v2770 = vld [vmem:[#allocation5 + $0x1d0] sm:$0xff]
        %v2771 = vld [vmem:[#allocation5 + $0x1d8] sm:$0xff]
        %v2772 = vld [vmem:[#allocation5 + $0x1e0] sm:$0xff]
        %v2773 = vld [vmem:[#allocation5 + $0x1e8] sm:$0xff]
        %v2774 = vld [vmem:[#allocation5 + $0x1f0] sm:$0xff]
        %v2775 = vld [vmem:[#allocation5 + $0x1f8] sm:$0xff]
        %v2776 = vld [vmem:[#allocation5 + $0x200] sm:$0xff]
        %v2777 = vld [vmem:[#allocation5 + $0x208] sm:$0xff]
        %v2778 = vld [vmem:[#allocation5 + $0x210] sm:$0xff]
        %v2779 = vld [vmem:[#allocation5 + $0x218] sm:$0xff]
        %v2780 = vld [vmem:[#allocation5 + $0x220] sm:$0xff]
        %v2781 = vld [vmem:[#allocation5 + $0x228] sm:$0xff]
        %v2782 = vld [vmem:[#allocation5 + $0x230] sm:$0xff]
        %v2783 = vld [vmem:[#allocation5 + $0x238] sm:$0xff]
        %v2784 = vld [vmem:[#allocation5 + $0x240] sm:$0xff]
        %v2785 = vld [vmem:[#allocation5 + $0x248] sm:$0xff]
        %v2786 = vld [vmem:[#allocation5 + $0x250] sm:$0xff]
        %v2787 = vld [vmem:[#allocation5 + $0x258] sm:$0xff]
        %v2788 = vld [vmem:[#allocation5 + $0x260] sm:$0xff]
        %v2789 = vld [vmem:[#allocation5 + $0x268] sm:$0xff]
        %v2790 = vld [vmem:[#allocation5 + $0x270] sm:$0xff]
        %v2791 = vld [vmem:[#allocation5 + $0x278] sm:$0xff]
        %v2792 = vld [vmem:[#allocation5 + $0x280] sm:$0xff]
        %v2793 = vld [vmem:[#allocation5 + $0x288] sm:$0xff]
        %v2794 = vld [vmem:[#allocation5 + $0x290] sm:$0xff]
        %v2795 = vld [vmem:[#allocation5 + $0x298] sm:$0xff]
        %v2796 = vld [vmem:[#allocation5 + $0x2a0] sm:$0xff]
        %v2797 = vld [vmem:[#allocation5 + $0x2a8] sm:$0xff]
        %v2798 = vld [vmem:[#allocation5 + $0x2b0] sm:$0xff]
        %v2799 = vld [vmem:[#allocation5 + $0x2b8] sm:$0xff]
        %v2800 = vld [vmem:[#allocation5 + $0x2c0] sm:$0xff]
        %v2801 = vld [vmem:[#allocation5 + $0x2c8] sm:$0xff]
        %v2802 = vld [vmem:[#allocation5 + $0x2d0] sm:$0xff]
        %v2803 = vld [vmem:[#allocation5 + $0x2d8] sm:$0xff]
        %v2804 = vld [vmem:[#allocation5 + $0x2e0] sm:$0xff]
        %v2805 = vld [vmem:[#allocation5 + $0x2e8] sm:$0xff]
        %v2806 = vld [vmem:[#allocation5 + $0x2f0] sm:$0xff]
        %v2807 = vld [vmem:[#allocation5 + $0x2f8] sm:$0xff]
        %v2808 = vld [vmem:[#allocation5 + $0x300] sm:$0xff]
        %v2809 = vld [vmem:[#allocation5 + $0x308] sm:$0xff]
        %v2810 = vld [vmem:[#allocation5 + $0x310] sm:$0xff]
        %v2811 = vld [vmem:[#allocation5 + $0x318] sm:$0xff]
        %v2812 = vld [vmem:[#allocation5 + $0x320] sm:$0xff]
        %v2813 = vld [vmem:[#allocation5 + $0x328] sm:$0xff]
        %v2814 = vld [vmem:[#allocation5 + $0x330] sm:$0xff]
        %v2815 = vld [vmem:[#allocation5 + $0x338] sm:$0xff]
        %v2816 = vld [vmem:[#allocation5 + $0x340] sm:$0xff]
        %v2817 = vld [vmem:[#allocation5 + $0x348] sm:$0xff]
        %v2818 = vld [vmem:[#allocation5 + $0x350] sm:$0xff]
        %v2819 = vld [vmem:[#allocation5 + $0x358] sm:$0xff]
        %v2820 = vld [vmem:[#allocation5 + $0x360] sm:$0xff]
        %v2821 = vld [vmem:[#allocation5 + $0x368] sm:$0xff]
        %v2822 = vld [vmem:[#allocation5 + $0x370] sm:$0xff]
        %v2823 = vld [vmem:[#allocation5 + $0x378] sm:$0xff]
        %v2824 = vld [vmem:[#allocation5 + $0x380] sm:$0xff]
        %v2825 = vld [vmem:[#allocation5 + $0x388] sm:$0xff]
        %v2826 = vld [vmem:[#allocation5 + $0x390] sm:$0xff]
        %v2827 = vld [vmem:[#allocation5 + $0x398] sm:$0xff]
        %v2828 = vld [vmem:[#allocation5 + $0x3a0] sm:$0xff]
        %v2829 = vld [vmem:[#allocation5 + $0x3a8] sm:$0xff]
        %v2830 = vld [vmem:[#allocation5 + $0x3b0] sm:$0xff]
        %v2831 = vld [vmem:[#allocation5 + $0x3b8] sm:$0xff]
        %v2832 = vld [vmem:[#allocation5 + $0x3c0] sm:$0xff]
        %v2833 = vld [vmem:[#allocation5 + $0x3c8] sm:$0xff]
        %v2834 = vld [vmem:[#allocation5 + $0x3d0] sm:$0xff]
        %v2835 = vld [vmem:[#allocation5 + $0x3d8] sm:$0xff]
        %v2836 = vld [vmem:[#allocation5 + $0x3e0] sm:$0xff]
        %v2837 = vld [vmem:[#allocation5 + $0x3e8] sm:$0xff]
        %v2838 = vld [vmem:[#allocation5 + $0x3f0] sm:$0xff]
        %v2839 = vld [vmem:[#allocation5 + $0x3f8] sm:$0xff]
        %v2840 = vpack.c.bf16 %v2586, %v2584
        %v2841 = vpack.c.bf16 %v2587, %v2585
        %v2842 = vpack.c.bf16 %v2590, %v2588
        %v2843 = vpack.c.bf16 %v2591, %v2589
        %v2844 = vpack.c.bf16 %v2594, %v2592
        %v2845 = vpack.c.bf16 %v2595, %v2593
        %v2846 = vpack.c.bf16 %v2598, %v2596
        %v2847 = vpack.c.bf16 %v2599, %v2597
        %v2848 = vpack.c.bf16 %v2602, %v2600
        %v2849 = vpack.c.bf16 %v2603, %v2601
        %v2850 = vpack.c.bf16 %v2606, %v2604
        %v2851 = vpack.c.bf16 %v2607, %v2605
        %v2852 = vpack.c.bf16 %v2610, %v2608
        %v2853 = vpack.c.bf16 %v2611, %v2609
        %v2854 = vpack.c.bf16 %v2614, %v2612
        %v2855 = vpack.c.bf16 %v2615, %v2613
        %v2856 = vpack.c.bf16 %v2618, %v2616
        %v2857 = vpack.c.bf16 %v2619, %v2617
        %v2858 = vpack.c.bf16 %v2622, %v2620
        %v2859 = vpack.c.bf16 %v2623, %v2621
        %v2860 = vpack.c.bf16 %v2626, %v2624
        %v2861 = vpack.c.bf16 %v2627, %v2625
        %v2862 = vpack.c.bf16 %v2630, %v2628
        %v2863 = vpack.c.bf16 %v2631, %v2629
        %v2864 = vpack.c.bf16 %v2634, %v2632
        %v2865 = vpack.c.bf16 %v2635, %v2633
        %v2866 = vpack.c.bf16 %v2638, %v2636
        %v2867 = vpack.c.bf16 %v2639, %v2637
        %v2868 = vpack.c.bf16 %v2642, %v2640
        %v2869 = vpack.c.bf16 %v2643, %v2641
        %v2870 = vpack.c.bf16 %v2646, %v2644
        %v2871 = vpack.c.bf16 %v2647, %v2645
        %v2872 = vpack.c.bf16 %v2650, %v2648
        %v2873 = vpack.c.bf16 %v2651, %v2649
        %v2874 = vpack.c.bf16 %v2654, %v2652
        %v2875 = vpack.c.bf16 %v2655, %v2653
        %v2876 = vpack.c.bf16 %v2658, %v2656
        %v2877 = vpack.c.bf16 %v2659, %v2657
        %v2878 = vpack.c.bf16 %v2662, %v2660
        %v2879 = vpack.c.bf16 %v2663, %v2661
        %v2880 = vpack.c.bf16 %v2666, %v2664
        %v2881 = vpack.c.bf16 %v2667, %v2665
        %v2882 = vpack.c.bf16 %v2670, %v2668
        %v2883 = vpack.c.bf16 %v2671, %v2669
        %v2884 = vpack.c.bf16 %v2674, %v2672
        %v2885 = vpack.c.bf16 %v2675, %v2673
        %v2886 = vpack.c.bf16 %v2678, %v2676
        %v2887 = vpack.c.bf16 %v2679, %v2677
        %v2888 = vpack.c.bf16 %v2682, %v2680
        %v2889 = vpack.c.bf16 %v2683, %v2681
        %v2890 = vpack.c.bf16 %v2686, %v2684
        %v2891 = vpack.c.bf16 %v2687, %v2685
        %v2892 = vpack.c.bf16 %v2690, %v2688
        %v2893 = vpack.c.bf16 %v2691, %v2689
        %v2894 = vpack.c.bf16 %v2694, %v2692
        %v2895 = vpack.c.bf16 %v2695, %v2693
        %v2896 = vpack.c.bf16 %v2698, %v2696
        %v2897 = vpack.c.bf16 %v2699, %v2697
        %v2898 = vpack.c.bf16 %v2702, %v2700
        %v2899 = vpack.c.bf16 %v2703, %v2701
        %v2900 = vpack.c.bf16 %v2706, %v2704
        %v2901 = vpack.c.bf16 %v2707, %v2705
        %v2902 = vpack.c.bf16 %v2710, %v2708
        %v2903 = vpack.c.bf16 %v2711, %v2709
        %v2904 = vld [vmem:[%s4] sm:$0xff]
        %v2905 = vld [vmem:[%s4 + $0x8] sm:$0xff]
        %v2906 = vld [vmem:[%s4 + $0x10] sm:$0xff]
        %v2907 = vld [vmem:[%s4 + $0x18] sm:$0xff]
        %v2908 = vld [vmem:[%s4 + $0x20] sm:$0xff]
        %v2909 = vld [vmem:[%s4 + $0x28] sm:$0xff]
        %v2910 = vld [vmem:[%s4 + $0x30] sm:$0xff]
        %v2911 = vld [vmem:[%s4 + $0x38] sm:$0xff]
        %v2912 = vld [vmem:[%s4 + $0x40] sm:$0xff]
        %v2913 = vld [vmem:[%s4 + $0x48] sm:$0xff]
        %v2914 = vld [vmem:[%s4 + $0x50] sm:$0xff]
        %v2915 = vld [vmem:[%s4 + $0x58] sm:$0xff]
        %v2916 = vld [vmem:[%s4 + $0x60] sm:$0xff]
        %v2917 = vld [vmem:[%s4 + $0x68] sm:$0xff]
        %v2918 = vld [vmem:[%s4 + $0x70] sm:$0xff]
        %v2919 = vld [vmem:[%s4 + $0x78] sm:$0xff]
        %v2920 = vld [vmem:[%s4 + $0x80] sm:$0xff]
        %v2921 = vld [vmem:[%s4 + $0x88] sm:$0xff]
        %v2922 = vld [vmem:[%s4 + $0x90] sm:$0xff]
        %v2923 = vld [vmem:[%s4 + $0x98] sm:$0xff]
        %v2924 = vld [vmem:[%s4 + $0xa0] sm:$0xff]
        %v2925 = vld [vmem:[%s4 + $0xa8] sm:$0xff]
        %v2926 = vld [vmem:[%s4 + $0xb0] sm:$0xff]
        %v2927 = vld [vmem:[%s4 + $0xb8] sm:$0xff]
        %v2928 = vld [vmem:[%s4 + $0xc0] sm:$0xff]
        %v2929 = vld [vmem:[%s4 + $0xc8] sm:$0xff]
        %v2930 = vld [vmem:[%s4 + $0xd0] sm:$0xff]
        %v2931 = vld [vmem:[%s4 + $0xd8] sm:$0xff]
        %v2932 = vld [vmem:[%s4 + $0xe0] sm:$0xff]
        %v2933 = vld [vmem:[%s4 + $0xe8] sm:$0xff]
        %v2934 = vld [vmem:[%s4 + $0xf0] sm:$0xff]
        %v2935 = vld [vmem:[%s4 + $0xf8] sm:$0xff]
        %v2936 = vld [vmem:[%s4 + $0x100] sm:$0xff]
        %v2937 = vld [vmem:[%s4 + $0x108] sm:$0xff]
        %v2938 = vld [vmem:[%s4 + $0x110] sm:$0xff]
        %v2939 = vld [vmem:[%s4 + $0x118] sm:$0xff]
        %v2940 = vld [vmem:[%s4 + $0x120] sm:$0xff]
        %v2941 = vld [vmem:[%s4 + $0x128] sm:$0xff]
        %v2942 = vld [vmem:[%s4 + $0x130] sm:$0xff]
        %v2943 = vld [vmem:[%s4 + $0x138] sm:$0xff]
        %v2944 = vld [vmem:[%s4 + $0x140] sm:$0xff]
        %v2945 = vld [vmem:[%s4 + $0x148] sm:$0xff]
        %v2946 = vld [vmem:[%s4 + $0x150] sm:$0xff]
        %v2947 = vld [vmem:[%s4 + $0x158] sm:$0xff]
        %v2948 = vld [vmem:[%s4 + $0x160] sm:$0xff]
        %v2949 = vld [vmem:[%s4 + $0x168] sm:$0xff]
        %v2950 = vld [vmem:[%s4 + $0x170] sm:$0xff]
        %v2951 = vld [vmem:[%s4 + $0x178] sm:$0xff]
        %v2952 = vld [vmem:[%s4 + $0x180] sm:$0xff]
        %v2953 = vld [vmem:[%s4 + $0x188] sm:$0xff]
        %v2954 = vld [vmem:[%s4 + $0x190] sm:$0xff]
        %v2955 = vld [vmem:[%s4 + $0x198] sm:$0xff]
        %v2956 = vld [vmem:[%s4 + $0x1a0] sm:$0xff]
        %v2957 = vld [vmem:[%s4 + $0x1a8] sm:$0xff]
        %v2958 = vld [vmem:[%s4 + $0x1b0] sm:$0xff]
        %v2959 = vld [vmem:[%s4 + $0x1b8] sm:$0xff]
        %v2960 = vld [vmem:[%s4 + $0x1c0] sm:$0xff]
        %v2961 = vld [vmem:[%s4 + $0x1c8] sm:$0xff]
        %v2962 = vld [vmem:[%s4 + $0x1d0] sm:$0xff]
        %v2963 = vld [vmem:[%s4 + $0x1d8] sm:$0xff]
        %v2964 = vld [vmem:[%s4 + $0x1e0] sm:$0xff]
        %v2965 = vld [vmem:[%s4 + $0x1e8] sm:$0xff]
        %v2966 = vld [vmem:[%s4 + $0x1f0] sm:$0xff]
        %v2967 = vld [vmem:[%s4 + $0x1f8] sm:$0xff]
        %2969 = vset.pattern.permute.xlu0 0
        %2970 = vperm.xlu0 %2969, %v2904
        %v2971 = vpop.permute.xlu0 %2970
        %2974 = vset.pattern.permute.xlu0 0
        %2975 = vperm.xlu0 %2974, %v2905
        %v2976 = vpop.permute.xlu0 %2975
        %2979 = vset.pattern.permute.xlu0 0
        %2980 = vperm.xlu0 %2979, %v2906
        %v2981 = vpop.permute.xlu0 %2980
        %2984 = vset.pattern.permute.xlu0 0
        %2985 = vperm.xlu0 %2984, %v2907
        %v2986 = vpop.permute.xlu0 %2985
        %2989 = vset.pattern.permute.xlu0 0
        %2990 = vperm.xlu0 %2989, %v2908
        %v2991 = vpop.permute.xlu0 %2990
        %2994 = vset.pattern.permute.xlu0 0
        %2995 = vperm.xlu0 %2994, %v2909
        %v2996 = vpop.permute.xlu0 %2995
        %2999 = vset.pattern.permute.xlu0 0
        %3000 = vperm.xlu0 %2999, %v2910
        %v3001 = vpop.permute.xlu0 %3000
        %3004 = vset.pattern.permute.xlu0 0
        %3005 = vperm.xlu0 %3004, %v2911
        %v3006 = vpop.permute.xlu0 %3005
        %3009 = vset.pattern.permute.xlu0 0
        %3010 = vperm.xlu0 %3009, %v2912
        %v3011 = vpop.permute.xlu0 %3010
        %3014 = vset.pattern.permute.xlu0 0
        %3015 = vperm.xlu0 %3014, %v2913
        %v3016 = vpop.permute.xlu0 %3015
        %3019 = vset.pattern.permute.xlu0 0
        %3020 = vperm.xlu0 %3019, %v2914
        %v3021 = vpop.permute.xlu0 %3020
        %3024 = vset.pattern.permute.xlu0 0
        %3025 = vperm.xlu0 %3024, %v2915
        %v3026 = vpop.permute.xlu0 %3025
        %3029 = vset.pattern.permute.xlu0 0
        %3030 = vperm.xlu0 %3029, %v2916
        %v3031 = vpop.permute.xlu0 %3030
        %3034 = vset.pattern.permute.xlu0 0
        %3035 = vperm.xlu0 %3034, %v2917
        %v3036 = vpop.permute.xlu0 %3035
        %3039 = vset.pattern.permute.xlu0 0
        %3040 = vperm.xlu0 %3039, %v2918
        %v3041 = vpop.permute.xlu0 %3040
        %3044 = vset.pattern.permute.xlu0 0
        %3045 = vperm.xlu0 %3044, %v2919
        %v3046 = vpop.permute.xlu0 %3045
        %3049 = vset.pattern.permute.xlu0 0
        %3050 = vperm.xlu0 %3049, %v2920
        %v3051 = vpop.permute.xlu0 %3050
        %3054 = vset.pattern.permute.xlu0 0
        %3055 = vperm.xlu0 %3054, %v2921
        %v3056 = vpop.permute.xlu0 %3055
        %3059 = vset.pattern.permute.xlu0 0
        %3060 = vperm.xlu0 %3059, %v2922
        %v3061 = vpop.permute.xlu0 %3060
        %3064 = vset.pattern.permute.xlu0 0
        %3065 = vperm.xlu0 %3064, %v2923
        %v3066 = vpop.permute.xlu0 %3065
        %3069 = vset.pattern.permute.xlu0 0
        %3070 = vperm.xlu0 %3069, %v2924
        %v3071 = vpop.permute.xlu0 %3070
        %3074 = vset.pattern.permute.xlu0 0
        %3075 = vperm.xlu0 %3074, %v2925
        %v3076 = vpop.permute.xlu0 %3075
        %3079 = vset.pattern.permute.xlu0 0
        %3080 = vperm.xlu0 %3079, %v2926
        %v3081 = vpop.permute.xlu0 %3080
        %3084 = vset.pattern.permute.xlu0 0
        %3085 = vperm.xlu0 %3084, %v2927
        %v3086 = vpop.permute.xlu0 %3085
        %3089 = vset.pattern.permute.xlu0 0
        %3090 = vperm.xlu0 %3089, %v2928
        %v3091 = vpop.permute.xlu0 %3090
        %3094 = vset.pattern.permute.xlu0 0
        %3095 = vperm.xlu0 %3094, %v2929
        %v3096 = vpop.permute.xlu0 %3095
        %3099 = vset.pattern.permute.xlu0 0
        %3100 = vperm.xlu0 %3099, %v2930
        %v3101 = vpop.permute.xlu0 %3100
        %3104 = vset.pattern.permute.xlu0 0
        %3105 = vperm.xlu0 %3104, %v2931
        %v3106 = vpop.permute.xlu0 %3105
        %3109 = vset.pattern.permute.xlu0 0
        %3110 = vperm.xlu0 %3109, %v2932
        %v3111 = vpop.permute.xlu0 %3110
        %3114 = vset.pattern.permute.xlu0 0
        %3115 = vperm.xlu0 %3114, %v2933
        %v3116 = vpop.permute.xlu0 %3115
        %3119 = vset.pattern.permute.xlu0 0
        %3120 = vperm.xlu0 %3119, %v2934
        %v3121 = vpop.permute.xlu0 %3120
        %3124 = vset.pattern.permute.xlu0 0
        %3125 = vperm.xlu0 %3124, %v2935
        %v3126 = vpop.permute.xlu0 %3125
        %3129 = vset.pattern.permute.xlu0 0
        %3130 = vperm.xlu0 %3129, %v2936
        %v3131 = vpop.permute.xlu0 %3130
        %3134 = vset.pattern.permute.xlu0 0
        %3135 = vperm.xlu0 %3134, %v2937
        %v3136 = vpop.permute.xlu0 %3135
        %3139 = vset.pattern.permute.xlu0 0
        %3140 = vperm.xlu0 %3139, %v2938
        %v3141 = vpop.permute.xlu0 %3140
        %3144 = vset.pattern.permute.xlu0 0
        %3145 = vperm.xlu0 %3144, %v2939
        %v3146 = vpop.permute.xlu0 %3145
        %3149 = vset.pattern.permute.xlu0 0
        %3150 = vperm.xlu0 %3149, %v2940
        %v3151 = vpop.permute.xlu0 %3150
        %3154 = vset.pattern.permute.xlu0 0
        %3155 = vperm.xlu0 %3154, %v2941
        %v3156 = vpop.permute.xlu0 %3155
        %3159 = vset.pattern.permute.xlu0 0
        %3160 = vperm.xlu0 %3159, %v2942
        %v3161 = vpop.permute.xlu0 %3160
        %3164 = vset.pattern.permute.xlu0 0
        %3165 = vperm.xlu0 %3164, %v2943
        %v3166 = vpop.permute.xlu0 %3165
        %3169 = vset.pattern.permute.xlu0 0
        %3170 = vperm.xlu0 %3169, %v2944
        %v3171 = vpop.permute.xlu0 %3170
        %3174 = vset.pattern.permute.xlu0 0
        %3175 = vperm.xlu0 %3174, %v2945
        %v3176 = vpop.permute.xlu0 %3175
        %3179 = vset.pattern.permute.xlu0 0
        %3180 = vperm.xlu0 %3179, %v2946
        %v3181 = vpop.permute.xlu0 %3180
        %3184 = vset.pattern.permute.xlu0 0
        %3185 = vperm.xlu0 %3184, %v2947
        %v3186 = vpop.permute.xlu0 %3185
        %3189 = vset.pattern.permute.xlu0 0
        %3190 = vperm.xlu0 %3189, %v2948
        %v3191 = vpop.permute.xlu0 %3190
        %3194 = vset.pattern.permute.xlu0 0
        %3195 = vperm.xlu0 %3194, %v2949
        %v3196 = vpop.permute.xlu0 %3195
        %3199 = vset.pattern.permute.xlu0 0
        %3200 = vperm.xlu0 %3199, %v2950
        %v3201 = vpop.permute.xlu0 %3200
        %3204 = vset.pattern.permute.xlu0 0
        %3205 = vperm.xlu0 %3204, %v2951
        %v3206 = vpop.permute.xlu0 %3205
        %3209 = vset.pattern.permute.xlu0 0
        %3210 = vperm.xlu0 %3209, %v2952
        %v3211 = vpop.permute.xlu0 %3210
        %3214 = vset.pattern.permute.xlu0 0
        %3215 = vperm.xlu0 %3214, %v2953
        %v3216 = vpop.permute.xlu0 %3215
        %3219 = vset.pattern.permute.xlu0 0
        %3220 = vperm.xlu0 %3219, %v2954
        %v3221 = vpop.permute.xlu0 %3220
        %3224 = vset.pattern.permute.xlu0 0
        %3225 = vperm.xlu0 %3224, %v2955
        %v3226 = vpop.permute.xlu0 %3225
        %3229 = vset.pattern.permute.xlu0 0
        %3230 = vperm.xlu0 %3229, %v2956
        %v3231 = vpop.permute.xlu0 %3230
        %3234 = vset.pattern.permute.xlu0 0
        %3235 = vperm.xlu0 %3234, %v2957
        %v3236 = vpop.permute.xlu0 %3235
        %3239 = vset.pattern.permute.xlu0 0
        %3240 = vperm.xlu0 %3239, %v2958
        %v3241 = vpop.permute.xlu0 %3240
        %3244 = vset.pattern.permute.xlu0 0
        %3245 = vperm.xlu0 %3244, %v2959
        %v3246 = vpop.permute.xlu0 %3245
        %3249 = vset.pattern.permute.xlu0 0
        %3250 = vperm.xlu0 %3249, %v2960
        %v3251 = vpop.permute.xlu0 %3250
        %3254 = vset.pattern.permute.xlu0 0
        %3255 = vperm.xlu0 %3254, %v2961
        %v3256 = vpop.permute.xlu0 %3255
        %3259 = vset.pattern.permute.xlu0 0
        %3260 = vperm.xlu0 %3259, %v2962
        %v3261 = vpop.permute.xlu0 %3260
        %3264 = vset.pattern.permute.xlu0 0
        %3265 = vperm.xlu0 %3264, %v2963
        %v3266 = vpop.permute.xlu0 %3265
        %3269 = vset.pattern.permute.xlu0 0
        %3270 = vperm.xlu0 %3269, %v2964
        %v3271 = vpop.permute.xlu0 %3270
        %3274 = vset.pattern.permute.xlu0 0
        %3275 = vperm.xlu0 %3274, %v2965
        %v3276 = vpop.permute.xlu0 %3275
        %3279 = vset.pattern.permute.xlu0 0
        %3280 = vperm.xlu0 %3279, %v2966
        %v3281 = vpop.permute.xlu0 %3280
        %3284 = vset.pattern.permute.xlu0 0
        %3285 = vperm.xlu0 %3284, %v2967
        %v3286 = vpop.permute.xlu0 %3285
        %v3416 = vunpack.c.l.b16 %v2712
        %v3417 = vunpack.c.h.b16 %v2712
        %v3418 = vunpack.c.l.b16 %v2713
        %v3419 = vunpack.c.h.b16 %v2713
        %v3420 = vunpack.c.l.b16 %v2714
        %v3421 = vunpack.c.h.b16 %v2714
        %v3422 = vunpack.c.l.b16 %v2715
        %v3423 = vunpack.c.h.b16 %v2715
        %v3424 = vunpack.c.l.b16 %v2716
        %v3425 = vunpack.c.h.b16 %v2716
        %v3426 = vunpack.c.l.b16 %v2717
        %v3427 = vunpack.c.h.b16 %v2717
        %v3428 = vunpack.c.l.b16 %v2718
        %v3429 = vunpack.c.h.b16 %v2718
        %v3430 = vunpack.c.l.b16 %v2719
        %v3431 = vunpack.c.h.b16 %v2719
        %v3432 = vunpack.c.l.b16 %v2720
        %v3433 = vunpack.c.h.b16 %v2720
        %v3434 = vunpack.c.l.b16 %v2721
        %v3435 = vunpack.c.h.b16 %v2721
        %v3436 = vunpack.c.l.b16 %v2722
        %v3437 = vunpack.c.h.b16 %v2722
        %v3438 = vunpack.c.l.b16 %v2723
        %v3439 = vunpack.c.h.b16 %v2723
        %v3440 = vunpack.c.l.b16 %v2724
        %v3441 = vunpack.c.h.b16 %v2724
        %v3442 = vunpack.c.l.b16 %v2725
        %v3443 = vunpack.c.h.b16 %v2725
        %v3444 = vunpack.c.l.b16 %v2726
        %v3445 = vunpack.c.h.b16 %v2726
        %v3446 = vunpack.c.l.b16 %v2727
        %v3447 = vunpack.c.h.b16 %v2727
        %v3448 = vunpack.c.l.b16 %v2728
        %v3449 = vunpack.c.h.b16 %v2728
        %v3450 = vunpack.c.l.b16 %v2729
        %v3451 = vunpack.c.h.b16 %v2729
        %v3452 = vunpack.c.l.b16 %v2730
        %v3453 = vunpack.c.h.b16 %v2730
        %v3454 = vunpack.c.l.b16 %v2731
        %v3455 = vunpack.c.h.b16 %v2731
        %v3456 = vunpack.c.l.b16 %v2732
        %v3457 = vunpack.c.h.b16 %v2732
        %v3458 = vunpack.c.l.b16 %v2733
        %v3459 = vunpack.c.h.b16 %v2733
        %v3460 = vunpack.c.l.b16 %v2734
        %v3461 = vunpack.c.h.b16 %v2734
        %v3462 = vunpack.c.l.b16 %v2735
        %v3463 = vunpack.c.h.b16 %v2735
        %v3464 = vunpack.c.l.b16 %v2736
        %v3465 = vunpack.c.h.b16 %v2736
        %v3466 = vunpack.c.l.b16 %v2737
        %v3467 = vunpack.c.h.b16 %v2737
        %v3468 = vunpack.c.l.b16 %v2738
        %v3469 = vunpack.c.h.b16 %v2738
        %v3470 = vunpack.c.l.b16 %v2739
        %v3471 = vunpack.c.h.b16 %v2739
        %v3472 = vunpack.c.l.b16 %v2740
        %v3473 = vunpack.c.h.b16 %v2740
        %v3474 = vunpack.c.l.b16 %v2741
        %v3475 = vunpack.c.h.b16 %v2741
        %v3476 = vunpack.c.l.b16 %v2742
        %v3477 = vunpack.c.h.b16 %v2742
        %v3478 = vunpack.c.l.b16 %v2743
        %v3479 = vunpack.c.h.b16 %v2743
        %v3480 = vunpack.c.l.b16 %v2744
        %v3481 = vunpack.c.h.b16 %v2744
        %v3482 = vunpack.c.l.b16 %v2745
        %v3483 = vunpack.c.h.b16 %v2745
        %v3484 = vunpack.c.l.b16 %v2746
        %v3485 = vunpack.c.h.b16 %v2746
        %v3486 = vunpack.c.l.b16 %v2747
        %v3487 = vunpack.c.h.b16 %v2747
        %v3488 = vunpack.c.l.b16 %v2748
        %v3489 = vunpack.c.h.b16 %v2748
        %v3490 = vunpack.c.l.b16 %v2749
        %v3491 = vunpack.c.h.b16 %v2749
        %v3492 = vunpack.c.l.b16 %v2750
        %v3493 = vunpack.c.h.b16 %v2750
        %v3494 = vunpack.c.l.b16 %v2751
        %v3495 = vunpack.c.h.b16 %v2751
        %v3496 = vunpack.c.l.b16 %v2752
        %v3497 = vunpack.c.h.b16 %v2752
        %v3498 = vunpack.c.l.b16 %v2753
        %v3499 = vunpack.c.h.b16 %v2753
        %v3500 = vunpack.c.l.b16 %v2754
        %v3501 = vunpack.c.h.b16 %v2754
        %v3502 = vunpack.c.l.b16 %v2755
        %v3503 = vunpack.c.h.b16 %v2755
        %v3504 = vunpack.c.l.b16 %v2756
        %v3505 = vunpack.c.h.b16 %v2756
        %v3506 = vunpack.c.l.b16 %v2757
        %v3507 = vunpack.c.h.b16 %v2757
        %v3508 = vunpack.c.l.b16 %v2758
        %v3509 = vunpack.c.h.b16 %v2758
        %v3510 = vunpack.c.l.b16 %v2759
        %v3511 = vunpack.c.h.b16 %v2759
        %v3512 = vunpack.c.l.b16 %v2760
        %v3513 = vunpack.c.h.b16 %v2760
        %v3514 = vunpack.c.l.b16 %v2761
        %v3515 = vunpack.c.h.b16 %v2761
        %v3516 = vunpack.c.l.b16 %v2762
        %v3517 = vunpack.c.h.b16 %v2762
        %v3518 = vunpack.c.l.b16 %v2763
        %v3519 = vunpack.c.h.b16 %v2763
        %v3520 = vunpack.c.l.b16 %v2764
        %v3521 = vunpack.c.h.b16 %v2764
        %v3522 = vunpack.c.l.b16 %v2765
        %v3523 = vunpack.c.h.b16 %v2765
        %v3524 = vunpack.c.l.b16 %v2766
        %v3525 = vunpack.c.h.b16 %v2766
        %v3526 = vunpack.c.l.b16 %v2767
        %v3527 = vunpack.c.h.b16 %v2767
        %v3528 = vunpack.c.l.b16 %v2768
        %v3529 = vunpack.c.h.b16 %v2768
        %v3530 = vunpack.c.l.b16 %v2769
        %v3531 = vunpack.c.h.b16 %v2769
        %v3532 = vunpack.c.l.b16 %v2770
        %v3533 = vunpack.c.h.b16 %v2770
        %v3534 = vunpack.c.l.b16 %v2771
        %v3535 = vunpack.c.h.b16 %v2771
        %v3536 = vunpack.c.l.b16 %v2772
        %v3537 = vunpack.c.h.b16 %v2772
        %v3538 = vunpack.c.l.b16 %v2773
        %v3539 = vunpack.c.h.b16 %v2773
        %v3540 = vunpack.c.l.b16 %v2774
        %v3541 = vunpack.c.h.b16 %v2774
        %v3542 = vunpack.c.l.b16 %v2775
        %v3543 = vunpack.c.h.b16 %v2775
        %v3544 = vunpack.c.l.b16 %v2776
        %v3545 = vunpack.c.h.b16 %v2776
        %v3546 = vunpack.c.l.b16 %v2777
        %v3547 = vunpack.c.h.b16 %v2777
        %v3548 = vunpack.c.l.b16 %v2778
        %v3549 = vunpack.c.h.b16 %v2778
        %v3550 = vunpack.c.l.b16 %v2779
        %v3551 = vunpack.c.h.b16 %v2779
        %v3552 = vunpack.c.l.b16 %v2780
        %v3553 = vunpack.c.h.b16 %v2780
        %v3554 = vunpack.c.l.b16 %v2781
        %v3555 = vunpack.c.h.b16 %v2781
        %v3556 = vunpack.c.l.b16 %v2782
        %v3557 = vunpack.c.h.b16 %v2782
        %v3558 = vunpack.c.l.b16 %v2783
        %v3559 = vunpack.c.h.b16 %v2783
        %v3560 = vunpack.c.l.b16 %v2784
        %v3561 = vunpack.c.h.b16 %v2784
        %v3562 = vunpack.c.l.b16 %v2785
        %v3563 = vunpack.c.h.b16 %v2785
        %v3564 = vunpack.c.l.b16 %v2786
        %v3565 = vunpack.c.h.b16 %v2786
        %v3566 = vunpack.c.l.b16 %v2787
        %v3567 = vunpack.c.h.b16 %v2787
        %v3568 = vunpack.c.l.b16 %v2788
        %v3569 = vunpack.c.h.b16 %v2788
        %v3570 = vunpack.c.l.b16 %v2789
        %v3571 = vunpack.c.h.b16 %v2789
        %v3572 = vunpack.c.l.b16 %v2790
        %v3573 = vunpack.c.h.b16 %v2790
        %v3574 = vunpack.c.l.b16 %v2791
        %v3575 = vunpack.c.h.b16 %v2791
        %v3576 = vunpack.c.l.b16 %v2792
        %v3577 = vunpack.c.h.b16 %v2792
        %v3578 = vunpack.c.l.b16 %v2793
        %v3579 = vunpack.c.h.b16 %v2793
        %v3580 = vunpack.c.l.b16 %v2794
        %v3581 = vunpack.c.h.b16 %v2794
        %v3582 = vunpack.c.l.b16 %v2795
        %v3583 = vunpack.c.h.b16 %v2795
        %v3584 = vunpack.c.l.b16 %v2796
        %v3585 = vunpack.c.h.b16 %v2796
        %v3586 = vunpack.c.l.b16 %v2797
        %v3587 = vunpack.c.h.b16 %v2797
        %v3588 = vunpack.c.l.b16 %v2798
        %v3589 = vunpack.c.h.b16 %v2798
        %v3590 = vunpack.c.l.b16 %v2799
        %v3591 = vunpack.c.h.b16 %v2799
        %v3592 = vunpack.c.l.b16 %v2800
        %v3593 = vunpack.c.h.b16 %v2800
        %v3594 = vunpack.c.l.b16 %v2801
        %v3595 = vunpack.c.h.b16 %v2801
        %v3596 = vunpack.c.l.b16 %v2802
        %v3597 = vunpack.c.h.b16 %v2802
        %v3598 = vunpack.c.l.b16 %v2803
        %v3599 = vunpack.c.h.b16 %v2803
        %v3600 = vunpack.c.l.b16 %v2804
        %v3601 = vunpack.c.h.b16 %v2804
        %v3602 = vunpack.c.l.b16 %v2805
        %v3603 = vunpack.c.h.b16 %v2805
        %v3604 = vunpack.c.l.b16 %v2806
        %v3605 = vunpack.c.h.b16 %v2806
        %v3606 = vunpack.c.l.b16 %v2807
        %v3607 = vunpack.c.h.b16 %v2807
        %v3608 = vunpack.c.l.b16 %v2808
        %v3609 = vunpack.c.h.b16 %v2808
        %v3610 = vunpack.c.l.b16 %v2809
        %v3611 = vunpack.c.h.b16 %v2809
        %v3612 = vunpack.c.l.b16 %v2810
        %v3613 = vunpack.c.h.b16 %v2810
        %v3614 = vunpack.c.l.b16 %v2811
        %v3615 = vunpack.c.h.b16 %v2811
        %v3616 = vunpack.c.l.b16 %v2812
        %v3617 = vunpack.c.h.b16 %v2812
        %v3618 = vunpack.c.l.b16 %v2813
        %v3619 = vunpack.c.h.b16 %v2813
        %v3620 = vunpack.c.l.b16 %v2814
        %v3621 = vunpack.c.h.b16 %v2814
        %v3622 = vunpack.c.l.b16 %v2815
        %v3623 = vunpack.c.h.b16 %v2815
        %v3624 = vunpack.c.l.b16 %v2816
        %v3625 = vunpack.c.h.b16 %v2816
        %v3626 = vunpack.c.l.b16 %v2817
        %v3627 = vunpack.c.h.b16 %v2817
        %v3628 = vunpack.c.l.b16 %v2818
        %v3629 = vunpack.c.h.b16 %v2818
        %v3630 = vunpack.c.l.b16 %v2819
        %v3631 = vunpack.c.h.b16 %v2819
        %v3632 = vunpack.c.l.b16 %v2820
        %v3633 = vunpack.c.h.b16 %v2820
        %v3634 = vunpack.c.l.b16 %v2821
        %v3635 = vunpack.c.h.b16 %v2821
        %v3636 = vunpack.c.l.b16 %v2822
        %v3637 = vunpack.c.h.b16 %v2822
        %v3638 = vunpack.c.l.b16 %v2823
        %v3639 = vunpack.c.h.b16 %v2823
        %v3640 = vunpack.c.l.b16 %v2824
        %v3641 = vunpack.c.h.b16 %v2824
        %v3642 = vunpack.c.l.b16 %v2825
        %v3643 = vunpack.c.h.b16 %v2825
        %v3644 = vunpack.c.l.b16 %v2826
        %v3645 = vunpack.c.h.b16 %v2826
        %v3646 = vunpack.c.l.b16 %v2827
        %v3647 = vunpack.c.h.b16 %v2827
        %v3648 = vunpack.c.l.b16 %v2828
        %v3649 = vunpack.c.h.b16 %v2828
        %v3650 = vunpack.c.l.b16 %v2829
        %v3651 = vunpack.c.h.b16 %v2829
        %v3652 = vunpack.c.l.b16 %v2830
        %v3653 = vunpack.c.h.b16 %v2830
        %v3654 = vunpack.c.l.b16 %v2831
        %v3655 = vunpack.c.h.b16 %v2831
        %v3656 = vunpack.c.l.b16 %v2832
        %v3657 = vunpack.c.h.b16 %v2832
        %v3658 = vunpack.c.l.b16 %v2833
        %v3659 = vunpack.c.h.b16 %v2833
        %v3660 = vunpack.c.l.b16 %v2834
        %v3661 = vunpack.c.h.b16 %v2834
        %v3662 = vunpack.c.l.b16 %v2835
        %v3663 = vunpack.c.h.b16 %v2835
        %v3664 = vunpack.c.l.b16 %v2836
        %v3665 = vunpack.c.h.b16 %v2836
        %v3666 = vunpack.c.l.b16 %v2837
        %v3667 = vunpack.c.h.b16 %v2837
        %v3668 = vunpack.c.l.b16 %v2838
        %v3669 = vunpack.c.h.b16 %v2838
        %v3670 = vunpack.c.l.b16 %v2839
        %v3671 = vunpack.c.h.b16 %v2839
        %v3672 = vpack.c.b16 %v3420, %v3416
        %v3673 = vpack.c.b16 %v3421, %v3417
        %v3674 = vpack.c.b16 %v3422, %v3418
        %v3675 = vpack.c.b16 %v3423, %v3419
        %v3676 = vpack.c.b16 %v3428, %v3424
        %v3677 = vpack.c.b16 %v3429, %v3425
        %v3678 = vpack.c.b16 %v3430, %v3426
        %v3679 = vpack.c.b16 %v3431, %v3427
        %v3680 = vpack.c.b16 %v3436, %v3432
        %v3681 = vpack.c.b16 %v3437, %v3433
        %v3682 = vpack.c.b16 %v3438, %v3434
        %v3683 = vpack.c.b16 %v3439, %v3435
        %v3684 = vpack.c.b16 %v3444, %v3440
        %v3685 = vpack.c.b16 %v3445, %v3441
        %v3686 = vpack.c.b16 %v3446, %v3442
        %v3687 = vpack.c.b16 %v3447, %v3443
        %v3688 = vpack.c.b16 %v3452, %v3448
        %v3689 = vpack.c.b16 %v3453, %v3449
        %v3690 = vpack.c.b16 %v3454, %v3450
        %v3691 = vpack.c.b16 %v3455, %v3451
        %v3692 = vpack.c.b16 %v3460, %v3456
        %v3693 = vpack.c.b16 %v3461, %v3457
        %v3694 = vpack.c.b16 %v3462, %v3458
        %v3695 = vpack.c.b16 %v3463, %v3459
        %v3696 = vpack.c.b16 %v3468, %v3464
        %v3697 = vpack.c.b16 %v3469, %v3465
        %v3698 = vpack.c.b16 %v3470, %v3466
        %v3699 = vpack.c.b16 %v3471, %v3467
        %v3700 = vpack.c.b16 %v3476, %v3472
        %v3701 = vpack.c.b16 %v3477, %v3473
        %v3702 = vpack.c.b16 %v3478, %v3474
        %v3703 = vpack.c.b16 %v3479, %v3475
        %v3704 = vpack.c.b16 %v3484, %v3480
        %v3705 = vpack.c.b16 %v3485, %v3481
        %v3706 = vpack.c.b16 %v3486, %v3482
        %v3707 = vpack.c.b16 %v3487, %v3483
        %v3708 = vpack.c.b16 %v3492, %v3488
        %v3709 = vpack.c.b16 %v3493, %v3489
        %v3710 = vpack.c.b16 %v3494, %v3490
        %v3711 = vpack.c.b16 %v3495, %v3491
        %v3712 = vpack.c.b16 %v3500, %v3496
        %v3713 = vpack.c.b16 %v3501, %v3497
        %v3714 = vpack.c.b16 %v3502, %v3498
        %v3715 = vpack.c.b16 %v3503, %v3499
        %v3716 = vpack.c.b16 %v3508, %v3504
        %v3717 = vpack.c.b16 %v3509, %v3505
        %v3718 = vpack.c.b16 %v3510, %v3506
        %v3719 = vpack.c.b16 %v3511, %v3507
        %v3720 = vpack.c.b16 %v3516, %v3512
        %v3721 = vpack.c.b16 %v3517, %v3513
        %v3722 = vpack.c.b16 %v3518, %v3514
        %v3723 = vpack.c.b16 %v3519, %v3515
        %v3724 = vpack.c.b16 %v3524, %v3520
        %v3725 = vpack.c.b16 %v3525, %v3521
        %v3726 = vpack.c.b16 %v3526, %v3522
        %v3727 = vpack.c.b16 %v3527, %v3523
        %v3728 = vpack.c.b16 %v3532, %v3528
        %v3729 = vpack.c.b16 %v3533, %v3529
        %v3730 = vpack.c.b16 %v3534, %v3530
        %v3731 = vpack.c.b16 %v3535, %v3531
        %v3732 = vpack.c.b16 %v3540, %v3536
        %v3733 = vpack.c.b16 %v3541, %v3537
        %v3734 = vpack.c.b16 %v3542, %v3538
        %v3735 = vpack.c.b16 %v3543, %v3539
        %v3736 = vpack.c.b16 %v3548, %v3544
        %v3737 = vpack.c.b16 %v3549, %v3545
        %v3738 = vpack.c.b16 %v3550, %v3546
        %v3739 = vpack.c.b16 %v3551, %v3547
        %v3740 = vpack.c.b16 %v3556, %v3552
        %v3741 = vpack.c.b16 %v3557, %v3553
        %v3742 = vpack.c.b16 %v3558, %v3554
        %v3743 = vpack.c.b16 %v3559, %v3555
        %v3744 = vpack.c.b16 %v3564, %v3560
        %v3745 = vpack.c.b16 %v3565, %v3561
        %v3746 = vpack.c.b16 %v3566, %v3562
        %v3747 = vpack.c.b16 %v3567, %v3563
        %v3748 = vpack.c.b16 %v3572, %v3568
        %v3749 = vpack.c.b16 %v3573, %v3569
        %v3750 = vpack.c.b16 %v3574, %v3570
        %v3751 = vpack.c.b16 %v3575, %v3571
        %v3752 = vpack.c.b16 %v3580, %v3576
        %v3753 = vpack.c.b16 %v3581, %v3577
        %v3754 = vpack.c.b16 %v3582, %v3578
        %v3755 = vpack.c.b16 %v3583, %v3579
        %v3756 = vpack.c.b16 %v3588, %v3584
        %v3757 = vpack.c.b16 %v3589, %v3585
        %v3758 = vpack.c.b16 %v3590, %v3586
        %v3759 = vpack.c.b16 %v3591, %v3587
        %v3760 = vpack.c.b16 %v3596, %v3592
        %v3761 = vpack.c.b16 %v3597, %v3593
        %v3762 = vpack.c.b16 %v3598, %v3594
        %v3763 = vpack.c.b16 %v3599, %v3595
        %v3764 = vpack.c.b16 %v3604, %v3600
        %v3765 = vpack.c.b16 %v3605, %v3601
        %v3766 = vpack.c.b16 %v3606, %v3602
        %v3767 = vpack.c.b16 %v3607, %v3603
        %v3768 = vpack.c.b16 %v3612, %v3608
        %v3769 = vpack.c.b16 %v3613, %v3609
        %v3770 = vpack.c.b16 %v3614, %v3610
        %v3771 = vpack.c.b16 %v3615, %v3611
        %v3772 = vpack.c.b16 %v3620, %v3616
        %v3773 = vpack.c.b16 %v3621, %v3617
        %v3774 = vpack.c.b16 %v3622, %v3618
        %v3775 = vpack.c.b16 %v3623, %v3619
        %v3776 = vpack.c.b16 %v3628, %v3624
        %v3777 = vpack.c.b16 %v3629, %v3625
        %v3778 = vpack.c.b16 %v3630, %v3626
        %v3779 = vpack.c.b16 %v3631, %v3627
        %v3780 = vpack.c.b16 %v3636, %v3632
        %v3781 = vpack.c.b16 %v3637, %v3633
        %v3782 = vpack.c.b16 %v3638, %v3634
        %v3783 = vpack.c.b16 %v3639, %v3635
        %v3784 = vpack.c.b16 %v3644, %v3640
        %v3785 = vpack.c.b16 %v3645, %v3641
        %v3786 = vpack.c.b16 %v3646, %v3642
        %v3787 = vpack.c.b16 %v3647, %v3643
        %v3788 = vpack.c.b16 %v3652, %v3648
        %v3789 = vpack.c.b16 %v3653, %v3649
        %v3790 = vpack.c.b16 %v3654, %v3650
        %v3791 = vpack.c.b16 %v3655, %v3651
        %v3792 = vpack.c.b16 %v3660, %v3656
        %v3793 = vpack.c.b16 %v3661, %v3657
        %v3794 = vpack.c.b16 %v3662, %v3658
        %v3795 = vpack.c.b16 %v3663, %v3659
        %v3796 = vpack.c.b16 %v3668, %v3664
        %v3797 = vpack.c.b16 %v3669, %v3665
        %v3798 = vpack.c.b16 %v3670, %v3666
        %v3799 = vpack.c.b16 %v3671, %v3667
        %3928 = vmatprep.subr.bf16.mxu0 %v2855
        %3929 = vmatpush1.bf16.msra.mxu0 %v2854
        %3930 = vmatprep.subr.bf16.mxu0 %v2853
        %3931 = vmatpush1.bf16.msra.mxu0 %v2852
        %3932 = vmatprep.subr.bf16.mxu0 %v2851
        %3933 = vmatpush1.bf16.msra.mxu0 %v2850
        %3934 = vmatprep.subr.bf16.mxu0 %v2849
        %3935 = vmatpush1.bf16.msra.mxu0 %v2848
        %3936 = vmatprep.subr.bf16.mxu0 %v2847
        %3937 = vmatpush1.bf16.msra.mxu0 %v2846
        %3938 = vmatprep.subr.bf16.mxu0 %v2845
        %3939 = vmatpush1.bf16.msra.mxu0 %v2844
        %3940 = vmatprep.subr.bf16.mxu0 %v2843
        %3941 = vmatpush1.bf16.msra.mxu0 %v2842
        %3942 = vmatprep.subr.bf16.mxu0 %v2841
        %3943 = vmatpush1.bf16.msra.mxu0 %v2840
        %3944 = vmatprep.subr.bf16.mxu0 %v2871
        %3945 = vmatpush2.bf16.msra.mxu0 %v2870
        %3946 = vmatprep.subr.bf16.mxu0 %v2869
        %3947 = vmatpush2.bf16.msra.mxu0 %v2868
        %3948 = vmatprep.subr.bf16.mxu0 %v2867
        %3949 = vmatpush2.bf16.msra.mxu0 %v2866
        %3950 = vmatprep.subr.bf16.mxu0 %v2865
        %3951 = vmatpush2.bf16.msra.mxu0 %v2864
        %3952 = vmatprep.subr.bf16.mxu0 %v2863
        %3953 = vmatpush2.bf16.msra.mxu0 %v2862
        %3954 = vmatprep.subr.bf16.mxu0 %v2861
        %3955 = vmatpush2.bf16.msra.mxu0 %v2860
        %3956 = vmatprep.subr.bf16.mxu0 %v2859
        %3957 = vmatpush2.bf16.msra.mxu0 %v2858
        %3958 = vmatprep.subr.bf16.mxu0 %v2857
        %3959 = vmatpush2.bf16.msra.mxu0 %v2856
        %3960 = vmatprep.mubr.bf16.mxu0 %v3673
        %3961 = vmatmul.mubr.bf16.gmra.mxu0 %v3672
        %v3962 = vpop.f32.mrf.mxu0
        %v3963 = vadd.f32 %v2971, %v3962
        %v3964 = vpop.f32.mrf.mxu0
        %v3965 = vadd.f32 %v2971, %v3964
        %v3966 = vpop.f32.mrf.mxu0
        %v3967 = vadd.f32 %v2976, %v3966
        %v3968 = vpop.f32.mrf.mxu0
        %v3969 = vadd.f32 %v2976, %v3968
        %3970 = vmatprep.mubr.bf16.mxu0 %v3677
        %3971 = vmatmul.mubr.bf16.gmra.mxu0 %v3676
        %v3972 = vpop.f32.mrf.mxu0
        %v3973 = vadd.f32 %v2981, %v3972
        %v3974 = vpop.f32.mrf.mxu0
        %v3975 = vadd.f32 %v2981, %v3974
        %v3976 = vpop.f32.mrf.mxu0
        %v3977 = vadd.f32 %v2986, %v3976
        %v3978 = vpop.f32.mrf.mxu0
        %v3979 = vadd.f32 %v2986, %v3978
        %3980 = vmatprep.mubr.bf16.mxu0 %v3681
        %3981 = vmatmul.mubr.bf16.gmra.mxu0 %v3680
        %v3982 = vpop.f32.mrf.mxu0
        %v3983 = vadd.f32 %v2991, %v3982
        %v3984 = vpop.f32.mrf.mxu0
        %v3985 = vadd.f32 %v2991, %v3984
        %v3986 = vpop.f32.mrf.mxu0
        %v3987 = vadd.f32 %v2996, %v3986
        %v3988 = vpop.f32.mrf.mxu0
        %v3989 = vadd.f32 %v2996, %v3988
        %3990 = vmatprep.mubr.bf16.mxu0 %v3685
        %3991 = vmatmul.mubr.bf16.gmra.mxu0 %v3684
        %v3992 = vpop.f32.mrf.mxu0
        %v3993 = vadd.f32 %v3001, %v3992
        %v3994 = vpop.f32.mrf.mxu0
        %v3995 = vadd.f32 %v3001, %v3994
        %v3996 = vpop.f32.mrf.mxu0
        %v3997 = vadd.f32 %v3006, %v3996
        %v3998 = vpop.f32.mrf.mxu0
        %v3999 = vadd.f32 %v3006, %v3998
        %4000 = vmatprep.mubr.bf16.mxu0 %v3689
        %4001 = vmatmul.mubr.bf16.gmra.mxu0 %v3688
        %v4002 = vpop.f32.mrf.mxu0
        %v4003 = vadd.f32 %v3011, %v4002
        %v4004 = vpop.f32.mrf.mxu0
        %v4005 = vadd.f32 %v3011, %v4004
        %v4006 = vpop.f32.mrf.mxu0
        %v4007 = vadd.f32 %v3016, %v4006
        %v4008 = vpop.f32.mrf.mxu0
        %v4009 = vadd.f32 %v3016, %v4008
        %4010 = vmatprep.mubr.bf16.mxu0 %v3693
        %4011 = vmatmul.mubr.bf16.gmra.mxu0 %v3692
        %v4012 = vpop.f32.mrf.mxu0
        %v4013 = vadd.f32 %v3021, %v4012
        %v4014 = vpop.f32.mrf.mxu0
        %v4015 = vadd.f32 %v3021, %v4014
        %v4016 = vpop.f32.mrf.mxu0
        %v4017 = vadd.f32 %v3026, %v4016
        %v4018 = vpop.f32.mrf.mxu0
        %v4019 = vadd.f32 %v3026, %v4018
        %4020 = vmatprep.mubr.bf16.mxu0 %v3697
        %4021 = vmatmul.mubr.bf16.gmra.mxu0 %v3696
        %v4022 = vpop.f32.mrf.mxu0
        %v4023 = vadd.f32 %v3031, %v4022
        %v4024 = vpop.f32.mrf.mxu0
        %v4025 = vadd.f32 %v3031, %v4024
        %v4026 = vpop.f32.mrf.mxu0
        %v4027 = vadd.f32 %v3036, %v4026
        %v4028 = vpop.f32.mrf.mxu0
        %v4029 = vadd.f32 %v3036, %v4028
        %4030 = vmatprep.mubr.bf16.mxu0 %v3701
        %4031 = vmatmul.mubr.bf16.gmra.mxu0 %v3700
        %v4032 = vpop.f32.mrf.mxu0
        %v4033 = vadd.f32 %v3041, %v4032
        %v4034 = vpop.f32.mrf.mxu0
        %v4035 = vadd.f32 %v3041, %v4034
        %v4036 = vpop.f32.mrf.mxu0
        %v4037 = vadd.f32 %v3046, %v4036
        %v4038 = vpop.f32.mrf.mxu0
        %v4039 = vadd.f32 %v3046, %v4038
        %4040 = vmatprep.mubr.bf16.mxu0 %v3705
        %4041 = vmatmul.mubr.bf16.gmra.mxu0 %v3704
        %v4042 = vpop.f32.mrf.mxu0
        %v4043 = vadd.f32 %v3051, %v4042
        %v4044 = vpop.f32.mrf.mxu0
        %v4045 = vadd.f32 %v3051, %v4044
        %v4046 = vpop.f32.mrf.mxu0
        %v4047 = vadd.f32 %v3056, %v4046
        %v4048 = vpop.f32.mrf.mxu0
        %v4049 = vadd.f32 %v3056, %v4048
        %4050 = vmatprep.mubr.bf16.mxu0 %v3709
        %4051 = vmatmul.mubr.bf16.gmra.mxu0 %v3708
        %v4052 = vpop.f32.mrf.mxu0
        %v4053 = vadd.f32 %v3061, %v4052
        %v4054 = vpop.f32.mrf.mxu0
        %v4055 = vadd.f32 %v3061, %v4054
        %v4056 = vpop.f32.mrf.mxu0
        %v4057 = vadd.f32 %v3066, %v4056
        %v4058 = vpop.f32.mrf.mxu0
        %v4059 = vadd.f32 %v3066, %v4058
        %4060 = vmatprep.mubr.bf16.mxu0 %v3713
        %4061 = vmatmul.mubr.bf16.gmra.mxu0 %v3712
        %v4062 = vpop.f32.mrf.mxu0
        %v4063 = vadd.f32 %v3071, %v4062
        %v4064 = vpop.f32.mrf.mxu0
        %v4065 = vadd.f32 %v3071, %v4064
        %v4066 = vpop.f32.mrf.mxu0
        %v4067 = vadd.f32 %v3076, %v4066
        %v4068 = vpop.f32.mrf.mxu0
        %v4069 = vadd.f32 %v3076, %v4068
        %4070 = vmatprep.mubr.bf16.mxu0 %v3717
        %4071 = vmatmul.mubr.bf16.gmra.mxu0 %v3716
        %v4072 = vpop.f32.mrf.mxu0
        %v4073 = vadd.f32 %v3081, %v4072
        %v4074 = vpop.f32.mrf.mxu0
        %v4075 = vadd.f32 %v3081, %v4074
        %v4076 = vpop.f32.mrf.mxu0
        %v4077 = vadd.f32 %v3086, %v4076
        %v4078 = vpop.f32.mrf.mxu0
        %v4079 = vadd.f32 %v3086, %v4078
        %4080 = vmatprep.mubr.bf16.mxu0 %v3721
        %4081 = vmatmul.mubr.bf16.gmra.mxu0 %v3720
        %v4082 = vpop.f32.mrf.mxu0
        %v4083 = vadd.f32 %v3091, %v4082
        %v4084 = vpop.f32.mrf.mxu0
        %v4085 = vadd.f32 %v3091, %v4084
        %v4086 = vpop.f32.mrf.mxu0
        %v4087 = vadd.f32 %v3096, %v4086
        %v4088 = vpop.f32.mrf.mxu0
        %v4089 = vadd.f32 %v3096, %v4088
        %4090 = vmatprep.mubr.bf16.mxu0 %v3725
        %4091 = vmatmul.mubr.bf16.gmra.mxu0 %v3724
        %v4092 = vpop.f32.mrf.mxu0
        %v4093 = vadd.f32 %v3101, %v4092
        %v4094 = vpop.f32.mrf.mxu0
        %v4095 = vadd.f32 %v3101, %v4094
        %v4096 = vpop.f32.mrf.mxu0
        %v4097 = vadd.f32 %v3106, %v4096
        %v4098 = vpop.f32.mrf.mxu0
        %v4099 = vadd.f32 %v3106, %v4098
        %4100 = vmatprep.mubr.bf16.mxu0 %v3729
        %4101 = vmatmul.mubr.bf16.gmra.mxu0 %v3728
        %v4102 = vpop.f32.mrf.mxu0
        %v4103 = vadd.f32 %v3111, %v4102
        %v4104 = vpop.f32.mrf.mxu0
        %v4105 = vadd.f32 %v3111, %v4104
        %v4106 = vpop.f32.mrf.mxu0
        %v4107 = vadd.f32 %v3116, %v4106
        %v4108 = vpop.f32.mrf.mxu0
        %v4109 = vadd.f32 %v3116, %v4108
        %4110 = vmatprep.mubr.bf16.mxu0 %v3733
        %4111 = vmatmul.mubr.bf16.gmra.mxu0 %v3732
        %v4112 = vpop.f32.mrf.mxu0
        %v4113 = vadd.f32 %v3121, %v4112
        %v4114 = vpop.f32.mrf.mxu0
        %v4115 = vadd.f32 %v3121, %v4114
        %v4116 = vpop.f32.mrf.mxu0
        %v4117 = vadd.f32 %v3126, %v4116
        %v4118 = vpop.f32.mrf.mxu0
        %v4119 = vadd.f32 %v3126, %v4118
        %4120 = vmatprep.mubr.bf16.mxu0 %v3737
        %4121 = vmatmul.mubr.bf16.gmra.mxu0 %v3736
        %v4122 = vpop.f32.mrf.mxu0
        %v4123 = vadd.f32 %v3131, %v4122
        %v4124 = vpop.f32.mrf.mxu0
        %v4125 = vadd.f32 %v3131, %v4124
        %v4126 = vpop.f32.mrf.mxu0
        %v4127 = vadd.f32 %v3136, %v4126
        %v4128 = vpop.f32.mrf.mxu0
        %v4129 = vadd.f32 %v3136, %v4128
        %4130 = vmatprep.mubr.bf16.mxu0 %v3741
        %4131 = vmatmul.mubr.bf16.gmra.mxu0 %v3740
        %v4132 = vpop.f32.mrf.mxu0
        %v4133 = vadd.f32 %v3141, %v4132
        %v4134 = vpop.f32.mrf.mxu0
        %v4135 = vadd.f32 %v3141, %v4134
        %v4136 = vpop.f32.mrf.mxu0
        %v4137 = vadd.f32 %v3146, %v4136
        %v4138 = vpop.f32.mrf.mxu0
        %v4139 = vadd.f32 %v3146, %v4138
        %4140 = vmatprep.mubr.bf16.mxu0 %v3745
        %4141 = vmatmul.mubr.bf16.gmra.mxu0 %v3744
        %v4142 = vpop.f32.mrf.mxu0
        %v4143 = vadd.f32 %v3151, %v4142
        %v4144 = vpop.f32.mrf.mxu0
        %v4145 = vadd.f32 %v3151, %v4144
        %v4146 = vpop.f32.mrf.mxu0
        %v4147 = vadd.f32 %v3156, %v4146
        %v4148 = vpop.f32.mrf.mxu0
        %v4149 = vadd.f32 %v3156, %v4148
        %4150 = vmatprep.mubr.bf16.mxu0 %v3749
        %4151 = vmatmul.mubr.bf16.gmra.mxu0 %v3748
        %v4152 = vpop.f32.mrf.mxu0
        %v4153 = vadd.f32 %v3161, %v4152
        %v4154 = vpop.f32.mrf.mxu0
        %v4155 = vadd.f32 %v3161, %v4154
        %v4156 = vpop.f32.mrf.mxu0
        %v4157 = vadd.f32 %v3166, %v4156
        %v4158 = vpop.f32.mrf.mxu0
        %v4159 = vadd.f32 %v3166, %v4158
        %4160 = vmatprep.mubr.bf16.mxu0 %v3753
        %4161 = vmatmul.mubr.bf16.gmra.mxu0 %v3752
        %v4162 = vpop.f32.mrf.mxu0
        %v4163 = vadd.f32 %v3171, %v4162
        %v4164 = vpop.f32.mrf.mxu0
        %v4165 = vadd.f32 %v3171, %v4164
        %v4166 = vpop.f32.mrf.mxu0
        %v4167 = vadd.f32 %v3176, %v4166
        %v4168 = vpop.f32.mrf.mxu0
        %v4169 = vadd.f32 %v3176, %v4168
        %4170 = vmatprep.mubr.bf16.mxu0 %v3757
        %4171 = vmatmul.mubr.bf16.gmra.mxu0 %v3756
        %v4172 = vpop.f32.mrf.mxu0
        %v4173 = vadd.f32 %v3181, %v4172
        %v4174 = vpop.f32.mrf.mxu0
        %v4175 = vadd.f32 %v3181, %v4174
        %v4176 = vpop.f32.mrf.mxu0
        %v4177 = vadd.f32 %v3186, %v4176
        %v4178 = vpop.f32.mrf.mxu0
        %v4179 = vadd.f32 %v3186, %v4178
        %4180 = vmatprep.mubr.bf16.mxu0 %v3761
        %4181 = vmatmul.mubr.bf16.gmra.mxu0 %v3760
        %v4182 = vpop.f32.mrf.mxu0
        %v4183 = vadd.f32 %v3191, %v4182
        %v4184 = vpop.f32.mrf.mxu0
        %v4185 = vadd.f32 %v3191, %v4184
        %v4186 = vpop.f32.mrf.mxu0
        %v4187 = vadd.f32 %v3196, %v4186
        %v4188 = vpop.f32.mrf.mxu0
        %v4189 = vadd.f32 %v3196, %v4188
        %4190 = vmatprep.mubr.bf16.mxu0 %v3765
        %4191 = vmatmul.mubr.bf16.gmra.mxu0 %v3764
        %v4192 = vpop.f32.mrf.mxu0
        %v4193 = vadd.f32 %v3201, %v4192
        %v4194 = vpop.f32.mrf.mxu0
        %v4195 = vadd.f32 %v3201, %v4194
        %v4196 = vpop.f32.mrf.mxu0
        %v4197 = vadd.f32 %v3206, %v4196
        %v4198 = vpop.f32.mrf.mxu0
        %v4199 = vadd.f32 %v3206, %v4198
        %4200 = vmatprep.mubr.bf16.mxu0 %v3769
        %4201 = vmatmul.mubr.bf16.gmra.mxu0 %v3768
        %v4202 = vpop.f32.mrf.mxu0
        %v4203 = vadd.f32 %v3211, %v4202
        %v4204 = vpop.f32.mrf.mxu0
        %v4205 = vadd.f32 %v3211, %v4204
        %v4206 = vpop.f32.mrf.mxu0
        %v4207 = vadd.f32 %v3216, %v4206
        %v4208 = vpop.f32.mrf.mxu0
        %v4209 = vadd.f32 %v3216, %v4208
        %4210 = vmatprep.mubr.bf16.mxu0 %v3773
        %4211 = vmatmul.mubr.bf16.gmra.mxu0 %v3772
        %v4212 = vpop.f32.mrf.mxu0
        %v4213 = vadd.f32 %v3221, %v4212
        %v4214 = vpop.f32.mrf.mxu0
        %v4215 = vadd.f32 %v3221, %v4214
        %v4216 = vpop.f32.mrf.mxu0
        %v4217 = vadd.f32 %v3226, %v4216
        %v4218 = vpop.f32.mrf.mxu0
        %v4219 = vadd.f32 %v3226, %v4218
        %4220 = vmatprep.mubr.bf16.mxu0 %v3777
        %4221 = vmatmul.mubr.bf16.gmra.mxu0 %v3776
        %v4222 = vpop.f32.mrf.mxu0
        %v4223 = vadd.f32 %v3231, %v4222
        %v4224 = vpop.f32.mrf.mxu0
        %v4225 = vadd.f32 %v3231, %v4224
        %v4226 = vpop.f32.mrf.mxu0
        %v4227 = vadd.f32 %v3236, %v4226
        %v4228 = vpop.f32.mrf.mxu0
        %v4229 = vadd.f32 %v3236, %v4228
        %4230 = vmatprep.mubr.bf16.mxu0 %v3781
        %4231 = vmatmul.mubr.bf16.gmra.mxu0 %v3780
        %v4232 = vpop.f32.mrf.mxu0
        %v4233 = vadd.f32 %v3241, %v4232
        %v4234 = vpop.f32.mrf.mxu0
        %v4235 = vadd.f32 %v3241, %v4234
        %v4236 = vpop.f32.mrf.mxu0
        %v4237 = vadd.f32 %v3246, %v4236
        %v4238 = vpop.f32.mrf.mxu0
        %v4239 = vadd.f32 %v3246, %v4238
        %4240 = vmatprep.mubr.bf16.mxu0 %v3785
        %4241 = vmatmul.mubr.bf16.gmra.mxu0 %v3784
        %v4242 = vpop.f32.mrf.mxu0
        %v4243 = vadd.f32 %v3251, %v4242
        %v4244 = vpop.f32.mrf.mxu0
        %v4245 = vadd.f32 %v3251, %v4244
        %v4246 = vpop.f32.mrf.mxu0
        %v4247 = vadd.f32 %v3256, %v4246
        %v4248 = vpop.f32.mrf.mxu0
        %v4249 = vadd.f32 %v3256, %v4248
        %4250 = vmatprep.mubr.bf16.mxu0 %v3789
        %4251 = vmatmul.mubr.bf16.gmra.mxu0 %v3788
        %v4252 = vpop.f32.mrf.mxu0
        %v4253 = vadd.f32 %v3261, %v4252
        %v4254 = vpop.f32.mrf.mxu0
        %v4255 = vadd.f32 %v3261, %v4254
        %v4256 = vpop.f32.mrf.mxu0
        %v4257 = vadd.f32 %v3266, %v4256
        %v4258 = vpop.f32.mrf.mxu0
        %v4259 = vadd.f32 %v3266, %v4258
        %4260 = vmatprep.mubr.bf16.mxu0 %v3793
        %4261 = vmatmul.mubr.bf16.gmra.mxu0 %v3792
        %v4262 = vpop.f32.mrf.mxu0
        %v4263 = vadd.f32 %v3271, %v4262
        %v4264 = vpop.f32.mrf.mxu0
        %v4265 = vadd.f32 %v3271, %v4264
        %v4266 = vpop.f32.mrf.mxu0
        %v4267 = vadd.f32 %v3276, %v4266
        %v4268 = vpop.f32.mrf.mxu0
        %v4269 = vadd.f32 %v3276, %v4268
        %4270 = vmatprep.mubr.bf16.mxu0 %v3797
        %4271 = vmatmul.mubr.bf16.gmra.mxu0 %v3796
        %v4272 = vpop.f32.mrf.mxu0
        %v4273 = vadd.f32 %v3281, %v4272
        %v4274 = vpop.f32.mrf.mxu0
        %v4275 = vadd.f32 %v3281, %v4274
        %v4276 = vpop.f32.mrf.mxu0
        %v4277 = vadd.f32 %v3286, %v4276
        %v4278 = vpop.f32.mrf.mxu0
        %v4279 = vadd.f32 %v3286, %v4278
        %4280 = vdwg.mxu0
        %4281 = vmatprep.subr.bf16.mxu0 %v2887
        %4282 = vmatpush1.bf16.msra.mxu0 %v2886
        %4283 = vmatprep.subr.bf16.mxu0 %v2885
        %4284 = vmatpush1.bf16.msra.mxu0 %v2884
        %4285 = vmatprep.subr.bf16.mxu0 %v2883
        %4286 = vmatpush1.bf16.msra.mxu0 %v2882
        %4287 = vmatprep.subr.bf16.mxu0 %v2881
        %4288 = vmatpush1.bf16.msra.mxu0 %v2880
        %4289 = vmatprep.subr.bf16.mxu0 %v2879
        %4290 = vmatpush1.bf16.msra.mxu0 %v2878
        %4291 = vmatprep.subr.bf16.mxu0 %v2877
        %4292 = vmatpush1.bf16.msra.mxu0 %v2876
        %4293 = vmatprep.subr.bf16.mxu0 %v2875
        %4294 = vmatpush1.bf16.msra.mxu0 %v2874
        %4295 = vmatprep.subr.bf16.mxu0 %v2873
        %4296 = vmatpush1.bf16.msra.mxu0 %v2872
        %4297 = vmatprep.subr.bf16.mxu0 %v2903
        %4298 = vmatpush2.bf16.msra.mxu0 %v2902
        %4299 = vmatprep.subr.bf16.mxu0 %v2901
        %4300 = vmatpush2.bf16.msra.mxu0 %v2900
        %4301 = vmatprep.subr.bf16.mxu0 %v2899
        %4302 = vmatpush2.bf16.msra.mxu0 %v2898
        %4303 = vmatprep.subr.bf16.mxu0 %v2897
        %4304 = vmatpush2.bf16.msra.mxu0 %v2896
        %4305 = vmatprep.subr.bf16.mxu0 %v2895
        %4306 = vmatpush2.bf16.msra.mxu0 %v2894
        %4307 = vmatprep.subr.bf16.mxu0 %v2893
        %4308 = vmatpush2.bf16.msra.mxu0 %v2892
        %4309 = vmatprep.subr.bf16.mxu0 %v2891
        %4310 = vmatpush2.bf16.msra.mxu0 %v2890
        %4311 = vmatprep.subr.bf16.mxu0 %v2889
        %4312 = vmatpush2.bf16.msra.mxu0 %v2888
        %4313 = vmatprep.mubr.bf16.mxu0 %v3675
        %4314 = vmatmul.mubr.bf16.gmra.mxu0 %v3674
        %v4315 = vpop.f32.mrf.mxu0
        %v4316 = vadd.f32 %v3963, %v4315
        %v4317 = vpop.f32.mrf.mxu0
        %v4318 = vadd.f32 %v3965, %v4317
        %v4319 = vpop.f32.mrf.mxu0
        %v4320 = vadd.f32 %v3967, %v4319
        %v4321 = vpop.f32.mrf.mxu0
        %v4322 = vadd.f32 %v3969, %v4321
        %4323 = vmatprep.mubr.bf16.mxu0 %v3679
        %4324 = vmatmul.mubr.bf16.gmra.mxu0 %v3678
        %v4325 = vpop.f32.mrf.mxu0
        %v4326 = vadd.f32 %v3973, %v4325
        %v4327 = vpop.f32.mrf.mxu0
        %v4328 = vadd.f32 %v3975, %v4327
        %v4329 = vpop.f32.mrf.mxu0
        %v4330 = vadd.f32 %v3977, %v4329
        %v4331 = vpop.f32.mrf.mxu0
        %v4332 = vadd.f32 %v3979, %v4331
        %4333 = vmatprep.mubr.bf16.mxu0 %v3683
        %4334 = vmatmul.mubr.bf16.gmra.mxu0 %v3682
        %v4335 = vpop.f32.mrf.mxu0
        %v4336 = vadd.f32 %v3983, %v4335
        %v4337 = vpop.f32.mrf.mxu0
        %v4338 = vadd.f32 %v3985, %v4337
        %v4339 = vpop.f32.mrf.mxu0
        %v4340 = vadd.f32 %v3987, %v4339
        %v4341 = vpop.f32.mrf.mxu0
        %v4342 = vadd.f32 %v3989, %v4341
        %4343 = vmatprep.mubr.bf16.mxu0 %v3687
        %4344 = vmatmul.mubr.bf16.gmra.mxu0 %v3686
        %v4345 = vpop.f32.mrf.mxu0
        %v4346 = vadd.f32 %v3993, %v4345
        %v4347 = vpop.f32.mrf.mxu0
        %v4348 = vadd.f32 %v3995, %v4347
        %v4349 = vpop.f32.mrf.mxu0
        %v4350 = vadd.f32 %v3997, %v4349
        %v4351 = vpop.f32.mrf.mxu0
        %v4352 = vadd.f32 %v3999, %v4351
        %4353 = vmatprep.mubr.bf16.mxu0 %v3691
        %4354 = vmatmul.mubr.bf16.gmra.mxu0 %v3690
        %v4355 = vpop.f32.mrf.mxu0
        %v4356 = vadd.f32 %v4003, %v4355
        %v4357 = vpop.f32.mrf.mxu0
        %v4358 = vadd.f32 %v4005, %v4357
        %v4359 = vpop.f32.mrf.mxu0
        %v4360 = vadd.f32 %v4007, %v4359
        %v4361 = vpop.f32.mrf.mxu0
        %v4362 = vadd.f32 %v4009, %v4361
        %4363 = vmatprep.mubr.bf16.mxu0 %v3695
        %4364 = vmatmul.mubr.bf16.gmra.mxu0 %v3694
        %v4365 = vpop.f32.mrf.mxu0
        %v4366 = vadd.f32 %v4013, %v4365
        %v4367 = vpop.f32.mrf.mxu0
        %v4368 = vadd.f32 %v4015, %v4367
        %v4369 = vpop.f32.mrf.mxu0
        %v4370 = vadd.f32 %v4017, %v4369
        %v4371 = vpop.f32.mrf.mxu0
        %v4372 = vadd.f32 %v4019, %v4371
        %4373 = vmatprep.mubr.bf16.mxu0 %v3699
        %4374 = vmatmul.mubr.bf16.gmra.mxu0 %v3698
        %v4375 = vpop.f32.mrf.mxu0
        %v4376 = vadd.f32 %v4023, %v4375
        %v4377 = vpop.f32.mrf.mxu0
        %v4378 = vadd.f32 %v4025, %v4377
        %v4379 = vpop.f32.mrf.mxu0
        %v4380 = vadd.f32 %v4027, %v4379
        %v4381 = vpop.f32.mrf.mxu0
        %v4382 = vadd.f32 %v4029, %v4381
        %4383 = vmatprep.mubr.bf16.mxu0 %v3703
        %4384 = vmatmul.mubr.bf16.gmra.mxu0 %v3702
        %v4385 = vpop.f32.mrf.mxu0
        %v4386 = vadd.f32 %v4033, %v4385
        %v4387 = vpop.f32.mrf.mxu0
        %v4388 = vadd.f32 %v4035, %v4387
        %v4389 = vpop.f32.mrf.mxu0
        %v4390 = vadd.f32 %v4037, %v4389
        %v4391 = vpop.f32.mrf.mxu0
        %v4392 = vadd.f32 %v4039, %v4391
        %4393 = vmatprep.mubr.bf16.mxu0 %v3707
        %4394 = vmatmul.mubr.bf16.gmra.mxu0 %v3706
        %v4395 = vpop.f32.mrf.mxu0
        %v4396 = vadd.f32 %v4043, %v4395
        %v4397 = vpop.f32.mrf.mxu0
        %v4398 = vadd.f32 %v4045, %v4397
        %v4399 = vpop.f32.mrf.mxu0
        %v4400 = vadd.f32 %v4047, %v4399
        %v4401 = vpop.f32.mrf.mxu0
        %v4402 = vadd.f32 %v4049, %v4401
        %4403 = vmatprep.mubr.bf16.mxu0 %v3711
        %4404 = vmatmul.mubr.bf16.gmra.mxu0 %v3710
        %v4405 = vpop.f32.mrf.mxu0
        %v4406 = vadd.f32 %v4053, %v4405
        %v4407 = vpop.f32.mrf.mxu0
        %v4408 = vadd.f32 %v4055, %v4407
        %v4409 = vpop.f32.mrf.mxu0
        %v4410 = vadd.f32 %v4057, %v4409
        %v4411 = vpop.f32.mrf.mxu0
        %v4412 = vadd.f32 %v4059, %v4411
        %4413 = vmatprep.mubr.bf16.mxu0 %v3715
        %4414 = vmatmul.mubr.bf16.gmra.mxu0 %v3714
        %v4415 = vpop.f32.mrf.mxu0
        %v4416 = vadd.f32 %v4063, %v4415
        %v4417 = vpop.f32.mrf.mxu0
        %v4418 = vadd.f32 %v4065, %v4417
        %v4419 = vpop.f32.mrf.mxu0
        %v4420 = vadd.f32 %v4067, %v4419
        %v4421 = vpop.f32.mrf.mxu0
        %v4422 = vadd.f32 %v4069, %v4421
        %4423 = vmatprep.mubr.bf16.mxu0 %v3719
        %4424 = vmatmul.mubr.bf16.gmra.mxu0 %v3718
        %v4425 = vpop.f32.mrf.mxu0
        %v4426 = vadd.f32 %v4073, %v4425
        %v4427 = vpop.f32.mrf.mxu0
        %v4428 = vadd.f32 %v4075, %v4427
        %v4429 = vpop.f32.mrf.mxu0
        %v4430 = vadd.f32 %v4077, %v4429
        %v4431 = vpop.f32.mrf.mxu0
        %v4432 = vadd.f32 %v4079, %v4431
        %4433 = vmatprep.mubr.bf16.mxu0 %v3723
        %4434 = vmatmul.mubr.bf16.gmra.mxu0 %v3722
        %v4435 = vpop.f32.mrf.mxu0
        %v4436 = vadd.f32 %v4083, %v4435
        %v4437 = vpop.f32.mrf.mxu0
        %v4438 = vadd.f32 %v4085, %v4437
        %v4439 = vpop.f32.mrf.mxu0
        %v4440 = vadd.f32 %v4087, %v4439
        %v4441 = vpop.f32.mrf.mxu0
        %v4442 = vadd.f32 %v4089, %v4441
        %4443 = vmatprep.mubr.bf16.mxu0 %v3727
        %4444 = vmatmul.mubr.bf16.gmra.mxu0 %v3726
        %v4445 = vpop.f32.mrf.mxu0
        %v4446 = vadd.f32 %v4093, %v4445
        %v4447 = vpop.f32.mrf.mxu0
        %v4448 = vadd.f32 %v4095, %v4447
        %v4449 = vpop.f32.mrf.mxu0
        %v4450 = vadd.f32 %v4097, %v4449
        %v4451 = vpop.f32.mrf.mxu0
        %v4452 = vadd.f32 %v4099, %v4451
        %4453 = vmatprep.mubr.bf16.mxu0 %v3731
        %4454 = vmatmul.mubr.bf16.gmra.mxu0 %v3730
        %v4455 = vpop.f32.mrf.mxu0
        %v4456 = vadd.f32 %v4103, %v4455
        %v4457 = vpop.f32.mrf.mxu0
        %v4458 = vadd.f32 %v4105, %v4457
        %v4459 = vpop.f32.mrf.mxu0
        %v4460 = vadd.f32 %v4107, %v4459
        %v4461 = vpop.f32.mrf.mxu0
        %v4462 = vadd.f32 %v4109, %v4461
        %4463 = vmatprep.mubr.bf16.mxu0 %v3735
        %4464 = vmatmul.mubr.bf16.gmra.mxu0 %v3734
        %v4465 = vpop.f32.mrf.mxu0
        %v4466 = vadd.f32 %v4113, %v4465
        %v4467 = vpop.f32.mrf.mxu0
        %v4468 = vadd.f32 %v4115, %v4467
        %v4469 = vpop.f32.mrf.mxu0
        %v4470 = vadd.f32 %v4117, %v4469
        %v4471 = vpop.f32.mrf.mxu0
        %v4472 = vadd.f32 %v4119, %v4471
        %4473 = vmatprep.mubr.bf16.mxu0 %v3739
        %4474 = vmatmul.mubr.bf16.gmra.mxu0 %v3738
        %v4475 = vpop.f32.mrf.mxu0
        %v4476 = vadd.f32 %v4123, %v4475
        %v4477 = vpop.f32.mrf.mxu0
        %v4478 = vadd.f32 %v4125, %v4477
        %v4479 = vpop.f32.mrf.mxu0
        %v4480 = vadd.f32 %v4127, %v4479
        %v4481 = vpop.f32.mrf.mxu0
        %v4482 = vadd.f32 %v4129, %v4481
        %4483 = vmatprep.mubr.bf16.mxu0 %v3743
        %4484 = vmatmul.mubr.bf16.gmra.mxu0 %v3742
        %v4485 = vpop.f32.mrf.mxu0
        %v4486 = vadd.f32 %v4133, %v4485
        %v4487 = vpop.f32.mrf.mxu0
        %v4488 = vadd.f32 %v4135, %v4487
        %v4489 = vpop.f32.mrf.mxu0
        %v4490 = vadd.f32 %v4137, %v4489
        %v4491 = vpop.f32.mrf.mxu0
        %v4492 = vadd.f32 %v4139, %v4491
        %4493 = vmatprep.mubr.bf16.mxu0 %v3747
        %4494 = vmatmul.mubr.bf16.gmra.mxu0 %v3746
        %v4495 = vpop.f32.mrf.mxu0
        %v4496 = vadd.f32 %v4143, %v4495
        %v4497 = vpop.f32.mrf.mxu0
        %v4498 = vadd.f32 %v4145, %v4497
        %v4499 = vpop.f32.mrf.mxu0
        %v4500 = vadd.f32 %v4147, %v4499
        %v4501 = vpop.f32.mrf.mxu0
        %v4502 = vadd.f32 %v4149, %v4501
        %4503 = vmatprep.mubr.bf16.mxu0 %v3751
        %4504 = vmatmul.mubr.bf16.gmra.mxu0 %v3750
        %v4505 = vpop.f32.mrf.mxu0
        %v4506 = vadd.f32 %v4153, %v4505
        %v4507 = vpop.f32.mrf.mxu0
        %v4508 = vadd.f32 %v4155, %v4507
        %v4509 = vpop.f32.mrf.mxu0
        %v4510 = vadd.f32 %v4157, %v4509
        %v4511 = vpop.f32.mrf.mxu0
        %v4512 = vadd.f32 %v4159, %v4511
        %4513 = vmatprep.mubr.bf16.mxu0 %v3755
        %4514 = vmatmul.mubr.bf16.gmra.mxu0 %v3754
        %v4515 = vpop.f32.mrf.mxu0
        %v4516 = vadd.f32 %v4163, %v4515
        %v4517 = vpop.f32.mrf.mxu0
        %v4518 = vadd.f32 %v4165, %v4517
        %v4519 = vpop.f32.mrf.mxu0
        %v4520 = vadd.f32 %v4167, %v4519
        %v4521 = vpop.f32.mrf.mxu0
        %v4522 = vadd.f32 %v4169, %v4521
        %4523 = vmatprep.mubr.bf16.mxu0 %v3759
        %4524 = vmatmul.mubr.bf16.gmra.mxu0 %v3758
        %v4525 = vpop.f32.mrf.mxu0
        %v4526 = vadd.f32 %v4173, %v4525
        %v4527 = vpop.f32.mrf.mxu0
        %v4528 = vadd.f32 %v4175, %v4527
        %v4529 = vpop.f32.mrf.mxu0
        %v4530 = vadd.f32 %v4177, %v4529
        %v4531 = vpop.f32.mrf.mxu0
        %v4532 = vadd.f32 %v4179, %v4531
        %4533 = vmatprep.mubr.bf16.mxu0 %v3763
        %4534 = vmatmul.mubr.bf16.gmra.mxu0 %v3762
        %v4535 = vpop.f32.mrf.mxu0
        %v4536 = vadd.f32 %v4183, %v4535
        %v4537 = vpop.f32.mrf.mxu0
        %v4538 = vadd.f32 %v4185, %v4537
        %v4539 = vpop.f32.mrf.mxu0
        %v4540 = vadd.f32 %v4187, %v4539
        %v4541 = vpop.f32.mrf.mxu0
        %v4542 = vadd.f32 %v4189, %v4541
        %4543 = vmatprep.mubr.bf16.mxu0 %v3767
        %4544 = vmatmul.mubr.bf16.gmra.mxu0 %v3766
        %v4545 = vpop.f32.mrf.mxu0
        %v4546 = vadd.f32 %v4193, %v4545
        %v4547 = vpop.f32.mrf.mxu0
        %v4548 = vadd.f32 %v4195, %v4547
        %v4549 = vpop.f32.mrf.mxu0
        %v4550 = vadd.f32 %v4197, %v4549
        %v4551 = vpop.f32.mrf.mxu0
        %v4552 = vadd.f32 %v4199, %v4551
        %4553 = vmatprep.mubr.bf16.mxu0 %v3771
        %4554 = vmatmul.mubr.bf16.gmra.mxu0 %v3770
        %v4555 = vpop.f32.mrf.mxu0
        %v4556 = vadd.f32 %v4203, %v4555
        %v4557 = vpop.f32.mrf.mxu0
        %v4558 = vadd.f32 %v4205, %v4557
        %v4559 = vpop.f32.mrf.mxu0
        %v4560 = vadd.f32 %v4207, %v4559
        %v4561 = vpop.f32.mrf.mxu0
        %v4562 = vadd.f32 %v4209, %v4561
        %4563 = vmatprep.mubr.bf16.mxu0 %v3775
        %4564 = vmatmul.mubr.bf16.gmra.mxu0 %v3774
        %v4565 = vpop.f32.mrf.mxu0
        %v4566 = vadd.f32 %v4213, %v4565
        %v4567 = vpop.f32.mrf.mxu0
        %v4568 = vadd.f32 %v4215, %v4567
        %v4569 = vpop.f32.mrf.mxu0
        %v4570 = vadd.f32 %v4217, %v4569
        %v4571 = vpop.f32.mrf.mxu0
        %v4572 = vadd.f32 %v4219, %v4571
        %4573 = vmatprep.mubr.bf16.mxu0 %v3779
        %4574 = vmatmul.mubr.bf16.gmra.mxu0 %v3778
        %v4575 = vpop.f32.mrf.mxu0
        %v4576 = vadd.f32 %v4223, %v4575
        %v4577 = vpop.f32.mrf.mxu0
        %v4578 = vadd.f32 %v4225, %v4577
        %v4579 = vpop.f32.mrf.mxu0
        %v4580 = vadd.f32 %v4227, %v4579
        %v4581 = vpop.f32.mrf.mxu0
        %v4582 = vadd.f32 %v4229, %v4581
        %4583 = vmatprep.mubr.bf16.mxu0 %v3783
        %4584 = vmatmul.mubr.bf16.gmra.mxu0 %v3782
        %v4585 = vpop.f32.mrf.mxu0
        %v4586 = vadd.f32 %v4233, %v4585
        %v4587 = vpop.f32.mrf.mxu0
        %v4588 = vadd.f32 %v4235, %v4587
        %v4589 = vpop.f32.mrf.mxu0
        %v4590 = vadd.f32 %v4237, %v4589
        %v4591 = vpop.f32.mrf.mxu0
        %v4592 = vadd.f32 %v4239, %v4591
        %4593 = vmatprep.mubr.bf16.mxu0 %v3787
        %4594 = vmatmul.mubr.bf16.gmra.mxu0 %v3786
        %v4595 = vpop.f32.mrf.mxu0
        %v4596 = vadd.f32 %v4243, %v4595
        %v4597 = vpop.f32.mrf.mxu0
        %v4598 = vadd.f32 %v4245, %v4597
        %v4599 = vpop.f32.mrf.mxu0
        %v4600 = vadd.f32 %v4247, %v4599
        %v4601 = vpop.f32.mrf.mxu0
        %v4602 = vadd.f32 %v4249, %v4601
        %4603 = vmatprep.mubr.bf16.mxu0 %v3791
        %4604 = vmatmul.mubr.bf16.gmra.mxu0 %v3790
        %v4605 = vpop.f32.mrf.mxu0
        %v4606 = vadd.f32 %v4253, %v4605
        %v4607 = vpop.f32.mrf.mxu0
        %v4608 = vadd.f32 %v4255, %v4607
        %v4609 = vpop.f32.mrf.mxu0
        %v4610 = vadd.f32 %v4257, %v4609
        %v4611 = vpop.f32.mrf.mxu0
        %v4612 = vadd.f32 %v4259, %v4611
        %4613 = vmatprep.mubr.bf16.mxu0 %v3795
        %4614 = vmatmul.mubr.bf16.gmra.mxu0 %v3794
        %v4615 = vpop.f32.mrf.mxu0
        %v4616 = vadd.f32 %v4263, %v4615
        %v4617 = vpop.f32.mrf.mxu0
        %v4618 = vadd.f32 %v4265, %v4617
        %v4619 = vpop.f32.mrf.mxu0
        %v4620 = vadd.f32 %v4267, %v4619
        %v4621 = vpop.f32.mrf.mxu0
        %v4622 = vadd.f32 %v4269, %v4621
        %4623 = vmatprep.mubr.bf16.mxu0 %v3799
        %4624 = vmatmul.mubr.bf16.gmra.mxu0 %v3798
        %v4625 = vpop.f32.mrf.mxu0
        %v4626 = vadd.f32 %v4273, %v4625
        %v4627 = vpop.f32.mrf.mxu0
        %v4628 = vadd.f32 %v4275, %v4627
        %v4629 = vpop.f32.mrf.mxu0
        %v4630 = vadd.f32 %v4277, %v4629
        %v4631 = vpop.f32.mrf.mxu0
        %v4632 = vadd.f32 %v4279, %v4631
        %4633 = vdwg.mxu0
        %vm4634 = vcmp.ge.f32.partialorder %v4316, 0.0
        %vm4635 = vcmp.ge.f32.partialorder %v4318, 0.0
        %vm4636 = vcmp.ge.f32.partialorder %v4320, 0.0
        %vm4637 = vcmp.ge.f32.partialorder %v4322, 0.0
        %vm4638 = vcmp.ge.f32.partialorder %v4326, 0.0
        %vm4639 = vcmp.ge.f32.partialorder %v4328, 0.0
        %vm4640 = vcmp.ge.f32.partialorder %v4330, 0.0
        %vm4641 = vcmp.ge.f32.partialorder %v4332, 0.0
        %vm4642 = vcmp.ge.f32.partialorder %v4336, 0.0
        %vm4643 = vcmp.ge.f32.partialorder %v4338, 0.0
        %vm4644 = vcmp.ge.f32.partialorder %v4340, 0.0
        %vm4645 = vcmp.ge.f32.partialorder %v4342, 0.0
        %vm4646 = vcmp.ge.f32.partialorder %v4346, 0.0
        %vm4647 = vcmp.ge.f32.partialorder %v4348, 0.0
        %vm4648 = vcmp.ge.f32.partialorder %v4350, 0.0
        %vm4649 = vcmp.ge.f32.partialorder %v4352, 0.0
        %vm4650 = vcmp.ge.f32.partialorder %v4356, 0.0
        %vm4651 = vcmp.ge.f32.partialorder %v4358, 0.0
        %vm4652 = vcmp.ge.f32.partialorder %v4360, 0.0
        %vm4653 = vcmp.ge.f32.partialorder %v4362, 0.0
        %vm4654 = vcmp.ge.f32.partialorder %v4366, 0.0
        %vm4655 = vcmp.ge.f32.partialorder %v4368, 0.0
        %vm4656 = vcmp.ge.f32.partialorder %v4370, 0.0
        %vm4657 = vcmp.ge.f32.partialorder %v4372, 0.0
        %vm4658 = vcmp.ge.f32.partialorder %v4376, 0.0
        %vm4659 = vcmp.ge.f32.partialorder %v4378, 0.0
        %vm4660 = vcmp.ge.f32.partialorder %v4380, 0.0
        %vm4661 = vcmp.ge.f32.partialorder %v4382, 0.0
        %vm4662 = vcmp.ge.f32.partialorder %v4386, 0.0
        %vm4663 = vcmp.ge.f32.partialorder %v4388, 0.0
        %vm4664 = vcmp.ge.f32.partialorder %v4390, 0.0
        %vm4665 = vcmp.ge.f32.partialorder %v4392, 0.0
        %vm4666 = vcmp.ge.f32.partialorder %v4396, 0.0
        %vm4667 = vcmp.ge.f32.partialorder %v4398, 0.0
        %vm4668 = vcmp.ge.f32.partialorder %v4400, 0.0
        %vm4669 = vcmp.ge.f32.partialorder %v4402, 0.0
        %vm4670 = vcmp.ge.f32.partialorder %v4406, 0.0
        %vm4671 = vcmp.ge.f32.partialorder %v4408, 0.0
        %vm4672 = vcmp.ge.f32.partialorder %v4410, 0.0
        %vm4673 = vcmp.ge.f32.partialorder %v4412, 0.0
        %vm4674 = vcmp.ge.f32.partialorder %v4416, 0.0
        %vm4675 = vcmp.ge.f32.partialorder %v4418, 0.0
        %vm4676 = vcmp.ge.f32.partialorder %v4420, 0.0
        %vm4677 = vcmp.ge.f32.partialorder %v4422, 0.0
        %vm4678 = vcmp.ge.f32.partialorder %v4426, 0.0
        %vm4679 = vcmp.ge.f32.partialorder %v4428, 0.0
        %vm4680 = vcmp.ge.f32.partialorder %v4430, 0.0
        %vm4681 = vcmp.ge.f32.partialorder %v4432, 0.0
        %vm4682 = vcmp.ge.f32.partialorder %v4436, 0.0
        %vm4683 = vcmp.ge.f32.partialorder %v4438, 0.0
        %vm4684 = vcmp.ge.f32.partialorder %v4440, 0.0
        %vm4685 = vcmp.ge.f32.partialorder %v4442, 0.0
        %vm4686 = vcmp.ge.f32.partialorder %v4446, 0.0
        %vm4687 = vcmp.ge.f32.partialorder %v4448, 0.0
        %vm4688 = vcmp.ge.f32.partialorder %v4450, 0.0
        %vm4689 = vcmp.ge.f32.partialorder %v4452, 0.0
        %vm4690 = vcmp.ge.f32.partialorder %v4456, 0.0
        %vm4691 = vcmp.ge.f32.partialorder %v4458, 0.0
        %vm4692 = vcmp.ge.f32.partialorder %v4460, 0.0
        %vm4693 = vcmp.ge.f32.partialorder %v4462, 0.0
        %vm4694 = vcmp.ge.f32.partialorder %v4466, 0.0
        %vm4695 = vcmp.ge.f32.partialorder %v4468, 0.0
        %vm4696 = vcmp.ge.f32.partialorder %v4470, 0.0
        %vm4697 = vcmp.ge.f32.partialorder %v4472, 0.0
        %vm4698 = vcmp.ge.f32.partialorder %v4476, 0.0
        %vm4699 = vcmp.ge.f32.partialorder %v4478, 0.0
        %vm4700 = vcmp.ge.f32.partialorder %v4480, 0.0
        %vm4701 = vcmp.ge.f32.partialorder %v4482, 0.0
        %vm4702 = vcmp.ge.f32.partialorder %v4486, 0.0
        %vm4703 = vcmp.ge.f32.partialorder %v4488, 0.0
        %vm4704 = vcmp.ge.f32.partialorder %v4490, 0.0
        %vm4705 = vcmp.ge.f32.partialorder %v4492, 0.0
        %vm4706 = vcmp.ge.f32.partialorder %v4496, 0.0
        %vm4707 = vcmp.ge.f32.partialorder %v4498, 0.0
        %vm4708 = vcmp.ge.f32.partialorder %v4500, 0.0
        %vm4709 = vcmp.ge.f32.partialorder %v4502, 0.0
        %vm4710 = vcmp.ge.f32.partialorder %v4506, 0.0
        %vm4711 = vcmp.ge.f32.partialorder %v4508, 0.0
        %vm4712 = vcmp.ge.f32.partialorder %v4510, 0.0
        %vm4713 = vcmp.ge.f32.partialorder %v4512, 0.0
        %vm4714 = vcmp.ge.f32.partialorder %v4516, 0.0
        %vm4715 = vcmp.ge.f32.partialorder %v4518, 0.0
        %vm4716 = vcmp.ge.f32.partialorder %v4520, 0.0
        %vm4717 = vcmp.ge.f32.partialorder %v4522, 0.0
        %vm4718 = vcmp.ge.f32.partialorder %v4526, 0.0
        %vm4719 = vcmp.ge.f32.partialorder %v4528, 0.0
        %vm4720 = vcmp.ge.f32.partialorder %v4530, 0.0
        %vm4721 = vcmp.ge.f32.partialorder %v4532, 0.0
        %vm4722 = vcmp.ge.f32.partialorder %v4536, 0.0
        %vm4723 = vcmp.ge.f32.partialorder %v4538, 0.0
        %vm4724 = vcmp.ge.f32.partialorder %v4540, 0.0
        %vm4725 = vcmp.ge.f32.partialorder %v4542, 0.0
        %vm4726 = vcmp.ge.f32.partialorder %v4546, 0.0
        %vm4727 = vcmp.ge.f32.partialorder %v4548, 0.0
        %vm4728 = vcmp.ge.f32.partialorder %v4550, 0.0
        %vm4729 = vcmp.ge.f32.partialorder %v4552, 0.0
        %vm4730 = vcmp.ge.f32.partialorder %v4556, 0.0
        %vm4731 = vcmp.ge.f32.partialorder %v4558, 0.0
        %vm4732 = vcmp.ge.f32.partialorder %v4560, 0.0
        %vm4733 = vcmp.ge.f32.partialorder %v4562, 0.0
        %vm4734 = vcmp.ge.f32.partialorder %v4566, 0.0
        %vm4735 = vcmp.ge.f32.partialorder %v4568, 0.0
        %vm4736 = vcmp.ge.f32.partialorder %v4570, 0.0
        %vm4737 = vcmp.ge.f32.partialorder %v4572, 0.0
        %vm4738 = vcmp.ge.f32.partialorder %v4576, 0.0
        %vm4739 = vcmp.ge.f32.partialorder %v4578, 0.0
        %vm4740 = vcmp.ge.f32.partialorder %v4580, 0.0
        %vm4741 = vcmp.ge.f32.partialorder %v4582, 0.0
        %vm4742 = vcmp.ge.f32.partialorder %v4586, 0.0
        %vm4743 = vcmp.ge.f32.partialorder %v4588, 0.0
        %vm4744 = vcmp.ge.f32.partialorder %v4590, 0.0
        %vm4745 = vcmp.ge.f32.partialorder %v4592, 0.0
        %vm4746 = vcmp.ge.f32.partialorder %v4596, 0.0
        %vm4747 = vcmp.ge.f32.partialorder %v4598, 0.0
        %vm4748 = vcmp.ge.f32.partialorder %v4600, 0.0
        %vm4749 = vcmp.ge.f32.partialorder %v4602, 0.0
        %vm4750 = vcmp.ge.f32.partialorder %v4606, 0.0
        %vm4751 = vcmp.ge.f32.partialorder %v4608, 0.0
        %vm4752 = vcmp.ge.f32.partialorder %v4610, 0.0
        %vm4753 = vcmp.ge.f32.partialorder %v4612, 0.0
        %vm4754 = vcmp.ge.f32.partialorder %v4616, 0.0
        %vm4755 = vcmp.ge.f32.partialorder %v4618, 0.0
        %vm4756 = vcmp.ge.f32.partialorder %v4620, 0.0
        %vm4757 = vcmp.ge.f32.partialorder %v4622, 0.0
        %vm4758 = vcmp.ge.f32.partialorder %v4626, 0.0
        %vm4759 = vcmp.ge.f32.partialorder %v4628, 0.0
        %vm4760 = vcmp.ge.f32.partialorder %v4630, 0.0
        %vm4761 = vcmp.ge.f32.partialorder %v4632, 0.0
        %v4762 = vmul.f32 %v4316, 0.2
        %v4763 = vmul.f32 %v4318, 0.2
        %v4764 = vmul.f32 %v4320, 0.2
        %v4765 = vmul.f32 %v4322, 0.2
        %v4766 = vmul.f32 %v4326, 0.2
        %v4767 = vmul.f32 %v4328, 0.2
        %v4768 = vmul.f32 %v4330, 0.2
        %v4769 = vmul.f32 %v4332, 0.2
        %v4770 = vmul.f32 %v4336, 0.2
        %v4771 = vmul.f32 %v4338, 0.2
        %v4772 = vmul.f32 %v4340, 0.2
        %v4773 = vmul.f32 %v4342, 0.2
        %v4774 = vmul.f32 %v4346, 0.2
        %v4775 = vmul.f32 %v4348, 0.2
        %v4776 = vmul.f32 %v4350, 0.2
        %v4777 = vmul.f32 %v4352, 0.2
        %v4778 = vmul.f32 %v4356, 0.2
        %v4779 = vmul.f32 %v4358, 0.2
        %v4780 = vmul.f32 %v4360, 0.2
        %v4781 = vmul.f32 %v4362, 0.2
        %v4782 = vmul.f32 %v4366, 0.2
        %v4783 = vmul.f32 %v4368, 0.2
        %v4784 = vmul.f32 %v4370, 0.2
        %v4785 = vmul.f32 %v4372, 0.2
        %v4786 = vmul.f32 %v4376, 0.2
        %v4787 = vmul.f32 %v4378, 0.2
        %v4788 = vmul.f32 %v4380, 0.2
        %v4789 = vmul.f32 %v4382, 0.2
        %v4790 = vmul.f32 %v4386, 0.2
        %v4791 = vmul.f32 %v4388, 0.2
        %v4792 = vmul.f32 %v4390, 0.2
        %v4793 = vmul.f32 %v4392, 0.2
        %v4794 = vmul.f32 %v4396, 0.2
        %v4795 = vmul.f32 %v4398, 0.2
        %v4796 = vmul.f32 %v4400, 0.2
        %v4797 = vmul.f32 %v4402, 0.2
        %v4798 = vmul.f32 %v4406, 0.2
        %v4799 = vmul.f32 %v4408, 0.2
        %v4800 = vmul.f32 %v4410, 0.2
        %v4801 = vmul.f32 %v4412, 0.2
        %v4802 = vmul.f32 %v4416, 0.2
        %v4803 = vmul.f32 %v4418, 0.2
        %v4804 = vmul.f32 %v4420, 0.2
        %v4805 = vmul.f32 %v4422, 0.2
        %v4806 = vmul.f32 %v4426, 0.2
        %v4807 = vmul.f32 %v4428, 0.2
        %v4808 = vmul.f32 %v4430, 0.2
        %v4809 = vmul.f32 %v4432, 0.2
        %v4810 = vmul.f32 %v4436, 0.2
        %v4811 = vmul.f32 %v4438, 0.2
        %v4812 = vmul.f32 %v4440, 0.2
        %v4813 = vmul.f32 %v4442, 0.2
        %v4814 = vmul.f32 %v4446, 0.2
        %v4815 = vmul.f32 %v4448, 0.2
        %v4816 = vmul.f32 %v4450, 0.2
        %v4817 = vmul.f32 %v4452, 0.2
        %v4818 = vmul.f32 %v4456, 0.2
        %v4819 = vmul.f32 %v4458, 0.2
        %v4820 = vmul.f32 %v4460, 0.2
        %v4821 = vmul.f32 %v4462, 0.2
        %v4822 = vmul.f32 %v4466, 0.2
        %v4823 = vmul.f32 %v4468, 0.2
        %v4824 = vmul.f32 %v4470, 0.2
        %v4825 = vmul.f32 %v4472, 0.2
        %v4826 = vmul.f32 %v4476, 0.2
        %v4827 = vmul.f32 %v4478, 0.2
        %v4828 = vmul.f32 %v4480, 0.2
        %v4829 = vmul.f32 %v4482, 0.2
        %v4830 = vmul.f32 %v4486, 0.2
        %v4831 = vmul.f32 %v4488, 0.2
        %v4832 = vmul.f32 %v4490, 0.2
        %v4833 = vmul.f32 %v4492, 0.2
        %v4834 = vmul.f32 %v4496, 0.2
        %v4835 = vmul.f32 %v4498, 0.2
        %v4836 = vmul.f32 %v4500, 0.2
        %v4837 = vmul.f32 %v4502, 0.2
        %v4838 = vmul.f32 %v4506, 0.2
        %v4839 = vmul.f32 %v4508, 0.2
        %v4840 = vmul.f32 %v4510, 0.2
        %v4841 = vmul.f32 %v4512, 0.2
        %v4842 = vmul.f32 %v4516, 0.2
        %v4843 = vmul.f32 %v4518, 0.2
        %v4844 = vmul.f32 %v4520, 0.2
        %v4845 = vmul.f32 %v4522, 0.2
        %v4846 = vmul.f32 %v4526, 0.2
        %v4847 = vmul.f32 %v4528, 0.2
        %v4848 = vmul.f32 %v4530, 0.2
        %v4849 = vmul.f32 %v4532, 0.2
        %v4850 = vmul.f32 %v4536, 0.2
        %v4851 = vmul.f32 %v4538, 0.2
        %v4852 = vmul.f32 %v4540, 0.2
        %v4853 = vmul.f32 %v4542, 0.2
        %v4854 = vmul.f32 %v4546, 0.2
        %v4855 = vmul.f32 %v4548, 0.2
        %v4856 = vmul.f32 %v4550, 0.2
        %v4857 = vmul.f32 %v4552, 0.2
        %v4858 = vmul.f32 %v4556, 0.2
        %v4859 = vmul.f32 %v4558, 0.2
        %v4860 = vmul.f32 %v4560, 0.2
        %v4861 = vmul.f32 %v4562, 0.2
        %v4862 = vmul.f32 %v4566, 0.2
        %v4863 = vmul.f32 %v4568, 0.2
        %v4864 = vmul.f32 %v4570, 0.2
        %v4865 = vmul.f32 %v4572, 0.2
        %v4866 = vmul.f32 %v4576, 0.2
        %v4867 = vmul.f32 %v4578, 0.2
        %v4868 = vmul.f32 %v4580, 0.2
        %v4869 = vmul.f32 %v4582, 0.2
        %v4870 = vmul.f32 %v4586, 0.2
        %v4871 = vmul.f32 %v4588, 0.2
        %v4872 = vmul.f32 %v4590, 0.2
        %v4873 = vmul.f32 %v4592, 0.2
        %v4874 = vmul.f32 %v4596, 0.2
        %v4875 = vmul.f32 %v4598, 0.2
        %v4876 = vmul.f32 %v4600, 0.2
        %v4877 = vmul.f32 %v4602, 0.2
        %v4878 = vmul.f32 %v4606, 0.2
        %v4879 = vmul.f32 %v4608, 0.2
        %v4880 = vmul.f32 %v4610, 0.2
        %v4881 = vmul.f32 %v4612, 0.2
        %v4882 = vmul.f32 %v4616, 0.2
        %v4883 = vmul.f32 %v4618, 0.2
        %v4884 = vmul.f32 %v4620, 0.2
        %v4885 = vmul.f32 %v4622, 0.2
        %v4886 = vmul.f32 %v4626, 0.2
        %v4887 = vmul.f32 %v4628, 0.2
        %v4888 = vmul.f32 %v4630, 0.2
        %v4889 = vmul.f32 %v4632, 0.2
        %v4890 = vsel %vm4634, %v4316, %v4762
        %v4891 = vsel %vm4635, %v4318, %v4763
        %v4892 = vsel %vm4636, %v4320, %v4764
        %v4893 = vsel %vm4637, %v4322, %v4765
        %v4894 = vsel %vm4638, %v4326, %v4766
        %v4895 = vsel %vm4639, %v4328, %v4767
        %v4896 = vsel %vm4640, %v4330, %v4768
        %v4897 = vsel %vm4641, %v4332, %v4769
        %v4898 = vsel %vm4642, %v4336, %v4770
        %v4899 = vsel %vm4643, %v4338, %v4771
        %v4900 = vsel %vm4644, %v4340, %v4772
        %v4901 = vsel %vm4645, %v4342, %v4773
        %v4902 = vsel %vm4646, %v4346, %v4774
        %v4903 = vsel %vm4647, %v4348, %v4775
        %v4904 = vsel %vm4648, %v4350, %v4776
        %v4905 = vsel %vm4649, %v4352, %v4777
        %v4906 = vsel %vm4650, %v4356, %v4778
        %v4907 = vsel %vm4651, %v4358, %v4779
        %v4908 = vsel %vm4652, %v4360, %v4780
        %v4909 = vsel %vm4653, %v4362, %v4781
        %v4910 = vsel %vm4654, %v4366, %v4782
        %v4911 = vsel %vm4655, %v4368, %v4783
        %v4912 = vsel %vm4656, %v4370, %v4784
        %v4913 = vsel %vm4657, %v4372, %v4785
        %v4914 = vsel %vm4658, %v4376, %v4786
        %v4915 = vsel %vm4659, %v4378, %v4787
        %v4916 = vsel %vm4660, %v4380, %v4788
        %v4917 = vsel %vm4661, %v4382, %v4789
        %v4918 = vsel %vm4662, %v4386, %v4790
        %v4919 = vsel %vm4663, %v4388, %v4791
        %v4920 = vsel %vm4664, %v4390, %v4792
        %v4921 = vsel %vm4665, %v4392, %v4793
        %v4922 = vsel %vm4666, %v4396, %v4794
        %v4923 = vsel %vm4667, %v4398, %v4795
        %v4924 = vsel %vm4668, %v4400, %v4796
        %v4925 = vsel %vm4669, %v4402, %v4797
        %v4926 = vsel %vm4670, %v4406, %v4798
        %v4927 = vsel %vm4671, %v4408, %v4799
        %v4928 = vsel %vm4672, %v4410, %v4800
        %v4929 = vsel %vm4673, %v4412, %v4801
        %v4930 = vsel %vm4674, %v4416, %v4802
        %v4931 = vsel %vm4675, %v4418, %v4803
        %v4932 = vsel %vm4676, %v4420, %v4804
        %v4933 = vsel %vm4677, %v4422, %v4805
        %v4934 = vsel %vm4678, %v4426, %v4806
        %v4935 = vsel %vm4679, %v4428, %v4807
        %v4936 = vsel %vm4680, %v4430, %v4808
        %v4937 = vsel %vm4681, %v4432, %v4809
        %v4938 = vsel %vm4682, %v4436, %v4810
        %v4939 = vsel %vm4683, %v4438, %v4811
        %v4940 = vsel %vm4684, %v4440, %v4812
        %v4941 = vsel %vm4685, %v4442, %v4813
        %v4942 = vsel %vm4686, %v4446, %v4814
        %v4943 = vsel %vm4687, %v4448, %v4815
        %v4944 = vsel %vm4688, %v4450, %v4816
        %v4945 = vsel %vm4689, %v4452, %v4817
        %v4946 = vsel %vm4690, %v4456, %v4818
        %v4947 = vsel %vm4691, %v4458, %v4819
        %v4948 = vsel %vm4692, %v4460, %v4820
        %v4949 = vsel %vm4693, %v4462, %v4821
        %v4950 = vsel %vm4694, %v4466, %v4822
        %v4951 = vsel %vm4695, %v4468, %v4823
        %v4952 = vsel %vm4696, %v4470, %v4824
        %v4953 = vsel %vm4697, %v4472, %v4825
        %v4954 = vsel %vm4698, %v4476, %v4826
        %v4955 = vsel %vm4699, %v4478, %v4827
        %v4956 = vsel %vm4700, %v4480, %v4828
        %v4957 = vsel %vm4701, %v4482, %v4829
        %v4958 = vsel %vm4702, %v4486, %v4830
        %v4959 = vsel %vm4703, %v4488, %v4831
        %v4960 = vsel %vm4704, %v4490, %v4832
        %v4961 = vsel %vm4705, %v4492, %v4833
        %v4962 = vsel %vm4706, %v4496, %v4834
        %v4963 = vsel %vm4707, %v4498, %v4835
        %v4964 = vsel %vm4708, %v4500, %v4836
        %v4965 = vsel %vm4709, %v4502, %v4837
        %v4966 = vsel %vm4710, %v4506, %v4838
        %v4967 = vsel %vm4711, %v4508, %v4839
        %v4968 = vsel %vm4712, %v4510, %v4840
        %v4969 = vsel %vm4713, %v4512, %v4841
        %v4970 = vsel %vm4714, %v4516, %v4842
        %v4971 = vsel %vm4715, %v4518, %v4843
        %v4972 = vsel %vm4716, %v4520, %v4844
        %v4973 = vsel %vm4717, %v4522, %v4845
        %v4974 = vsel %vm4718, %v4526, %v4846
        %v4975 = vsel %vm4719, %v4528, %v4847
        %v4976 = vsel %vm4720, %v4530, %v4848
        %v4977 = vsel %vm4721, %v4532, %v4849
        %v4978 = vsel %vm4722, %v4536, %v4850
        %v4979 = vsel %vm4723, %v4538, %v4851
        %v4980 = vsel %vm4724, %v4540, %v4852
        %v4981 = vsel %vm4725, %v4542, %v4853
        %v4982 = vsel %vm4726, %v4546, %v4854
        %v4983 = vsel %vm4727, %v4548, %v4855
        %v4984 = vsel %vm4728, %v4550, %v4856
        %v4985 = vsel %vm4729, %v4552, %v4857
        %v4986 = vsel %vm4730, %v4556, %v4858
        %v4987 = vsel %vm4731, %v4558, %v4859
        %v4988 = vsel %vm4732, %v4560, %v4860
        %v4989 = vsel %vm4733, %v4562, %v4861
        %v4990 = vsel %vm4734, %v4566, %v4862
        %v4991 = vsel %vm4735, %v4568, %v4863
        %v4992 = vsel %vm4736, %v4570, %v4864
        %v4993 = vsel %vm4737, %v4572, %v4865
        %v4994 = vsel %vm4738, %v4576, %v4866
        %v4995 = vsel %vm4739, %v4578, %v4867
        %v4996 = vsel %vm4740, %v4580, %v4868
        %v4997 = vsel %vm4741, %v4582, %v4869
        %v4998 = vsel %vm4742, %v4586, %v4870
        %v4999 = vsel %vm4743, %v4588, %v4871
        %v5000 = vsel %vm4744, %v4590, %v4872
        %v5001 = vsel %vm4745, %v4592, %v4873
        %v5002 = vsel %vm4746, %v4596, %v4874
        %v5003 = vsel %vm4747, %v4598, %v4875
        %v5004 = vsel %vm4748, %v4600, %v4876
        %v5005 = vsel %vm4749, %v4602, %v4877
        %v5006 = vsel %vm4750, %v4606, %v4878
        %v5007 = vsel %vm4751, %v4608, %v4879
        %v5008 = vsel %vm4752, %v4610, %v4880
        %v5009 = vsel %vm4753, %v4612, %v4881
        %v5010 = vsel %vm4754, %v4616, %v4882
        %v5011 = vsel %vm4755, %v4618, %v4883
        %v5012 = vsel %vm4756, %v4620, %v4884
        %v5013 = vsel %vm4757, %v4622, %v4885
        %v5014 = vsel %vm4758, %v4626, %v4886
        %v5015 = vsel %vm4759, %v4628, %v4887
        %v5016 = vsel %vm4760, %v4630, %v4888
        %v5017 = vsel %vm4761, %v4632, %v4889
        %5018 = vst [vmem:[%s275] sm:$0xff] %v4890
        %5019 = vst [vmem:[%s275 + $0x8] sm:$0xff] %v4891
        %5020 = vst [vmem:[%s275 + $0x10] sm:$0xff] %v4892
        %5021 = vst [vmem:[%s275 + $0x18] sm:$0xff] %v4893
        %5022 = vst [vmem:[%s275 + $0x20] sm:$0xff] %v4894
        %5023 = vst [vmem:[%s275 + $0x28] sm:$0xff] %v4895
        %5024 = vst [vmem:[%s275 + $0x30] sm:$0xff] %v4896
        %5025 = vst [vmem:[%s275 + $0x38] sm:$0xff] %v4897
        %5026 = vst [vmem:[%s275 + $0x40] sm:$0xff] %v4898
        %5027 = vst [vmem:[%s275 + $0x48] sm:$0xff] %v4899
        %5028 = vst [vmem:[%s275 + $0x50] sm:$0xff] %v4900
        %5029 = vst [vmem:[%s275 + $0x58] sm:$0xff] %v4901
        %5030 = vst [vmem:[%s275 + $0x60] sm:$0xff] %v4902
        %5031 = vst [vmem:[%s275 + $0x68] sm:$0xff] %v4903
        %5032 = vst [vmem:[%s275 + $0x70] sm:$0xff] %v4904
        %5033 = vst [vmem:[%s275 + $0x78] sm:$0xff] %v4905
        %5034 = vst [vmem:[%s275 + $0x80] sm:$0xff] %v4906
        %5035 = vst [vmem:[%s275 + $0x88] sm:$0xff] %v4907
        %5036 = vst [vmem:[%s275 + $0x90] sm:$0xff] %v4908
        %5037 = vst [vmem:[%s275 + $0x98] sm:$0xff] %v4909
        %5038 = vst [vmem:[%s275 + $0xa0] sm:$0xff] %v4910
        %5039 = vst [vmem:[%s275 + $0xa8] sm:$0xff] %v4911
        %5040 = vst [vmem:[%s275 + $0xb0] sm:$0xff] %v4912
        %5041 = vst [vmem:[%s275 + $0xb8] sm:$0xff] %v4913
        %5042 = vst [vmem:[%s275 + $0xc0] sm:$0xff] %v4914
        %5043 = vst [vmem:[%s275 + $0xc8] sm:$0xff] %v4915
        %5044 = vst [vmem:[%s275 + $0xd0] sm:$0xff] %v4916
        %5045 = vst [vmem:[%s275 + $0xd8] sm:$0xff] %v4917
        %5046 = vst [vmem:[%s275 + $0xe0] sm:$0xff] %v4918
        %5047 = vst [vmem:[%s275 + $0xe8] sm:$0xff] %v4919
        %5048 = vst [vmem:[%s275 + $0xf0] sm:$0xff] %v4920
        %5049 = vst [vmem:[%s275 + $0xf8] sm:$0xff] %v4921
        %5050 = vst [vmem:[%s275 + $0x100] sm:$0xff] %v4922
        %5051 = vst [vmem:[%s275 + $0x108] sm:$0xff] %v4923
        %5052 = vst [vmem:[%s275 + $0x110] sm:$0xff] %v4924
        %5053 = vst [vmem:[%s275 + $0x118] sm:$0xff] %v4925
        %5054 = vst [vmem:[%s275 + $0x120] sm:$0xff] %v4926
        %5055 = vst [vmem:[%s275 + $0x128] sm:$0xff] %v4927
        %5056 = vst [vmem:[%s275 + $0x130] sm:$0xff] %v4928
        %5057 = vst [vmem:[%s275 + $0x138] sm:$0xff] %v4929
        %5058 = vst [vmem:[%s275 + $0x140] sm:$0xff] %v4930
        %5059 = vst [vmem:[%s275 + $0x148] sm:$0xff] %v4931
        %5060 = vst [vmem:[%s275 + $0x150] sm:$0xff] %v4932
        %5061 = vst [vmem:[%s275 + $0x158] sm:$0xff] %v4933
        %5062 = vst [vmem:[%s275 + $0x160] sm:$0xff] %v4934
        %5063 = vst [vmem:[%s275 + $0x168] sm:$0xff] %v4935
        %5064 = vst [vmem:[%s275 + $0x170] sm:$0xff] %v4936
        %5065 = vst [vmem:[%s275 + $0x178] sm:$0xff] %v4937
        %5066 = vst [vmem:[%s275 + $0x180] sm:$0xff] %v4938
        %5067 = vst [vmem:[%s275 + $0x188] sm:$0xff] %v4939
        %5068 = vst [vmem:[%s275 + $0x190] sm:$0xff] %v4940
        %5069 = vst [vmem:[%s275 + $0x198] sm:$0xff] %v4941
        %5070 = vst [vmem:[%s275 + $0x1a0] sm:$0xff] %v4942
        %5071 = vst [vmem:[%s275 + $0x1a8] sm:$0xff] %v4943
        %5072 = vst [vmem:[%s275 + $0x1b0] sm:$0xff] %v4944
        %5073 = vst [vmem:[%s275 + $0x1b8] sm:$0xff] %v4945
        %5074 = vst [vmem:[%s275 + $0x1c0] sm:$0xff] %v4946
        %5075 = vst [vmem:[%s275 + $0x1c8] sm:$0xff] %v4947
        %5076 = vst [vmem:[%s275 + $0x1d0] sm:$0xff] %v4948
        %5077 = vst [vmem:[%s275 + $0x1d8] sm:$0xff] %v4949
        %5078 = vst [vmem:[%s275 + $0x1e0] sm:$0xff] %v4950
        %5079 = vst [vmem:[%s275 + $0x1e8] sm:$0xff] %v4951
        %5080 = vst [vmem:[%s275 + $0x1f0] sm:$0xff] %v4952
        %5081 = vst [vmem:[%s275 + $0x1f8] sm:$0xff] %v4953
        %5082 = vst [vmem:[%s275 + $0x200] sm:$0xff] %v4954
        %5083 = vst [vmem:[%s275 + $0x208] sm:$0xff] %v4955
        %5084 = vst [vmem:[%s275 + $0x210] sm:$0xff] %v4956
        %5085 = vst [vmem:[%s275 + $0x218] sm:$0xff] %v4957
        %5086 = vst [vmem:[%s275 + $0x220] sm:$0xff] %v4958
        %5087 = vst [vmem:[%s275 + $0x228] sm:$0xff] %v4959
        %5088 = vst [vmem:[%s275 + $0x230] sm:$0xff] %v4960
        %5089 = vst [vmem:[%s275 + $0x238] sm:$0xff] %v4961
        %5090 = vst [vmem:[%s275 + $0x240] sm:$0xff] %v4962
        %5091 = vst [vmem:[%s275 + $0x248] sm:$0xff] %v4963
        %5092 = vst [vmem:[%s275 + $0x250] sm:$0xff] %v4964
        %5093 = vst [vmem:[%s275 + $0x258] sm:$0xff] %v4965
        %5094 = vst [vmem:[%s275 + $0x260] sm:$0xff] %v4966
        %5095 = vst [vmem:[%s275 + $0x268] sm:$0xff] %v4967
        %5096 = vst [vmem:[%s275 + $0x270] sm:$0xff] %v4968
        %5097 = vst [vmem:[%s275 + $0x278] sm:$0xff] %v4969
        %5098 = vst [vmem:[%s275 + $0x280] sm:$0xff] %v4970
        %5099 = vst [vmem:[%s275 + $0x288] sm:$0xff] %v4971
        %5100 = vst [vmem:[%s275 + $0x290] sm:$0xff] %v4972
        %5101 = vst [vmem:[%s275 + $0x298] sm:$0xff] %v4973
        %5102 = vst [vmem:[%s275 + $0x2a0] sm:$0xff] %v4974
        %5103 = vst [vmem:[%s275 + $0x2a8] sm:$0xff] %v4975
        %5104 = vst [vmem:[%s275 + $0x2b0] sm:$0xff] %v4976
        %5105 = vst [vmem:[%s275 + $0x2b8] sm:$0xff] %v4977
        %5106 = vst [vmem:[%s275 + $0x2c0] sm:$0xff] %v4978
        %5107 = vst [vmem:[%s275 + $0x2c8] sm:$0xff] %v4979
        %5108 = vst [vmem:[%s275 + $0x2d0] sm:$0xff] %v4980
        %5109 = vst [vmem:[%s275 + $0x2d8] sm:$0xff] %v4981
        %5110 = vst [vmem:[%s275 + $0x2e0] sm:$0xff] %v4982
        %5111 = vst [vmem:[%s275 + $0x2e8] sm:$0xff] %v4983
        %5112 = vst [vmem:[%s275 + $0x2f0] sm:$0xff] %v4984
        %5113 = vst [vmem:[%s275 + $0x2f8] sm:$0xff] %v4985
        %5114 = vst [vmem:[%s275 + $0x300] sm:$0xff] %v4986
        %5115 = vst [vmem:[%s275 + $0x308] sm:$0xff] %v4987
        %5116 = vst [vmem:[%s275 + $0x310] sm:$0xff] %v4988
        %5117 = vst [vmem:[%s275 + $0x318] sm:$0xff] %v4989
        %5118 = vst [vmem:[%s275 + $0x320] sm:$0xff] %v4990
        %5119 = vst [vmem:[%s275 + $0x328] sm:$0xff] %v4991
        %5120 = vst [vmem:[%s275 + $0x330] sm:$0xff] %v4992
        %5121 = vst [vmem:[%s275 + $0x338] sm:$0xff] %v4993
        %5122 = vst [vmem:[%s275 + $0x340] sm:$0xff] %v4994
        %5123 = vst [vmem:[%s275 + $0x348] sm:$0xff] %v4995
        %5124 = vst [vmem:[%s275 + $0x350] sm:$0xff] %v4996
        %5125 = vst [vmem:[%s275 + $0x358] sm:$0xff] %v4997
        %5126 = vst [vmem:[%s275 + $0x360] sm:$0xff] %v4998
        %5127 = vst [vmem:[%s275 + $0x368] sm:$0xff] %v4999
        %5128 = vst [vmem:[%s275 + $0x370] sm:$0xff] %v5000
        %5129 = vst [vmem:[%s275 + $0x378] sm:$0xff] %v5001
        %5130 = vst [vmem:[%s275 + $0x380] sm:$0xff] %v5002
        %5131 = vst [vmem:[%s275 + $0x388] sm:$0xff] %v5003
        %5132 = vst [vmem:[%s275 + $0x390] sm:$0xff] %v5004
        %5133 = vst [vmem:[%s275 + $0x398] sm:$0xff] %v5005
        %5134 = vst [vmem:[%s275 + $0x3a0] sm:$0xff] %v5006
        %5135 = vst [vmem:[%s275 + $0x3a8] sm:$0xff] %v5007
        %5136 = vst [vmem:[%s275 + $0x3b0] sm:$0xff] %v5008
        %5137 = vst [vmem:[%s275 + $0x3b8] sm:$0xff] %v5009
        %5138 = vst [vmem:[%s275 + $0x3c0] sm:$0xff] %v5010
        %5139 = vst [vmem:[%s275 + $0x3c8] sm:$0xff] %v5011
        %5140 = vst [vmem:[%s275 + $0x3d0] sm:$0xff] %v5012
        %5141 = vst [vmem:[%s275 + $0x3d8] sm:$0xff] %v5013
        %5142 = vst [vmem:[%s275 + $0x3e0] sm:$0xff] %v5014
        %5143 = vst [vmem:[%s275 + $0x3e8] sm:$0xff] %v5015
        %5144 = vst [vmem:[%s275 + $0x3f0] sm:$0xff] %v5016
        %5145 = vst [vmem:[%s275 + $0x3f8] sm:$0xff] %v5017
        %s5146 = sand.u32 %s157, 1
        %s5147 = scalar_lea.sflag [#allocation4], %s5146
        %s5148 = sand.u32 %s157, 1
        %s5149 = smul.addr %s5148, 1024
        %s5150 = scalar_lea.vmem [#allocation7], %s5149
        // Predicated region
        $region49: #{tpu_custom_call.1} parent=39 // pred_check
          %p5151 = pneg %p167
        $region50: #{tpu_custom_call.1} parent=39 // pred_check_branch
          %5153 = sbr.rel (%p5151) target = $region52
        $region51: #{tpu_custom_call.1} parent=39 // pred_region
          %s5154 = smul.u32 2, %s28
          %s5156 = ssub.s32 16384, 16384
          %5157 = vsyncadd %s5147, %s5156
          %s5158 = smul.addr %s27, 128
          %s5159 = sadd.s32 %s5154, %s5158
          %s5160 = smul.addr %s5159, 128
          %s5161 = scalar_lea.hbm %s5, %s5160
          %s5162 = sshll.u32 %s5150, 4
          %s5163 = int_to_ptr.vmem [resolvable:$true] %s5162
          %5168 = dma.vmem_to_hbm [thread:$0]  %s5163, 16384, %s5161, %s5147, 256, 256, 16
        $region52: #{tpu_custom_call.1} parent=39 // pred_fallthru
          _
      $region40: #{tpu_custom_call.1} parent=5 // pred_fallthru
        _
      %p5169 = scmp.le.s32.totalorder 2, %s18
      // Predicated region
      $region53: #{tpu_custom_call.1} parent=5 // pred_check
        %p5170 = pneg %p5169
      $region54: #{tpu_custom_call.1} parent=5 // pred_check_branch
        %5172 = sbr.rel (%p5170) target = $region56
      $region55: #{tpu_custom_call.1} parent=5 // pred_region
        %s5173 = ssub.s32 %s18, 2
        // Predicated region
        $region57: #{tpu_custom_call.1} parent=55 // pred_check
          %p5174 = pneg %p173
        $region58: #{tpu_custom_call.1} parent=55 // pred_check_branch
          %5176 = sbr.rel (%p5174) target = $region60
        $region59: #{tpu_custom_call.1} parent=55 // pred_region
          %s5177 = sand.u32 %s158, 1
          %s5178 = scalar_lea.sflag [#allocation4], %s5177
          %s5179 = sand.u32 %s158, 1
          %s5180 = smul.addr %s5179, 1024
          %s5181 = scalar_lea.vmem [#allocation7], %s5180
          %5182 = dma.done %s5178, 16384
        $region60: #{tpu_custom_call.1} parent=55 // pred_fallthru
          _
      $region56: #{tpu_custom_call.1} parent=5 // pred_fallthru
        _
    $region6: #{tpu_custom_call.1} parent=1 // loop_footer
      %s22 = sadd.s32 1, %s18
    $region7: #{tpu_custom_call.1} parent=1 // loop_footer_branch
      %17 = sbr.rel target = $region3
    $region8: #{tpu_custom_call.1} parent=1 // loop_exit
      _
    %5183 = vsyncpa [#allocation3], 1
    %s5184 = scalar_lea.sflag [#allocation3], 1
    %5185 = vsyncpa %s5184, 1
    %5186 = vsyncpa [#allocation6], 1
    %5187 = vsyncpa [#allocation4], 1
    %s5188 = scalar_lea.sflag [#allocation4], 1
    %5189 = vsyncpa %s5188, 1

// kernel: tpu_custom_call.1
$region0: #{tpu_custom_call.1}
  #allocation0 [shape = 'u32[]', space=smem, size = 0x4, offset = 0x4, fixed_abs, tag = 'smem constant byte address 0x4 - core index']
  #allocation1 [shape = 'u32[144,128]{1,0:T(1,128)}', space=vmem, size = 0x12000, scoped, tag = 'internal scratch']
  %s0 = inlined_call_operand.hbm [shape: f32[2,512,256], index: 0, kind: input, shape index: {}]
  %s1 = inlined_call_operand.vmem [shape: bf16[512,512], index: 1, kind: input, shape index: {}]
  %s2 = inlined_call_operand.vmem [shape: f32[512,1], index: 2, kind: input, shape index: {}]
  %s3 = inlined_call_operand.hbm [shape: bf16[512,512], index: 3, kind: input, shape index: {}]
  %s4 = inlined_call_operand.vmem [shape: f32[512,1], index: 4, kind: input, shape index: {}]
  %s5 = inlined_call_operand.hbm [shape: f32[2,512,256], index: 5, kind: output, shape index: {}]
  %s6 = sld [smem:[#allocation0]]
  $region61: #{tpu_custom_call.1} parent=0
    _
  %s8 = ssub.s32 1, %s6
  %s9 = scalar_select 0, %s8, %s6
  $region1: #{tpu_custom_call.1} parent=0
    #allocation2 [shape = 'u8[1048576]{0}', space=vmem, size = 0x100000, scoped, tag = 'input window, operand 0']
    #allocation3 [shape = 's32[2]{0}', space=sflag, size = 0x8, scoped, tag = 'scoped memory for tpu_custom_call.1']
    #allocation4 [shape = 's32[2]{0}', space=sflag, size = 0x8, scoped, tag = 'scoped memory for tpu_custom_call.1']
    #allocation5 [shape = 'u8[524288]{0}', space=vmem, size = 0x80000, scoped, tag = 'input window, operand 3, single buffered']
    #allocation6 [shape = 's32[1]{0}', space=sflag, size = 0x4, scoped, tag = 'scoped memory for tpu_custom_call.1']
    #allocation7 [shape = 'u8[1048576]{0}', space=vmem, size = 0x100000, scoped, tag = 'output window, operand 0']
    %10 = vsyncpa [#allocation3], 0
    %s11 = scalar_lea.sflag [#allocation3], 1
    %12 = vsyncpa %s11, 0
    %13 = vsyncpa [#allocation6], 0
    %14 = vsyncpa [#allocation4], 0
    %s15 = scalar_lea.sflag [#allocation4], 1
    %16 = vsyncpa %s15, 0
    loop: start=0, step=1, limit=4
    $region2: #{tpu_custom_call.1} parent=1 // loop_pre_header
      _
    $region3: #{tpu_custom_call.1} parent=1 // loop_header
      %s18 = sphi 0, %s22
      %p19 = scmp.ge.s32.totalorder %s18, 4
      %s25 = sphi 0, %s37
      %s26 = sphi 0, %s33
      %s27 = sphi 0, %s25
      %s28 = sphi 0, %s26
      %s29 = sphi 0, %s27
      %s30 = sphi 0, %s28
      %s42 = sphi 0, %s44
      %s45 = sphi 0, %s42
      %s46 = sphi 0, %s45
      %s62 = sphi 0, %s46
      %s66 = sphi 0, %s66
      %s68 = sphi 0, %s66
      %s69 = sphi 0, %s68
      %s83 = sphi 0, %s69
      %s87 = sphi 0, %s87
      %s89 = sphi 0, %s87
      %s90 = sphi 0, %s89
      %s104 = sphi 0, %s90
      %s108 = sphi 0, %s108
      %s110 = sphi 0, %s108
      %s111 = sphi 0, %s110
      %s125 = sphi 0, %s111
      %s129 = sphi 0, %s129
      %s131 = sphi 0, %s129
      %s132 = sphi 0, %s131
      %s146 = sphi 0, %s132
      %s154 = sphi 0, %s156
      %s157 = sphi 0, %s154
      %s158 = sphi 0, %s157
      %s174 = sphi 0, %s158
    $region4: #{tpu_custom_call.1} parent=1 // loop_header_branch
      %21 = sbr.rel (%p19) target = $region8
    $region5: #{tpu_custom_call.1} parent=1 // loop_body
      %s23 = ssub.s32 %s18, 1
      %s24 = ssub.s32 %s18, 2
      %s31 = sadd.s32 1, %s26
      %p32 = scmp.ge.s32.totalorder %s31, 1
      %s33 = scalar_select %p32, 0, %s31
      %s34 = sadd.s32 1, %s25
      %s35 = scalar_select %p32, %s34, %s25
      %p36 = scmp.ge.s32.totalorder %s35, 2
      %s37 = scalar_select %p36, 0, %s35
      %s38 = ssub.s32 %s25, %s37
      %s39 = ssub.s32 %s26, %s33
      %s40 = sor.u32 %s38, %s39
      %p41 = scmp.eq.s32.totalorder %s40, 0
      %s43 = sadd.s32 %s42, 1
      %s44 = scalar_select %p41, %s42, %s43
      %p47 = pneg %p41
      %p48 = scmp.eq.s32.totalorder %s18, 1
      %p49 = por %p47, %p48
      %p50 = scmp.ne.s32.totalorder %s42, %s45
      %p51 = scmp.eq.s32.totalorder %s18, 0
      %p52 = por %p50, %p51
      %p53 = scmp.ne.s32.totalorder %s42, %s45
      %p54 = scmp.eq.s32.totalorder %s23, 1
      %p55 = por %p53, %p54
      %p56 = scmp.ne.s32.totalorder %s45, %s46
      %p57 = scmp.eq.s32.totalorder %s23, 0
      %p58 = por %p56, %p57
      %p59 = scmp.ne.s32.totalorder %s45, %s46
      %p60 = scmp.eq.s32.totalorder %s24, 1
      %p61 = por %p59, %p60
      %p63 = scmp.ne.s32.totalorder %s46, %s62
      %p64 = scmp.eq.s32.totalorder %s24, 0
      %p65 = por %p63, %p64
      %s67 = sadd.s32 %s66, 1
      %p70 = scmp.eq.s32.totalorder %s18, 1
      %p71 = scmp.ne.s32.totalorder %s66, %s68
      %p72 = scmp.eq.s32.totalorder %s18, 0
      %p73 = por %p71, %p72
      %p74 = scmp.ne.s32.totalorder %s66, %s68
      %p75 = scmp.eq.s32.totalorder %s23, 1
      %p76 = por %p74, %p75
      %p77 = scmp.ne.s32.totalorder %s68, %s69
      %p78 = scmp.eq.s32.totalorder %s23, 0
      %p79 = por %p77, %p78
      %p80 = scmp.ne.s32.totalorder %s68, %s69
      %p81 = scmp.eq.s32.totalorder %s24, 1
      %p82 = por %p80, %p81
      %p84 = scmp.ne.s32.totalorder %s69, %s83
      %p85 = scmp.eq.s32.totalorder %s24, 0
      %p86 = por %p84, %p85
      %s88 = sadd.s32 %s87, 1
      %p91 = scmp.eq.s32.totalorder %s18, 1
      %p92 = scmp.ne.s32.totalorder %s87, %s89
      %p93 = scmp.eq.s32.totalorder %s18, 0
      %p94 = por %p92, %p93
      %p95 = scmp.ne.s32.totalorder %s87, %s89
      %p96 = scmp.eq.s32.totalorder %s23, 1
      %p97 = por %p95, %p96
      %p98 = scmp.ne.s32.totalorder %s89, %s90
      %p99 = scmp.eq.s32.totalorder %s23, 0
      %p100 = por %p98, %p99
      %p101 = scmp.ne.s32.totalorder %s89, %s90
      %p102 = scmp.eq.s32.totalorder %s24, 1
      %p103 = por %p101, %p102
      %p105 = scmp.ne.s32.totalorder %s90, %s104
      %p106 = scmp.eq.s32.totalorder %s24, 0
      %p107 = por %p105, %p106
      %s109 = sadd.s32 %s108, 1
      %p112 = scmp.eq.s32.totalorder %s18, 1
      %p113 = scmp.ne.s32.totalorder %s108, %s110
      %p114 = scmp.eq.s32.totalorder %s18, 0
      %p115 = por %p113, %p114
      %p116 = scmp.ne.s32.totalorder %s108, %s110
      %p117 = scmp.eq.s32.totalorder %s23, 1
      %p118 = por %p116, %p117
      %p119 = scmp.ne.s32.totalorder %s110, %s111
      %p120 = scmp.eq.s32.totalorder %s23, 0
      %p121 = por %p119, %p120
      %p122 = scmp.ne.s32.totalorder %s110, %s111
      %p123 = scmp.eq.s32.totalorder %s24, 1
      %p124 = por %p122, %p123
      %p126 = scmp.ne.s32.totalorder %s111, %s125
      %p127 = scmp.eq.s32.totalorder %s24, 0
      %p128 = por %p126, %p127
      %s130 = sadd.s32 %s129, 1
      %p133 = scmp.eq.s32.totalorder %s18, 1
      %p134 = scmp.ne.s32.totalorder %s129, %s131
      %p135 = scmp.eq.s32.totalorder %s18, 0
      %p136 = por %p134, %p135
      %p137 = scmp.ne.s32.totalorder %s129, %s131
      %p138 = scmp.eq.s32.totalorder %s23, 1
      %p139 = por %p137, %p138
      %p140 = scmp.ne.s32.totalorder %s131, %s132
      %p141 = scmp.eq.s32.totalorder %s23, 0
      %p142 = por %p140, %p141
      %p143 = scmp.ne.s32.totalorder %s131, %s132
      %p144 = scmp.eq.s32.totalorder %s24, 1
      %p145 = por %p143, %p144
      %p147 = scmp.ne.s32.totalorder %s132, %s146
      %p148 = scmp.eq.s32.totalorder %s24, 0
      %p149 = por %p147, %p148
      %s150 = ssub.s32 %s25, %s37
      %s151 = ssub.s32 %s26, %s33
      %s152 = sor.u32 %s150, %s151
      %p153 = scmp.eq.s32.totalorder %s152, 0
      %s155 = sadd.s32 %s154, 1
      %s156 = scalar_select %p153, %s154, %s155
      %p159 = pneg %p153
      %p160 = scmp.eq.s32.totalorder %s18, 1
      %p161 = por %p159, %p160
      %p162 = scmp.ne.s32.totalorder %s154, %s157
      %p163 = scmp.eq.s32.totalorder %s18, 0
      %p164 = por %p162, %p163
      %p165 = scmp.ne.s32.totalorder %s154, %s157
      %p166 = scmp.eq.s32.totalorder %s23, 1
      %p167 = por %p165, %p166
      %p168 = scmp.ne.s32.totalorder %s157, %s158
      %p169 = scmp.eq.s32.totalorder %s23, 0
      %p170 = por %p168, %p169
      %p171 = scmp.ne.s32.totalorder %s157, %s158
      %p172 = scmp.eq.s32.totalorder %s24, 1
      %p173 = por %p171, %p172
      %p175 = scmp.ne.s32.totalorder %s158, %s174
      %p176 = scmp.eq.s32.totalorder %s24, 0
      %p177 = por %p175, %p176
      %p178 = scmp.le.s32.totalorder 1, %s18
      %p179 = scmp.lt.s32.totalorder %s18, 3
      %p180 = pnand %p178, %p179
      %p181 = pneg %p180
      // Predicated region
      $region9: #{tpu_custom_call.1} parent=5 // pred_check
        _
      $region10: #{tpu_custom_call.1} parent=5 // pred_check_branch
        %183 = sbr.rel (%p180) target = $region12
      $region11: #{tpu_custom_call.1} parent=5 // pred_region
        %s184 = ssub.s32 %s18, 1
        // Predicated region
        $region13: #{tpu_custom_call.1} parent=11 // pred_check
          %p185 = pneg %p79
        $region14: #{tpu_custom_call.1} parent=11 // pred_check_branch
          %187 = sbr.rel (%p185) target = $region16
        $region15: #{tpu_custom_call.1} parent=11 // pred_region
          _
        $region16: #{tpu_custom_call.1} parent=11 // pred_fallthru
          _
        // Predicated region
        $region17: #{tpu_custom_call.1} parent=11 // pred_check
          %p188 = pneg %p100
        $region18: #{tpu_custom_call.1} parent=11 // pred_check_branch
          %190 = sbr.rel (%p188) target = $region20
        $region19: #{tpu_custom_call.1} parent=11 // pred_region
          _
        $region20: #{tpu_custom_call.1} parent=11 // pred_fallthru
          _
        // Predicated region
        $region21: #{tpu_custom_call.1} parent=11 // pred_check
          %p191 = pneg %p121
        $region22: #{tpu_custom_call.1} parent=11 // pred_check_branch
          %193 = sbr.rel (%p191) target = $region24
        $region23: #{tpu_custom_call.1} parent=11 // pred_region
          %s195 = ssub.s32 16384, 16384
          %196 = vsyncadd [#allocation6], %s195
          %s197 = sshll.u32 [#allocation5], 4
          %s198 = int_to_ptr.vmem [resolvable:$true] %s197
          %203 = dma.hbm_to_vmem [thread:$0]  %s3, 16384, %s198, [#allocation6], 256, 256, 16
        $region24: #{tpu_custom_call.1} parent=11 // pred_fallthru
          _
        // Predicated region
        $region25: #{tpu_custom_call.1} parent=11 // pred_check
          %p204 = pneg %p142
        $region26: #{tpu_custom_call.1} parent=11 // pred_check_branch
          %206 = sbr.rel (%p204) target = $region28
        $region27: #{tpu_custom_call.1} parent=11 // pred_region
          _
        $region28: #{tpu_custom_call.1} parent=11 // pred_fallthru
          _
      $region12: #{tpu_custom_call.1} parent=5 // pred_fallthru
        _
      %p207 = scmp.lt.s32.totalorder %s18, 2
      // Predicated region
      $region29: #{tpu_custom_call.1} parent=5 // pred_check
        %p208 = pneg %p207
      $region30: #{tpu_custom_call.1} parent=5 // pred_check_branch
        %210 = sbr.rel (%p208) target = $region32
      $region31: #{tpu_custom_call.1} parent=5 // pred_region
        // Predicated region
        $region33: #{tpu_custom_call.1} parent=31 // pred_check
          %p211 = pneg %p52
        $region34: #{tpu_custom_call.1} parent=31 // pred_check_branch
          %213 = sbr.rel (%p211) target = $region36
        $region35: #{tpu_custom_call.1} parent=31 // pred_region
          %s214 = sand.u32 %s42, 1
          %s215 = scalar_lea.sflag [#allocation3], %s214
          %s216 = sand.u32 %s42, 1
          %s217 = smul.addr %s216, 1024
          %s218 = scalar_lea.vmem [#allocation2], %s217
          %s219 = smul.u32 2, %s26
          %s221 = ssub.s32 16384, 16384
          %222 = vsyncadd %s215, %s221
          %s223 = smul.addr %s25, 128
          %s224 = sadd.s32 %s219, %s223
          %s225 = smul.addr %s224, 128
          %s226 = scalar_lea.hbm %s0, %s225
          %s227 = sshll.u32 %s218, 4
          %s228 = int_to_ptr.vmem [resolvable:$true] %s227
          %233 = dma.hbm_to_vmem [thread:$0]  %s226, 16384, %s228, %s215, 256, 256, 16
        $region36: #{tpu_custom_call.1} parent=31 // pred_fallthru
          _
      $region32: #{tpu_custom_call.1} parent=5 // pred_fallthru
        _
      %p234 = scmp.le.s32.totalorder 1, %s18
      %p235 = scmp.lt.s32.totalorder %s18, 3
      %p236 = pnand %p234, %p235
      %p237 = pneg %p236
      // Predicated region
      $region37: #{tpu_custom_call.1} parent=5 // pred_check
        _
      $region38: #{tpu_custom_call.1} parent=5 // pred_check_branch
        %239 = sbr.rel (%p236) target = $region40
      $region39: #{tpu_custom_call.1} parent=5 // pred_region
        %s240 = ssub.s32 %s18, 1
        %s241 = sand.u32 %s45, 1
        %s242 = scalar_lea.sflag [#allocation3], %s241
        %s243 = sand.u32 %s45, 1
        %s244 = smul.addr %s243, 1024
        %s245 = scalar_lea.vmem [#allocation2], %s244
        // Predicated region
        $region41: #{tpu_custom_call.1} parent=39 // pred_check
          %p246 = pneg %p58
        $region42: #{tpu_custom_call.1} parent=39 // pred_check_branch
          %248 = sbr.rel (%p246) target = $region44
        $region43: #{tpu_custom_call.1} parent=39 // pred_region
          %249 = dma.done %s242, 16384
        $region44: #{tpu_custom_call.1} parent=39 // pred_fallthru
          _
        // Predicated region
        $region45: #{tpu_custom_call.1} parent=39 // pred_check
          %p250 = pneg %p121
        $region46: #{tpu_custom_call.1} parent=39 // pred_check_branch
          %252 = sbr.rel (%p250) target = $region48
        $region47: #{tpu_custom_call.1} parent=39 // pred_region
          %253 = dma.done [#allocation6], 16384
        $region48: #{tpu_custom_call.1} parent=39 // pred_fallthru
          _
        %s254 = sand.u32 %s45, 1
        %s255 = scalar_lea.sflag [#allocation3], %s254
        %s256 = sand.u32 %s45, 1
        %s257 = smul.addr %s256, 1024
        %s258 = scalar_lea.vmem [#allocation2], %s257
        %p259 = pneg %p58
        %p260 = pneg %p55
        %p261 = pneg %p79
        %p262 = pneg %p76
        %p263 = pneg %p100
        %p264 = pneg %p97
        %p265 = pneg %p121
        %p266 = pneg %p118
        %p267 = pneg %p142
        %p268 = pneg %p139
        %p269 = pneg %p170
        %p270 = pneg %p167
        %s271 = sand.u32 %s157, 1
        %s272 = scalar_lea.sflag [#allocation4], %s271
        %s273 = sand.u32 %s157, 1
        %s274 = smul.addr %s273, 1024
        %s275 = scalar_lea.vmem [#allocation7], %s274
        %s276 = smul.u32 2, %s28
        %s277 = smul.u32 2, %s28
        %v278 = vld [vmem:[%s245] sm:$0xff]
        %v279 = vld [vmem:[%s245 + $0x8] sm:$0xff]
        %v280 = vld [vmem:[%s245 + $0x10] sm:$0xff]
        %v281 = vld [vmem:[%s245 + $0x18] sm:$0xff]
        %v282 = vld [vmem:[%s245 + $0x20] sm:$0xff]
        %v283 = vld [vmem:[%s245 + $0x28] sm:$0xff]
        %v284 = vld [vmem:[%s245 + $0x30] sm:$0xff]
        %v285 = vld [vmem:[%s245 + $0x38] sm:$0xff]
        %v286 = vld [vmem:[%s245 + $0x40] sm:$0xff]
        %v287 = vld [vmem:[%s245 + $0x48] sm:$0xff]
        %v288 = vld [vmem:[%s245 + $0x50] sm:$0xff]
        %v289 = vld [vmem:[%s245 + $0x58] sm:$0xff]
        %v290 = vld [vmem:[%s245 + $0x60] sm:$0xff]
        %v291 = vld [vmem:[%s245 + $0x68] sm:$0xff]
        %v292 = vld [vmem:[%s245 + $0x70] sm:$0xff]
        %v293 = vld [vmem:[%s245 + $0x78] sm:$0xff]
        %v294 = vld [vmem:[%s245 + $0x80] sm:$0xff]
        %v295 = vld [vmem:[%s245 + $0x88] sm:$0xff]
        %v296 = vld [vmem:[%s245 + $0x90] sm:$0xff]
        %v297 = vld [vmem:[%s245 + $0x98] sm:$0xff]
        %v298 = vld [vmem:[%s245 + $0xa0] sm:$0xff]
        %v299 = vld [vmem:[%s245 + $0xa8] sm:$0xff]
        %v300 = vld [vmem:[%s245 + $0xb0] sm:$0xff]
        %v301 = vld [vmem:[%s245 + $0xb8] sm:$0xff]
        %v302 = vld [vmem:[%s245 + $0xc0] sm:$0xff]
        %v303 = vld [vmem:[%s245 + $0xc8] sm:$0xff]
        %v304 = vld [vmem:[%s245 + $0xd0] sm:$0xff]
        %v305 = vld [vmem:[%s245 + $0xd8] sm:$0xff]
        %v306 = vld [vmem:[%s245 + $0xe0] sm:$0xff]
        %v307 = vld [vmem:[%s245 + $0xe8] sm:$0xff]
        %v308 = vld [vmem:[%s245 + $0xf0] sm:$0xff]
        %v309 = vld [vmem:[%s245 + $0xf8] sm:$0xff]
        %v310 = vld [vmem:[%s245 + $0x100] sm:$0xff]
        %v311 = vld [vmem:[%s245 + $0x108] sm:$0xff]
        %v312 = vld [vmem:[%s245 + $0x110] sm:$0xff]
        %v313 = vld [vmem:[%s245 + $0x118] sm:$0xff]
        %v314 = vld [vmem:[%s245 + $0x120] sm:$0xff]
        %v315 = vld [vmem:[%s245 + $0x128] sm:$0xff]
        %v316 = vld [vmem:[%s245 + $0x130] sm:$0xff]
        %v317 = vld [vmem:[%s245 + $0x138] sm:$0xff]
        %v318 = vld [vmem:[%s245 + $0x140] sm:$0xff]
        %v319 = vld [vmem:[%s245 + $0x148] sm:$0xff]
        %v320 = vld [vmem:[%s245 + $0x150] sm:$0xff]
        %v321 = vld [vmem:[%s245 + $0x158] sm:$0xff]
        %v322 = vld [vmem:[%s245 + $0x160] sm:$0xff]
        %v323 = vld [vmem:[%s245 + $0x168] sm:$0xff]
        %v324 = vld [vmem:[%s245 + $0x170] sm:$0xff]
        %v325 = vld [vmem:[%s245 + $0x178] sm:$0xff]
        %v326 = vld [vmem:[%s245 + $0x180] sm:$0xff]
        %v327 = vld [vmem:[%s245 + $0x188] sm:$0xff]
        %v328 = vld [vmem:[%s245 + $0x190] sm:$0xff]
        %v329 = vld [vmem:[%s245 + $0x198] sm:$0xff]
        %v330 = vld [vmem:[%s245 + $0x1a0] sm:$0xff]
        %v331 = vld [vmem:[%s245 + $0x1a8] sm:$0xff]
        %v332 = vld [vmem:[%s245 + $0x1b0] sm:$0xff]
        %v333 = vld [vmem:[%s245 + $0x1b8] sm:$0xff]
        %v334 = vld [vmem:[%s245 + $0x1c0] sm:$0xff]
        %v335 = vld [vmem:[%s245 + $0x1c8] sm:$0xff]
        %v336 = vld [vmem:[%s245 + $0x1d0] sm:$0xff]
        %v337 = vld [vmem:[%s245 + $0x1d8] sm:$0xff]
        %v338 = vld [vmem:[%s245 + $0x1e0] sm:$0xff]
        %v339 = vld [vmem:[%s245 + $0x1e8] sm:$0xff]
        %v340 = vld [vmem:[%s245 + $0x1f0] sm:$0xff]
        %v341 = vld [vmem:[%s245 + $0x1f8] sm:$0xff]
        %v342 = vld [vmem:[%s245 + $0x200] sm:$0xff]
        %v343 = vld [vmem:[%s245 + $0x208] sm:$0xff]
        %v344 = vld [vmem:[%s245 + $0x210] sm:$0xff]
        %v345 = vld [vmem:[%s245 + $0x218] sm:$0xff]
        %v346 = vld [vmem:[%s245 + $0x220] sm:$0xff]
        %v347 = vld [vmem:[%s245 + $0x228] sm:$0xff]
        %v348 = vld [vmem:[%s245 + $0x230] sm:$0xff]
        %v349 = vld [vmem:[%s245 + $0x238] sm:$0xff]
        %v350 = vld [vmem:[%s245 + $0x240] sm:$0xff]
        %v351 = vld [vmem:[%s245 + $0x248] sm:$0xff]
        %v352 = vld [vmem:[%s245 + $0x250] sm:$0xff]
        %v353 = vld [vmem:[%s245 + $0x258] sm:$0xff]
        %v354 = vld [vmem:[%s245 + $0x260] sm:$0xff]
        %v355 = vld [vmem:[%s245 + $0x268] sm:$0xff]
        %v356 = vld [vmem:[%s245 + $0x270] sm:$0xff]
        %v357 = vld [vmem:[%s245 + $0x278] sm:$0xff]
        %v358 = vld [vmem:[%s245 + $0x280] sm:$0xff]
        %v359 = vld [vmem:[%s245 + $0x288] sm:$0xff]
        %v360 = vld [vmem:[%s245 + $0x290] sm:$0xff]
        %v361 = vld [vmem:[%s245 + $0x298] sm:$0xff]
        %v362 = vld [vmem:[%s245 + $0x2a0] sm:$0xff]
        %v363 = vld [vmem:[%s245 + $0x2a8] sm:$0xff]
        %v364 = vld [vmem:[%s245 + $0x2b0] sm:$0xff]
        %v365 = vld [vmem:[%s245 + $0x2b8] sm:$0xff]
        %v366 = vld [vmem:[%s245 + $0x2c0] sm:$0xff]
        %v367 = vld [vmem:[%s245 + $0x2c8] sm:$0xff]
        %v368 = vld [vmem:[%s245 + $0x2d0] sm:$0xff]
        %v369 = vld [vmem:[%s245 + $0x2d8] sm:$0xff]
        %v370 = vld [vmem:[%s245 + $0x2e0] sm:$0xff]
        %v371 = vld [vmem:[%s245 + $0x2e8] sm:$0xff]
        %v372 = vld [vmem:[%s245 + $0x2f0] sm:$0xff]
        %v373 = vld [vmem:[%s245 + $0x2f8] sm:$0xff]
        %v374 = vld [vmem:[%s245 + $0x300] sm:$0xff]
        %v375 = vld [vmem:[%s245 + $0x308] sm:$0xff]
        %v376 = vld [vmem:[%s245 + $0x310] sm:$0xff]
        %v377 = vld [vmem:[%s245 + $0x318] sm:$0xff]
        %v378 = vld [vmem:[%s245 + $0x320] sm:$0xff]
        %v379 = vld [vmem:[%s245 + $0x328] sm:$0xff]
        %v380 = vld [vmem:[%s245 + $0x330] sm:$0xff]
        %v381 = vld [vmem:[%s245 + $0x338] sm:$0xff]
        %v382 = vld [vmem:[%s245 + $0x340] sm:$0xff]
        %v383 = vld [vmem:[%s245 + $0x348] sm:$0xff]
        %v384 = vld [vmem:[%s245 + $0x350] sm:$0xff]
        %v385 = vld [vmem:[%s245 + $0x358] sm:$0xff]
        %v386 = vld [vmem:[%s245 + $0x360] sm:$0xff]
        %v387 = vld [vmem:[%s245 + $0x368] sm:$0xff]
        %v388 = vld [vmem:[%s245 + $0x370] sm:$0xff]
        %v389 = vld [vmem:[%s245 + $0x378] sm:$0xff]
        %v390 = vld [vmem:[%s245 + $0x380] sm:$0xff]
        %v391 = vld [vmem:[%s245 + $0x388] sm:$0xff]
        %v392 = vld [vmem:[%s245 + $0x390] sm:$0xff]
        %v393 = vld [vmem:[%s245 + $0x398] sm:$0xff]
        %v394 = vld [vmem:[%s245 + $0x3a0] sm:$0xff]
        %v395 = vld [vmem:[%s245 + $0x3a8] sm:$0xff]
        %v396 = vld [vmem:[%s245 + $0x3b0] sm:$0xff]
        %v397 = vld [vmem:[%s245 + $0x3b8] sm:$0xff]
        %v398 = vld [vmem:[%s245 + $0x3c0] sm:$0xff]
        %v399 = vld [vmem:[%s245 + $0x3c8] sm:$0xff]
        %v400 = vld [vmem:[%s245 + $0x3d0] sm:$0xff]
        %v401 = vld [vmem:[%s245 + $0x3d8] sm:$0xff]
        %v402 = vld [vmem:[%s245 + $0x3e0] sm:$0xff]
        %v403 = vld [vmem:[%s245 + $0x3e8] sm:$0xff]
        %v404 = vld [vmem:[%s245 + $0x3f0] sm:$0xff]
        %v405 = vld [vmem:[%s245 + $0x3f8] sm:$0xff]
        %v406 = vpack.c.bf16 %v280, %v278
        %v407 = vpack.c.bf16 %v281, %v279
        %v408 = vpack.c.bf16 %v284, %v282
        %v409 = vpack.c.bf16 %v285, %v283
        %v410 = vpack.c.bf16 %v288, %v286
        %v411 = vpack.c.bf16 %v289, %v287
        %v412 = vpack.c.bf16 %v292, %v290
        %v413 = vpack.c.bf16 %v293, %v291
        %v414 = vpack.c.bf16 %v296, %v294
        %v415 = vpack.c.bf16 %v297, %v295
        %v416 = vpack.c.bf16 %v300, %v298
        %v417 = vpack.c.bf16 %v301, %v299
        %v418 = vpack.c.bf16 %v304, %v302
        %v419 = vpack.c.bf16 %v305, %v303
        %v420 = vpack.c.bf16 %v308, %v306
        %v421 = vpack.c.bf16 %v309, %v307
        %v422 = vpack.c.bf16 %v312, %v310
        %v423 = vpack.c.bf16 %v313, %v311
        %v424 = vpack.c.bf16 %v316, %v314
        %v425 = vpack.c.bf16 %v317, %v315
        %v426 = vpack.c.bf16 %v320, %v318
        %v427 = vpack.c.bf16 %v321, %v319
        %v428 = vpack.c.bf16 %v324, %v322
        %v429 = vpack.c.bf16 %v325, %v323
        %v430 = vpack.c.bf16 %v328, %v326
        %v431 = vpack.c.bf16 %v329, %v327
        %v432 = vpack.c.bf16 %v332, %v330
        %v433 = vpack.c.bf16 %v333, %v331
        %v434 = vpack.c.bf16 %v336, %v334
        %v435 = vpack.c.bf16 %v337, %v335
        %v436 = vpack.c.bf16 %v340, %v338
        %v437 = vpack.c.bf16 %v341, %v339
        %v438 = vpack.c.bf16 %v344, %v342
        %v439 = vpack.c.bf16 %v345, %v343
        %v440 = vpack.c.bf16 %v348, %v346
        %v441 = vpack.c.bf16 %v349, %v347
        %v442 = vpack.c.bf16 %v352, %v350
        %v443 = vpack.c.bf16 %v353, %v351
        %v444 = vpack.c.bf16 %v356, %v354
        %v445 = vpack.c.bf16 %v357, %v355
        %v446 = vpack.c.bf16 %v360, %v358
        %v447 = vpack.c.bf16 %v361, %v359
        %v448 = vpack.c.bf16 %v364, %v362
        %v449 = vpack.c.bf16 %v365, %v363
        %v450 = vpack.c.bf16 %v368, %v366
        %v451 = vpack.c.bf16 %v369, %v367
        %v452 = vpack.c.bf16 %v372, %v370
        %v453 = vpack.c.bf16 %v373, %v371
        %v454 = vpack.c.bf16 %v376, %v374
        %v455 = vpack.c.bf16 %v377, %v375
        %v456 = vpack.c.bf16 %v380, %v378
        %v457 = vpack.c.bf16 %v381, %v379
        %v458 = vpack.c.bf16 %v384, %v382
        %v459 = vpack.c.bf16 %v385, %v383
        %v460 = vpack.c.bf16 %v388, %v386
        %v461 = vpack.c.bf16 %v389, %v387
        %v462 = vpack.c.bf16 %v392, %v390
        %v463 = vpack.c.bf16 %v393, %v391
        %v464 = vpack.c.bf16 %v396, %v394
        %v465 = vpack.c.bf16 %v397, %v395
        %v466 = vpack.c.bf16 %v400, %v398
        %v467 = vpack.c.bf16 %v401, %v399
        %v468 = vpack.c.bf16 %v404, %v402
        %v469 = vpack.c.bf16 %v405, %v403
        %v470 = vld [vmem:[%s1] sm:$0xff]
        %v471 = vld [vmem:[%s1 + $0x8] sm:$0xff]
        %v472 = vld [vmem:[%s1 + $0x10] sm:$0xff]
        %v473 = vld [vmem:[%s1 + $0x18] sm:$0xff]
        %v474 = vld [vmem:[%s1 + $0x20] sm:$0xff]
        %v475 = vld [vmem:[%s1 + $0x28] sm:$0xff]
        %v476 = vld [vmem:[%s1 + $0x30] sm:$0xff]
        %v477 = vld [vmem:[%s1 + $0x38] sm:$0xff]
        %v478 = vld [vmem:[%s1 + $0x40] sm:$0xff]
        %v479 = vld [vmem:[%s1 + $0x48] sm:$0xff]
        %v480 = vld [vmem:[%s1 + $0x50] sm:$0xff]
        %v481 = vld [vmem:[%s1 + $0x58] sm:$0xff]
        %v482 = vld [vmem:[%s1 + $0x60] sm:$0xff]
        %v483 = vld [vmem:[%s1 + $0x68] sm:$0xff]
        %v484 = vld [vmem:[%s1 + $0x70] sm:$0xff]
        %v485 = vld [vmem:[%s1 + $0x78] sm:$0xff]
        %v486 = vld [vmem:[%s1 + $0x80] sm:$0xff]
        %v487 = vld [vmem:[%s1 + $0x88] sm:$0xff]
        %v488 = vld [vmem:[%s1 + $0x90] sm:$0xff]
        %v489 = vld [vmem:[%s1 + $0x98] sm:$0xff]
        %v490 = vld [vmem:[%s1 + $0xa0] sm:$0xff]
        %v491 = vld [vmem:[%s1 + $0xa8] sm:$0xff]
        %v492 = vld [vmem:[%s1 + $0xb0] sm:$0xff]
        %v493 = vld [vmem:[%s1 + $0xb8] sm:$0xff]
        %v494 = vld [vmem:[%s1 + $0xc0] sm:$0xff]
        %v495 = vld [vmem:[%s1 + $0xc8] sm:$0xff]
        %v496 = vld [vmem:[%s1 + $0xd0] sm:$0xff]
        %v497 = vld [vmem:[%s1 + $0xd8] sm:$0xff]
        %v498 = vld [vmem:[%s1 + $0xe0] sm:$0xff]
        %v499 = vld [vmem:[%s1 + $0xe8] sm:$0xff]
        %v500 = vld [vmem:[%s1 + $0xf0] sm:$0xff]
        %v501 = vld [vmem:[%s1 + $0xf8] sm:$0xff]
        %v502 = vld [vmem:[%s1 + $0x100] sm:$0xff]
        %v503 = vld [vmem:[%s1 + $0x108] sm:$0xff]
        %v504 = vld [vmem:[%s1 + $0x110] sm:$0xff]
        %v505 = vld [vmem:[%s1 + $0x118] sm:$0xff]
        %v506 = vld [vmem:[%s1 + $0x120] sm:$0xff]
        %v507 = vld [vmem:[%s1 + $0x128] sm:$0xff]
        %v508 = vld [vmem:[%s1 + $0x130] sm:$0xff]
        %v509 = vld [vmem:[%s1 + $0x138] sm:$0xff]
        %v510 = vld [vmem:[%s1 + $0x140] sm:$0xff]
        %v511 = vld [vmem:[%s1 + $0x148] sm:$0xff]
        %v512 = vld [vmem:[%s1 + $0x150] sm:$0xff]
        %v513 = vld [vmem:[%s1 + $0x158] sm:$0xff]
        %v514 = vld [vmem:[%s1 + $0x160] sm:$0xff]
        %v515 = vld [vmem:[%s1 + $0x168] sm:$0xff]
        %v516 = vld [vmem:[%s1 + $0x170] sm:$0xff]
        %v517 = vld [vmem:[%s1 + $0x178] sm:$0xff]
        %v518 = vld [vmem:[%s1 + $0x180] sm:$0xff]
        %v519 = vld [vmem:[%s1 + $0x188] sm:$0xff]
        %v520 = vld [vmem:[%s1 + $0x190] sm:$0xff]
        %v521 = vld [vmem:[%s1 + $0x198] sm:$0xff]
        %v522 = vld [vmem:[%s1 + $0x1a0] sm:$0xff]
        %v523 = vld [vmem:[%s1 + $0x1a8] sm:$0xff]
        %v524 = vld [vmem:[%s1 + $0x1b0] sm:$0xff]
        %v525 = vld [vmem:[%s1 + $0x1b8] sm:$0xff]
        %v526 = vld [vmem:[%s1 + $0x1c0] sm:$0xff]
        %v527 = vld [vmem:[%s1 + $0x1c8] sm:$0xff]
        %v528 = vld [vmem:[%s1 + $0x1d0] sm:$0xff]
        %v529 = vld [vmem:[%s1 + $0x1d8] sm:$0xff]
        %v530 = vld [vmem:[%s1 + $0x1e0] sm:$0xff]
        %v531 = vld [vmem:[%s1 + $0x1e8] sm:$0xff]
        %v532 = vld [vmem:[%s1 + $0x1f0] sm:$0xff]
        %v533 = vld [vmem:[%s1 + $0x1f8] sm:$0xff]
        %v534 = vld [vmem:[%s1 + $0x200] sm:$0xff]
        %v535 = vld [vmem:[%s1 + $0x208] sm:$0xff]
        %v536 = vld [vmem:[%s1 + $0x210] sm:$0xff]
        %v537 = vld [vmem:[%s1 + $0x218] sm:$0xff]
        %v538 = vld [vmem:[%s1 + $0x220] sm:$0xff]
        %v539 = vld [vmem:[%s1 + $0x228] sm:$0xff]
        %v540 = vld [vmem:[%s1 + $0x230] sm:$0xff]
        %v541 = vld [vmem:[%s1 + $0x238] sm:$0xff]
        %v542 = vld [vmem:[%s1 + $0x240] sm:$0xff]
        %v543 = vld [vmem:[%s1 + $0x248] sm:$0xff]
        %v544 = vld [vmem:[%s1 + $0x250] sm:$0xff]
        %v545 = vld [vmem:[%s1 + $0x258] sm:$0xff]
        %v546 = vld [vmem:[%s1 + $0x260] sm:$0xff]
        %v547 = vld [vmem:[%s1 + $0x268] sm:$0xff]
        %v548 = vld [vmem:[%s1 + $0x270] sm:$0xff]
        %v549 = vld [vmem:[%s1 + $0x278] sm:$0xff]
        %v550 = vld [vmem:[%s1 + $0x280] sm:$0xff]
        %v551 = vld [vmem:[%s1 + $0x288] sm:$0xff]
        %v552 = vld [vmem:[%s1 + $0x290] sm:$0xff]
        %v553 = vld [vmem:[%s1 + $0x298] sm:$0xff]
        %v554 = vld [vmem:[%s1 + $0x2a0] sm:$0xff]
        %v555 = vld [vmem:[%s1 + $0x2a8] sm:$0xff]
        %v556 = vld [vmem:[%s1 + $0x2b0] sm:$0xff]
        %v557 = vld [vmem:[%s1 + $0x2b8] sm:$0xff]
        %v558 = vld [vmem:[%s1 + $0x2c0] sm:$0xff]
        %v559 = vld [vmem:[%s1 + $0x2c8] sm:$0xff]
        %v560 = vld [vmem:[%s1 + $0x2d0] sm:$0xff]
        %v561 = vld [vmem:[%s1 + $0x2d8] sm:$0xff]
        %v562 = vld [vmem:[%s1 + $0x2e0] sm:$0xff]
        %v563 = vld [vmem:[%s1 + $0x2e8] sm:$0xff]
        %v564 = vld [vmem:[%s1 + $0x2f0] sm:$0xff]
        %v565 = vld [vmem:[%s1 + $0x2f8] sm:$0xff]
        %v566 = vld [vmem:[%s1 + $0x300] sm:$0xff]
        %v567 = vld [vmem:[%s1 + $0x308] sm:$0xff]
        %v568 = vld [vmem:[%s1 + $0x310] sm:$0xff]
        %v569 = vld [vmem:[%s1 + $0x318] sm:$0xff]
        %v570 = vld [vmem:[%s1 + $0x320] sm:$0xff]
        %v571 = vld [vmem:[%s1 + $0x328] sm:$0xff]
        %v572 = vld [vmem:[%s1 + $0x330] sm:$0xff]
        %v573 = vld [vmem:[%s1 + $0x338] sm:$0xff]
        %v574 = vld [vmem:[%s1 + $0x340] sm:$0xff]
        %v575 = vld [vmem:[%s1 + $0x348] sm:$0xff]
        %v576 = vld [vmem:[%s1 + $0x350] sm:$0xff]
        %v577 = vld [vmem:[%s1 + $0x358] sm:$0xff]
        %v578 = vld [vmem:[%s1 + $0x360] sm:$0xff]
        %v579 = vld [vmem:[%s1 + $0x368] sm:$0xff]
        %v580 = vld [vmem:[%s1 + $0x370] sm:$0xff]
        %v581 = vld [vmem:[%s1 + $0x378] sm:$0xff]
        %v582 = vld [vmem:[%s1 + $0x380] sm:$0xff]
        %v583 = vld [vmem:[%s1 + $0x388] sm:$0xff]
        %v584 = vld [vmem:[%s1 + $0x390] sm:$0xff]
        %v585 = vld [vmem:[%s1 + $0x398] sm:$0xff]
        %v586 = vld [vmem:[%s1 + $0x3a0] sm:$0xff]
        %v587 = vld [vmem:[%s1 + $0x3a8] sm:$0xff]
        %v588 = vld [vmem:[%s1 + $0x3b0] sm:$0xff]
        %v589 = vld [vmem:[%s1 + $0x3b8] sm:$0xff]
        %v590 = vld [vmem:[%s1 + $0x3c0] sm:$0xff]
        %v591 = vld [vmem:[%s1 + $0x3c8] sm:$0xff]
        %v592 = vld [vmem:[%s1 + $0x3d0] sm:$0xff]
        %v593 = vld [vmem:[%s1 + $0x3d8] sm:$0xff]
        %v594 = vld [vmem:[%s1 + $0x3e0] sm:$0xff]
        %v595 = vld [vmem:[%s1 + $0x3e8] sm:$0xff]
        %v596 = vld [vmem:[%s1 + $0x3f0] sm:$0xff]
        %v597 = vld [vmem:[%s1 + $0x3f8] sm:$0xff]
        %v598 = vld [vmem:[%s2] sm:$0xff]
        %v599 = vld [vmem:[%s2 + $0x8] sm:$0xff]
        %v600 = vld [vmem:[%s2 + $0x10] sm:$0xff]
        %v601 = vld [vmem:[%s2 + $0x18] sm:$0xff]
        %v602 = vld [vmem:[%s2 + $0x20] sm:$0xff]
        %v603 = vld [vmem:[%s2 + $0x28] sm:$0xff]
        %v604 = vld [vmem:[%s2 + $0x30] sm:$0xff]
        %v605 = vld [vmem:[%s2 + $0x38] sm:$0xff]
        %v606 = vld [vmem:[%s2 + $0x40] sm:$0xff]
        %v607 = vld [vmem:[%s2 + $0x48] sm:$0xff]
        %v608 = vld [vmem:[%s2 + $0x50] sm:$0xff]
        %v609 = vld [vmem:[%s2 + $0x58] sm:$0xff]
        %v610 = vld [vmem:[%s2 + $0x60] sm:$0xff]
        %v611 = vld [vmem:[%s2 + $0x68] sm:$0xff]
        %v612 = vld [vmem:[%s2 + $0x70] sm:$0xff]
        %v613 = vld [vmem:[%s2 + $0x78] sm:$0xff]
        %v614 = vld [vmem:[%s2 + $0x80] sm:$0xff]
        %v615 = vld [vmem:[%s2 + $0x88] sm:$0xff]
        %v616 = vld [vmem:[%s2 + $0x90] sm:$0xff]
        %v617 = vld [vmem:[%s2 + $0x98] sm:$0xff]
        %v618 = vld [vmem:[%s2 + $0xa0] sm:$0xff]
        %v619 = vld [vmem:[%s2 + $0xa8] sm:$0xff]
        %v620 = vld [vmem:[%s2 + $0xb0] sm:$0xff]
        %v621 = vld [vmem:[%s2 + $0xb8] sm:$0xff]
        %v622 = vld [vmem:[%s2 + $0xc0] sm:$0xff]
        %v623 = vld [vmem:[%s2 + $0xc8] sm:$0xff]
        %v624 = vld [vmem:[%s2 + $0xd0] sm:$0xff]
        %v625 = vld [vmem:[%s2 + $0xd8] sm:$0xff]
        %v626 = vld [vmem:[%s2 + $0xe0] sm:$0xff]
        %v627 = vld [vmem:[%s2 + $0xe8] sm:$0xff]
        %v628 = vld [vmem:[%s2 + $0xf0] sm:$0xff]
        %v629 = vld [vmem:[%s2 + $0xf8] sm:$0xff]
        %v630 = vld [vmem:[%s2 + $0x100] sm:$0xff]
        %v631 = vld [vmem:[%s2 + $0x108] sm:$0xff]
        %v632 = vld [vmem:[%s2 + $0x110] sm:$0xff]
        %v633 = vld [vmem:[%s2 + $0x118] sm:$0xff]
        %v634 = vld [vmem:[%s2 + $0x120] sm:$0xff]
        %v635 = vld [vmem:[%s2 + $0x128] sm:$0xff]
        %v636 = vld [vmem:[%s2 + $0x130] sm:$0xff]
        %v637 = vld [vmem:[%s2 + $0x138] sm:$0xff]
        %v638 = vld [vmem:[%s2 + $0x140] sm:$0xff]
        %v639 = vld [vmem:[%s2 + $0x148] sm:$0xff]
        %v640 = vld [vmem:[%s2 + $0x150] sm:$0xff]
        %v641 = vld [vmem:[%s2 + $0x158] sm:$0xff]
        %v642 = vld [vmem:[%s2 + $0x160] sm:$0xff]
        %v643 = vld [vmem:[%s2 + $0x168] sm:$0xff]
        %v644 = vld [vmem:[%s2 + $0x170] sm:$0xff]
        %v645 = vld [vmem:[%s2 + $0x178] sm:$0xff]
        %v646 = vld [vmem:[%s2 + $0x180] sm:$0xff]
        %v647 = vld [vmem:[%s2 + $0x188] sm:$0xff]
        %v648 = vld [vmem:[%s2 + $0x190] sm:$0xff]
        %v649 = vld [vmem:[%s2 + $0x198] sm:$0xff]
        %v650 = vld [vmem:[%s2 + $0x1a0] sm:$0xff]
        %v651 = vld [vmem:[%s2 + $0x1a8] sm:$0xff]
        %v652 = vld [vmem:[%s2 + $0x1b0] sm:$0xff]
        %v653 = vld [vmem:[%s2 + $0x1b8] sm:$0xff]
        %v654 = vld [vmem:[%s2 + $0x1c0] sm:$0xff]
        %v655 = vld [vmem:[%s2 + $0x1c8] sm:$0xff]
        %v656 = vld [vmem:[%s2 + $0x1d0] sm:$0xff]
        %v657 = vld [vmem:[%s2 + $0x1d8] sm:$0xff]
        %v658 = vld [vmem:[%s2 + $0x1e0] sm:$0xff]
        %v659 = vld [vmem:[%s2 + $0x1e8] sm:$0xff]
        %v660 = vld [vmem:[%s2 + $0x1f0] sm:$0xff]
        %v661 = vld [vmem:[%s2 + $0x1f8] sm:$0xff]
        %663 = vset.pattern.permute.xlu0 0
        %664 = vperm.xlu0 %663, %v598
        %v665 = vpop.permute.xlu0 %664
        %668 = vset.pattern.permute.xlu0 0
        %669 = vperm.xlu0 %668, %v599
        %v670 = vpop.permute.xlu0 %669
        %673 = vset.pattern.permute.xlu0 0
        %674 = vperm.xlu0 %673, %v600
        %v675 = vpop.permute.xlu0 %674
        %678 = vset.pattern.permute.xlu0 0
        %679 = vperm.xlu0 %678, %v601
        %v680 = vpop.permute.xlu0 %679
        %683 = vset.pattern.permute.xlu0 0
        %684 = vperm.xlu0 %683, %v602
        %v685 = vpop.permute.xlu0 %684
        %688 = vset.pattern.permute.xlu0 0
        %689 = vperm.xlu0 %688, %v603
        %v690 = vpop.permute.xlu0 %689
        %693 = vset.pattern.permute.xlu0 0
        %694 = vperm.xlu0 %693, %v604
        %v695 = vpop.permute.xlu0 %694
        %698 = vset.pattern.permute.xlu0 0
        %699 = vperm.xlu0 %698, %v605
        %v700 = vpop.permute.xlu0 %699
        %703 = vset.pattern.permute.xlu0 0
        %704 = vperm.xlu0 %703, %v606
        %v705 = vpop.permute.xlu0 %704
        %708 = vset.pattern.permute.xlu0 0
        %709 = vperm.xlu0 %708, %v607
        %v710 = vpop.permute.xlu0 %709
        %713 = vset.pattern.permute.xlu0 0
        %714 = vperm.xlu0 %713, %v608
        %v715 = vpop.permute.xlu0 %714
        %718 = vset.pattern.permute.xlu0 0
        %719 = vperm.xlu0 %718, %v609
        %v720 = vpop.permute.xlu0 %719
        %723 = vset.pattern.permute.xlu0 0
        %724 = vperm.xlu0 %723, %v610
        %v725 = vpop.permute.xlu0 %724
        %728 = vset.pattern.permute.xlu0 0
        %729 = vperm.xlu0 %728, %v611
        %v730 = vpop.permute.xlu0 %729
        %733 = vset.pattern.permute.xlu0 0
        %734 = vperm.xlu0 %733, %v612
        %v735 = vpop.permute.xlu0 %734
        %738 = vset.pattern.permute.xlu0 0
        %739 = vperm.xlu0 %738, %v613
        %v740 = vpop.permute.xlu0 %739
        %743 = vset.pattern.permute.xlu0 0
        %744 = vperm.xlu0 %743, %v614
        %v745 = vpop.permute.xlu0 %744
        %748 = vset.pattern.permute.xlu0 0
        %749 = vperm.xlu0 %748, %v615
        %v750 = vpop.permute.xlu0 %749
        %753 = vset.pattern.permute.xlu0 0
        %754 = vperm.xlu0 %753, %v616
        %v755 = vpop.permute.xlu0 %754
        %758 = vset.pattern.permute.xlu0 0
        %759 = vperm.xlu0 %758, %v617
        %v760 = vpop.permute.xlu0 %759
        %763 = vset.pattern.permute.xlu0 0
        %764 = vperm.xlu0 %763, %v618
        %v765 = vpop.permute.xlu0 %764
        %768 = vset.pattern.permute.xlu0 0
        %769 = vperm.xlu0 %768, %v619
        %v770 = vpop.permute.xlu0 %769
        %773 = vset.pattern.permute.xlu0 0
        %774 = vperm.xlu0 %773, %v620
        %v775 = vpop.permute.xlu0 %774
        %778 = vset.pattern.permute.xlu0 0
        %779 = vperm.xlu0 %778, %v621
        %v780 = vpop.permute.xlu0 %779
        %783 = vset.pattern.permute.xlu0 0
        %784 = vperm.xlu0 %783, %v622
        %v785 = vpop.permute.xlu0 %784
        %788 = vset.pattern.permute.xlu0 0
        %789 = vperm.xlu0 %788, %v623
        %v790 = vpop.permute.xlu0 %789
        %793 = vset.pattern.permute.xlu0 0
        %794 = vperm.xlu0 %793, %v624
        %v795 = vpop.permute.xlu0 %794
        %798 = vset.pattern.permute.xlu0 0
        %799 = vperm.xlu0 %798, %v625
        %v800 = vpop.permute.xlu0 %799
        %803 = vset.pattern.permute.xlu0 0
        %804 = vperm.xlu0 %803, %v626
        %v805 = vpop.permute.xlu0 %804
        %808 = vset.pattern.permute.xlu0 0
        %809 = vperm.xlu0 %808, %v627
        %v810 = vpop.permute.xlu0 %809
        %813 = vset.pattern.permute.xlu0 0
        %814 = vperm.xlu0 %813, %v628
        %v815 = vpop.permute.xlu0 %814
        %818 = vset.pattern.permute.xlu0 0
        %819 = vperm.xlu0 %818, %v629
        %v820 = vpop.permute.xlu0 %819
        %823 = vset.pattern.permute.xlu0 0
        %824 = vperm.xlu0 %823, %v630
        %v825 = vpop.permute.xlu0 %824
        %828 = vset.pattern.permute.xlu0 0
        %829 = vperm.xlu0 %828, %v631
        %v830 = vpop.permute.xlu0 %829
        %833 = vset.pattern.permute.xlu0 0
        %834 = vperm.xlu0 %833, %v632
        %v835 = vpop.permute.xlu0 %834
        %838 = vset.pattern.permute.xlu0 0
        %839 = vperm.xlu0 %838, %v633
        %v840 = vpop.permute.xlu0 %839
        %843 = vset.pattern.permute.xlu0 0
        %844 = vperm.xlu0 %843, %v634
        %v845 = vpop.permute.xlu0 %844
        %848 = vset.pattern.permute.xlu0 0
        %849 = vperm.xlu0 %848, %v635
        %v850 = vpop.permute.xlu0 %849
        %853 = vset.pattern.permute.xlu0 0
        %854 = vperm.xlu0 %853, %v636
        %v855 = vpop.permute.xlu0 %854
        %858 = vset.pattern.permute.xlu0 0
        %859 = vperm.xlu0 %858, %v637
        %v860 = vpop.permute.xlu0 %859
        %863 = vset.pattern.permute.xlu0 0
        %864 = vperm.xlu0 %863, %v638
        %v865 = vpop.permute.xlu0 %864
        %868 = vset.pattern.permute.xlu0 0
        %869 = vperm.xlu0 %868, %v639
        %v870 = vpop.permute.xlu0 %869
        %873 = vset.pattern.permute.xlu0 0
        %874 = vperm.xlu0 %873, %v640
        %v875 = vpop.permute.xlu0 %874
        %878 = vset.pattern.permute.xlu0 0
        %879 = vperm.xlu0 %878, %v641
        %v880 = vpop.permute.xlu0 %879
        %883 = vset.pattern.permute.xlu0 0
        %884 = vperm.xlu0 %883, %v642
        %v885 = vpop.permute.xlu0 %884
        %888 = vset.pattern.permute.xlu0 0
        %889 = vperm.xlu0 %888, %v643
        %v890 = vpop.permute.xlu0 %889
        %893 = vset.pattern.permute.xlu0 0
        %894 = vperm.xlu0 %893, %v644
        %v895 = vpop.permute.xlu0 %894
        %898 = vset.pattern.permute.xlu0 0
        %899 = vperm.xlu0 %898, %v645
        %v900 = vpop.permute.xlu0 %899
        %903 = vset.pattern.permute.xlu0 0
        %904 = vperm.xlu0 %903, %v646
        %v905 = vpop.permute.xlu0 %904
        %908 = vset.pattern.permute.xlu0 0
        %909 = vperm.xlu0 %908, %v647
        %v910 = vpop.permute.xlu0 %909
        %913 = vset.pattern.permute.xlu0 0
        %914 = vperm.xlu0 %913, %v648
        %v915 = vpop.permute.xlu0 %914
        %918 = vset.pattern.permute.xlu0 0
        %919 = vperm.xlu0 %918, %v649
        %v920 = vpop.permute.xlu0 %919
        %923 = vset.pattern.permute.xlu0 0
        %924 = vperm.xlu0 %923, %v650
        %v925 = vpop.permute.xlu0 %924
        %928 = vset.pattern.permute.xlu0 0
        %929 = vperm.xlu0 %928, %v651
        %v930 = vpop.permute.xlu0 %929
        %933 = vset.pattern.permute.xlu0 0
        %934 = vperm.xlu0 %933, %v652
        %v935 = vpop.permute.xlu0 %934
        %938 = vset.pattern.permute.xlu0 0
        %939 = vperm.xlu0 %938, %v653
        %v940 = vpop.permute.xlu0 %939
        %943 = vset.pattern.permute.xlu0 0
        %944 = vperm.xlu0 %943, %v654
        %v945 = vpop.permute.xlu0 %944
        %948 = vset.pattern.permute.xlu0 0
        %949 = vperm.xlu0 %948, %v655
        %v950 = vpop.permute.xlu0 %949
        %953 = vset.pattern.permute.xlu0 0
        %954 = vperm.xlu0 %953, %v656
        %v955 = vpop.permute.xlu0 %954
        %958 = vset.pattern.permute.xlu0 0
        %959 = vperm.xlu0 %958, %v657
        %v960 = vpop.permute.xlu0 %959
        %963 = vset.pattern.permute.xlu0 0
        %964 = vperm.xlu0 %963, %v658
        %v965 = vpop.permute.xlu0 %964
        %968 = vset.pattern.permute.xlu0 0
        %969 = vperm.xlu0 %968, %v659
        %v970 = vpop.permute.xlu0 %969
        %973 = vset.pattern.permute.xlu0 0
        %974 = vperm.xlu0 %973, %v660
        %v975 = vpop.permute.xlu0 %974
        %978 = vset.pattern.permute.xlu0 0
        %979 = vperm.xlu0 %978, %v661
        %v980 = vpop.permute.xlu0 %979
        %v1110 = vunpack.c.l.b16 %v470
        %v1111 = vunpack.c.h.b16 %v470
        %v1112 = vunpack.c.l.b16 %v471
        %v1113 = vunpack.c.h.b16 %v471
        %v1114 = vunpack.c.l.b16 %v472
        %v1115 = vunpack.c.h.b16 %v472
        %v1116 = vunpack.c.l.b16 %v473
        %v1117 = vunpack.c.h.b16 %v473
        %v1118 = vunpack.c.l.b16 %v474
        %v1119 = vunpack.c.h.b16 %v474
        %v1120 = vunpack.c.l.b16 %v475
        %v1121 = vunpack.c.h.b16 %v475
        %v1122 = vunpack.c.l.b16 %v476
        %v1123 = vunpack.c.h.b16 %v476
        %v1124 = vunpack.c.l.b16 %v477
        %v1125 = vunpack.c.h.b16 %v477
        %v1126 = vunpack.c.l.b16 %v478
        %v1127 = vunpack.c.h.b16 %v478
        %v1128 = vunpack.c.l.b16 %v479
        %v1129 = vunpack.c.h.b16 %v479
        %v1130 = vunpack.c.l.b16 %v480
        %v1131 = vunpack.c.h.b16 %v480
        %v1132 = vunpack.c.l.b16 %v481
        %v1133 = vunpack.c.h.b16 %v481
        %v1134 = vunpack.c.l.b16 %v482
        %v1135 = vunpack.c.h.b16 %v482
        %v1136 = vunpack.c.l.b16 %v483
        %v1137 = vunpack.c.h.b16 %v483
        %v1138 = vunpack.c.l.b16 %v484
        %v1139 = vunpack.c.h.b16 %v484
        %v1140 = vunpack.c.l.b16 %v485
        %v1141 = vunpack.c.h.b16 %v485
        %v1142 = vunpack.c.l.b16 %v486
        %v1143 = vunpack.c.h.b16 %v486
        %v1144 = vunpack.c.l.b16 %v487
        %v1145 = vunpack.c.h.b16 %v487
        %v1146 = vunpack.c.l.b16 %v488
        %v1147 = vunpack.c.h.b16 %v488
        %v1148 = vunpack.c.l.b16 %v489
        %v1149 = vunpack.c.h.b16 %v489
        %v1150 = vunpack.c.l.b16 %v490
        %v1151 = vunpack.c.h.b16 %v490
        %v1152 = vunpack.c.l.b16 %v491
        %v1153 = vunpack.c.h.b16 %v491
        %v1154 = vunpack.c.l.b16 %v492
        %v1155 = vunpack.c.h.b16 %v492
        %v1156 = vunpack.c.l.b16 %v493
        %v1157 = vunpack.c.h.b16 %v493
        %v1158 = vunpack.c.l.b16 %v494
        %v1159 = vunpack.c.h.b16 %v494
        %v1160 = vunpack.c.l.b16 %v495
        %v1161 = vunpack.c.h.b16 %v495
        %v1162 = vunpack.c.l.b16 %v496
        %v1163 = vunpack.c.h.b16 %v496
        %v1164 = vunpack.c.l.b16 %v497
        %v1165 = vunpack.c.h.b16 %v497
        %v1166 = vunpack.c.l.b16 %v498
        %v1167 = vunpack.c.h.b16 %v498
        %v1168 = vunpack.c.l.b16 %v499
        %v1169 = vunpack.c.h.b16 %v499
        %v1170 = vunpack.c.l.b16 %v500
        %v1171 = vunpack.c.h.b16 %v500
        %v1172 = vunpack.c.l.b16 %v501
        %v1173 = vunpack.c.h.b16 %v501
        %v1174 = vunpack.c.l.b16 %v502
        %v1175 = vunpack.c.h.b16 %v502
        %v1176 = vunpack.c.l.b16 %v503
        %v1177 = vunpack.c.h.b16 %v503
        %v1178 = vunpack.c.l.b16 %v504
        %v1179 = vunpack.c.h.b16 %v504
        %v1180 = vunpack.c.l.b16 %v505
        %v1181 = vunpack.c.h.b16 %v505
        %v1182 = vunpack.c.l.b16 %v506
        %v1183 = vunpack.c.h.b16 %v506
        %v1184 = vunpack.c.l.b16 %v507
        %v1185 = vunpack.c.h.b16 %v507
        %v1186 = vunpack.c.l.b16 %v508
        %v1187 = vunpack.c.h.b16 %v508
        %v1188 = vunpack.c.l.b16 %v509
        %v1189 = vunpack.c.h.b16 %v509
        %v1190 = vunpack.c.l.b16 %v510
        %v1191 = vunpack.c.h.b16 %v510
        %v1192 = vunpack.c.l.b16 %v511
        %v1193 = vunpack.c.h.b16 %v511
        %v1194 = vunpack.c.l.b16 %v512
        %v1195 = vunpack.c.h.b16 %v512
        %v1196 = vunpack.c.l.b16 %v513
        %v1197 = vunpack.c.h.b16 %v513
        %v1198 = vunpack.c.l.b16 %v514
        %v1199 = vunpack.c.h.b16 %v514
        %v1200 = vunpack.c.l.b16 %v515
        %v1201 = vunpack.c.h.b16 %v515
        %v1202 = vunpack.c.l.b16 %v516
        %v1203 = vunpack.c.h.b16 %v516
        %v1204 = vunpack.c.l.b16 %v517
        %v1205 = vunpack.c.h.b16 %v517
        %v1206 = vunpack.c.l.b16 %v518
        %v1207 = vunpack.c.h.b16 %v518
        %v1208 = vunpack.c.l.b16 %v519
        %v1209 = vunpack.c.h.b16 %v519
        %v1210 = vunpack.c.l.b16 %v520
        %v1211 = vunpack.c.h.b16 %v520
        %v1212 = vunpack.c.l.b16 %v521
        %v1213 = vunpack.c.h.b16 %v521
        %v1214 = vunpack.c.l.b16 %v522
        %v1215 = vunpack.c.h.b16 %v522
        %v1216 = vunpack.c.l.b16 %v523
        %v1217 = vunpack.c.h.b16 %v523
        %v1218 = vunpack.c.l.b16 %v524
        %v1219 = vunpack.c.h.b16 %v524
        %v1220 = vunpack.c.l.b16 %v525
        %v1221 = vunpack.c.h.b16 %v525
        %v1222 = vunpack.c.l.b16 %v526
        %v1223 = vunpack.c.h.b16 %v526
        %v1224 = vunpack.c.l.b16 %v527
        %v1225 = vunpack.c.h.b16 %v527
        %v1226 = vunpack.c.l.b16 %v528
        %v1227 = vunpack.c.h.b16 %v528
        %v1228 = vunpack.c.l.b16 %v529
        %v1229 = vunpack.c.h.b16 %v529
        %v1230 = vunpack.c.l.b16 %v530
        %v1231 = vunpack.c.h.b16 %v530
        %v1232 = vunpack.c.l.b16 %v531
        %v1233 = vunpack.c.h.b16 %v531
        %v1234 = vunpack.c.l.b16 %v532
        %v1235 = vunpack.c.h.b16 %v532
        %v1236 = vunpack.c.l.b16 %v533
        %v1237 = vunpack.c.h.b16 %v533
        %v1238 = vunpack.c.l.b16 %v534
        %v1239 = vunpack.c.h.b16 %v534
        %v1240 = vunpack.c.l.b16 %v535
        %v1241 = vunpack.c.h.b16 %v535
        %v1242 = vunpack.c.l.b16 %v536
        %v1243 = vunpack.c.h.b16 %v536
        %v1244 = vunpack.c.l.b16 %v537
        %v1245 = vunpack.c.h.b16 %v537
        %v1246 = vunpack.c.l.b16 %v538
        %v1247 = vunpack.c.h.b16 %v538
        %v1248 = vunpack.c.l.b16 %v539
        %v1249 = vunpack.c.h.b16 %v539
        %v1250 = vunpack.c.l.b16 %v540
        %v1251 = vunpack.c.h.b16 %v540
        %v1252 = vunpack.c.l.b16 %v541
        %v1253 = vunpack.c.h.b16 %v541
        %v1254 = vunpack.c.l.b16 %v542
        %v1255 = vunpack.c.h.b16 %v542
        %v1256 = vunpack.c.l.b16 %v543
        %v1257 = vunpack.c.h.b16 %v543
        %v1258 = vunpack.c.l.b16 %v544
        %v1259 = vunpack.c.h.b16 %v544
        %v1260 = vunpack.c.l.b16 %v545
        %v1261 = vunpack.c.h.b16 %v545
        %v1262 = vunpack.c.l.b16 %v546
        %v1263 = vunpack.c.h.b16 %v546
        %v1264 = vunpack.c.l.b16 %v547
        %v1265 = vunpack.c.h.b16 %v547
        %v1266 = vunpack.c.l.b16 %v548
        %v1267 = vunpack.c.h.b16 %v548
        %v1268 = vunpack.c.l.b16 %v549
        %v1269 = vunpack.c.h.b16 %v549
        %v1270 = vunpack.c.l.b16 %v550
        %v1271 = vunpack.c.h.b16 %v550
        %v1272 = vunpack.c.l.b16 %v551
        %v1273 = vunpack.c.h.b16 %v551
        %v1274 = vunpack.c.l.b16 %v552
        %v1275 = vunpack.c.h.b16 %v552
        %v1276 = vunpack.c.l.b16 %v553
        %v1277 = vunpack.c.h.b16 %v553
        %v1278 = vunpack.c.l.b16 %v554
        %v1279 = vunpack.c.h.b16 %v554
        %v1280 = vunpack.c.l.b16 %v555
        %v1281 = vunpack.c.h.b16 %v555
        %v1282 = vunpack.c.l.b16 %v556
        %v1283 = vunpack.c.h.b16 %v556
        %v1284 = vunpack.c.l.b16 %v557
        %v1285 = vunpack.c.h.b16 %v557
        %v1286 = vunpack.c.l.b16 %v558
        %v1287 = vunpack.c.h.b16 %v558
        %v1288 = vunpack.c.l.b16 %v559
        %v1289 = vunpack.c.h.b16 %v559
        %v1290 = vunpack.c.l.b16 %v560
        %v1291 = vunpack.c.h.b16 %v560
        %v1292 = vunpack.c.l.b16 %v561
        %v1293 = vunpack.c.h.b16 %v561
        %v1294 = vunpack.c.l.b16 %v562
        %v1295 = vunpack.c.h.b16 %v562
        %v1296 = vunpack.c.l.b16 %v563
        %v1297 = vunpack.c.h.b16 %v563
        %v1298 = vunpack.c.l.b16 %v564
        %v1299 = vunpack.c.h.b16 %v564
        %v1300 = vunpack.c.l.b16 %v565
        %v1301 = vunpack.c.h.b16 %v565
        %v1302 = vunpack.c.l.b16 %v566
        %v1303 = vunpack.c.h.b16 %v566
        %v1304 = vunpack.c.l.b16 %v567
        %v1305 = vunpack.c.h.b16 %v567
        %v1306 = vunpack.c.l.b16 %v568
        %v1307 = vunpack.c.h.b16 %v568
        %v1308 = vunpack.c.l.b16 %v569
        %v1309 = vunpack.c.h.b16 %v569
        %v1310 = vunpack.c.l.b16 %v570
        %v1311 = vunpack.c.h.b16 %v570
        %v1312 = vunpack.c.l.b16 %v571
        %v1313 = vunpack.c.h.b16 %v571
        %v1314 = vunpack.c.l.b16 %v572
        %v1315 = vunpack.c.h.b16 %v572
        %v1316 = vunpack.c.l.b16 %v573
        %v1317 = vunpack.c.h.b16 %v573
        %v1318 = vunpack.c.l.b16 %v574
        %v1319 = vunpack.c.h.b16 %v574
        %v1320 = vunpack.c.l.b16 %v575
        %v1321 = vunpack.c.h.b16 %v575
        %v1322 = vunpack.c.l.b16 %v576
        %v1323 = vunpack.c.h.b16 %v576
        %v1324 = vunpack.c.l.b16 %v577
        %v1325 = vunpack.c.h.b16 %v577
        %v1326 = vunpack.c.l.b16 %v578
        %v1327 = vunpack.c.h.b16 %v578
        %v1328 = vunpack.c.l.b16 %v579
        %v1329 = vunpack.c.h.b16 %v579
        %v1330 = vunpack.c.l.b16 %v580
        %v1331 = vunpack.c.h.b16 %v580
        %v1332 = vunpack.c.l.b16 %v581
        %v1333 = vunpack.c.h.b16 %v581
        %v1334 = vunpack.c.l.b16 %v582
        %v1335 = vunpack.c.h.b16 %v582
        %v1336 = vunpack.c.l.b16 %v583
        %v1337 = vunpack.c.h.b16 %v583
        %v1338 = vunpack.c.l.b16 %v584
        %v1339 = vunpack.c.h.b16 %v584
        %v1340 = vunpack.c.l.b16 %v585
        %v1341 = vunpack.c.h.b16 %v585
        %v1342 = vunpack.c.l.b16 %v586
        %v1343 = vunpack.c.h.b16 %v586
        %v1344 = vunpack.c.l.b16 %v587
        %v1345 = vunpack.c.h.b16 %v587
        %v1346 = vunpack.c.l.b16 %v588
        %v1347 = vunpack.c.h.b16 %v588
        %v1348 = vunpack.c.l.b16 %v589
        %v1349 = vunpack.c.h.b16 %v589
        %v1350 = vunpack.c.l.b16 %v590
        %v1351 = vunpack.c.h.b16 %v590
        %v1352 = vunpack.c.l.b16 %v591
        %v1353 = vunpack.c.h.b16 %v591
        %v1354 = vunpack.c.l.b16 %v592
        %v1355 = vunpack.c.h.b16 %v592
        %v1356 = vunpack.c.l.b16 %v593
        %v1357 = vunpack.c.h.b16 %v593
        %v1358 = vunpack.c.l.b16 %v594
        %v1359 = vunpack.c.h.b16 %v594
        %v1360 = vunpack.c.l.b16 %v595
        %v1361 = vunpack.c.h.b16 %v595
        %v1362 = vunpack.c.l.b16 %v596
        %v1363 = vunpack.c.h.b16 %v596
        %v1364 = vunpack.c.l.b16 %v597
        %v1365 = vunpack.c.h.b16 %v597
        %v1366 = vpack.c.b16 %v1114, %v1110
        %v1367 = vpack.c.b16 %v1115, %v1111
        %v1368 = vpack.c.b16 %v1116, %v1112
        %v1369 = vpack.c.b16 %v1117, %v1113
        %v1370 = vpack.c.b16 %v1122, %v1118
        %v1371 = vpack.c.b16 %v1123, %v1119
        %v1372 = vpack.c.b16 %v1124, %v1120
        %v1373 = vpack.c.b16 %v1125, %v1121
        %v1374 = vpack.c.b16 %v1130, %v1126
        %v1375 = vpack.c.b16 %v1131, %v1127
        %v1376 = vpack.c.b16 %v1132, %v1128
        %v1377 = vpack.c.b16 %v1133, %v1129
        %v1378 = vpack.c.b16 %v1138, %v1134
        %v1379 = vpack.c.b16 %v1139, %v1135
        %v1380 = vpack.c.b16 %v1140, %v1136
        %v1381 = vpack.c.b16 %v1141, %v1137
        %v1382 = vpack.c.b16 %v1146, %v1142
        %v1383 = vpack.c.b16 %v1147, %v1143
        %v1384 = vpack.c.b16 %v1148, %v1144
        %v1385 = vpack.c.b16 %v1149, %v1145
        %v1386 = vpack.c.b16 %v1154, %v1150
        %v1387 = vpack.c.b16 %v1155, %v1151
        %v1388 = vpack.c.b16 %v1156, %v1152
        %v1389 = vpack.c.b16 %v1157, %v1153
        %v1390 = vpack.c.b16 %v1162, %v1158
        %v1391 = vpack.c.b16 %v1163, %v1159
        %v1392 = vpack.c.b16 %v1164, %v1160
        %v1393 = vpack.c.b16 %v1165, %v1161
        %v1394 = vpack.c.b16 %v1170, %v1166
        %v1395 = vpack.c.b16 %v1171, %v1167
        %v1396 = vpack.c.b16 %v1172, %v1168
        %v1397 = vpack.c.b16 %v1173, %v1169
        %v1398 = vpack.c.b16 %v1178, %v1174
        %v1399 = vpack.c.b16 %v1179, %v1175
        %v1400 = vpack.c.b16 %v1180, %v1176
        %v1401 = vpack.c.b16 %v1181, %v1177
        %v1402 = vpack.c.b16 %v1186, %v1182
        %v1403 = vpack.c.b16 %v1187, %v1183
        %v1404 = vpack.c.b16 %v1188, %v1184
        %v1405 = vpack.c.b16 %v1189, %v1185
        %v1406 = vpack.c.b16 %v1194, %v1190
        %v1407 = vpack.c.b16 %v1195, %v1191
        %v1408 = vpack.c.b16 %v1196, %v1192
        %v1409 = vpack.c.b16 %v1197, %v1193
        %v1410 = vpack.c.b16 %v1202, %v1198
        %v1411 = vpack.c.b16 %v1203, %v1199
        %v1412 = vpack.c.b16 %v1204, %v1200
        %v1413 = vpack.c.b16 %v1205, %v1201
        %v1414 = vpack.c.b16 %v1210, %v1206
        %v1415 = vpack.c.b16 %v1211, %v1207
        %v1416 = vpack.c.b16 %v1212, %v1208
        %v1417 = vpack.c.b16 %v1213, %v1209
        %v1418 = vpack.c.b16 %v1218, %v1214
        %v1419 = vpack.c.b16 %v1219, %v1215
        %v1420 = vpack.c.b16 %v1220, %v1216
        %v1421 = vpack.c.b16 %v1221, %v1217
        %v1422 = vpack.c.b16 %v1226, %v1222
        %v1423 = vpack.c.b16 %v1227, %v1223
        %v1424 = vpack.c.b16 %v1228, %v1224
        %v1425 = vpack.c.b16 %v1229, %v1225
        %v1426 = vpack.c.b16 %v1234, %v1230
        %v1427 = vpack.c.b16 %v1235, %v1231
        %v1428 = vpack.c.b16 %v1236, %v1232
        %v1429 = vpack.c.b16 %v1237, %v1233
        %v1430 = vpack.c.b16 %v1242, %v1238
        %v1431 = vpack.c.b16 %v1243, %v1239
        %v1432 = vpack.c.b16 %v1244, %v1240
        %v1433 = vpack.c.b16 %v1245, %v1241
        %v1434 = vpack.c.b16 %v1250, %v1246
        %v1435 = vpack.c.b16 %v1251, %v1247
        %v1436 = vpack.c.b16 %v1252, %v1248
        %v1437 = vpack.c.b16 %v1253, %v1249
        %v1438 = vpack.c.b16 %v1258, %v1254
        %v1439 = vpack.c.b16 %v1259, %v1255
        %v1440 = vpack.c.b16 %v1260, %v1256
        %v1441 = vpack.c.b16 %v1261, %v1257
        %v1442 = vpack.c.b16 %v1266, %v1262
        %v1443 = vpack.c.b16 %v1267, %v1263
        %v1444 = vpack.c.b16 %v1268, %v1264
        %v1445 = vpack.c.b16 %v1269, %v1265
        %v1446 = vpack.c.b16 %v1274, %v1270
        %v1447 = vpack.c.b16 %v1275, %v1271
        %v1448 = vpack.c.b16 %v1276, %v1272
        %v1449 = vpack.c.b16 %v1277, %v1273
        %v1450 = vpack.c.b16 %v1282, %v1278
        %v1451 = vpack.c.b16 %v1283, %v1279
        %v1452 = vpack.c.b16 %v1284, %v1280
        %v1453 = vpack.c.b16 %v1285, %v1281
        %v1454 = vpack.c.b16 %v1290, %v1286
        %v1455 = vpack.c.b16 %v1291, %v1287
        %v1456 = vpack.c.b16 %v1292, %v1288
        %v1457 = vpack.c.b16 %v1293, %v1289
        %v1458 = vpack.c.b16 %v1298, %v1294
        %v1459 = vpack.c.b16 %v1299, %v1295
        %v1460 = vpack.c.b16 %v1300, %v1296
        %v1461 = vpack.c.b16 %v1301, %v1297
        %v1462 = vpack.c.b16 %v1306, %v1302
        %v1463 = vpack.c.b16 %v1307, %v1303
        %v1464 = vpack.c.b16 %v1308, %v1304
        %v1465 = vpack.c.b16 %v1309, %v1305
        %v1466 = vpack.c.b16 %v1314, %v1310
        %v1467 = vpack.c.b16 %v1315, %v1311
        %v1468 = vpack.c.b16 %v1316, %v1312
        %v1469 = vpack.c.b16 %v1317, %v1313
        %v1470 = vpack.c.b16 %v1322, %v1318
        %v1471 = vpack.c.b16 %v1323, %v1319
        %v1472 = vpack.c.b16 %v1324, %v1320
        %v1473 = vpack.c.b16 %v1325, %v1321
        %v1474 = vpack.c.b16 %v1330, %v1326
        %v1475 = vpack.c.b16 %v1331, %v1327
        %v1476 = vpack.c.b16 %v1332, %v1328
        %v1477 = vpack.c.b16 %v1333, %v1329
        %v1478 = vpack.c.b16 %v1338, %v1334
        %v1479 = vpack.c.b16 %v1339, %v1335
        %v1480 = vpack.c.b16 %v1340, %v1336
        %v1481 = vpack.c.b16 %v1341, %v1337
        %v1482 = vpack.c.b16 %v1346, %v1342
        %v1483 = vpack.c.b16 %v1347, %v1343
        %v1484 = vpack.c.b16 %v1348, %v1344
        %v1485 = vpack.c.b16 %v1349, %v1345
        %v1486 = vpack.c.b16 %v1354, %v1350
        %v1487 = vpack.c.b16 %v1355, %v1351
        %v1488 = vpack.c.b16 %v1356, %v1352
        %v1489 = vpack.c.b16 %v1357, %v1353
        %v1490 = vpack.c.b16 %v1362, %v1358
        %v1491 = vpack.c.b16 %v1363, %v1359
        %v1492 = vpack.c.b16 %v1364, %v1360
        %v1493 = vpack.c.b16 %v1365, %v1361
        %1622 = vmatprep.subr.bf16.mxu0 %v421
        %1623 = vmatpush1.bf16.msra.mxu0 %v420
        %1624 = vmatprep.subr.bf16.mxu0 %v419
        %1625 = vmatpush1.bf16.msra.mxu0 %v418
        %1626 = vmatprep.subr.bf16.mxu0 %v417
        %1627 = vmatpush1.bf16.msra.mxu0 %v416
        %1628 = vmatprep.subr.bf16.mxu0 %v415
        %1629 = vmatpush1.bf16.msra.mxu0 %v414
        %1630 = vmatprep.subr.bf16.mxu0 %v413
        %1631 = vmatpush1.bf16.msra.mxu0 %v412
        %1632 = vmatprep.subr.bf16.mxu0 %v411
        %1633 = vmatpush1.bf16.msra.mxu0 %v410
        %1634 = vmatprep.subr.bf16.mxu0 %v409
        %1635 = vmatpush1.bf16.msra.mxu0 %v408
        %1636 = vmatprep.subr.bf16.mxu0 %v407
        %1637 = vmatpush1.bf16.msra.mxu0 %v406
        %1638 = vmatprep.subr.bf16.mxu0 %v437
        %1639 = vmatpush2.bf16.msra.mxu0 %v436
        %1640 = vmatprep.subr.bf16.mxu0 %v435
        %1641 = vmatpush2.bf16.msra.mxu0 %v434
        %1642 = vmatprep.subr.bf16.mxu0 %v433
        %1643 = vmatpush2.bf16.msra.mxu0 %v432
        %1644 = vmatprep.subr.bf16.mxu0 %v431
        %1645 = vmatpush2.bf16.msra.mxu0 %v430
        %1646 = vmatprep.subr.bf16.mxu0 %v429
        %1647 = vmatpush2.bf16.msra.mxu0 %v428
        %1648 = vmatprep.subr.bf16.mxu0 %v427
        %1649 = vmatpush2.bf16.msra.mxu0 %v426
        %1650 = vmatprep.subr.bf16.mxu0 %v425
        %1651 = vmatpush2.bf16.msra.mxu0 %v424
        %1652 = vmatprep.subr.bf16.mxu0 %v423
        %1653 = vmatpush2.bf16.msra.mxu0 %v422
        %1654 = vmatprep.mubr.bf16.mxu0 %v1367
        %1655 = vmatmul.mubr.bf16.gmra.mxu0 %v1366
        %v1656 = vpop.f32.mrf.mxu0
        %v1657 = vadd.f32 %v665, %v1656
        %v1658 = vpop.f32.mrf.mxu0
        %v1659 = vadd.f32 %v665, %v1658
        %v1660 = vpop.f32.mrf.mxu0
        %v1661 = vadd.f32 %v670, %v1660
        %v1662 = vpop.f32.mrf.mxu0
        %v1663 = vadd.f32 %v670, %v1662
        %1664 = vmatprep.mubr.bf16.mxu0 %v1371
        %1665 = vmatmul.mubr.bf16.gmra.mxu0 %v1370
        %v1666 = vpop.f32.mrf.mxu0
        %v1667 = vadd.f32 %v675, %v1666
        %v1668 = vpop.f32.mrf.mxu0
        %v1669 = vadd.f32 %v675, %v1668
        %v1670 = vpop.f32.mrf.mxu0
        %v1671 = vadd.f32 %v680, %v1670
        %v1672 = vpop.f32.mrf.mxu0
        %v1673 = vadd.f32 %v680, %v1672
        %1674 = vmatprep.mubr.bf16.mxu0 %v1375
        %1675 = vmatmul.mubr.bf16.gmra.mxu0 %v1374
        %v1676 = vpop.f32.mrf.mxu0
        %v1677 = vadd.f32 %v685, %v1676
        %v1678 = vpop.f32.mrf.mxu0
        %v1679 = vadd.f32 %v685, %v1678
        %v1680 = vpop.f32.mrf.mxu0
        %v1681 = vadd.f32 %v690, %v1680
        %v1682 = vpop.f32.mrf.mxu0
        %v1683 = vadd.f32 %v690, %v1682
        %1684 = vmatprep.mubr.bf16.mxu0 %v1379
        %1685 = vmatmul.mubr.bf16.gmra.mxu0 %v1378
        %v1686 = vpop.f32.mrf.mxu0
        %v1687 = vadd.f32 %v695, %v1686
        %v1688 = vpop.f32.mrf.mxu0
        %v1689 = vadd.f32 %v695, %v1688
        %v1690 = vpop.f32.mrf.mxu0
        %v1691 = vadd.f32 %v700, %v1690
        %v1692 = vpop.f32.mrf.mxu0
        %v1693 = vadd.f32 %v700, %v1692
        %1694 = vmatprep.mubr.bf16.mxu0 %v1383
        %1695 = vmatmul.mubr.bf16.gmra.mxu0 %v1382
        %v1696 = vpop.f32.mrf.mxu0
        %v1697 = vadd.f32 %v705, %v1696
        %v1698 = vpop.f32.mrf.mxu0
        %v1699 = vadd.f32 %v705, %v1698
        %v1700 = vpop.f32.mrf.mxu0
        %v1701 = vadd.f32 %v710, %v1700
        %v1702 = vpop.f32.mrf.mxu0
        %v1703 = vadd.f32 %v710, %v1702
        %1704 = vmatprep.mubr.bf16.mxu0 %v1387
        %1705 = vmatmul.mubr.bf16.gmra.mxu0 %v1386
        %v1706 = vpop.f32.mrf.mxu0
        %v1707 = vadd.f32 %v715, %v1706
        %v1708 = vpop.f32.mrf.mxu0
        %v1709 = vadd.f32 %v715, %v1708
        %v1710 = vpop.f32.mrf.mxu0
        %v1711 = vadd.f32 %v720, %v1710
        %v1712 = vpop.f32.mrf.mxu0
        %v1713 = vadd.f32 %v720, %v1712
        %1714 = vmatprep.mubr.bf16.mxu0 %v1391
        %1715 = vmatmul.mubr.bf16.gmra.mxu0 %v1390
        %v1716 = vpop.f32.mrf.mxu0
        %v1717 = vadd.f32 %v725, %v1716
        %v1718 = vpop.f32.mrf.mxu0
        %v1719 = vadd.f32 %v725, %v1718
        %v1720 = vpop.f32.mrf.mxu0
        %v1721 = vadd.f32 %v730, %v1720
        %v1722 = vpop.f32.mrf.mxu0
        %v1723 = vadd.f32 %v730, %v1722
        %1724 = vmatprep.mubr.bf16.mxu0 %v1395
        %1725 = vmatmul.mubr.bf16.gmra.mxu0 %v1394
        %v1726 = vpop.f32.mrf.mxu0
        %v1727 = vadd.f32 %v735, %v1726
        %v1728 = vpop.f32.mrf.mxu0
        %v1729 = vadd.f32 %v735, %v1728
        %v1730 = vpop.f32.mrf.mxu0
        %v1731 = vadd.f32 %v740, %v1730
        %v1732 = vpop.f32.mrf.mxu0
        %v1733 = vadd.f32 %v740, %v1732
        %1734 = vmatprep.mubr.bf16.mxu0 %v1399
        %1735 = vmatmul.mubr.bf16.gmra.mxu0 %v1398
        %v1736 = vpop.f32.mrf.mxu0
        %v1737 = vadd.f32 %v745, %v1736
        %v1738 = vpop.f32.mrf.mxu0
        %v1739 = vadd.f32 %v745, %v1738
        %v1740 = vpop.f32.mrf.mxu0
        %v1741 = vadd.f32 %v750, %v1740
        %v1742 = vpop.f32.mrf.mxu0
        %v1743 = vadd.f32 %v750, %v1742
        %1744 = vmatprep.mubr.bf16.mxu0 %v1403
        %1745 = vmatmul.mubr.bf16.gmra.mxu0 %v1402
        %v1746 = vpop.f32.mrf.mxu0
        %v1747 = vadd.f32 %v755, %v1746
        %v1748 = vpop.f32.mrf.mxu0
        %v1749 = vadd.f32 %v755, %v1748
        %v1750 = vpop.f32.mrf.mxu0
        %v1751 = vadd.f32 %v760, %v1750
        %v1752 = vpop.f32.mrf.mxu0
        %v1753 = vadd.f32 %v760, %v1752
        %1754 = vmatprep.mubr.bf16.mxu0 %v1407
        %1755 = vmatmul.mubr.bf16.gmra.mxu0 %v1406
        %v1756 = vpop.f32.mrf.mxu0
        %v1757 = vadd.f32 %v765, %v1756
        %v1758 = vpop.f32.mrf.mxu0
        %v1759 = vadd.f32 %v765, %v1758
        %v1760 = vpop.f32.mrf.mxu0
        %v1761 = vadd.f32 %v770, %v1760
        %v1762 = vpop.f32.mrf.mxu0
        %v1763 = vadd.f32 %v770, %v1762
        %1764 = vmatprep.mubr.bf16.mxu0 %v1411
        %1765 = vmatmul.mubr.bf16.gmra.mxu0 %v1410
        %v1766 = vpop.f32.mrf.mxu0
        %v1767 = vadd.f32 %v775, %v1766
        %v1768 = vpop.f32.mrf.mxu0
        %v1769 = vadd.f32 %v775, %v1768
        %v1770 = vpop.f32.mrf.mxu0
        %v1771 = vadd.f32 %v780, %v1770
        %v1772 = vpop.f32.mrf.mxu0
        %v1773 = vadd.f32 %v780, %v1772
        %1774 = vmatprep.mubr.bf16.mxu0 %v1415
        %1775 = vmatmul.mubr.bf16.gmra.mxu0 %v1414
        %v1776 = vpop.f32.mrf.mxu0
        %v1777 = vadd.f32 %v785, %v1776
        %v1778 = vpop.f32.mrf.mxu0
        %v1779 = vadd.f32 %v785, %v1778
        %v1780 = vpop.f32.mrf.mxu0
        %v1781 = vadd.f32 %v790, %v1780
        %v1782 = vpop.f32.mrf.mxu0
        %v1783 = vadd.f32 %v790, %v1782
        %1784 = vmatprep.mubr.bf16.mxu0 %v1419
        %1785 = vmatmul.mubr.bf16.gmra.mxu0 %v1418
        %v1786 = vpop.f32.mrf.mxu0
        %v1787 = vadd.f32 %v795, %v1786
        %v1788 = vpop.f32.mrf.mxu0
        %v1789 = vadd.f32 %v795, %v1788
        %v1790 = vpop.f32.mrf.mxu0
        %v1791 = vadd.f32 %v800, %v1790
        %v1792 = vpop.f32.mrf.mxu0
        %v1793 = vadd.f32 %v800, %v1792
        %1794 = vmatprep.mubr.bf16.mxu0 %v1423
        %1795 = vmatmul.mubr.bf16.gmra.mxu0 %v1422
        %v1796 = vpop.f32.mrf.mxu0
        %v1797 = vadd.f32 %v805, %v1796
        %v1798 = vpop.f32.mrf.mxu0
        %v1799 = vadd.f32 %v805, %v1798
        %v1800 = vpop.f32.mrf.mxu0
        %v1801 = vadd.f32 %v810, %v1800
        %v1802 = vpop.f32.mrf.mxu0
        %v1803 = vadd.f32 %v810, %v1802
        %1804 = vmatprep.mubr.bf16.mxu0 %v1427
        %1805 = vmatmul.mubr.bf16.gmra.mxu0 %v1426
        %v1806 = vpop.f32.mrf.mxu0
        %v1807 = vadd.f32 %v815, %v1806
        %v1808 = vpop.f32.mrf.mxu0
        %v1809 = vadd.f32 %v815, %v1808
        %v1810 = vpop.f32.mrf.mxu0
        %v1811 = vadd.f32 %v820, %v1810
        %v1812 = vpop.f32.mrf.mxu0
        %v1813 = vadd.f32 %v820, %v1812
        %1814 = vmatprep.mubr.bf16.mxu0 %v1431
        %1815 = vmatmul.mubr.bf16.gmra.mxu0 %v1430
        %v1816 = vpop.f32.mrf.mxu0
        %v1817 = vadd.f32 %v825, %v1816
        %v1818 = vpop.f32.mrf.mxu0
        %v1819 = vadd.f32 %v825, %v1818
        %v1820 = vpop.f32.mrf.mxu0
        %v1821 = vadd.f32 %v830, %v1820
        %v1822 = vpop.f32.mrf.mxu0
        %v1823 = vadd.f32 %v830, %v1822
        %1824 = vmatprep.mubr.bf16.mxu0 %v1435
        %1825 = vmatmul.mubr.bf16.gmra.mxu0 %v1434
        %v1826 = vpop.f32.mrf.mxu0
        %v1827 = vadd.f32 %v835, %v1826
        %v1828 = vpop.f32.mrf.mxu0
        %v1829 = vadd.f32 %v835, %v1828
        %v1830 = vpop.f32.mrf.mxu0
        %v1831 = vadd.f32 %v840, %v1830
        %v1832 = vpop.f32.mrf.mxu0
        %v1833 = vadd.f32 %v840, %v1832
        %1834 = vmatprep.mubr.bf16.mxu0 %v1439
        %1835 = vmatmul.mubr.bf16.gmra.mxu0 %v1438
        %v1836 = vpop.f32.mrf.mxu0
        %v1837 = vadd.f32 %v845, %v1836
        %v1838 = vpop.f32.mrf.mxu0
        %v1839 = vadd.f32 %v845, %v1838
        %v1840 = vpop.f32.mrf.mxu0
        %v1841 = vadd.f32 %v850, %v1840
        %v1842 = vpop.f32.mrf.mxu0
        %v1843 = vadd.f32 %v850, %v1842
        %1844 = vmatprep.mubr.bf16.mxu0 %v1443
        %1845 = vmatmul.mubr.bf16.gmra.mxu0 %v1442
        %v1846 = vpop.f32.mrf.mxu0
        %v1847 = vadd.f32 %v855, %v1846
        %v1848 = vpop.f32.mrf.mxu0
        %v1849 = vadd.f32 %v855, %v1848
        %v1850 = vpop.f32.mrf.mxu0
        %v1851 = vadd.f32 %v860, %v1850
        %v1852 = vpop.f32.mrf.mxu0
        %v1853 = vadd.f32 %v860, %v1852
        %1854 = vmatprep.mubr.bf16.mxu0 %v1447
        %1855 = vmatmul.mubr.bf16.gmra.mxu0 %v1446
        %v1856 = vpop.f32.mrf.mxu0
        %v1857 = vadd.f32 %v865, %v1856
        %v1858 = vpop.f32.mrf.mxu0
        %v1859 = vadd.f32 %v865, %v1858
        %v1860 = vpop.f32.mrf.mxu0
        %v1861 = vadd.f32 %v870, %v1860
        %v1862 = vpop.f32.mrf.mxu0
        %v1863 = vadd.f32 %v870, %v1862
        %1864 = vmatprep.mubr.bf16.mxu0 %v1451
        %1865 = vmatmul.mubr.bf16.gmra.mxu0 %v1450
        %v1866 = vpop.f32.mrf.mxu0
        %v1867 = vadd.f32 %v875, %v1866
        %v1868 = vpop.f32.mrf.mxu0
        %v1869 = vadd.f32 %v875, %v1868
        %v1870 = vpop.f32.mrf.mxu0
        %v1871 = vadd.f32 %v880, %v1870
        %v1872 = vpop.f32.mrf.mxu0
        %v1873 = vadd.f32 %v880, %v1872
        %1874 = vmatprep.mubr.bf16.mxu0 %v1455
        %1875 = vmatmul.mubr.bf16.gmra.mxu0 %v1454
        %v1876 = vpop.f32.mrf.mxu0
        %v1877 = vadd.f32 %v885, %v1876
        %v1878 = vpop.f32.mrf.mxu0
        %v1879 = vadd.f32 %v885, %v1878
        %v1880 = vpop.f32.mrf.mxu0
        %v1881 = vadd.f32 %v890, %v1880
        %v1882 = vpop.f32.mrf.mxu0
        %v1883 = vadd.f32 %v890, %v1882
        %1884 = vmatprep.mubr.bf16.mxu0 %v1459
        %1885 = vmatmul.mubr.bf16.gmra.mxu0 %v1458
        %v1886 = vpop.f32.mrf.mxu0
        %v1887 = vadd.f32 %v895, %v1886
        %v1888 = vpop.f32.mrf.mxu0
        %v1889 = vadd.f32 %v895, %v1888
        %v1890 = vpop.f32.mrf.mxu0
        %v1891 = vadd.f32 %v900, %v1890
        %v1892 = vpop.f32.mrf.mxu0
        %v1893 = vadd.f32 %v900, %v1892
        %1894 = vmatprep.mubr.bf16.mxu0 %v1463
        %1895 = vmatmul.mubr.bf16.gmra.mxu0 %v1462
        %v1896 = vpop.f32.mrf.mxu0
        %v1897 = vadd.f32 %v905, %v1896
        %v1898 = vpop.f32.mrf.mxu0
        %v1899 = vadd.f32 %v905, %v1898
        %v1900 = vpop.f32.mrf.mxu0
        %v1901 = vadd.f32 %v910, %v1900
        %v1902 = vpop.f32.mrf.mxu0
        %v1903 = vadd.f32 %v910, %v1902
        %1904 = vmatprep.mubr.bf16.mxu0 %v1467
        %1905 = vmatmul.mubr.bf16.gmra.mxu0 %v1466
        %v1906 = vpop.f32.mrf.mxu0
        %v1907 = vadd.f32 %v915, %v1906
        %v1908 = vpop.f32.mrf.mxu0
        %v1909 = vadd.f32 %v915, %v1908
        %v1910 = vpop.f32.mrf.mxu0
        %v1911 = vadd.f32 %v920, %v1910
        %v1912 = vpop.f32.mrf.mxu0
        %v1913 = vadd.f32 %v920, %v1912
        %1914 = vmatprep.mubr.bf16.mxu0 %v1471
        %1915 = vmatmul.mubr.bf16.gmra.mxu0 %v1470
        %v1916 = vpop.f32.mrf.mxu0
        %v1917 = vadd.f32 %v925, %v1916
        %v1918 = vpop.f32.mrf.mxu0
        %v1919 = vadd.f32 %v925, %v1918
        %v1920 = vpop.f32.mrf.mxu0
        %v1921 = vadd.f32 %v930, %v1920
        %v1922 = vpop.f32.mrf.mxu0
        %v1923 = vadd.f32 %v930, %v1922
        %1924 = vmatprep.mubr.bf16.mxu0 %v1475
        %1925 = vmatmul.mubr.bf16.gmra.mxu0 %v1474
        %v1926 = vpop.f32.mrf.mxu0
        %v1927 = vadd.f32 %v935, %v1926
        %v1928 = vpop.f32.mrf.mxu0
        %v1929 = vadd.f32 %v935, %v1928
        %v1930 = vpop.f32.mrf.mxu0
        %v1931 = vadd.f32 %v940, %v1930
        %v1932 = vpop.f32.mrf.mxu0
        %v1933 = vadd.f32 %v940, %v1932
        %1934 = vmatprep.mubr.bf16.mxu0 %v1479
        %1935 = vmatmul.mubr.bf16.gmra.mxu0 %v1478
        %v1936 = vpop.f32.mrf.mxu0
        %v1937 = vadd.f32 %v945, %v1936
        %v1938 = vpop.f32.mrf.mxu0
        %v1939 = vadd.f32 %v945, %v1938
        %v1940 = vpop.f32.mrf.mxu0
        %v1941 = vadd.f32 %v950, %v1940
        %v1942 = vpop.f32.mrf.mxu0
        %v1943 = vadd.f32 %v950, %v1942
        %1944 = vmatprep.mubr.bf16.mxu0 %v1483
        %1945 = vmatmul.mubr.bf16.gmra.mxu0 %v1482
        %v1946 = vpop.f32.mrf.mxu0
        %v1947 = vadd.f32 %v955, %v1946
        %v1948 = vpop.f32.mrf.mxu0
        %v1949 = vadd.f32 %v955, %v1948
        %v1950 = vpop.f32.mrf.mxu0
        %v1951 = vadd.f32 %v960, %v1950
        %v1952 = vpop.f32.mrf.mxu0
        %v1953 = vadd.f32 %v960, %v1952
        %1954 = vmatprep.mubr.bf16.mxu0 %v1487
        %1955 = vmatmul.mubr.bf16.gmra.mxu0 %v1486
        %v1956 = vpop.f32.mrf.mxu0
        %v1957 = vadd.f32 %v965, %v1956
        %v1958 = vpop.f32.mrf.mxu0
        %v1959 = vadd.f32 %v965, %v1958
        %v1960 = vpop.f32.mrf.mxu0
        %v1961 = vadd.f32 %v970, %v1960
        %v1962 = vpop.f32.mrf.mxu0
        %v1963 = vadd.f32 %v970, %v1962
        %1964 = vmatprep.mubr.bf16.mxu0 %v1491
        %1965 = vmatmul.mubr.bf16.gmra.mxu0 %v1490
        %v1966 = vpop.f32.mrf.mxu0
        %v1967 = vadd.f32 %v975, %v1966
        %v1968 = vpop.f32.mrf.mxu0
        %v1969 = vadd.f32 %v975, %v1968
        %v1970 = vpop.f32.mrf.mxu0
        %v1971 = vadd.f32 %v980, %v1970
        %v1972 = vpop.f32.mrf.mxu0
        %v1973 = vadd.f32 %v980, %v1972
        %1974 = vdwg.mxu0
        %1975 = vmatprep.subr.bf16.mxu0 %v453
        %1976 = vmatpush1.bf16.msra.mxu0 %v452
        %1977 = vmatprep.subr.bf16.mxu0 %v451
        %1978 = vmatpush1.bf16.msra.mxu0 %v450
        %1979 = vmatprep.subr.bf16.mxu0 %v449
        %1980 = vmatpush1.bf16.msra.mxu0 %v448
        %1981 = vmatprep.subr.bf16.mxu0 %v447
        %1982 = vmatpush1.bf16.msra.mxu0 %v446
        %1983 = vmatprep.subr.bf16.mxu0 %v445
        %1984 = vmatpush1.bf16.msra.mxu0 %v444
        %1985 = vmatprep.subr.bf16.mxu0 %v443
        %1986 = vmatpush1.bf16.msra.mxu0 %v442
        %1987 = vmatprep.subr.bf16.mxu0 %v441
        %1988 = vmatpush1.bf16.msra.mxu0 %v440
        %1989 = vmatprep.subr.bf16.mxu0 %v439
        %1990 = vmatpush1.bf16.msra.mxu0 %v438
        %1991 = vmatprep.subr.bf16.mxu0 %v469
        %1992 = vmatpush2.bf16.msra.mxu0 %v468
        %1993 = vmatprep.subr.bf16.mxu0 %v467
        %1994 = vmatpush2.bf16.msra.mxu0 %v466
        %1995 = vmatprep.subr.bf16.mxu0 %v465
        %1996 = vmatpush2.bf16.msra.mxu0 %v464
        %1997 = vmatprep.subr.bf16.mxu0 %v463
        %1998 = vmatpush2.bf16.msra.mxu0 %v462
        %1999 = vmatprep.subr.bf16.mxu0 %v461
        %2000 = vmatpush2.bf16.msra.mxu0 %v460
        %2001 = vmatprep.subr.bf16.mxu0 %v459
        %2002 = vmatpush2.bf16.msra.mxu0 %v458
        %2003 = vmatprep.subr.bf16.mxu0 %v457
        %2004 = vmatpush2.bf16.msra.mxu0 %v456
        %2005 = vmatprep.subr.bf16.mxu0 %v455
        %2006 = vmatpush2.bf16.msra.mxu0 %v454
        %2007 = vmatprep.mubr.bf16.mxu0 %v1369
        %2008 = vmatmul.mubr.bf16.gmra.mxu0 %v1368
        %v2009 = vpop.f32.mrf.mxu0
        %v2010 = vadd.f32 %v1657, %v2009
        %v2011 = vpop.f32.mrf.mxu0
        %v2012 = vadd.f32 %v1659, %v2011
        %v2013 = vpop.f32.mrf.mxu0
        %v2014 = vadd.f32 %v1661, %v2013
        %v2015 = vpop.f32.mrf.mxu0
        %v2016 = vadd.f32 %v1663, %v2015
        %2017 = vmatprep.mubr.bf16.mxu0 %v1373
        %2018 = vmatmul.mubr.bf16.gmra.mxu0 %v1372
        %v2019 = vpop.f32.mrf.mxu0
        %v2020 = vadd.f32 %v1667, %v2019
        %v2021 = vpop.f32.mrf.mxu0
        %v2022 = vadd.f32 %v1669, %v2021
        %v2023 = vpop.f32.mrf.mxu0
        %v2024 = vadd.f32 %v1671, %v2023
        %v2025 = vpop.f32.mrf.mxu0
        %v2026 = vadd.f32 %v1673, %v2025
        %2027 = vmatprep.mubr.bf16.mxu0 %v1377
        %2028 = vmatmul.mubr.bf16.gmra.mxu0 %v1376
        %v2029 = vpop.f32.mrf.mxu0
        %v2030 = vadd.f32 %v1677, %v2029
        %v2031 = vpop.f32.mrf.mxu0
        %v2032 = vadd.f32 %v1679, %v2031
        %v2033 = vpop.f32.mrf.mxu0
        %v2034 = vadd.f32 %v1681, %v2033
        %v2035 = vpop.f32.mrf.mxu0
        %v2036 = vadd.f32 %v1683, %v2035
        %2037 = vmatprep.mubr.bf16.mxu0 %v1381
        %2038 = vmatmul.mubr.bf16.gmra.mxu0 %v1380
        %v2039 = vpop.f32.mrf.mxu0
        %v2040 = vadd.f32 %v1687, %v2039
        %v2041 = vpop.f32.mrf.mxu0
        %v2042 = vadd.f32 %v1689, %v2041
        %v2043 = vpop.f32.mrf.mxu0
        %v2044 = vadd.f32 %v1691, %v2043
        %v2045 = vpop.f32.mrf.mxu0
        %v2046 = vadd.f32 %v1693, %v2045
        %2047 = vmatprep.mubr.bf16.mxu0 %v1385
        %2048 = vmatmul.mubr.bf16.gmra.mxu0 %v1384
        %v2049 = vpop.f32.mrf.mxu0
        %v2050 = vadd.f32 %v1697, %v2049
        %v2051 = vpop.f32.mrf.mxu0
        %v2052 = vadd.f32 %v1699, %v2051
        %v2053 = vpop.f32.mrf.mxu0
        %v2054 = vadd.f32 %v1701, %v2053
        %v2055 = vpop.f32.mrf.mxu0
        %v2056 = vadd.f32 %v1703, %v2055
        %2057 = vmatprep.mubr.bf16.mxu0 %v1389
        %2058 = vmatmul.mubr.bf16.gmra.mxu0 %v1388
        %v2059 = vpop.f32.mrf.mxu0
        %v2060 = vadd.f32 %v1707, %v2059
        %v2061 = vpop.f32.mrf.mxu0
        %v2062 = vadd.f32 %v1709, %v2061
        %v2063 = vpop.f32.mrf.mxu0
        %v2064 = vadd.f32 %v1711, %v2063
        %v2065 = vpop.f32.mrf.mxu0
        %v2066 = vadd.f32 %v1713, %v2065
        %2067 = vmatprep.mubr.bf16.mxu0 %v1393
        %2068 = vmatmul.mubr.bf16.gmra.mxu0 %v1392
        %v2069 = vpop.f32.mrf.mxu0
        %v2070 = vadd.f32 %v1717, %v2069
        %v2071 = vpop.f32.mrf.mxu0
        %v2072 = vadd.f32 %v1719, %v2071
        %v2073 = vpop.f32.mrf.mxu0
        %v2074 = vadd.f32 %v1721, %v2073
        %v2075 = vpop.f32.mrf.mxu0
        %v2076 = vadd.f32 %v1723, %v2075
        %2077 = vmatprep.mubr.bf16.mxu0 %v1397
        %2078 = vmatmul.mubr.bf16.gmra.mxu0 %v1396
        %v2079 = vpop.f32.mrf.mxu0
        %v2080 = vadd.f32 %v1727, %v2079
        %v2081 = vpop.f32.mrf.mxu0
        %v2082 = vadd.f32 %v1729, %v2081
        %v2083 = vpop.f32.mrf.mxu0
        %v2084 = vadd.f32 %v1731, %v2083
        %v2085 = vpop.f32.mrf.mxu0
        %v2086 = vadd.f32 %v1733, %v2085
        %2087 = vmatprep.mubr.bf16.mxu0 %v1401
        %2088 = vmatmul.mubr.bf16.gmra.mxu0 %v1400
        %v2089 = vpop.f32.mrf.mxu0
        %v2090 = vadd.f32 %v1737, %v2089
        %v2091 = vpop.f32.mrf.mxu0
        %v2092 = vadd.f32 %v1739, %v2091
        %v2093 = vpop.f32.mrf.mxu0
        %v2094 = vadd.f32 %v1741, %v2093
        %v2095 = vpop.f32.mrf.mxu0
        %v2096 = vadd.f32 %v1743, %v2095
        %2097 = vmatprep.mubr.bf16.mxu0 %v1405
        %2098 = vmatmul.mubr.bf16.gmra.mxu0 %v1404
        %v2099 = vpop.f32.mrf.mxu0
        %v2100 = vadd.f32 %v1747, %v2099
        %v2101 = vpop.f32.mrf.mxu0
        %v2102 = vadd.f32 %v1749, %v2101
        %v2103 = vpop.f32.mrf.mxu0
        %v2104 = vadd.f32 %v1751, %v2103
        %v2105 = vpop.f32.mrf.mxu0
        %v2106 = vadd.f32 %v1753, %v2105
        %2107 = vmatprep.mubr.bf16.mxu0 %v1409
        %2108 = vmatmul.mubr.bf16.gmra.mxu0 %v1408
        %v2109 = vpop.f32.mrf.mxu0
        %v2110 = vadd.f32 %v1757, %v2109
        %v2111 = vpop.f32.mrf.mxu0
        %v2112 = vadd.f32 %v1759, %v2111
        %v2113 = vpop.f32.mrf.mxu0
        %v2114 = vadd.f32 %v1761, %v2113
        %v2115 = vpop.f32.mrf.mxu0
        %v2116 = vadd.f32 %v1763, %v2115
        %2117 = vmatprep.mubr.bf16.mxu0 %v1413
        %2118 = vmatmul.mubr.bf16.gmra.mxu0 %v1412
        %v2119 = vpop.f32.mrf.mxu0
        %v2120 = vadd.f32 %v1767, %v2119
        %v2121 = vpop.f32.mrf.mxu0
        %v2122 = vadd.f32 %v1769, %v2121
        %v2123 = vpop.f32.mrf.mxu0
        %v2124 = vadd.f32 %v1771, %v2123
        %v2125 = vpop.f32.mrf.mxu0
        %v2126 = vadd.f32 %v1773, %v2125
        %2127 = vmatprep.mubr.bf16.mxu0 %v1417
        %2128 = vmatmul.mubr.bf16.gmra.mxu0 %v1416
        %v2129 = vpop.f32.mrf.mxu0
        %v2130 = vadd.f32 %v1777, %v2129
        %v2131 = vpop.f32.mrf.mxu0
        %v2132 = vadd.f32 %v1779, %v2131
        %v2133 = vpop.f32.mrf.mxu0
        %v2134 = vadd.f32 %v1781, %v2133
        %v2135 = vpop.f32.mrf.mxu0
        %v2136 = vadd.f32 %v1783, %v2135
        %2137 = vmatprep.mubr.bf16.mxu0 %v1421
        %2138 = vmatmul.mubr.bf16.gmra.mxu0 %v1420
        %v2139 = vpop.f32.mrf.mxu0
        %v2140 = vadd.f32 %v1787, %v2139
        %v2141 = vpop.f32.mrf.mxu0
        %v2142 = vadd.f32 %v1789, %v2141
        %v2143 = vpop.f32.mrf.mxu0
        %v2144 = vadd.f32 %v1791, %v2143
        %v2145 = vpop.f32.mrf.mxu0
        %v2146 = vadd.f32 %v1793, %v2145
        %2147 = vmatprep.mubr.bf16.mxu0 %v1425
        %2148 = vmatmul.mubr.bf16.gmra.mxu0 %v1424
        %v2149 = vpop.f32.mrf.mxu0
        %v2150 = vadd.f32 %v1797, %v2149
        %v2151 = vpop.f32.mrf.mxu0
        %v2152 = vadd.f32 %v1799, %v2151
        %v2153 = vpop.f32.mrf.mxu0
        %v2154 = vadd.f32 %v1801, %v2153
        %v2155 = vpop.f32.mrf.mxu0
        %v2156 = vadd.f32 %v1803, %v2155
        %2157 = vmatprep.mubr.bf16.mxu0 %v1429
        %2158 = vmatmul.mubr.bf16.gmra.mxu0 %v1428
        %v2159 = vpop.f32.mrf.mxu0
        %v2160 = vadd.f32 %v1807, %v2159
        %v2161 = vpop.f32.mrf.mxu0
        %v2162 = vadd.f32 %v1809, %v2161
        %v2163 = vpop.f32.mrf.mxu0
        %v2164 = vadd.f32 %v1811, %v2163
        %v2165 = vpop.f32.mrf.mxu0
        %v2166 = vadd.f32 %v1813, %v2165
        %2167 = vmatprep.mubr.bf16.mxu0 %v1433
        %2168 = vmatmul.mubr.bf16.gmra.mxu0 %v1432
        %v2169 = vpop.f32.mrf.mxu0
        %v2170 = vadd.f32 %v1817, %v2169
        %v2171 = vpop.f32.mrf.mxu0
        %v2172 = vadd.f32 %v1819, %v2171
        %v2173 = vpop.f32.mrf.mxu0
        %v2174 = vadd.f32 %v1821, %v2173
        %v2175 = vpop.f32.mrf.mxu0
        %v2176 = vadd.f32 %v1823, %v2175
        %2177 = vmatprep.mubr.bf16.mxu0 %v1437
        %2178 = vmatmul.mubr.bf16.gmra.mxu0 %v1436
        %v2179 = vpop.f32.mrf.mxu0
        %v2180 = vadd.f32 %v1827, %v2179
        %v2181 = vpop.f32.mrf.mxu0
        %v2182 = vadd.f32 %v1829, %v2181
        %v2183 = vpop.f32.mrf.mxu0
        %v2184 = vadd.f32 %v1831, %v2183
        %v2185 = vpop.f32.mrf.mxu0
        %v2186 = vadd.f32 %v1833, %v2185
        %2187 = vmatprep.mubr.bf16.mxu0 %v1441
        %2188 = vmatmul.mubr.bf16.gmra.mxu0 %v1440
        %v2189 = vpop.f32.mrf.mxu0
        %v2190 = vadd.f32 %v1837, %v2189
        %v2191 = vpop.f32.mrf.mxu0
        %v2192 = vadd.f32 %v1839, %v2191
        %v2193 = vpop.f32.mrf.mxu0
        %v2194 = vadd.f32 %v1841, %v2193
        %v2195 = vpop.f32.mrf.mxu0
        %v2196 = vadd.f32 %v1843, %v2195
        %2197 = vmatprep.mubr.bf16.mxu0 %v1445
        %2198 = vmatmul.mubr.bf16.gmra.mxu0 %v1444
        %v2199 = vpop.f32.mrf.mxu0
        %v2200 = vadd.f32 %v1847, %v2199
        %v2201 = vpop.f32.mrf.mxu0
        %v2202 = vadd.f32 %v1849, %v2201
        %v2203 = vpop.f32.mrf.mxu0
        %v2204 = vadd.f32 %v1851, %v2203
        %v2205 = vpop.f32.mrf.mxu0
        %v2206 = vadd.f32 %v1853, %v2205
        %2207 = vmatprep.mubr.bf16.mxu0 %v1449
        %2208 = vmatmul.mubr.bf16.gmra.mxu0 %v1448
        %v2209 = vpop.f32.mrf.mxu0
        %v2210 = vadd.f32 %v1857, %v2209
        %v2211 = vpop.f32.mrf.mxu0
        %v2212 = vadd.f32 %v1859, %v2211
        %v2213 = vpop.f32.mrf.mxu0
        %v2214 = vadd.f32 %v1861, %v2213
        %v2215 = vpop.f32.mrf.mxu0
        %v2216 = vadd.f32 %v1863, %v2215
        %2217 = vmatprep.mubr.bf16.mxu0 %v1453
        %2218 = vmatmul.mubr.bf16.gmra.mxu0 %v1452
        %v2219 = vpop.f32.mrf.mxu0
        %v2220 = vadd.f32 %v1867, %v2219
        %v2221 = vpop.f32.mrf.mxu0
        %v2222 = vadd.f32 %v1869, %v2221
        %v2223 = vpop.f32.mrf.mxu0
        %v2224 = vadd.f32 %v1871, %v2223
        %v2225 = vpop.f32.mrf.mxu0
        %v2226 = vadd.f32 %v1873, %v2225
        %2227 = vmatprep.mubr.bf16.mxu0 %v1457
        %2228 = vmatmul.mubr.bf16.gmra.mxu0 %v1456
        %v2229 = vpop.f32.mrf.mxu0
        %v2230 = vadd.f32 %v1877, %v2229
        %v2231 = vpop.f32.mrf.mxu0
        %v2232 = vadd.f32 %v1879, %v2231
        %v2233 = vpop.f32.mrf.mxu0
        %v2234 = vadd.f32 %v1881, %v2233
        %v2235 = vpop.f32.mrf.mxu0
        %v2236 = vadd.f32 %v1883, %v2235
        %2237 = vmatprep.mubr.bf16.mxu0 %v1461
        %2238 = vmatmul.mubr.bf16.gmra.mxu0 %v1460
        %v2239 = vpop.f32.mrf.mxu0
        %v2240 = vadd.f32 %v1887, %v2239
        %v2241 = vpop.f32.mrf.mxu0
        %v2242 = vadd.f32 %v1889, %v2241
        %v2243 = vpop.f32.mrf.mxu0
        %v2244 = vadd.f32 %v1891, %v2243
        %v2245 = vpop.f32.mrf.mxu0
        %v2246 = vadd.f32 %v1893, %v2245
        %2247 = vmatprep.mubr.bf16.mxu0 %v1465
        %2248 = vmatmul.mubr.bf16.gmra.mxu0 %v1464
        %v2249 = vpop.f32.mrf.mxu0
        %v2250 = vadd.f32 %v1897, %v2249
        %v2251 = vpop.f32.mrf.mxu0
        %v2252 = vadd.f32 %v1899, %v2251
        %v2253 = vpop.f32.mrf.mxu0
        %v2254 = vadd.f32 %v1901, %v2253
        %v2255 = vpop.f32.mrf.mxu0
        %v2256 = vadd.f32 %v1903, %v2255
        %2257 = vmatprep.mubr.bf16.mxu0 %v1469
        %2258 = vmatmul.mubr.bf16.gmra.mxu0 %v1468
        %v2259 = vpop.f32.mrf.mxu0
        %v2260 = vadd.f32 %v1907, %v2259
        %v2261 = vpop.f32.mrf.mxu0
        %v2262 = vadd.f32 %v1909, %v2261
        %v2263 = vpop.f32.mrf.mxu0
        %v2264 = vadd.f32 %v1911, %v2263
        %v2265 = vpop.f32.mrf.mxu0
        %v2266 = vadd.f32 %v1913, %v2265
        %2267 = vmatprep.mubr.bf16.mxu0 %v1473
        %2268 = vmatmul.mubr.bf16.gmra.mxu0 %v1472
        %v2269 = vpop.f32.mrf.mxu0
        %v2270 = vadd.f32 %v1917, %v2269
        %v2271 = vpop.f32.mrf.mxu0
        %v2272 = vadd.f32 %v1919, %v2271
        %v2273 = vpop.f32.mrf.mxu0
        %v2274 = vadd.f32 %v1921, %v2273
        %v2275 = vpop.f32.mrf.mxu0
        %v2276 = vadd.f32 %v1923, %v2275
        %2277 = vmatprep.mubr.bf16.mxu0 %v1477
        %2278 = vmatmul.mubr.bf16.gmra.mxu0 %v1476
        %v2279 = vpop.f32.mrf.mxu0
        %v2280 = vadd.f32 %v1927, %v2279
        %v2281 = vpop.f32.mrf.mxu0
        %v2282 = vadd.f32 %v1929, %v2281
        %v2283 = vpop.f32.mrf.mxu0
        %v2284 = vadd.f32 %v1931, %v2283
        %v2285 = vpop.f32.mrf.mxu0
        %v2286 = vadd.f32 %v1933, %v2285
        %2287 = vmatprep.mubr.bf16.mxu0 %v1481
        %2288 = vmatmul.mubr.bf16.gmra.mxu0 %v1480
        %v2289 = vpop.f32.mrf.mxu0
        %v2290 = vadd.f32 %v1937, %v2289
        %v2291 = vpop.f32.mrf.mxu0
        %v2292 = vadd.f32 %v1939, %v2291
        %v2293 = vpop.f32.mrf.mxu0
        %v2294 = vadd.f32 %v1941, %v2293
        %v2295 = vpop.f32.mrf.mxu0
        %v2296 = vadd.f32 %v1943, %v2295
        %2297 = vmatprep.mubr.bf16.mxu0 %v1485
        %2298 = vmatmul.mubr.bf16.gmra.mxu0 %v1484
        %v2299 = vpop.f32.mrf.mxu0
        %v2300 = vadd.f32 %v1947, %v2299
        %v2301 = vpop.f32.mrf.mxu0
        %v2302 = vadd.f32 %v1949, %v2301
        %v2303 = vpop.f32.mrf.mxu0
        %v2304 = vadd.f32 %v1951, %v2303
        %v2305 = vpop.f32.mrf.mxu0
        %v2306 = vadd.f32 %v1953, %v2305
        %2307 = vmatprep.mubr.bf16.mxu0 %v1489
        %2308 = vmatmul.mubr.bf16.gmra.mxu0 %v1488
        %v2309 = vpop.f32.mrf.mxu0
        %v2310 = vadd.f32 %v1957, %v2309
        %v2311 = vpop.f32.mrf.mxu0
        %v2312 = vadd.f32 %v1959, %v2311
        %v2313 = vpop.f32.mrf.mxu0
        %v2314 = vadd.f32 %v1961, %v2313
        %v2315 = vpop.f32.mrf.mxu0
        %v2316 = vadd.f32 %v1963, %v2315
        %2317 = vmatprep.mubr.bf16.mxu0 %v1493
        %2318 = vmatmul.mubr.bf16.gmra.mxu0 %v1492
        %v2319 = vpop.f32.mrf.mxu0
        %v2320 = vadd.f32 %v1967, %v2319
        %v2321 = vpop.f32.mrf.mxu0
        %v2322 = vadd.f32 %v1969, %v2321
        %v2323 = vpop.f32.mrf.mxu0
        %v2324 = vadd.f32 %v1971, %v2323
        %v2325 = vpop.f32.mrf.mxu0
        %v2326 = vadd.f32 %v1973, %v2325
        %2327 = vdwg.mxu0
        %vm2328 = vcmp.ge.f32.partialorder %v2010, 0.0
        %vm2329 = vcmp.ge.f32.partialorder %v2012, 0.0
        %vm2330 = vcmp.ge.f32.partialorder %v2014, 0.0
        %vm2331 = vcmp.ge.f32.partialorder %v2016, 0.0
        %vm2332 = vcmp.ge.f32.partialorder %v2020, 0.0
        %vm2333 = vcmp.ge.f32.partialorder %v2022, 0.0
        %vm2334 = vcmp.ge.f32.partialorder %v2024, 0.0
        %vm2335 = vcmp.ge.f32.partialorder %v2026, 0.0
        %vm2336 = vcmp.ge.f32.partialorder %v2030, 0.0
        %vm2337 = vcmp.ge.f32.partialorder %v2032, 0.0
        %vm2338 = vcmp.ge.f32.partialorder %v2034, 0.0
        %vm2339 = vcmp.ge.f32.partialorder %v2036, 0.0
        %vm2340 = vcmp.ge.f32.partialorder %v2040, 0.0
        %vm2341 = vcmp.ge.f32.partialorder %v2042, 0.0
        %vm2342 = vcmp.ge.f32.partialorder %v2044, 0.0
        %vm2343 = vcmp.ge.f32.partialorder %v2046, 0.0
        %vm2344 = vcmp.ge.f32.partialorder %v2050, 0.0
        %vm2345 = vcmp.ge.f32.partialorder %v2052, 0.0
        %vm2346 = vcmp.ge.f32.partialorder %v2054, 0.0
        %vm2347 = vcmp.ge.f32.partialorder %v2056, 0.0
        %vm2348 = vcmp.ge.f32.partialorder %v2060, 0.0
        %vm2349 = vcmp.ge.f32.partialorder %v2062, 0.0
        %vm2350 = vcmp.ge.f32.partialorder %v2064, 0.0
        %vm2351 = vcmp.ge.f32.partialorder %v2066, 0.0
        %vm2352 = vcmp.ge.f32.partialorder %v2070, 0.0
        %vm2353 = vcmp.ge.f32.partialorder %v2072, 0.0
        %vm2354 = vcmp.ge.f32.partialorder %v2074, 0.0
        %vm2355 = vcmp.ge.f32.partialorder %v2076, 0.0
        %vm2356 = vcmp.ge.f32.partialorder %v2080, 0.0
        %vm2357 = vcmp.ge.f32.partialorder %v2082, 0.0
        %vm2358 = vcmp.ge.f32.partialorder %v2084, 0.0
        %vm2359 = vcmp.ge.f32.partialorder %v2086, 0.0
        %vm2360 = vcmp.ge.f32.partialorder %v2090, 0.0
        %vm2361 = vcmp.ge.f32.partialorder %v2092, 0.0
        %vm2362 = vcmp.ge.f32.partialorder %v2094, 0.0
        %vm2363 = vcmp.ge.f32.partialorder %v2096, 0.0
        %vm2364 = vcmp.ge.f32.partialorder %v2100, 0.0
        %vm2365 = vcmp.ge.f32.partialorder %v2102, 0.0
        %vm2366 = vcmp.ge.f32.partialorder %v2104, 0.0
        %vm2367 = vcmp.ge.f32.partialorder %v2106, 0.0
        %vm2368 = vcmp.ge.f32.partialorder %v2110, 0.0
        %vm2369 = vcmp.ge.f32.partialorder %v2112, 0.0
        %vm2370 = vcmp.ge.f32.partialorder %v2114, 0.0
        %vm2371 = vcmp.ge.f32.partialorder %v2116, 0.0
        %vm2372 = vcmp.ge.f32.partialorder %v2120, 0.0
        %vm2373 = vcmp.ge.f32.partialorder %v2122, 0.0
        %vm2374 = vcmp.ge.f32.partialorder %v2124, 0.0
        %vm2375 = vcmp.ge.f32.partialorder %v2126, 0.0
        %vm2376 = vcmp.ge.f32.partialorder %v2130, 0.0
        %vm2377 = vcmp.ge.f32.partialorder %v2132, 0.0
        %vm2378 = vcmp.ge.f32.partialorder %v2134, 0.0
        %vm2379 = vcmp.ge.f32.partialorder %v2136, 0.0
        %vm2380 = vcmp.ge.f32.partialorder %v2140, 0.0
        %vm2381 = vcmp.ge.f32.partialorder %v2142, 0.0
        %vm2382 = vcmp.ge.f32.partialorder %v2144, 0.0
        %vm2383 = vcmp.ge.f32.partialorder %v2146, 0.0
        %vm2384 = vcmp.ge.f32.partialorder %v2150, 0.0
        %vm2385 = vcmp.ge.f32.partialorder %v2152, 0.0
        %vm2386 = vcmp.ge.f32.partialorder %v2154, 0.0
        %vm2387 = vcmp.ge.f32.partialorder %v2156, 0.0
        %vm2388 = vcmp.ge.f32.partialorder %v2160, 0.0
        %vm2389 = vcmp.ge.f32.partialorder %v2162, 0.0
        %vm2390 = vcmp.ge.f32.partialorder %v2164, 0.0
        %vm2391 = vcmp.ge.f32.partialorder %v2166, 0.0
        %vm2392 = vcmp.ge.f32.partialorder %v2170, 0.0
        %vm2393 = vcmp.ge.f32.partialorder %v2172, 0.0
        %vm2394 = vcmp.ge.f32.partialorder %v2174, 0.0
        %vm2395 = vcmp.ge.f32.partialorder %v2176, 0.0
        %vm2396 = vcmp.ge.f32.partialorder %v2180, 0.0
        %vm2397 = vcmp.ge.f32.partialorder %v2182, 0.0
        %vm2398 = vcmp.ge.f32.partialorder %v2184, 0.0
        %vm2399 = vcmp.ge.f32.partialorder %v2186, 0.0
        %vm2400 = vcmp.ge.f32.partialorder %v2190, 0.0
        %vm2401 = vcmp.ge.f32.partialorder %v2192, 0.0
        %vm2402 = vcmp.ge.f32.partialorder %v2194, 0.0
        %vm2403 = vcmp.ge.f32.partialorder %v2196, 0.0
        %vm2404 = vcmp.ge.f32.partialorder %v2200, 0.0
        %vm2405 = vcmp.ge.f32.partialorder %v2202, 0.0
        %vm2406 = vcmp.ge.f32.partialorder %v2204, 0.0
        %vm2407 = vcmp.ge.f32.partialorder %v2206, 0.0
        %vm2408 = vcmp.ge.f32.partialorder %v2210, 0.0
        %vm2409 = vcmp.ge.f32.partialorder %v2212, 0.0
        %vm2410 = vcmp.ge.f32.partialorder %v2214, 0.0
        %vm2411 = vcmp.ge.f32.partialorder %v2216, 0.0
        %vm2412 = vcmp.ge.f32.partialorder %v2220, 0.0
        %vm2413 = vcmp.ge.f32.partialorder %v2222, 0.0
        %vm2414 = vcmp.ge.f32.partialorder %v2224, 0.0
        %vm2415 = vcmp.ge.f32.partialorder %v2226, 0.0
        %vm2416 = vcmp.ge.f32.partialorder %v2230, 0.0
        %vm2417 = vcmp.ge.f32.partialorder %v2232, 0.0
        %vm2418 = vcmp.ge.f32.partialorder %v2234, 0.0
        %vm2419 = vcmp.ge.f32.partialorder %v2236, 0.0
        %vm2420 = vcmp.ge.f32.partialorder %v2240, 0.0
        %vm2421 = vcmp.ge.f32.partialorder %v2242, 0.0
        %vm2422 = vcmp.ge.f32.partialorder %v2244, 0.0
        %vm2423 = vcmp.ge.f32.partialorder %v2246, 0.0
        %vm2424 = vcmp.ge.f32.partialorder %v2250, 0.0
        %vm2425 = vcmp.ge.f32.partialorder %v2252, 0.0
        %vm2426 = vcmp.ge.f32.partialorder %v2254, 0.0
        %vm2427 = vcmp.ge.f32.partialorder %v2256, 0.0
        %vm2428 = vcmp.ge.f32.partialorder %v2260, 0.0
        %vm2429 = vcmp.ge.f32.partialorder %v2262, 0.0
        %vm2430 = vcmp.ge.f32.partialorder %v2264, 0.0
        %vm2431 = vcmp.ge.f32.partialorder %v2266, 0.0
        %vm2432 = vcmp.ge.f32.partialorder %v2270, 0.0
        %vm2433 = vcmp.ge.f32.partialorder %v2272, 0.0
        %vm2434 = vcmp.ge.f32.partialorder %v2274, 0.0
        %vm2435 = vcmp.ge.f32.partialorder %v2276, 0.0
        %vm2436 = vcmp.ge.f32.partialorder %v2280, 0.0
        %vm2437 = vcmp.ge.f32.partialorder %v2282, 0.0
        %vm2438 = vcmp.ge.f32.partialorder %v2284, 0.0
        %vm2439 = vcmp.ge.f32.partialorder %v2286, 0.0
        %vm2440 = vcmp.ge.f32.partialorder %v2290, 0.0
        %vm2441 = vcmp.ge.f32.partialorder %v2292, 0.0
        %vm2442 = vcmp.ge.f32.partialorder %v2294, 0.0
        %vm2443 = vcmp.ge.f32.partialorder %v2296, 0.0
        %vm2444 = vcmp.ge.f32.partialorder %v2300, 0.0
        %vm2445 = vcmp.ge.f32.partialorder %v2302, 0.0
        %vm2446 = vcmp.ge.f32.partialorder %v2304, 0.0
        %vm2447 = vcmp.ge.f32.partialorder %v2306, 0.0
        %vm2448 = vcmp.ge.f32.partialorder %v2310, 0.0
        %vm2449 = vcmp.ge.f32.partialorder %v2312, 0.0
        %vm2450 = vcmp.ge.f32.partialorder %v2314, 0.0
        %vm2451 = vcmp.ge.f32.partialorder %v2316, 0.0
        %vm2452 = vcmp.ge.f32.partialorder %v2320, 0.0
        %vm2453 = vcmp.ge.f32.partialorder %v2322, 0.0
        %vm2454 = vcmp.ge.f32.partialorder %v2324, 0.0
        %vm2455 = vcmp.ge.f32.partialorder %v2326, 0.0
        %v2456 = vmul.f32 %v2010, 0.2
        %v2457 = vmul.f32 %v2012, 0.2
        %v2458 = vmul.f32 %v2014, 0.2
        %v2459 = vmul.f32 %v2016, 0.2
        %v2460 = vmul.f32 %v2020, 0.2
        %v2461 = vmul.f32 %v2022, 0.2
        %v2462 = vmul.f32 %v2024, 0.2
        %v2463 = vmul.f32 %v2026, 0.2
        %v2464 = vmul.f32 %v2030, 0.2
        %v2465 = vmul.f32 %v2032, 0.2
        %v2466 = vmul.f32 %v2034, 0.2
        %v2467 = vmul.f32 %v2036, 0.2
        %v2468 = vmul.f32 %v2040, 0.2
        %v2469 = vmul.f32 %v2042, 0.2
        %v2470 = vmul.f32 %v2044, 0.2
        %v2471 = vmul.f32 %v2046, 0.2
        %v2472 = vmul.f32 %v2050, 0.2
        %v2473 = vmul.f32 %v2052, 0.2
        %v2474 = vmul.f32 %v2054, 0.2
        %v2475 = vmul.f32 %v2056, 0.2
        %v2476 = vmul.f32 %v2060, 0.2
        %v2477 = vmul.f32 %v2062, 0.2
        %v2478 = vmul.f32 %v2064, 0.2
        %v2479 = vmul.f32 %v2066, 0.2
        %v2480 = vmul.f32 %v2070, 0.2
        %v2481 = vmul.f32 %v2072, 0.2
        %v2482 = vmul.f32 %v2074, 0.2
        %v2483 = vmul.f32 %v2076, 0.2
        %v2484 = vmul.f32 %v2080, 0.2
        %v2485 = vmul.f32 %v2082, 0.2
        %v2486 = vmul.f32 %v2084, 0.2
        %v2487 = vmul.f32 %v2086, 0.2
        %v2488 = vmul.f32 %v2090, 0.2
        %v2489 = vmul.f32 %v2092, 0.2
        %v2490 = vmul.f32 %v2094, 0.2
        %v2491 = vmul.f32 %v2096, 0.2
        %v2492 = vmul.f32 %v2100, 0.2
        %v2493 = vmul.f32 %v2102, 0.2
        %v2494 = vmul.f32 %v2104, 0.2
        %v2495 = vmul.f32 %v2106, 0.2
        %v2496 = vmul.f32 %v2110, 0.2
        %v2497 = vmul.f32 %v2112, 0.2
        %v2498 = vmul.f32 %v2114, 0.2
        %v2499 = vmul.f32 %v2116, 0.2
        %v2500 = vmul.f32 %v2120, 0.2
        %v2501 = vmul.f32 %v2122, 0.2
        %v2502 = vmul.f32 %v2124, 0.2
        %v2503 = vmul.f32 %v2126, 0.2
        %v2504 = vmul.f32 %v2130, 0.2
        %v2505 = vmul.f32 %v2132, 0.2
        %v2506 = vmul.f32 %v2134, 0.2
        %v2507 = vmul.f32 %v2136, 0.2
        %v2508 = vmul.f32 %v2140, 0.2
        %v2509 = vmul.f32 %v2142, 0.2
        %v2510 = vmul.f32 %v2144, 0.2
        %v2511 = vmul.f32 %v2146, 0.2
        %v2512 = vmul.f32 %v2150, 0.2
        %v2513 = vmul.f32 %v2152, 0.2
        %v2514 = vmul.f32 %v2154, 0.2
        %v2515 = vmul.f32 %v2156, 0.2
        %v2516 = vmul.f32 %v2160, 0.2
        %v2517 = vmul.f32 %v2162, 0.2
        %v2518 = vmul.f32 %v2164, 0.2
        %v2519 = vmul.f32 %v2166, 0.2
        %v2520 = vmul.f32 %v2170, 0.2
        %v2521 = vmul.f32 %v2172, 0.2
        %v2522 = vmul.f32 %v2174, 0.2
        %v2523 = vmul.f32 %v2176, 0.2
        %v2524 = vmul.f32 %v2180, 0.2
        %v2525 = vmul.f32 %v2182, 0.2
        %v2526 = vmul.f32 %v2184, 0.2
        %v2527 = vmul.f32 %v2186, 0.2
        %v2528 = vmul.f32 %v2190, 0.2
        %v2529 = vmul.f32 %v2192, 0.2
        %v2530 = vmul.f32 %v2194, 0.2
        %v2531 = vmul.f32 %v2196, 0.2
        %v2532 = vmul.f32 %v2200, 0.2
        %v2533 = vmul.f32 %v2202, 0.2
        %v2534 = vmul.f32 %v2204, 0.2
        %v2535 = vmul.f32 %v2206, 0.2
        %v2536 = vmul.f32 %v2210, 0.2
        %v2537 = vmul.f32 %v2212, 0.2
        %v2538 = vmul.f32 %v2214, 0.2
        %v2539 = vmul.f32 %v2216, 0.2
        %v2540 = vmul.f32 %v2220, 0.2
        %v2541 = vmul.f32 %v2222, 0.2
        %v2542 = vmul.f32 %v2224, 0.2
        %v2543 = vmul.f32 %v2226, 0.2
        %v2544 = vmul.f32 %v2230, 0.2
        %v2545 = vmul.f32 %v2232, 0.2
        %v2546 = vmul.f32 %v2234, 0.2
        %v2547 = vmul.f32 %v2236, 0.2
        %v2548 = vmul.f32 %v2240, 0.2
        %v2549 = vmul.f32 %v2242, 0.2
        %v2550 = vmul.f32 %v2244, 0.2
        %v2551 = vmul.f32 %v2246, 0.2
        %v2552 = vmul.f32 %v2250, 0.2
        %v2553 = vmul.f32 %v2252, 0.2
        %v2554 = vmul.f32 %v2254, 0.2
        %v2555 = vmul.f32 %v2256, 0.2
        %v2556 = vmul.f32 %v2260, 0.2
        %v2557 = vmul.f32 %v2262, 0.2
        %v2558 = vmul.f32 %v2264, 0.2
        %v2559 = vmul.f32 %v2266, 0.2
        %v2560 = vmul.f32 %v2270, 0.2
        %v2561 = vmul.f32 %v2272, 0.2
        %v2562 = vmul.f32 %v2274, 0.2
        %v2563 = vmul.f32 %v2276, 0.2
        %v2564 = vmul.f32 %v2280, 0.2
        %v2565 = vmul.f32 %v2282, 0.2
        %v2566 = vmul.f32 %v2284, 0.2
        %v2567 = vmul.f32 %v2286, 0.2
        %v2568 = vmul.f32 %v2290, 0.2
        %v2569 = vmul.f32 %v2292, 0.2
        %v2570 = vmul.f32 %v2294, 0.2
        %v2571 = vmul.f32 %v2296, 0.2
        %v2572 = vmul.f32 %v2300, 0.2
        %v2573 = vmul.f32 %v2302, 0.2
        %v2574 = vmul.f32 %v2304, 0.2
        %v2575 = vmul.f32 %v2306, 0.2
        %v2576 = vmul.f32 %v2310, 0.2
        %v2577 = vmul.f32 %v2312, 0.2
        %v2578 = vmul.f32 %v2314, 0.2
        %v2579 = vmul.f32 %v2316, 0.2
        %v2580 = vmul.f32 %v2320, 0.2
        %v2581 = vmul.f32 %v2322, 0.2
        %v2582 = vmul.f32 %v2324, 0.2
        %v2583 = vmul.f32 %v2326, 0.2
        %v2584 = vsel %vm2328, %v2010, %v2456
        %v2585 = vsel %vm2329, %v2012, %v2457
        %v2586 = vsel %vm2330, %v2014, %v2458
        %v2587 = vsel %vm2331, %v2016, %v2459
        %v2588 = vsel %vm2332, %v2020, %v2460
        %v2589 = vsel %vm2333, %v2022, %v2461
        %v2590 = vsel %vm2334, %v2024, %v2462
        %v2591 = vsel %vm2335, %v2026, %v2463
        %v2592 = vsel %vm2336, %v2030, %v2464
        %v2593 = vsel %vm2337, %v2032, %v2465
        %v2594 = vsel %vm2338, %v2034, %v2466
        %v2595 = vsel %vm2339, %v2036, %v2467
        %v2596 = vsel %vm2340, %v2040, %v2468
        %v2597 = vsel %vm2341, %v2042, %v2469
        %v2598 = vsel %vm2342, %v2044, %v2470
        %v2599 = vsel %vm2343, %v2046, %v2471
        %v2600 = vsel %vm2344, %v2050, %v2472
        %v2601 = vsel %vm2345, %v2052, %v2473
        %v2602 = vsel %vm2346, %v2054, %v2474
        %v2603 = vsel %vm2347, %v2056, %v2475
        %v2604 = vsel %vm2348, %v2060, %v2476
        %v2605 = vsel %vm2349, %v2062, %v2477
        %v2606 = vsel %vm2350, %v2064, %v2478
        %v2607 = vsel %vm2351, %v2066, %v2479
        %v2608 = vsel %vm2352, %v2070, %v2480
        %v2609 = vsel %vm2353, %v2072, %v2481
        %v2610 = vsel %vm2354, %v2074, %v2482
        %v2611 = vsel %vm2355, %v2076, %v2483
        %v2612 = vsel %vm2356, %v2080, %v2484
        %v2613 = vsel %vm2357, %v2082, %v2485
        %v2614 = vsel %vm2358, %v2084, %v2486
        %v2615 = vsel %vm2359, %v2086, %v2487
        %v2616 = vsel %vm2360, %v2090, %v2488
        %v2617 = vsel %vm2361, %v2092, %v2489
        %v2618 = vsel %vm2362, %v2094, %v2490
        %v2619 = vsel %vm2363, %v2096, %v2491
        %v2620 = vsel %vm2364, %v2100, %v2492
        %v2621 = vsel %vm2365, %v2102, %v2493
        %v2622 = vsel %vm2366, %v2104, %v2494
        %v2623 = vsel %vm2367, %v2106, %v2495
        %v2624 = vsel %vm2368, %v2110, %v2496
        %v2625 = vsel %vm2369, %v2112, %v2497
        %v2626 = vsel %vm2370, %v2114, %v2498
        %v2627 = vsel %vm2371, %v2116, %v2499
        %v2628 = vsel %vm2372, %v2120, %v2500
        %v2629 = vsel %vm2373, %v2122, %v2501
        %v2630 = vsel %vm2374, %v2124, %v2502
        %v2631 = vsel %vm2375, %v2126, %v2503
        %v2632 = vsel %vm2376, %v2130, %v2504
        %v2633 = vsel %vm2377, %v2132, %v2505
        %v2634 = vsel %vm2378, %v2134, %v2506
        %v2635 = vsel %vm2379, %v2136, %v2507
        %v2636 = vsel %vm2380, %v2140, %v2508
        %v2637 = vsel %vm2381, %v2142, %v2509
        %v2638 = vsel %vm2382, %v2144, %v2510
        %v2639 = vsel %vm2383, %v2146, %v2511
        %v2640 = vsel %vm2384, %v2150, %v2512
        %v2641 = vsel %vm2385, %v2152, %v2513
        %v2642 = vsel %vm2386, %v2154, %v2514
        %v2643 = vsel %vm2387, %v2156, %v2515
        %v2644 = vsel %vm2388, %v2160, %v2516
        %v2645 = vsel %vm2389, %v2162, %v2517
        %v2646 = vsel %vm2390, %v2164, %v2518
        %v2647 = vsel %vm2391, %v2166, %v2519
        %v2648 = vsel %vm2392, %v2170, %v2520
        %v2649 = vsel %vm2393, %v2172, %v2521
        %v2650 = vsel %vm2394, %v2174, %v2522
        %v2651 = vsel %vm2395, %v2176, %v2523
        %v2652 = vsel %vm2396, %v2180, %v2524
        %v2653 = vsel %vm2397, %v2182, %v2525
        %v2654 = vsel %vm2398, %v2184, %v2526
        %v2655 = vsel %vm2399, %v2186, %v2527
        %v2656 = vsel %vm2400, %v2190, %v2528
        %v2657 = vsel %vm2401, %v2192, %v2529
        %v2658 = vsel %vm2402, %v2194, %v2530
        %v2659 = vsel %vm2403, %v2196, %v2531
        %v2660 = vsel %vm2404, %v2200, %v2532
        %v2661 = vsel %vm2405, %v2202, %v2533
        %v2662 = vsel %vm2406, %v2204, %v2534
        %v2663 = vsel %vm2407, %v2206, %v2535
        %v2664 = vsel %vm2408, %v2210, %v2536
        %v2665 = vsel %vm2409, %v2212, %v2537
        %v2666 = vsel %vm2410, %v2214, %v2538
        %v2667 = vsel %vm2411, %v2216, %v2539
        %v2668 = vsel %vm2412, %v2220, %v2540
        %v2669 = vsel %vm2413, %v2222, %v2541
        %v2670 = vsel %vm2414, %v2224, %v2542
        %v2671 = vsel %vm2415, %v2226, %v2543
        %v2672 = vsel %vm2416, %v2230, %v2544
        %v2673 = vsel %vm2417, %v2232, %v2545
        %v2674 = vsel %vm2418, %v2234, %v2546
        %v2675 = vsel %vm2419, %v2236, %v2547
        %v2676 = vsel %vm2420, %v2240, %v2548
        %v2677 = vsel %vm2421, %v2242, %v2549
        %v2678 = vsel %vm2422, %v2244, %v2550
        %v2679 = vsel %vm2423, %v2246, %v2551
        %v2680 = vsel %vm2424, %v2250, %v2552
        %v2681 = vsel %vm2425, %v2252, %v2553
        %v2682 = vsel %vm2426, %v2254, %v2554
        %v2683 = vsel %vm2427, %v2256, %v2555
        %v2684 = vsel %vm2428, %v2260, %v2556
        %v2685 = vsel %vm2429, %v2262, %v2557
        %v2686 = vsel %vm2430, %v2264, %v2558
        %v2687 = vsel %vm2431, %v2266, %v2559
        %v2688 = vsel %vm2432, %v2270, %v2560
        %v2689 = vsel %vm2433, %v2272, %v2561
        %v2690 = vsel %vm2434, %v2274, %v2562
        %v2691 = vsel %vm2435, %v2276, %v2563
        %v2692 = vsel %vm2436, %v2280, %v2564
        %v2693 = vsel %vm2437, %v2282, %v2565
        %v2694 = vsel %vm2438, %v2284, %v2566
        %v2695 = vsel %vm2439, %v2286, %v2567
        %v2696 = vsel %vm2440, %v2290, %v2568
        %v2697 = vsel %vm2441, %v2292, %v2569
        %v2698 = vsel %vm2442, %v2294, %v2570
        %v2699 = vsel %vm2443, %v2296, %v2571
        %v2700 = vsel %vm2444, %v2300, %v2572
        %v2701 = vsel %vm2445, %v2302, %v2573
        %v2702 = vsel %vm2446, %v2304, %v2574
        %v2703 = vsel %vm2447, %v2306, %v2575
        %v2704 = vsel %vm2448, %v2310, %v2576
        %v2705 = vsel %vm2449, %v2312, %v2577
        %v2706 = vsel %vm2450, %v2314, %v2578
        %v2707 = vsel %vm2451, %v2316, %v2579
        %v2708 = vsel %vm2452, %v2320, %v2580
        %v2709 = vsel %vm2453, %v2322, %v2581
        %v2710 = vsel %vm2454, %v2324, %v2582
        %v2711 = vsel %vm2455, %v2326, %v2583
        %v2712 = vld [vmem:[#allocation5] sm:$0xff]
        %v2713 = vld [vmem:[#allocation5 + $0x8] sm:$0xff]
        %v2714 = vld [vmem:[#allocation5 + $0x10] sm:$0xff]
        %v2715 = vld [vmem:[#allocation5 + $0x18] sm:$0xff]
        %v2716 = vld [vmem:[#allocation5 + $0x20] sm:$0xff]
        %v2717 = vld [vmem:[#allocation5 + $0x28] sm:$0xff]
        %v2718 = vld [vmem:[#allocation5 + $0x30] sm:$0xff]
        %v2719 = vld [vmem:[#allocation5 + $0x38] sm:$0xff]
        %v2720 = vld [vmem:[#allocation5 + $0x40] sm:$0xff]
        %v2721 = vld [vmem:[#allocation5 + $0x48] sm:$0xff]
        %v2722 = vld [vmem:[#allocation5 + $0x50] sm:$0xff]
        %v2723 = vld [vmem:[#allocation5 + $0x58] sm:$0xff]
        %v2724 = vld [vmem:[#allocation5 + $0x60] sm:$0xff]
        %v2725 = vld [vmem:[#allocation5 + $0x68] sm:$0xff]
        %v2726 = vld [vmem:[#allocation5 + $0x70] sm:$0xff]
        %v2727 = vld [vmem:[#allocation5 + $0x78] sm:$0xff]
        %v2728 = vld [vmem:[#allocation5 + $0x80] sm:$0xff]
        %v2729 = vld [vmem:[#allocation5 + $0x88] sm:$0xff]
        %v2730 = vld [vmem:[#allocation5 + $0x90] sm:$0xff]
        %v2731 = vld [vmem:[#allocation5 + $0x98] sm:$0xff]
        %v2732 = vld [vmem:[#allocation5 + $0xa0] sm:$0xff]
        %v2733 = vld [vmem:[#allocation5 + $0xa8] sm:$0xff]
        %v2734 = vld [vmem:[#allocation5 + $0xb0] sm:$0xff]
        %v2735 = vld [vmem:[#allocation5 + $0xb8] sm:$0xff]
        %v2736 = vld [vmem:[#allocation5 + $0xc0] sm:$0xff]
        %v2737 = vld [vmem:[#allocation5 + $0xc8] sm:$0xff]
        %v2738 = vld [vmem:[#allocation5 + $0xd0] sm:$0xff]
        %v2739 = vld [vmem:[#allocation5 + $0xd8] sm:$0xff]
        %v2740 = vld [vmem:[#allocation5 + $0xe0] sm:$0xff]
        %v2741 = vld [vmem:[#allocation5 + $0xe8] sm:$0xff]
        %v2742 = vld [vmem:[#allocation5 + $0xf0] sm:$0xff]
        %v2743 = vld [vmem:[#allocation5 + $0xf8] sm:$0xff]
        %v2744 = vld [vmem:[#allocation5 + $0x100] sm:$0xff]
        %v2745 = vld [vmem:[#allocation5 + $0x108] sm:$0xff]
        %v2746 = vld [vmem:[#allocation5 + $0x110] sm:$0xff]
        %v2747 = vld [vmem:[#allocation5 + $0x118] sm:$0xff]
        %v2748 = vld [vmem:[#allocation5 + $0x120] sm:$0xff]
        %v2749 = vld [vmem:[#allocation5 + $0x128] sm:$0xff]
        %v2750 = vld [vmem:[#allocation5 + $0x130] sm:$0xff]
        %v2751 = vld [vmem:[#allocation5 + $0x138] sm:$0xff]
        %v2752 = vld [vmem:[#allocation5 + $0x140] sm:$0xff]
        %v2753 = vld [vmem:[#allocation5 + $0x148] sm:$0xff]
        %v2754 = vld [vmem:[#allocation5 + $0x150] sm:$0xff]
        %v2755 = vld [vmem:[#allocation5 + $0x158] sm:$0xff]
        %v2756 = vld [vmem:[#allocation5 + $0x160] sm:$0xff]
        %v2757 = vld [vmem:[#allocation5 + $0x168] sm:$0xff]
        %v2758 = vld [vmem:[#allocation5 + $0x170] sm:$0xff]
        %v2759 = vld [vmem:[#allocation5 + $0x178] sm:$0xff]
        %v2760 = vld [vmem:[#allocation5 + $0x180] sm:$0xff]
        %v2761 = vld [vmem:[#allocation5 + $0x188] sm:$0xff]
        %v2762 = vld [vmem:[#allocation5 + $0x190] sm:$0xff]
        %v2763 = vld [vmem:[#allocation5 + $0x198] sm:$0xff]
        %v2764 = vld [vmem:[#allocation5 + $0x1a0] sm:$0xff]
        %v2765 = vld [vmem:[#allocation5 + $0x1a8] sm:$0xff]
        %v2766 = vld [vmem:[#allocation5 + $0x1b0] sm:$0xff]
        %v2767 = vld [vmem:[#allocation5 + $0x1b8] sm:$0xff]
        %v2768 = vld [vmem:[#allocation5 + $0x1c0] sm:$0xff]
        %v2769 = vld [vmem:[#allocation5 + $0x1c8] sm:$0xff]
        %v2770 = vld [vmem:[#allocation5 + $0x1d0] sm:$0xff]
        %v2771 = vld [vmem:[#allocation5 + $0x1d8] sm:$0xff]
        %v2772 = vld [vmem:[#allocation5 + $0x1e0] sm:$0xff]
        %v2773 = vld [vmem:[#allocation5 + $0x1e8] sm:$0xff]
        %v2774 = vld [vmem:[#allocation5 + $0x1f0] sm:$0xff]
        %v2775 = vld [vmem:[#allocation5 + $0x1f8] sm:$0xff]
        %v2776 = vld [vmem:[#allocation5 + $0x200] sm:$0xff]
        %v2777 = vld [vmem:[#allocation5 + $0x208] sm:$0xff]
        %v2778 = vld [vmem:[#allocation5 + $0x210] sm:$0xff]
        %v2779 = vld [vmem:[#allocation5 + $0x218] sm:$0xff]
        %v2780 = vld [vmem:[#allocation5 + $0x220] sm:$0xff]
        %v2781 = vld [vmem:[#allocation5 + $0x228] sm:$0xff]
        %v2782 = vld [vmem:[#allocation5 + $0x230] sm:$0xff]
        %v2783 = vld [vmem:[#allocation5 + $0x238] sm:$0xff]
        %v2784 = vld [vmem:[#allocation5 + $0x240] sm:$0xff]
        %v2785 = vld [vmem:[#allocation5 + $0x248] sm:$0xff]
        %v2786 = vld [vmem:[#allocation5 + $0x250] sm:$0xff]
        %v2787 = vld [vmem:[#allocation5 + $0x258] sm:$0xff]
        %v2788 = vld [vmem:[#allocation5 + $0x260] sm:$0xff]
        %v2789 = vld [vmem:[#allocation5 + $0x268] sm:$0xff]
        %v2790 = vld [vmem:[#allocation5 + $0x270] sm:$0xff]
        %v2791 = vld [vmem:[#allocation5 + $0x278] sm:$0xff]
        %v2792 = vld [vmem:[#allocation5 + $0x280] sm:$0xff]
        %v2793 = vld [vmem:[#allocation5 + $0x288] sm:$0xff]
        %v2794 = vld [vmem:[#allocation5 + $0x290] sm:$0xff]
        %v2795 = vld [vmem:[#allocation5 + $0x298] sm:$0xff]
        %v2796 = vld [vmem:[#allocation5 + $0x2a0] sm:$0xff]
        %v2797 = vld [vmem:[#allocation5 + $0x2a8] sm:$0xff]
        %v2798 = vld [vmem:[#allocation5 + $0x2b0] sm:$0xff]
        %v2799 = vld [vmem:[#allocation5 + $0x2b8] sm:$0xff]
        %v2800 = vld [vmem:[#allocation5 + $0x2c0] sm:$0xff]
        %v2801 = vld [vmem:[#allocation5 + $0x2c8] sm:$0xff]
        %v2802 = vld [vmem:[#allocation5 + $0x2d0] sm:$0xff]
        %v2803 = vld [vmem:[#allocation5 + $0x2d8] sm:$0xff]
        %v2804 = vld [vmem:[#allocation5 + $0x2e0] sm:$0xff]
        %v2805 = vld [vmem:[#allocation5 + $0x2e8] sm:$0xff]
        %v2806 = vld [vmem:[#allocation5 + $0x2f0] sm:$0xff]
        %v2807 = vld [vmem:[#allocation5 + $0x2f8] sm:$0xff]
        %v2808 = vld [vmem:[#allocation5 + $0x300] sm:$0xff]
        %v2809 = vld [vmem:[#allocation5 + $0x308] sm:$0xff]
        %v2810 = vld [vmem:[#allocation5 + $0x310] sm:$0xff]
        %v2811 = vld [vmem:[#allocation5 + $0x318] sm:$0xff]
        %v2812 = vld [vmem:[#allocation5 + $0x320] sm:$0xff]
        %v2813 = vld [vmem:[#allocation5 + $0x328] sm:$0xff]
        %v2814 = vld [vmem:[#allocation5 + $0x330] sm:$0xff]
        %v2815 = vld [vmem:[#allocation5 + $0x338] sm:$0xff]
        %v2816 = vld [vmem:[#allocation5 + $0x340] sm:$0xff]
        %v2817 = vld [vmem:[#allocation5 + $0x348] sm:$0xff]
        %v2818 = vld [vmem:[#allocation5 + $0x350] sm:$0xff]
        %v2819 = vld [vmem:[#allocation5 + $0x358] sm:$0xff]
        %v2820 = vld [vmem:[#allocation5 + $0x360] sm:$0xff]
        %v2821 = vld [vmem:[#allocation5 + $0x368] sm:$0xff]
        %v2822 = vld [vmem:[#allocation5 + $0x370] sm:$0xff]
        %v2823 = vld [vmem:[#allocation5 + $0x378] sm:$0xff]
        %v2824 = vld [vmem:[#allocation5 + $0x380] sm:$0xff]
        %v2825 = vld [vmem:[#allocation5 + $0x388] sm:$0xff]
        %v2826 = vld [vmem:[#allocation5 + $0x390] sm:$0xff]
        %v2827 = vld [vmem:[#allocation5 + $0x398] sm:$0xff]
        %v2828 = vld [vmem:[#allocation5 + $0x3a0] sm:$0xff]
        %v2829 = vld [vmem:[#allocation5 + $0x3a8] sm:$0xff]
        %v2830 = vld [vmem:[#allocation5 + $0x3b0] sm:$0xff]
        %v2831 = vld [vmem:[#allocation5 + $0x3b8] sm:$0xff]
        %v2832 = vld [vmem:[#allocation5 + $0x3c0] sm:$0xff]
        %v2833 = vld [vmem:[#allocation5 + $0x3c8] sm:$0xff]
        %v2834 = vld [vmem:[#allocation5 + $0x3d0] sm:$0xff]
        %v2835 = vld [vmem:[#allocation5 + $0x3d8] sm:$0xff]
        %v2836 = vld [vmem:[#allocation5 + $0x3e0] sm:$0xff]
        %v2837 = vld [vmem:[#allocation5 + $0x3e8] sm:$0xff]
        %v2838 = vld [vmem:[#allocation5 + $0x3f0] sm:$0xff]
        %v2839 = vld [vmem:[#allocation5 + $0x3f8] sm:$0xff]
        %v2840 = vpack.c.bf16 %v2586, %v2584
        %v2841 = vpack.c.bf16 %v2587, %v2585
        %v2842 = vpack.c.bf16 %v2590, %v2588
        %v2843 = vpack.c.bf16 %v2591, %v2589
        %v2844 = vpack.c.bf16 %v2594, %v2592
        %v2845 = vpack.c.bf16 %v2595, %v2593
        %v2846 = vpack.c.bf16 %v2598, %v2596
        %v2847 = vpack.c.bf16 %v2599, %v2597
        %v2848 = vpack.c.bf16 %v2602, %v2600
        %v2849 = vpack.c.bf16 %v2603, %v2601
        %v2850 = vpack.c.bf16 %v2606, %v2604
        %v2851 = vpack.c.bf16 %v2607, %v2605
        %v2852 = vpack.c.bf16 %v2610, %v2608
        %v2853 = vpack.c.bf16 %v2611, %v2609
        %v2854 = vpack.c.bf16 %v2614, %v2612
        %v2855 = vpack.c.bf16 %v2615, %v2613
        %v2856 = vpack.c.bf16 %v2618, %v2616
        %v2857 = vpack.c.bf16 %v2619, %v2617
        %v2858 = vpack.c.bf16 %v2622, %v2620
        %v2859 = vpack.c.bf16 %v2623, %v2621
        %v2860 = vpack.c.bf16 %v2626, %v2624
        %v2861 = vpack.c.bf16 %v2627, %v2625
        %v2862 = vpack.c.bf16 %v2630, %v2628
        %v2863 = vpack.c.bf16 %v2631, %v2629
        %v2864 = vpack.c.bf16 %v2634, %v2632
        %v2865 = vpack.c.bf16 %v2635, %v2633
        %v2866 = vpack.c.bf16 %v2638, %v2636
        %v2867 = vpack.c.bf16 %v2639, %v2637
        %v2868 = vpack.c.bf16 %v2642, %v2640
        %v2869 = vpack.c.bf16 %v2643, %v2641
        %v2870 = vpack.c.bf16 %v2646, %v2644
        %v2871 = vpack.c.bf16 %v2647, %v2645
        %v2872 = vpack.c.bf16 %v2650, %v2648
        %v2873 = vpack.c.bf16 %v2651, %v2649
        %v2874 = vpack.c.bf16 %v2654, %v2652
        %v2875 = vpack.c.bf16 %v2655, %v2653
        %v2876 = vpack.c.bf16 %v2658, %v2656
        %v2877 = vpack.c.bf16 %v2659, %v2657
        %v2878 = vpack.c.bf16 %v2662, %v2660
        %v2879 = vpack.c.bf16 %v2663, %v2661
        %v2880 = vpack.c.bf16 %v2666, %v2664
        %v2881 = vpack.c.bf16 %v2667, %v2665
        %v2882 = vpack.c.bf16 %v2670, %v2668
        %v2883 = vpack.c.bf16 %v2671, %v2669
        %v2884 = vpack.c.bf16 %v2674, %v2672
        %v2885 = vpack.c.bf16 %v2675, %v2673
        %v2886 = vpack.c.bf16 %v2678, %v2676
        %v2887 = vpack.c.bf16 %v2679, %v2677
        %v2888 = vpack.c.bf16 %v2682, %v2680
        %v2889 = vpack.c.bf16 %v2683, %v2681
        %v2890 = vpack.c.bf16 %v2686, %v2684
        %v2891 = vpack.c.bf16 %v2687, %v2685
        %v2892 = vpack.c.bf16 %v2690, %v2688
        %v2893 = vpack.c.bf16 %v2691, %v2689
        %v2894 = vpack.c.bf16 %v2694, %v2692
        %v2895 = vpack.c.bf16 %v2695, %v2693
        %v2896 = vpack.c.bf16 %v2698, %v2696
        %v2897 = vpack.c.bf16 %v2699, %v2697
        %v2898 = vpack.c.bf16 %v2702, %v2700
        %v2899 = vpack.c.bf16 %v2703, %v2701
        %v2900 = vpack.c.bf16 %v2706, %v2704
        %v2901 = vpack.c.bf16 %v2707, %v2705
        %v2902 = vpack.c.bf16 %v2710, %v2708
        %v2903 = vpack.c.bf16 %v2711, %v2709
        %v2904 = vld [vmem:[%s4] sm:$0xff]
        %v2905 = vld [vmem:[%s4 + $0x8] sm:$0xff]
        %v2906 = vld [vmem:[%s4 + $0x10] sm:$0xff]
        %v2907 = vld [vmem:[%s4 + $0x18] sm:$0xff]
        %v2908 = vld [vmem:[%s4 + $0x20] sm:$0xff]
        %v2909 = vld [vmem:[%s4 + $0x28] sm:$0xff]
        %v2910 = vld [vmem:[%s4 + $0x30] sm:$0xff]
        %v2911 = vld [vmem:[%s4 + $0x38] sm:$0xff]
        %v2912 = vld [vmem:[%s4 + $0x40] sm:$0xff]
        %v2913 = vld [vmem:[%s4 + $0x48] sm:$0xff]
        %v2914 = vld [vmem:[%s4 + $0x50] sm:$0xff]
        %v2915 = vld [vmem:[%s4 + $0x58] sm:$0xff]
        %v2916 = vld [vmem:[%s4 + $0x60] sm:$0xff]
        %v2917 = vld [vmem:[%s4 + $0x68] sm:$0xff]
        %v2918 = vld [vmem:[%s4 + $0x70] sm:$0xff]
        %v2919 = vld [vmem:[%s4 + $0x78] sm:$0xff]
        %v2920 = vld [vmem:[%s4 + $0x80] sm:$0xff]
        %v2921 = vld [vmem:[%s4 + $0x88] sm:$0xff]
        %v2922 = vld [vmem:[%s4 + $0x90] sm:$0xff]
        %v2923 = vld [vmem:[%s4 + $0x98] sm:$0xff]
        %v2924 = vld [vmem:[%s4 + $0xa0] sm:$0xff]
        %v2925 = vld [vmem:[%s4 + $0xa8] sm:$0xff]
        %v2926 = vld [vmem:[%s4 + $0xb0] sm:$0xff]
        %v2927 = vld [vmem:[%s4 + $0xb8] sm:$0xff]
        %v2928 = vld [vmem:[%s4 + $0xc0] sm:$0xff]
        %v2929 = vld [vmem:[%s4 + $0xc8] sm:$0xff]
        %v2930 = vld [vmem:[%s4 + $0xd0] sm:$0xff]
        %v2931 = vld [vmem:[%s4 + $0xd8] sm:$0xff]
        %v2932 = vld [vmem:[%s4 + $0xe0] sm:$0xff]
        %v2933 = vld [vmem:[%s4 + $0xe8] sm:$0xff]
        %v2934 = vld [vmem:[%s4 + $0xf0] sm:$0xff]
        %v2935 = vld [vmem:[%s4 + $0xf8] sm:$0xff]
        %v2936 = vld [vmem:[%s4 + $0x100] sm:$0xff]
        %v2937 = vld [vmem:[%s4 + $0x108] sm:$0xff]
        %v2938 = vld [vmem:[%s4 + $0x110] sm:$0xff]
        %v2939 = vld [vmem:[%s4 + $0x118] sm:$0xff]
        %v2940 = vld [vmem:[%s4 + $0x120] sm:$0xff]
        %v2941 = vld [vmem:[%s4 + $0x128] sm:$0xff]
        %v2942 = vld [vmem:[%s4 + $0x130] sm:$0xff]
        %v2943 = vld [vmem:[%s4 + $0x138] sm:$0xff]
        %v2944 = vld [vmem:[%s4 + $0x140] sm:$0xff]
        %v2945 = vld [vmem:[%s4 + $0x148] sm:$0xff]
        %v2946 = vld [vmem:[%s4 + $0x150] sm:$0xff]
        %v2947 = vld [vmem:[%s4 + $0x158] sm:$0xff]
        %v2948 = vld [vmem:[%s4 + $0x160] sm:$0xff]
        %v2949 = vld [vmem:[%s4 + $0x168] sm:$0xff]
        %v2950 = vld [vmem:[%s4 + $0x170] sm:$0xff]
        %v2951 = vld [vmem:[%s4 + $0x178] sm:$0xff]
        %v2952 = vld [vmem:[%s4 + $0x180] sm:$0xff]
        %v2953 = vld [vmem:[%s4 + $0x188] sm:$0xff]
        %v2954 = vld [vmem:[%s4 + $0x190] sm:$0xff]
        %v2955 = vld [vmem:[%s4 + $0x198] sm:$0xff]
        %v2956 = vld [vmem:[%s4 + $0x1a0] sm:$0xff]
        %v2957 = vld [vmem:[%s4 + $0x1a8] sm:$0xff]
        %v2958 = vld [vmem:[%s4 + $0x1b0] sm:$0xff]
        %v2959 = vld [vmem:[%s4 + $0x1b8] sm:$0xff]
        %v2960 = vld [vmem:[%s4 + $0x1c0] sm:$0xff]
        %v2961 = vld [vmem:[%s4 + $0x1c8] sm:$0xff]
        %v2962 = vld [vmem:[%s4 + $0x1d0] sm:$0xff]
        %v2963 = vld [vmem:[%s4 + $0x1d8] sm:$0xff]
        %v2964 = vld [vmem:[%s4 + $0x1e0] sm:$0xff]
        %v2965 = vld [vmem:[%s4 + $0x1e8] sm:$0xff]
        %v2966 = vld [vmem:[%s4 + $0x1f0] sm:$0xff]
        %v2967 = vld [vmem:[%s4 + $0x1f8] sm:$0xff]
        %2969 = vset.pattern.permute.xlu0 0
        %2970 = vperm.xlu0 %2969, %v2904
        %v2971 = vpop.permute.xlu0 %2970
        %2974 = vset.pattern.permute.xlu0 0
        %2975 = vperm.xlu0 %2974, %v2905
        %v2976 = vpop.permute.xlu0 %2975
        %2979 = vset.pattern.permute.xlu0 0
        %2980 = vperm.xlu0 %2979, %v2906
        %v2981 = vpop.permute.xlu0 %2980
        %2984 = vset.pattern.permute.xlu0 0
        %2985 = vperm.xlu0 %2984, %v2907
        %v2986 = vpop.permute.xlu0 %2985
        %2989 = vset.pattern.permute.xlu0 0
        %2990 = vperm.xlu0 %2989, %v2908
        %v2991 = vpop.permute.xlu0 %2990
        %2994 = vset.pattern.permute.xlu0 0
        %2995 = vperm.xlu0 %2994, %v2909
        %v2996 = vpop.permute.xlu0 %2995
        %2999 = vset.pattern.permute.xlu0 0
        %3000 = vperm.xlu0 %2999, %v2910
        %v3001 = vpop.permute.xlu0 %3000
        %3004 = vset.pattern.permute.xlu0 0
        %3005 = vperm.xlu0 %3004, %v2911
        %v3006 = vpop.permute.xlu0 %3005
        %3009 = vset.pattern.permute.xlu0 0
        %3010 = vperm.xlu0 %3009, %v2912
        %v3011 = vpop.permute.xlu0 %3010
        %3014 = vset.pattern.permute.xlu0 0
        %3015 = vperm.xlu0 %3014, %v2913
        %v3016 = vpop.permute.xlu0 %3015
        %3019 = vset.pattern.permute.xlu0 0
        %3020 = vperm.xlu0 %3019, %v2914
        %v3021 = vpop.permute.xlu0 %3020
        %3024 = vset.pattern.permute.xlu0 0
        %3025 = vperm.xlu0 %3024, %v2915
        %v3026 = vpop.permute.xlu0 %3025
        %3029 = vset.pattern.permute.xlu0 0
        %3030 = vperm.xlu0 %3029, %v2916
        %v3031 = vpop.permute.xlu0 %3030
        %3034 = vset.pattern.permute.xlu0 0
        %3035 = vperm.xlu0 %3034, %v2917
        %v3036 = vpop.permute.xlu0 %3035
        %3039 = vset.pattern.permute.xlu0 0
        %3040 = vperm.xlu0 %3039, %v2918
        %v3041 = vpop.permute.xlu0 %3040
        %3044 = vset.pattern.permute.xlu0 0
        %3045 = vperm.xlu0 %3044, %v2919
        %v3046 = vpop.permute.xlu0 %3045
        %3049 = vset.pattern.permute.xlu0 0
        %3050 = vperm.xlu0 %3049, %v2920
        %v3051 = vpop.permute.xlu0 %3050
        %3054 = vset.pattern.permute.xlu0 0
        %3055 = vperm.xlu0 %3054, %v2921
        %v3056 = vpop.permute.xlu0 %3055
        %3059 = vset.pattern.permute.xlu0 0
        %3060 = vperm.xlu0 %3059, %v2922
        %v3061 = vpop.permute.xlu0 %3060
        %3064 = vset.pattern.permute.xlu0 0
        %3065 = vperm.xlu0 %3064, %v2923
        %v3066 = vpop.permute.xlu0 %3065
        %3069 = vset.pattern.permute.xlu0 0
        %3070 = vperm.xlu0 %3069, %v2924
        %v3071 = vpop.permute.xlu0 %3070
        %3074 = vset.pattern.permute.xlu0 0
        %3075 = vperm.xlu0 %3074, %v2925
        %v3076 = vpop.permute.xlu0 %3075
        %3079 = vset.pattern.permute.xlu0 0
        %3080 = vperm.xlu0 %3079, %v2926
        %v3081 = vpop.permute.xlu0 %3080
        %3084 = vset.pattern.permute.xlu0 0
        %3085 = vperm.xlu0 %3084, %v2927
        %v3086 = vpop.permute.xlu0 %3085
        %3089 = vset.pattern.permute.xlu0 0
        %3090 = vperm.xlu0 %3089, %v2928
        %v3091 = vpop.permute.xlu0 %3090
        %3094 = vset.pattern.permute.xlu0 0
        %3095 = vperm.xlu0 %3094, %v2929
        %v3096 = vpop.permute.xlu0 %3095
        %3099 = vset.pattern.permute.xlu0 0
        %3100 = vperm.xlu0 %3099, %v2930
        %v3101 = vpop.permute.xlu0 %3100
        %3104 = vset.pattern.permute.xlu0 0
        %3105 = vperm.xlu0 %3104, %v2931
        %v3106 = vpop.permute.xlu0 %3105
        %3109 = vset.pattern.permute.xlu0 0
        %3110 = vperm.xlu0 %3109, %v2932
        %v3111 = vpop.permute.xlu0 %3110
        %3114 = vset.pattern.permute.xlu0 0
        %3115 = vperm.xlu0 %3114, %v2933
        %v3116 = vpop.permute.xlu0 %3115
        %3119 = vset.pattern.permute.xlu0 0
        %3120 = vperm.xlu0 %3119, %v2934
        %v3121 = vpop.permute.xlu0 %3120
        %3124 = vset.pattern.permute.xlu0 0
        %3125 = vperm.xlu0 %3124, %v2935
        %v3126 = vpop.permute.xlu0 %3125
        %3129 = vset.pattern.permute.xlu0 0
        %3130 = vperm.xlu0 %3129, %v2936
        %v3131 = vpop.permute.xlu0 %3130
        %3134 = vset.pattern.permute.xlu0 0
        %3135 = vperm.xlu0 %3134, %v2937
        %v3136 = vpop.permute.xlu0 %3135
        %3139 = vset.pattern.permute.xlu0 0
        %3140 = vperm.xlu0 %3139, %v2938
        %v3141 = vpop.permute.xlu0 %3140
        %3144 = vset.pattern.permute.xlu0 0
        %3145 = vperm.xlu0 %3144, %v2939
        %v3146 = vpop.permute.xlu0 %3145
        %3149 = vset.pattern.permute.xlu0 0
        %3150 = vperm.xlu0 %3149, %v2940
        %v3151 = vpop.permute.xlu0 %3150
        %3154 = vset.pattern.permute.xlu0 0
        %3155 = vperm.xlu0 %3154, %v2941
        %v3156 = vpop.permute.xlu0 %3155
        %3159 = vset.pattern.permute.xlu0 0
        %3160 = vperm.xlu0 %3159, %v2942
        %v3161 = vpop.permute.xlu0 %3160
        %3164 = vset.pattern.permute.xlu0 0
        %3165 = vperm.xlu0 %3164, %v2943
        %v3166 = vpop.permute.xlu0 %3165
        %3169 = vset.pattern.permute.xlu0 0
        %3170 = vperm.xlu0 %3169, %v2944
        %v3171 = vpop.permute.xlu0 %3170
        %3174 = vset.pattern.permute.xlu0 0
        %3175 = vperm.xlu0 %3174, %v2945
        %v3176 = vpop.permute.xlu0 %3175
        %3179 = vset.pattern.permute.xlu0 0
        %3180 = vperm.xlu0 %3179, %v2946
        %v3181 = vpop.permute.xlu0 %3180
        %3184 = vset.pattern.permute.xlu0 0
        %3185 = vperm.xlu0 %3184, %v2947
        %v3186 = vpop.permute.xlu0 %3185
        %3189 = vset.pattern.permute.xlu0 0
        %3190 = vperm.xlu0 %3189, %v2948
        %v3191 = vpop.permute.xlu0 %3190
        %3194 = vset.pattern.permute.xlu0 0
        %3195 = vperm.xlu0 %3194, %v2949
        %v3196 = vpop.permute.xlu0 %3195
        %3199 = vset.pattern.permute.xlu0 0
        %3200 = vperm.xlu0 %3199, %v2950
        %v3201 = vpop.permute.xlu0 %3200
        %3204 = vset.pattern.permute.xlu0 0
        %3205 = vperm.xlu0 %3204, %v2951
        %v3206 = vpop.permute.xlu0 %3205
        %3209 = vset.pattern.permute.xlu0 0
        %3210 = vperm.xlu0 %3209, %v2952
        %v3211 = vpop.permute.xlu0 %3210
        %3214 = vset.pattern.permute.xlu0 0
        %3215 = vperm.xlu0 %3214, %v2953
        %v3216 = vpop.permute.xlu0 %3215
        %3219 = vset.pattern.permute.xlu0 0
        %3220 = vperm.xlu0 %3219, %v2954
        %v3221 = vpop.permute.xlu0 %3220
        %3224 = vset.pattern.permute.xlu0 0
        %3225 = vperm.xlu0 %3224, %v2955
        %v3226 = vpop.permute.xlu0 %3225
        %3229 = vset.pattern.permute.xlu0 0
        %3230 = vperm.xlu0 %3229, %v2956
        %v3231 = vpop.permute.xlu0 %3230
        %3234 = vset.pattern.permute.xlu0 0
        %3235 = vperm.xlu0 %3234, %v2957
        %v3236 = vpop.permute.xlu0 %3235
        %3239 = vset.pattern.permute.xlu0 0
        %3240 = vperm.xlu0 %3239, %v2958
        %v3241 = vpop.permute.xlu0 %3240
        %3244 = vset.pattern.permute.xlu0 0
        %3245 = vperm.xlu0 %3244, %v2959
        %v3246 = vpop.permute.xlu0 %3245
        %3249 = vset.pattern.permute.xlu0 0
        %3250 = vperm.xlu0 %3249, %v2960
        %v3251 = vpop.permute.xlu0 %3250
        %3254 = vset.pattern.permute.xlu0 0
        %3255 = vperm.xlu0 %3254, %v2961
        %v3256 = vpop.permute.xlu0 %3255
        %3259 = vset.pattern.permute.xlu0 0
        %3260 = vperm.xlu0 %3259, %v2962
        %v3261 = vpop.permute.xlu0 %3260
        %3264 = vset.pattern.permute.xlu0 0
        %3265 = vperm.xlu0 %3264, %v2963
        %v3266 = vpop.permute.xlu0 %3265
        %3269 = vset.pattern.permute.xlu0 0
        %3270 = vperm.xlu0 %3269, %v2964
        %v3271 = vpop.permute.xlu0 %3270
        %3274 = vset.pattern.permute.xlu0 0
        %3275 = vperm.xlu0 %3274, %v2965
        %v3276 = vpop.permute.xlu0 %3275
        %3279 = vset.pattern.permute.xlu0 0
        %3280 = vperm.xlu0 %3279, %v2966
        %v3281 = vpop.permute.xlu0 %3280
        %3284 = vset.pattern.permute.xlu0 0
        %3285 = vperm.xlu0 %3284, %v2967
        %v3286 = vpop.permute.xlu0 %3285
        %v3416 = vunpack.c.l.b16 %v2712
        %v3417 = vunpack.c.h.b16 %v2712
        %v3418 = vunpack.c.l.b16 %v2713
        %v3419 = vunpack.c.h.b16 %v2713
        %v3420 = vunpack.c.l.b16 %v2714
        %v3421 = vunpack.c.h.b16 %v2714
        %v3422 = vunpack.c.l.b16 %v2715
        %v3423 = vunpack.c.h.b16 %v2715
        %v3424 = vunpack.c.l.b16 %v2716
        %v3425 = vunpack.c.h.b16 %v2716
        %v3426 = vunpack.c.l.b16 %v2717
        %v3427 = vunpack.c.h.b16 %v2717
        %v3428 = vunpack.c.l.b16 %v2718
        %v3429 = vunpack.c.h.b16 %v2718
        %v3430 = vunpack.c.l.b16 %v2719
        %v3431 = vunpack.c.h.b16 %v2719
        %v3432 = vunpack.c.l.b16 %v2720
        %v3433 = vunpack.c.h.b16 %v2720
        %v3434 = vunpack.c.l.b16 %v2721
        %v3435 = vunpack.c.h.b16 %v2721
        %v3436 = vunpack.c.l.b16 %v2722
        %v3437 = vunpack.c.h.b16 %v2722
        %v3438 = vunpack.c.l.b16 %v2723
        %v3439 = vunpack.c.h.b16 %v2723
        %v3440 = vunpack.c.l.b16 %v2724
        %v3441 = vunpack.c.h.b16 %v2724
        %v3442 = vunpack.c.l.b16 %v2725
        %v3443 = vunpack.c.h.b16 %v2725
        %v3444 = vunpack.c.l.b16 %v2726
        %v3445 = vunpack.c.h.b16 %v2726
        %v3446 = vunpack.c.l.b16 %v2727
        %v3447 = vunpack.c.h.b16 %v2727
        %v3448 = vunpack.c.l.b16 %v2728
        %v3449 = vunpack.c.h.b16 %v2728
        %v3450 = vunpack.c.l.b16 %v2729
        %v3451 = vunpack.c.h.b16 %v2729
        %v3452 = vunpack.c.l.b16 %v2730
        %v3453 = vunpack.c.h.b16 %v2730
        %v3454 = vunpack.c.l.b16 %v2731
        %v3455 = vunpack.c.h.b16 %v2731
        %v3456 = vunpack.c.l.b16 %v2732
        %v3457 = vunpack.c.h.b16 %v2732
        %v3458 = vunpack.c.l.b16 %v2733
        %v3459 = vunpack.c.h.b16 %v2733
        %v3460 = vunpack.c.l.b16 %v2734
        %v3461 = vunpack.c.h.b16 %v2734
        %v3462 = vunpack.c.l.b16 %v2735
        %v3463 = vunpack.c.h.b16 %v2735
        %v3464 = vunpack.c.l.b16 %v2736
        %v3465 = vunpack.c.h.b16 %v2736
        %v3466 = vunpack.c.l.b16 %v2737
        %v3467 = vunpack.c.h.b16 %v2737
        %v3468 = vunpack.c.l.b16 %v2738
        %v3469 = vunpack.c.h.b16 %v2738
        %v3470 = vunpack.c.l.b16 %v2739
        %v3471 = vunpack.c.h.b16 %v2739
        %v3472 = vunpack.c.l.b16 %v2740
        %v3473 = vunpack.c.h.b16 %v2740
        %v3474 = vunpack.c.l.b16 %v2741
        %v3475 = vunpack.c.h.b16 %v2741
        %v3476 = vunpack.c.l.b16 %v2742
        %v3477 = vunpack.c.h.b16 %v2742
        %v3478 = vunpack.c.l.b16 %v2743
        %v3479 = vunpack.c.h.b16 %v2743
        %v3480 = vunpack.c.l.b16 %v2744
        %v3481 = vunpack.c.h.b16 %v2744
        %v3482 = vunpack.c.l.b16 %v2745
        %v3483 = vunpack.c.h.b16 %v2745
        %v3484 = vunpack.c.l.b16 %v2746
        %v3485 = vunpack.c.h.b16 %v2746
        %v3486 = vunpack.c.l.b16 %v2747
        %v3487 = vunpack.c.h.b16 %v2747
        %v3488 = vunpack.c.l.b16 %v2748
        %v3489 = vunpack.c.h.b16 %v2748
        %v3490 = vunpack.c.l.b16 %v2749
        %v3491 = vunpack.c.h.b16 %v2749
        %v3492 = vunpack.c.l.b16 %v2750
        %v3493 = vunpack.c.h.b16 %v2750
        %v3494 = vunpack.c.l.b16 %v2751
        %v3495 = vunpack.c.h.b16 %v2751
        %v3496 = vunpack.c.l.b16 %v2752
        %v3497 = vunpack.c.h.b16 %v2752
        %v3498 = vunpack.c.l.b16 %v2753
        %v3499 = vunpack.c.h.b16 %v2753
        %v3500 = vunpack.c.l.b16 %v2754
        %v3501 = vunpack.c.h.b16 %v2754
        %v3502 = vunpack.c.l.b16 %v2755
        %v3503 = vunpack.c.h.b16 %v2755
        %v3504 = vunpack.c.l.b16 %v2756
        %v3505 = vunpack.c.h.b16 %v2756
        %v3506 = vunpack.c.l.b16 %v2757
        %v3507 = vunpack.c.h.b16 %v2757
        %v3508 = vunpack.c.l.b16 %v2758
        %v3509 = vunpack.c.h.b16 %v2758
        %v3510 = vunpack.c.l.b16 %v2759
        %v3511 = vunpack.c.h.b16 %v2759
        %v3512 = vunpack.c.l.b16 %v2760
        %v3513 = vunpack.c.h.b16 %v2760
        %v3514 = vunpack.c.l.b16 %v2761
        %v3515 = vunpack.c.h.b16 %v2761
        %v3516 = vunpack.c.l.b16 %v2762
        %v3517 = vunpack.c.h.b16 %v2762
        %v3518 = vunpack.c.l.b16 %v2763
        %v3519 = vunpack.c.h.b16 %v2763
        %v3520 = vunpack.c.l.b16 %v2764
        %v3521 = vunpack.c.h.b16 %v2764
        %v3522 = vunpack.c.l.b16 %v2765
        %v3523 = vunpack.c.h.b16 %v2765
        %v3524 = vunpack.c.l.b16 %v2766
        %v3525 = vunpack.c.h.b16 %v2766
        %v3526 = vunpack.c.l.b16 %v2767
        %v3527 = vunpack.c.h.b16 %v2767
        %v3528 = vunpack.c.l.b16 %v2768
        %v3529 = vunpack.c.h.b16 %v2768
        %v3530 = vunpack.c.l.b16 %v2769
        %v3531 = vunpack.c.h.b16 %v2769
        %v3532 = vunpack.c.l.b16 %v2770
        %v3533 = vunpack.c.h.b16 %v2770
        %v3534 = vunpack.c.l.b16 %v2771
        %v3535 = vunpack.c.h.b16 %v2771
        %v3536 = vunpack.c.l.b16 %v2772
        %v3537 = vunpack.c.h.b16 %v2772
        %v3538 = vunpack.c.l.b16 %v2773
        %v3539 = vunpack.c.h.b16 %v2773
        %v3540 = vunpack.c.l.b16 %v2774
        %v3541 = vunpack.c.h.b16 %v2774
        %v3542 = vunpack.c.l.b16 %v2775
        %v3543 = vunpack.c.h.b16 %v2775
        %v3544 = vunpack.c.l.b16 %v2776
        %v3545 = vunpack.c.h.b16 %v2776
        %v3546 = vunpack.c.l.b16 %v2777
        %v3547 = vunpack.c.h.b16 %v2777
        %v3548 = vunpack.c.l.b16 %v2778
        %v3549 = vunpack.c.h.b16 %v2778
        %v3550 = vunpack.c.l.b16 %v2779
        %v3551 = vunpack.c.h.b16 %v2779
        %v3552 = vunpack.c.l.b16 %v2780
        %v3553 = vunpack.c.h.b16 %v2780
        %v3554 = vunpack.c.l.b16 %v2781
        %v3555 = vunpack.c.h.b16 %v2781
        %v3556 = vunpack.c.l.b16 %v2782
        %v3557 = vunpack.c.h.b16 %v2782
        %v3558 = vunpack.c.l.b16 %v2783
        %v3559 = vunpack.c.h.b16 %v2783
        %v3560 = vunpack.c.l.b16 %v2784
        %v3561 = vunpack.c.h.b16 %v2784
        %v3562 = vunpack.c.l.b16 %v2785
        %v3563 = vunpack.c.h.b16 %v2785
        %v3564 = vunpack.c.l.b16 %v2786
        %v3565 = vunpack.c.h.b16 %v2786
        %v3566 = vunpack.c.l.b16 %v2787
        %v3567 = vunpack.c.h.b16 %v2787
        %v3568 = vunpack.c.l.b16 %v2788
        %v3569 = vunpack.c.h.b16 %v2788
        %v3570 = vunpack.c.l.b16 %v2789
        %v3571 = vunpack.c.h.b16 %v2789
        %v3572 = vunpack.c.l.b16 %v2790
        %v3573 = vunpack.c.h.b16 %v2790
        %v3574 = vunpack.c.l.b16 %v2791
        %v3575 = vunpack.c.h.b16 %v2791
        %v3576 = vunpack.c.l.b16 %v2792
        %v3577 = vunpack.c.h.b16 %v2792
        %v3578 = vunpack.c.l.b16 %v2793
        %v3579 = vunpack.c.h.b16 %v2793
        %v3580 = vunpack.c.l.b16 %v2794
        %v3581 = vunpack.c.h.b16 %v2794
        %v3582 = vunpack.c.l.b16 %v2795
        %v3583 = vunpack.c.h.b16 %v2795
        %v3584 = vunpack.c.l.b16 %v2796
        %v3585 = vunpack.c.h.b16 %v2796
        %v3586 = vunpack.c.l.b16 %v2797
        %v3587 = vunpack.c.h.b16 %v2797
        %v3588 = vunpack.c.l.b16 %v2798
        %v3589 = vunpack.c.h.b16 %v2798
        %v3590 = vunpack.c.l.b16 %v2799
        %v3591 = vunpack.c.h.b16 %v2799
        %v3592 = vunpack.c.l.b16 %v2800
        %v3593 = vunpack.c.h.b16 %v2800
        %v3594 = vunpack.c.l.b16 %v2801
        %v3595 = vunpack.c.h.b16 %v2801
        %v3596 = vunpack.c.l.b16 %v2802
        %v3597 = vunpack.c.h.b16 %v2802
        %v3598 = vunpack.c.l.b16 %v2803
        %v3599 = vunpack.c.h.b16 %v2803
        %v3600 = vunpack.c.l.b16 %v2804
        %v3601 = vunpack.c.h.b16 %v2804
        %v3602 = vunpack.c.l.b16 %v2805
        %v3603 = vunpack.c.h.b16 %v2805
        %v3604 = vunpack.c.l.b16 %v2806
        %v3605 = vunpack.c.h.b16 %v2806
        %v3606 = vunpack.c.l.b16 %v2807
        %v3607 = vunpack.c.h.b16 %v2807
        %v3608 = vunpack.c.l.b16 %v2808
        %v3609 = vunpack.c.h.b16 %v2808
        %v3610 = vunpack.c.l.b16 %v2809
        %v3611 = vunpack.c.h.b16 %v2809
        %v3612 = vunpack.c.l.b16 %v2810
        %v3613 = vunpack.c.h.b16 %v2810
        %v3614 = vunpack.c.l.b16 %v2811
        %v3615 = vunpack.c.h.b16 %v2811
        %v3616 = vunpack.c.l.b16 %v2812
        %v3617 = vunpack.c.h.b16 %v2812
        %v3618 = vunpack.c.l.b16 %v2813
        %v3619 = vunpack.c.h.b16 %v2813
        %v3620 = vunpack.c.l.b16 %v2814
        %v3621 = vunpack.c.h.b16 %v2814
        %v3622 = vunpack.c.l.b16 %v2815
        %v3623 = vunpack.c.h.b16 %v2815
        %v3624 = vunpack.c.l.b16 %v2816
        %v3625 = vunpack.c.h.b16 %v2816
        %v3626 = vunpack.c.l.b16 %v2817
        %v3627 = vunpack.c.h.b16 %v2817
        %v3628 = vunpack.c.l.b16 %v2818
        %v3629 = vunpack.c.h.b16 %v2818
        %v3630 = vunpack.c.l.b16 %v2819
        %v3631 = vunpack.c.h.b16 %v2819
        %v3632 = vunpack.c.l.b16 %v2820
        %v3633 = vunpack.c.h.b16 %v2820
        %v3634 = vunpack.c.l.b16 %v2821
        %v3635 = vunpack.c.h.b16 %v2821
        %v3636 = vunpack.c.l.b16 %v2822
        %v3637 = vunpack.c.h.b16 %v2822
        %v3638 = vunpack.c.l.b16 %v2823
        %v3639 = vunpack.c.h.b16 %v2823
        %v3640 = vunpack.c.l.b16 %v2824
        %v3641 = vunpack.c.h.b16 %v2824
        %v3642 = vunpack.c.l.b16 %v2825
        %v3643 = vunpack.c.h.b16 %v2825
        %v3644 = vunpack.c.l.b16 %v2826
        %v3645 = vunpack.c.h.b16 %v2826
        %v3646 = vunpack.c.l.b16 %v2827
        %v3647 = vunpack.c.h.b16 %v2827
        %v3648 = vunpack.c.l.b16 %v2828
        %v3649 = vunpack.c.h.b16 %v2828
        %v3650 = vunpack.c.l.b16 %v2829
        %v3651 = vunpack.c.h.b16 %v2829
        %v3652 = vunpack.c.l.b16 %v2830
        %v3653 = vunpack.c.h.b16 %v2830
        %v3654 = vunpack.c.l.b16 %v2831
        %v3655 = vunpack.c.h.b16 %v2831
        %v3656 = vunpack.c.l.b16 %v2832
        %v3657 = vunpack.c.h.b16 %v2832
        %v3658 = vunpack.c.l.b16 %v2833
        %v3659 = vunpack.c.h.b16 %v2833
        %v3660 = vunpack.c.l.b16 %v2834
        %v3661 = vunpack.c.h.b16 %v2834
        %v3662 = vunpack.c.l.b16 %v2835
        %v3663 = vunpack.c.h.b16 %v2835
        %v3664 = vunpack.c.l.b16 %v2836
        %v3665 = vunpack.c.h.b16 %v2836
        %v3666 = vunpack.c.l.b16 %v2837
        %v3667 = vunpack.c.h.b16 %v2837
        %v3668 = vunpack.c.l.b16 %v2838
        %v3669 = vunpack.c.h.b16 %v2838
        %v3670 = vunpack.c.l.b16 %v2839
        %v3671 = vunpack.c.h.b16 %v2839
        %v3672 = vpack.c.b16 %v3420, %v3416
        %v3673 = vpack.c.b16 %v3421, %v3417
        %v3674 = vpack.c.b16 %v3422, %v3418
        %v3675 = vpack.c.b16 %v3423, %v3419
        %v3676 = vpack.c.b16 %v3428, %v3424
        %v3677 = vpack.c.b16 %v3429, %v3425
        %v3678 = vpack.c.b16 %v3430, %v3426
        %v3679 = vpack.c.b16 %v3431, %v3427
        %v3680 = vpack.c.b16 %v3436, %v3432
        %v3681 = vpack.c.b16 %v3437, %v3433
        %v3682 = vpack.c.b16 %v3438, %v3434
        %v3683 = vpack.c.b16 %v3439, %v3435
        %v3684 = vpack.c.b16 %v3444, %v3440
        %v3685 = vpack.c.b16 %v3445, %v3441
        %v3686 = vpack.c.b16 %v3446, %v3442
        %v3687 = vpack.c.b16 %v3447, %v3443
        %v3688 = vpack.c.b16 %v3452, %v3448
        %v3689 = vpack.c.b16 %v3453, %v3449
        %v3690 = vpack.c.b16 %v3454, %v3450
        %v3691 = vpack.c.b16 %v3455, %v3451
        %v3692 = vpack.c.b16 %v3460, %v3456
        %v3693 = vpack.c.b16 %v3461, %v3457
        %v3694 = vpack.c.b16 %v3462, %v3458
        %v3695 = vpack.c.b16 %v3463, %v3459
        %v3696 = vpack.c.b16 %v3468, %v3464
        %v3697 = vpack.c.b16 %v3469, %v3465
        %v3698 = vpack.c.b16 %v3470, %v3466
        %v3699 = vpack.c.b16 %v3471, %v3467
        %v3700 = vpack.c.b16 %v3476, %v3472
        %v3701 = vpack.c.b16 %v3477, %v3473
        %v3702 = vpack.c.b16 %v3478, %v3474
        %v3703 = vpack.c.b16 %v3479, %v3475
        %v3704 = vpack.c.b16 %v3484, %v3480
        %v3705 = vpack.c.b16 %v3485, %v3481
        %v3706 = vpack.c.b16 %v3486, %v3482
        %v3707 = vpack.c.b16 %v3487, %v3483
        %v3708 = vpack.c.b16 %v3492, %v3488
        %v3709 = vpack.c.b16 %v3493, %v3489
        %v3710 = vpack.c.b16 %v3494, %v3490
        %v3711 = vpack.c.b16 %v3495, %v3491
        %v3712 = vpack.c.b16 %v3500, %v3496
        %v3713 = vpack.c.b16 %v3501, %v3497
        %v3714 = vpack.c.b16 %v3502, %v3498
        %v3715 = vpack.c.b16 %v3503, %v3499
        %v3716 = vpack.c.b16 %v3508, %v3504
        %v3717 = vpack.c.b16 %v3509, %v3505
        %v3718 = vpack.c.b16 %v3510, %v3506
        %v3719 = vpack.c.b16 %v3511, %v3507
        %v3720 = vpack.c.b16 %v3516, %v3512
        %v3721 = vpack.c.b16 %v3517, %v3513
        %v3722 = vpack.c.b16 %v3518, %v3514
        %v3723 = vpack.c.b16 %v3519, %v3515
        %v3724 = vpack.c.b16 %v3524, %v3520
        %v3725 = vpack.c.b16 %v3525, %v3521
        %v3726 = vpack.c.b16 %v3526, %v3522
        %v3727 = vpack.c.b16 %v3527, %v3523
        %v3728 = vpack.c.b16 %v3532, %v3528
        %v3729 = vpack.c.b16 %v3533, %v3529
        %v3730 = vpack.c.b16 %v3534, %v3530
        %v3731 = vpack.c.b16 %v3535, %v3531
        %v3732 = vpack.c.b16 %v3540, %v3536
        %v3733 = vpack.c.b16 %v3541, %v3537
        %v3734 = vpack.c.b16 %v3542, %v3538
        %v3735 = vpack.c.b16 %v3543, %v3539
        %v3736 = vpack.c.b16 %v3548, %v3544
        %v3737 = vpack.c.b16 %v3549, %v3545
        %v3738 = vpack.c.b16 %v3550, %v3546
        %v3739 = vpack.c.b16 %v3551, %v3547
        %v3740 = vpack.c.b16 %v3556, %v3552
        %v3741 = vpack.c.b16 %v3557, %v3553
        %v3742 = vpack.c.b16 %v3558, %v3554
        %v3743 = vpack.c.b16 %v3559, %v3555
        %v3744 = vpack.c.b16 %v3564, %v3560
        %v3745 = vpack.c.b16 %v3565, %v3561
        %v3746 = vpack.c.b16 %v3566, %v3562
        %v3747 = vpack.c.b16 %v3567, %v3563
        %v3748 = vpack.c.b16 %v3572, %v3568
        %v3749 = vpack.c.b16 %v3573, %v3569
        %v3750 = vpack.c.b16 %v3574, %v3570
        %v3751 = vpack.c.b16 %v3575, %v3571
        %v3752 = vpack.c.b16 %v3580, %v3576
        %v3753 = vpack.c.b16 %v3581, %v3577
        %v3754 = vpack.c.b16 %v3582, %v3578
        %v3755 = vpack.c.b16 %v3583, %v3579
        %v3756 = vpack.c.b16 %v3588, %v3584
        %v3757 = vpack.c.b16 %v3589, %v3585
        %v3758 = vpack.c.b16 %v3590, %v3586
        %v3759 = vpack.c.b16 %v3591, %v3587
        %v3760 = vpack.c.b16 %v3596, %v3592
        %v3761 = vpack.c.b16 %v3597, %v3593
        %v3762 = vpack.c.b16 %v3598, %v3594
        %v3763 = vpack.c.b16 %v3599, %v3595
        %v3764 = vpack.c.b16 %v3604, %v3600
        %v3765 = vpack.c.b16 %v3605, %v3601
        %v3766 = vpack.c.b16 %v3606, %v3602
        %v3767 = vpack.c.b16 %v3607, %v3603
        %v3768 = vpack.c.b16 %v3612, %v3608
        %v3769 = vpack.c.b16 %v3613, %v3609
        %v3770 = vpack.c.b16 %v3614, %v3610
        %v3771 = vpack.c.b16 %v3615, %v3611
        %v3772 = vpack.c.b16 %v3620, %v3616
        %v3773 = vpack.c.b16 %v3621, %v3617
        %v3774 = vpack.c.b16 %v3622, %v3618
        %v3775 = vpack.c.b16 %v3623, %v3619
        %v3776 = vpack.c.b16 %v3628, %v3624
        %v3777 = vpack.c.b16 %v3629, %v3625
        %v3778 = vpack.c.b16 %v3630, %v3626
        %v3779 = vpack.c.b16 %v3631, %v3627
        %v3780 = vpack.c.b16 %v3636, %v3632
        %v3781 = vpack.c.b16 %v3637, %v3633
        %v3782 = vpack.c.b16 %v3638, %v3634
        %v3783 = vpack.c.b16 %v3639, %v3635
        %v3784 = vpack.c.b16 %v3644, %v3640
        %v3785 = vpack.c.b16 %v3645, %v3641
        %v3786 = vpack.c.b16 %v3646, %v3642
        %v3787 = vpack.c.b16 %v3647, %v3643
        %v3788 = vpack.c.b16 %v3652, %v3648
        %v3789 = vpack.c.b16 %v3653, %v3649
        %v3790 = vpack.c.b16 %v3654, %v3650
        %v3791 = vpack.c.b16 %v3655, %v3651
        %v3792 = vpack.c.b16 %v3660, %v3656
        %v3793 = vpack.c.b16 %v3661, %v3657
        %v3794 = vpack.c.b16 %v3662, %v3658
        %v3795 = vpack.c.b16 %v3663, %v3659
        %v3796 = vpack.c.b16 %v3668, %v3664
        %v3797 = vpack.c.b16 %v3669, %v3665
        %v3798 = vpack.c.b16 %v3670, %v3666
        %v3799 = vpack.c.b16 %v3671, %v3667
        %3928 = vmatprep.subr.bf16.mxu0 %v2855
        %3929 = vmatpush1.bf16.msra.mxu0 %v2854
        %3930 = vmatprep.subr.bf16.mxu0 %v2853
        %3931 = vmatpush1.bf16.msra.mxu0 %v2852
        %3932 = vmatprep.subr.bf16.mxu0 %v2851
        %3933 = vmatpush1.bf16.msra.mxu0 %v2850
        %3934 = vmatprep.subr.bf16.mxu0 %v2849
        %3935 = vmatpush1.bf16.msra.mxu0 %v2848
        %3936 = vmatprep.subr.bf16.mxu0 %v2847
        %3937 = vmatpush1.bf16.msra.mxu0 %v2846
        %3938 = vmatprep.subr.bf16.mxu0 %v2845
        %3939 = vmatpush1.bf16.msra.mxu0 %v2844
        %3940 = vmatprep.subr.bf16.mxu0 %v2843
        %3941 = vmatpush1.bf16.msra.mxu0 %v2842
        %3942 = vmatprep.subr.bf16.mxu0 %v2841
        %3943 = vmatpush1.bf16.msra.mxu0 %v2840
        %3944 = vmatprep.subr.bf16.mxu0 %v2871
        %3945 = vmatpush2.bf16.msra.mxu0 %v2870
        %3946 = vmatprep.subr.bf16.mxu0 %v2869
        %3947 = vmatpush2.bf16.msra.mxu0 %v2868
        %3948 = vmatprep.subr.bf16.mxu0 %v2867
        %3949 = vmatpush2.bf16.msra.mxu0 %v2866
        %3950 = vmatprep.subr.bf16.mxu0 %v2865
        %3951 = vmatpush2.bf16.msra.mxu0 %v2864
        %3952 = vmatprep.subr.bf16.mxu0 %v2863
        %3953 = vmatpush2.bf16.msra.mxu0 %v2862
        %3954 = vmatprep.subr.bf16.mxu0 %v2861
        %3955 = vmatpush2.bf16.msra.mxu0 %v2860
        %3956 = vmatprep.subr.bf16.mxu0 %v2859
        %3957 = vmatpush2.bf16.msra.mxu0 %v2858
        %3958 = vmatprep.subr.bf16.mxu0 %v2857
        %3959 = vmatpush2.bf16.msra.mxu0 %v2856
        %3960 = vmatprep.mubr.bf16.mxu0 %v3673
        %3961 = vmatmul.mubr.bf16.gmra.mxu0 %v3672
        %v3962 = vpop.f32.mrf.mxu0
        %v3963 = vadd.f32 %v2971, %v3962
        %v3964 = vpop.f32.mrf.mxu0
        %v3965 = vadd.f32 %v2971, %v3964
        %v3966 = vpop.f32.mrf.mxu0
        %v3967 = vadd.f32 %v2976, %v3966
        %v3968 = vpop.f32.mrf.mxu0
        %v3969 = vadd.f32 %v2976, %v3968
        %3970 = vmatprep.mubr.bf16.mxu0 %v3677
        %3971 = vmatmul.mubr.bf16.gmra.mxu0 %v3676
        %v3972 = vpop.f32.mrf.mxu0
        %v3973 = vadd.f32 %v2981, %v3972
        %v3974 = vpop.f32.mrf.mxu0
        %v3975 = vadd.f32 %v2981, %v3974
        %v3976 = vpop.f32.mrf.mxu0
        %v3977 = vadd.f32 %v2986, %v3976
        %v3978 = vpop.f32.mrf.mxu0
        %v3979 = vadd.f32 %v2986, %v3978
        %3980 = vmatprep.mubr.bf16.mxu0 %v3681
        %3981 = vmatmul.mubr.bf16.gmra.mxu0 %v3680
        %v3982 = vpop.f32.mrf.mxu0
        %v3983 = vadd.f32 %v2991, %v3982
        %v3984 = vpop.f32.mrf.mxu0
        %v3985 = vadd.f32 %v2991, %v3984
        %v3986 = vpop.f32.mrf.mxu0
        %v3987 = vadd.f32 %v2996, %v3986
        %v3988 = vpop.f32.mrf.mxu0
        %v3989 = vadd.f32 %v2996, %v3988
        %3990 = vmatprep.mubr.bf16.mxu0 %v3685
        %3991 = vmatmul.mubr.bf16.gmra.mxu0 %v3684
        %v3992 = vpop.f32.mrf.mxu0
        %v3993 = vadd.f32 %v3001, %v3992
        %v3994 = vpop.f32.mrf.mxu0
        %v3995 = vadd.f32 %v3001, %v3994
        %v3996 = vpop.f32.mrf.mxu0
        %v3997 = vadd.f32 %v3006, %v3996
        %v3998 = vpop.f32.mrf.mxu0
        %v3999 = vadd.f32 %v3006, %v3998
        %4000 = vmatprep.mubr.bf16.mxu0 %v3689
        %4001 = vmatmul.mubr.bf16.gmra.mxu0 %v3688
        %v4002 = vpop.f32.mrf.mxu0
        %v4003 = vadd.f32 %v3011, %v4002
        %v4004 = vpop.f32.mrf.mxu0
        %v4005 = vadd.f32 %v3011, %v4004
        %v4006 = vpop.f32.mrf.mxu0
        %v4007 = vadd.f32 %v3016, %v4006
        %v4008 = vpop.f32.mrf.mxu0
        %v4009 = vadd.f32 %v3016, %v4008
        %4010 = vmatprep.mubr.bf16.mxu0 %v3693
        %4011 = vmatmul.mubr.bf16.gmra.mxu0 %v3692
        %v4012 = vpop.f32.mrf.mxu0
        %v4013 = vadd.f32 %v3021, %v4012
        %v4014 = vpop.f32.mrf.mxu0
        %v4015 = vadd.f32 %v3021, %v4014
        %v4016 = vpop.f32.mrf.mxu0
        %v4017 = vadd.f32 %v3026, %v4016
        %v4018 = vpop.f32.mrf.mxu0
        %v4019 = vadd.f32 %v3026, %v4018
        %4020 = vmatprep.mubr.bf16.mxu0 %v3697
        %4021 = vmatmul.mubr.bf16.gmra.mxu0 %v3696
        %v4022 = vpop.f32.mrf.mxu0
        %v4023 = vadd.f32 %v3031, %v4022
        %v4024 = vpop.f32.mrf.mxu0
        %v4025 = vadd.f32 %v3031, %v4024
        %v4026 = vpop.f32.mrf.mxu0
        %v4027 = vadd.f32 %v3036, %v4026
        %v4028 = vpop.f32.mrf.mxu0
        %v4029 = vadd.f32 %v3036, %v4028
        %4030 = vmatprep.mubr.bf16.mxu0 %v3701
        %4031 = vmatmul.mubr.bf16.gmra.mxu0 %v3700
        %v4032 = vpop.f32.mrf.mxu0
        %v4033 = vadd.f32 %v3041, %v4032
        %v4034 = vpop.f32.mrf.mxu0
        %v4035 = vadd.f32 %v3041, %v4034
        %v4036 = vpop.f32.mrf.mxu0
        %v4037 = vadd.f32 %v3046, %v4036
        %v4038 = vpop.f32.mrf.mxu0
        %v4039 = vadd.f32 %v3046, %v4038
        %4040 = vmatprep.mubr.bf16.mxu0 %v3705
        %4041 = vmatmul.mubr.bf16.gmra.mxu0 %v3704
        %v4042 = vpop.f32.mrf.mxu0
        %v4043 = vadd.f32 %v3051, %v4042
        %v4044 = vpop.f32.mrf.mxu0
        %v4045 = vadd.f32 %v3051, %v4044
        %v4046 = vpop.f32.mrf.mxu0
        %v4047 = vadd.f32 %v3056, %v4046
        %v4048 = vpop.f32.mrf.mxu0
        %v4049 = vadd.f32 %v3056, %v4048
        %4050 = vmatprep.mubr.bf16.mxu0 %v3709
        %4051 = vmatmul.mubr.bf16.gmra.mxu0 %v3708
        %v4052 = vpop.f32.mrf.mxu0
        %v4053 = vadd.f32 %v3061, %v4052
        %v4054 = vpop.f32.mrf.mxu0
        %v4055 = vadd.f32 %v3061, %v4054
        %v4056 = vpop.f32.mrf.mxu0
        %v4057 = vadd.f32 %v3066, %v4056
        %v4058 = vpop.f32.mrf.mxu0
        %v4059 = vadd.f32 %v3066, %v4058
        %4060 = vmatprep.mubr.bf16.mxu0 %v3713
        %4061 = vmatmul.mubr.bf16.gmra.mxu0 %v3712
        %v4062 = vpop.f32.mrf.mxu0
        %v4063 = vadd.f32 %v3071, %v4062
        %v4064 = vpop.f32.mrf.mxu0
        %v4065 = vadd.f32 %v3071, %v4064
        %v4066 = vpop.f32.mrf.mxu0
        %v4067 = vadd.f32 %v3076, %v4066
        %v4068 = vpop.f32.mrf.mxu0
        %v4069 = vadd.f32 %v3076, %v4068
        %4070 = vmatprep.mubr.bf16.mxu0 %v3717
        %4071 = vmatmul.mubr.bf16.gmra.mxu0 %v3716
        %v4072 = vpop.f32.mrf.mxu0
        %v4073 = vadd.f32 %v3081, %v4072
        %v4074 = vpop.f32.mrf.mxu0
        %v4075 = vadd.f32 %v3081, %v4074
        %v4076 = vpop.f32.mrf.mxu0
        %v4077 = vadd.f32 %v3086, %v4076
        %v4078 = vpop.f32.mrf.mxu0
        %v4079 = vadd.f32 %v3086, %v4078
        %4080 = vmatprep.mubr.bf16.mxu0 %v3721
        %4081 = vmatmul.mubr.bf16.gmra.mxu0 %v3720
        %v4082 = vpop.f32.mrf.mxu0
        %v4083 = vadd.f32 %v3091, %v4082
        %v4084 = vpop.f32.mrf.mxu0
        %v4085 = vadd.f32 %v3091, %v4084
        %v4086 = vpop.f32.mrf.mxu0
        %v4087 = vadd.f32 %v3096, %v4086
        %v4088 = vpop.f32.mrf.mxu0
        %v4089 = vadd.f32 %v3096, %v4088
        %4090 = vmatprep.mubr.bf16.mxu0 %v3725
        %4091 = vmatmul.mubr.bf16.gmra.mxu0 %v3724
        %v4092 = vpop.f32.mrf.mxu0
        %v4093 = vadd.f32 %v3101, %v4092
        %v4094 = vpop.f32.mrf.mxu0
        %v4095 = vadd.f32 %v3101, %v4094
        %v4096 = vpop.f32.mrf.mxu0
        %v4097 = vadd.f32 %v3106, %v4096
        %v4098 = vpop.f32.mrf.mxu0
        %v4099 = vadd.f32 %v3106, %v4098
        %4100 = vmatprep.mubr.bf16.mxu0 %v3729
        %4101 = vmatmul.mubr.bf16.gmra.mxu0 %v3728
        %v4102 = vpop.f32.mrf.mxu0
        %v4103 = vadd.f32 %v3111, %v4102
        %v4104 = vpop.f32.mrf.mxu0
        %v4105 = vadd.f32 %v3111, %v4104
        %v4106 = vpop.f32.mrf.mxu0
        %v4107 = vadd.f32 %v3116, %v4106
        %v4108 = vpop.f32.mrf.mxu0
        %v4109 = vadd.f32 %v3116, %v4108
        %4110 = vmatprep.mubr.bf16.mxu0 %v3733
        %4111 = vmatmul.mubr.bf16.gmra.mxu0 %v3732
        %v4112 = vpop.f32.mrf.mxu0
        %v4113 = vadd.f32 %v3121, %v4112
        %v4114 = vpop.f32.mrf.mxu0
        %v4115 = vadd.f32 %v3121, %v4114
        %v4116 = vpop.f32.mrf.mxu0
        %v4117 = vadd.f32 %v3126, %v4116
        %v4118 = vpop.f32.mrf.mxu0
        %v4119 = vadd.f32 %v3126, %v4118
        %4120 = vmatprep.mubr.bf16.mxu0 %v3737
        %4121 = vmatmul.mubr.bf16.gmra.mxu0 %v3736
        %v4122 = vpop.f32.mrf.mxu0
        %v4123 = vadd.f32 %v3131, %v4122
        %v4124 = vpop.f32.mrf.mxu0
        %v4125 = vadd.f32 %v3131, %v4124
        %v4126 = vpop.f32.mrf.mxu0
        %v4127 = vadd.f32 %v3136, %v4126
        %v4128 = vpop.f32.mrf.mxu0
        %v4129 = vadd.f32 %v3136, %v4128
        %4130 = vmatprep.mubr.bf16.mxu0 %v3741
        %4131 = vmatmul.mubr.bf16.gmra.mxu0 %v3740
        %v4132 = vpop.f32.mrf.mxu0
        %v4133 = vadd.f32 %v3141, %v4132
        %v4134 = vpop.f32.mrf.mxu0
        %v4135 = vadd.f32 %v3141, %v4134
        %v4136 = vpop.f32.mrf.mxu0
        %v4137 = vadd.f32 %v3146, %v4136
        %v4138 = vpop.f32.mrf.mxu0
        %v4139 = vadd.f32 %v3146, %v4138
        %4140 = vmatprep.mubr.bf16.mxu0 %v3745
        %4141 = vmatmul.mubr.bf16.gmra.mxu0 %v3744
        %v4142 = vpop.f32.mrf.mxu0
        %v4143 = vadd.f32 %v3151, %v4142
        %v4144 = vpop.f32.mrf.mxu0
        %v4145 = vadd.f32 %v3151, %v4144
        %v4146 = vpop.f32.mrf.mxu0
        %v4147 = vadd.f32 %v3156, %v4146
        %v4148 = vpop.f32.mrf.mxu0
        %v4149 = vadd.f32 %v3156, %v4148
        %4150 = vmatprep.mubr.bf16.mxu0 %v3749
        %4151 = vmatmul.mubr.bf16.gmra.mxu0 %v3748
        %v4152 = vpop.f32.mrf.mxu0
        %v4153 = vadd.f32 %v3161, %v4152
        %v4154 = vpop.f32.mrf.mxu0
        %v4155 = vadd.f32 %v3161, %v4154
        %v4156 = vpop.f32.mrf.mxu0
        %v4157 = vadd.f32 %v3166, %v4156
        %v4158 = vpop.f32.mrf.mxu0
        %v4159 = vadd.f32 %v3166, %v4158
        %4160 = vmatprep.mubr.bf16.mxu0 %v3753
        %4161 = vmatmul.mubr.bf16.gmra.mxu0 %v3752
        %v4162 = vpop.f32.mrf.mxu0
        %v4163 = vadd.f32 %v3171, %v4162
        %v4164 = vpop.f32.mrf.mxu0
        %v4165 = vadd.f32 %v3171, %v4164
        %v4166 = vpop.f32.mrf.mxu0
        %v4167 = vadd.f32 %v3176, %v4166
        %v4168 = vpop.f32.mrf.mxu0
        %v4169 = vadd.f32 %v3176, %v4168
        %4170 = vmatprep.mubr.bf16.mxu0 %v3757
        %4171 = vmatmul.mubr.bf16.gmra.mxu0 %v3756
        %v4172 = vpop.f32.mrf.mxu0
        %v4173 = vadd.f32 %v3181, %v4172
        %v4174 = vpop.f32.mrf.mxu0
        %v4175 = vadd.f32 %v3181, %v4174
        %v4176 = vpop.f32.mrf.mxu0
        %v4177 = vadd.f32 %v3186, %v4176
        %v4178 = vpop.f32.mrf.mxu0
        %v4179 = vadd.f32 %v3186, %v4178
        %4180 = vmatprep.mubr.bf16.mxu0 %v3761
        %4181 = vmatmul.mubr.bf16.gmra.mxu0 %v3760
        %v4182 = vpop.f32.mrf.mxu0
        %v4183 = vadd.f32 %v3191, %v4182
        %v4184 = vpop.f32.mrf.mxu0
        %v4185 = vadd.f32 %v3191, %v4184
        %v4186 = vpop.f32.mrf.mxu0
        %v4187 = vadd.f32 %v3196, %v4186
        %v4188 = vpop.f32.mrf.mxu0
        %v4189 = vadd.f32 %v3196, %v4188
        %4190 = vmatprep.mubr.bf16.mxu0 %v3765
        %4191 = vmatmul.mubr.bf16.gmra.mxu0 %v3764
        %v4192 = vpop.f32.mrf.mxu0
        %v4193 = vadd.f32 %v3201, %v4192
        %v4194 = vpop.f32.mrf.mxu0
        %v4195 = vadd.f32 %v3201, %v4194
        %v4196 = vpop.f32.mrf.mxu0
        %v4197 = vadd.f32 %v3206, %v4196
        %v4198 = vpop.f32.mrf.mxu0
        %v4199 = vadd.f32 %v3206, %v4198
        %4200 = vmatprep.mubr.bf16.mxu0 %v3769
        %4201 = vmatmul.mubr.bf16.gmra.mxu0 %v3768
        %v4202 = vpop.f32.mrf.mxu0
        %v4203 = vadd.f32 %v3211, %v4202
        %v4204 = vpop.f32.mrf.mxu0
        %v4205 = vadd.f32 %v3211, %v4204
        %v4206 = vpop.f32.mrf.mxu0
        %v4207 = vadd.f32 %v3216, %v4206
        %v4208 = vpop.f32.mrf.mxu0
        %v4209 = vadd.f32 %v3216, %v4208
        %4210 = vmatprep.mubr.bf16.mxu0 %v3773
        %4211 = vmatmul.mubr.bf16.gmra.mxu0 %v3772
        %v4212 = vpop.f32.mrf.mxu0
        %v4213 = vadd.f32 %v3221, %v4212
        %v4214 = vpop.f32.mrf.mxu0
        %v4215 = vadd.f32 %v3221, %v4214
        %v4216 = vpop.f32.mrf.mxu0
        %v4217 = vadd.f32 %v3226, %v4216
        %v4218 = vpop.f32.mrf.mxu0
        %v4219 = vadd.f32 %v3226, %v4218
        %4220 = vmatprep.mubr.bf16.mxu0 %v3777
        %4221 = vmatmul.mubr.bf16.gmra.mxu0 %v3776
        %v4222 = vpop.f32.mrf.mxu0
        %v4223 = vadd.f32 %v3231, %v4222
        %v4224 = vpop.f32.mrf.mxu0
        %v4225 = vadd.f32 %v3231, %v4224
        %v4226 = vpop.f32.mrf.mxu0
        %v4227 = vadd.f32 %v3236, %v4226
        %v4228 = vpop.f32.mrf.mxu0
        %v4229 = vadd.f32 %v3236, %v4228
        %4230 = vmatprep.mubr.bf16.mxu0 %v3781
        %4231 = vmatmul.mubr.bf16.gmra.mxu0 %v3780
        %v4232 = vpop.f32.mrf.mxu0
        %v4233 = vadd.f32 %v3241, %v4232
        %v4234 = vpop.f32.mrf.mxu0
        %v4235 = vadd.f32 %v3241, %v4234
        %v4236 = vpop.f32.mrf.mxu0
        %v4237 = vadd.f32 %v3246, %v4236
        %v4238 = vpop.f32.mrf.mxu0
        %v4239 = vadd.f32 %v3246, %v4238
        %4240 = vmatprep.mubr.bf16.mxu0 %v3785
        %4241 = vmatmul.mubr.bf16.gmra.mxu0 %v3784
        %v4242 = vpop.f32.mrf.mxu0
        %v4243 = vadd.f32 %v3251, %v4242
        %v4244 = vpop.f32.mrf.mxu0
        %v4245 = vadd.f32 %v3251, %v4244
        %v4246 = vpop.f32.mrf.mxu0
        %v4247 = vadd.f32 %v3256, %v4246
        %v4248 = vpop.f32.mrf.mxu0
        %v4249 = vadd.f32 %v3256, %v4248
        %4250 = vmatprep.mubr.bf16.mxu0 %v3789
        %4251 = vmatmul.mubr.bf16.gmra.mxu0 %v3788
        %v4252 = vpop.f32.mrf.mxu0
        %v4253 = vadd.f32 %v3261, %v4252
        %v4254 = vpop.f32.mrf.mxu0
        %v4255 = vadd.f32 %v3261, %v4254
        %v4256 = vpop.f32.mrf.mxu0
        %v4257 = vadd.f32 %v3266, %v4256
        %v4258 = vpop.f32.mrf.mxu0
        %v4259 = vadd.f32 %v3266, %v4258
        %4260 = vmatprep.mubr.bf16.mxu0 %v3793
        %4261 = vmatmul.mubr.bf16.gmra.mxu0 %v3792
        %v4262 = vpop.f32.mrf.mxu0
        %v4263 = vadd.f32 %v3271, %v4262
        %v4264 = vpop.f32.mrf.mxu0
        %v4265 = vadd.f32 %v3271, %v4264
        %v4266 = vpop.f32.mrf.mxu0
        %v4267 = vadd.f32 %v3276, %v4266
        %v4268 = vpop.f32.mrf.mxu0
        %v4269 = vadd.f32 %v3276, %v4268
        %4270 = vmatprep.mubr.bf16.mxu0 %v3797
        %4271 = vmatmul.mubr.bf16.gmra.mxu0 %v3796
        %v4272 = vpop.f32.mrf.mxu0
        %v4273 = vadd.f32 %v3281, %v4272
        %v4274 = vpop.f32.mrf.mxu0
        %v4275 = vadd.f32 %v3281, %v4274
        %v4276 = vpop.f32.mrf.mxu0
        %v4277 = vadd.f32 %v3286, %v4276
        %v4278 = vpop.f32.mrf.mxu0
        %v4279 = vadd.f32 %v3286, %v4278
        %4280 = vdwg.mxu0
        %4281 = vmatprep.subr.bf16.mxu0 %v2887
        %4282 = vmatpush1.bf16.msra.mxu0 %v2886
        %4283 = vmatprep.subr.bf16.mxu0 %v2885
        %4284 = vmatpush1.bf16.msra.mxu0 %v2884
        %4285 = vmatprep.subr.bf16.mxu0 %v2883
        %4286 = vmatpush1.bf16.msra.mxu0 %v2882
        %4287 = vmatprep.subr.bf16.mxu0 %v2881
        %4288 = vmatpush1.bf16.msra.mxu0 %v2880
        %4289 = vmatprep.subr.bf16.mxu0 %v2879
        %4290 = vmatpush1.bf16.msra.mxu0 %v2878
        %4291 = vmatprep.subr.bf16.mxu0 %v2877
        %4292 = vmatpush1.bf16.msra.mxu0 %v2876
        %4293 = vmatprep.subr.bf16.mxu0 %v2875
        %4294 = vmatpush1.bf16.msra.mxu0 %v2874
        %4295 = vmatprep.subr.bf16.mxu0 %v2873
        %4296 = vmatpush1.bf16.msra.mxu0 %v2872
        %4297 = vmatprep.subr.bf16.mxu0 %v2903
        %4298 = vmatpush2.bf16.msra.mxu0 %v2902
        %4299 = vmatprep.subr.bf16.mxu0 %v2901
        %4300 = vmatpush2.bf16.msra.mxu0 %v2900
        %4301 = vmatprep.subr.bf16.mxu0 %v2899
        %4302 = vmatpush2.bf16.msra.mxu0 %v2898
        %4303 = vmatprep.subr.bf16.mxu0 %v2897
        %4304 = vmatpush2.bf16.msra.mxu0 %v2896
        %4305 = vmatprep.subr.bf16.mxu0 %v2895
        %4306 = vmatpush2.bf16.msra.mxu0 %v2894
        %4307 = vmatprep.subr.bf16.mxu0 %v2893
        %4308 = vmatpush2.bf16.msra.mxu0 %v2892
        %4309 = vmatprep.subr.bf16.mxu0 %v2891
        %4310 = vmatpush2.bf16.msra.mxu0 %v2890
        %4311 = vmatprep.subr.bf16.mxu0 %v2889
        %4312 = vmatpush2.bf16.msra.mxu0 %v2888
        %4313 = vmatprep.mubr.bf16.mxu0 %v3675
        %4314 = vmatmul.mubr.bf16.gmra.mxu0 %v3674
        %v4315 = vpop.f32.mrf.mxu0
        %v4316 = vadd.f32 %v3963, %v4315
        %v4317 = vpop.f32.mrf.mxu0
        %v4318 = vadd.f32 %v3965, %v4317
        %v4319 = vpop.f32.mrf.mxu0
        %v4320 = vadd.f32 %v3967, %v4319
        %v4321 = vpop.f32.mrf.mxu0
        %v4322 = vadd.f32 %v3969, %v4321
        %4323 = vmatprep.mubr.bf16.mxu0 %v3679
        %4324 = vmatmul.mubr.bf16.gmra.mxu0 %v3678
        %v4325 = vpop.f32.mrf.mxu0
        %v4326 = vadd.f32 %v3973, %v4325
        %v4327 = vpop.f32.mrf.mxu0
        %v4328 = vadd.f32 %v3975, %v4327
        %v4329 = vpop.f32.mrf.mxu0
        %v4330 = vadd.f32 %v3977, %v4329
        %v4331 = vpop.f32.mrf.mxu0
        %v4332 = vadd.f32 %v3979, %v4331
        %4333 = vmatprep.mubr.bf16.mxu0 %v3683
        %4334 = vmatmul.mubr.bf16.gmra.mxu0 %v3682
        %v4335 = vpop.f32.mrf.mxu0
        %v4336 = vadd.f32 %v3983, %v4335
        %v4337 = vpop.f32.mrf.mxu0
        %v4338 = vadd.f32 %v3985, %v4337
        %v4339 = vpop.f32.mrf.mxu0
        %v4340 = vadd.f32 %v3987, %v4339
        %v4341 = vpop.f32.mrf.mxu0
        %v4342 = vadd.f32 %v3989, %v4341
        %4343 = vmatprep.mubr.bf16.mxu0 %v3687
        %4344 = vmatmul.mubr.bf16.gmra.mxu0 %v3686
        %v4345 = vpop.f32.mrf.mxu0
        %v4346 = vadd.f32 %v3993, %v4345
        %v4347 = vpop.f32.mrf.mxu0
        %v4348 = vadd.f32 %v3995, %v4347
        %v4349 = vpop.f32.mrf.mxu0
        %v4350 = vadd.f32 %v3997, %v4349
        %v4351 = vpop.f32.mrf.mxu0
        %v4352 = vadd.f32 %v3999, %v4351
        %4353 = vmatprep.mubr.bf16.mxu0 %v3691
        %4354 = vmatmul.mubr.bf16.gmra.mxu0 %v3690
        %v4355 = vpop.f32.mrf.mxu0
        %v4356 = vadd.f32 %v4003, %v4355
        %v4357 = vpop.f32.mrf.mxu0
        %v4358 = vadd.f32 %v4005, %v4357
        %v4359 = vpop.f32.mrf.mxu0
        %v4360 = vadd.f32 %v4007, %v4359
        %v4361 = vpop.f32.mrf.mxu0
        %v4362 = vadd.f32 %v4009, %v4361
        %4363 = vmatprep.mubr.bf16.mxu0 %v3695
        %4364 = vmatmul.mubr.bf16.gmra.mxu0 %v3694
        %v4365 = vpop.f32.mrf.mxu0
        %v4366 = vadd.f32 %v4013, %v4365
        %v4367 = vpop.f32.mrf.mxu0
        %v4368 = vadd.f32 %v4015, %v4367
        %v4369 = vpop.f32.mrf.mxu0
        %v4370 = vadd.f32 %v4017, %v4369
        %v4371 = vpop.f32.mrf.mxu0
        %v4372 = vadd.f32 %v4019, %v4371
        %4373 = vmatprep.mubr.bf16.mxu0 %v3699
        %4374 = vmatmul.mubr.bf16.gmra.mxu0 %v3698
        %v4375 = vpop.f32.mrf.mxu0
        %v4376 = vadd.f32 %v4023, %v4375
        %v4377 = vpop.f32.mrf.mxu0
        %v4378 = vadd.f32 %v4025, %v4377
        %v4379 = vpop.f32.mrf.mxu0
        %v4380 = vadd.f32 %v4027, %v4379
        %v4381 = vpop.f32.mrf.mxu0
        %v4382 = vadd.f32 %v4029, %v4381
        %4383 = vmatprep.mubr.bf16.mxu0 %v3703
        %4384 = vmatmul.mubr.bf16.gmra.mxu0 %v3702
        %v4385 = vpop.f32.mrf.mxu0
        %v4386 = vadd.f32 %v4033, %v4385
        %v4387 = vpop.f32.mrf.mxu0
        %v4388 = vadd.f32 %v4035, %v4387
        %v4389 = vpop.f32.mrf.mxu0
        %v4390 = vadd.f32 %v4037, %v4389
        %v4391 = vpop.f32.mrf.mxu0
        %v4392 = vadd.f32 %v4039, %v4391
        %4393 = vmatprep.mubr.bf16.mxu0 %v3707
        %4394 = vmatmul.mubr.bf16.gmra.mxu0 %v3706
        %v4395 = vpop.f32.mrf.mxu0
        %v4396 = vadd.f32 %v4043, %v4395
        %v4397 = vpop.f32.mrf.mxu0
        %v4398 = vadd.f32 %v4045, %v4397
        %v4399 = vpop.f32.mrf.mxu0
        %v4400 = vadd.f32 %v4047, %v4399
        %v4401 = vpop.f32.mrf.mxu0
        %v4402 = vadd.f32 %v4049, %v4401
        %4403 = vmatprep.mubr.bf16.mxu0 %v3711
        %4404 = vmatmul.mubr.bf16.gmra.mxu0 %v3710
        %v4405 = vpop.f32.mrf.mxu0
        %v4406 = vadd.f32 %v4053, %v4405
        %v4407 = vpop.f32.mrf.mxu0
        %v4408 = vadd.f32 %v4055, %v4407
        %v4409 = vpop.f32.mrf.mxu0
        %v4410 = vadd.f32 %v4057, %v4409
        %v4411 = vpop.f32.mrf.mxu0
        %v4412 = vadd.f32 %v4059, %v4411
        %4413 = vmatprep.mubr.bf16.mxu0 %v3715
        %4414 = vmatmul.mubr.bf16.gmra.mxu0 %v3714
        %v4415 = vpop.f32.mrf.mxu0
        %v4416 = vadd.f32 %v4063, %v4415
        %v4417 = vpop.f32.mrf.mxu0
        %v4418 = vadd.f32 %v4065, %v4417
        %v4419 = vpop.f32.mrf.mxu0
        %v4420 = vadd.f32 %v4067, %v4419
        %v4421 = vpop.f32.mrf.mxu0
        %v4422 = vadd.f32 %v4069, %v4421
        %4423 = vmatprep.mubr.bf16.mxu0 %v3719
        %4424 = vmatmul.mubr.bf16.gmra.mxu0 %v3718
        %v4425 = vpop.f32.mrf.mxu0
        %v4426 = vadd.f32 %v4073, %v4425
        %v4427 = vpop.f32.mrf.mxu0
        %v4428 = vadd.f32 %v4075, %v4427
        %v4429 = vpop.f32.mrf.mxu0
        %v4430 = vadd.f32 %v4077, %v4429
        %v4431 = vpop.f32.mrf.mxu0
        %v4432 = vadd.f32 %v4079, %v4431
        %4433 = vmatprep.mubr.bf16.mxu0 %v3723
        %4434 = vmatmul.mubr.bf16.gmra.mxu0 %v3722
        %v4435 = vpop.f32.mrf.mxu0
        %v4436 = vadd.f32 %v4083, %v4435
        %v4437 = vpop.f32.mrf.mxu0
        %v4438 = vadd.f32 %v4085, %v4437
        %v4439 = vpop.f32.mrf.mxu0
        %v4440 = vadd.f32 %v4087, %v4439
        %v4441 = vpop.f32.mrf.mxu0
        %v4442 = vadd.f32 %v4089, %v4441
        %4443 = vmatprep.mubr.bf16.mxu0 %v3727
        %4444 = vmatmul.mubr.bf16.gmra.mxu0 %v3726
        %v4445 = vpop.f32.mrf.mxu0
        %v4446 = vadd.f32 %v4093, %v4445
        %v4447 = vpop.f32.mrf.mxu0
        %v4448 = vadd.f32 %v4095, %v4447
        %v4449 = vpop.f32.mrf.mxu0
        %v4450 = vadd.f32 %v4097, %v4449
        %v4451 = vpop.f32.mrf.mxu0
        %v4452 = vadd.f32 %v4099, %v4451
        %4453 = vmatprep.mubr.bf16.mxu0 %v3731
        %4454 = vmatmul.mubr.bf16.gmra.mxu0 %v3730
        %v4455 = vpop.f32.mrf.mxu0
        %v4456 = vadd.f32 %v4103, %v4455
        %v4457 = vpop.f32.mrf.mxu0
        %v4458 = vadd.f32 %v4105, %v4457
        %v4459 = vpop.f32.mrf.mxu0
        %v4460 = vadd.f32 %v4107, %v4459
        %v4461 = vpop.f32.mrf.mxu0
        %v4462 = vadd.f32 %v4109, %v4461
        %4463 = vmatprep.mubr.bf16.mxu0 %v3735
        %4464 = vmatmul.mubr.bf16.gmra.mxu0 %v3734
        %v4465 = vpop.f32.mrf.mxu0
        %v4466 = vadd.f32 %v4113, %v4465
        %v4467 = vpop.f32.mrf.mxu0
        %v4468 = vadd.f32 %v4115, %v4467
        %v4469 = vpop.f32.mrf.mxu0
        %v4470 = vadd.f32 %v4117, %v4469
        %v4471 = vpop.f32.mrf.mxu0
        %v4472 = vadd.f32 %v4119, %v4471
        %4473 = vmatprep.mubr.bf16.mxu0 %v3739
        %4474 = vmatmul.mubr.bf16.gmra.mxu0 %v3738
        %v4475 = vpop.f32.mrf.mxu0
        %v4476 = vadd.f32 %v4123, %v4475
        %v4477 = vpop.f32.mrf.mxu0
        %v4478 = vadd.f32 %v4125, %v4477
        %v4479 = vpop.f32.mrf.mxu0
        %v4480 = vadd.f32 %v4127, %v4479
        %v4481 = vpop.f32.mrf.mxu0
        %v4482 = vadd.f32 %v4129, %v4481
        %4483 = vmatprep.mubr.bf16.mxu0 %v3743
        %4484 = vmatmul.mubr.bf16.gmra.mxu0 %v3742
        %v4485 = vpop.f32.mrf.mxu0
        %v4486 = vadd.f32 %v4133, %v4485
        %v4487 = vpop.f32.mrf.mxu0
        %v4488 = vadd.f32 %v4135, %v4487
        %v4489 = vpop.f32.mrf.mxu0
        %v4490 = vadd.f32 %v4137, %v4489
        %v4491 = vpop.f32.mrf.mxu0
        %v4492 = vadd.f32 %v4139, %v4491
        %4493 = vmatprep.mubr.bf16.mxu0 %v3747
        %4494 = vmatmul.mubr.bf16.gmra.mxu0 %v3746
        %v4495 = vpop.f32.mrf.mxu0
        %v4496 = vadd.f32 %v4143, %v4495
        %v4497 = vpop.f32.mrf.mxu0
        %v4498 = vadd.f32 %v4145, %v4497
        %v4499 = vpop.f32.mrf.mxu0
        %v4500 = vadd.f32 %v4147, %v4499
        %v4501 = vpop.f32.mrf.mxu0
        %v4502 = vadd.f32 %v4149, %v4501
        %4503 = vmatprep.mubr.bf16.mxu0 %v3751
        %4504 = vmatmul.mubr.bf16.gmra.mxu0 %v3750
        %v4505 = vpop.f32.mrf.mxu0
        %v4506 = vadd.f32 %v4153, %v4505
        %v4507 = vpop.f32.mrf.mxu0
        %v4508 = vadd.f32 %v4155, %v4507
        %v4509 = vpop.f32.mrf.mxu0
        %v4510 = vadd.f32 %v4157, %v4509
        %v4511 = vpop.f32.mrf.mxu0
        %v4512 = vadd.f32 %v4159, %v4511
        %4513 = vmatprep.mubr.bf16.mxu0 %v3755
        %4514 = vmatmul.mubr.bf16.gmra.mxu0 %v3754
        %v4515 = vpop.f32.mrf.mxu0
        %v4516 = vadd.f32 %v4163, %v4515
        %v4517 = vpop.f32.mrf.mxu0
        %v4518 = vadd.f32 %v4165, %v4517
        %v4519 = vpop.f32.mrf.mxu0
        %v4520 = vadd.f32 %v4167, %v4519
        %v4521 = vpop.f32.mrf.mxu0
        %v4522 = vadd.f32 %v4169, %v4521
        %4523 = vmatprep.mubr.bf16.mxu0 %v3759
        %4524 = vmatmul.mubr.bf16.gmra.mxu0 %v3758
        %v4525 = vpop.f32.mrf.mxu0
        %v4526 = vadd.f32 %v4173, %v4525
        %v4527 = vpop.f32.mrf.mxu0
        %v4528 = vadd.f32 %v4175, %v4527
        %v4529 = vpop.f32.mrf.mxu0
        %v4530 = vadd.f32 %v4177, %v4529
        %v4531 = vpop.f32.mrf.mxu0
        %v4532 = vadd.f32 %v4179, %v4531
        %4533 = vmatprep.mubr.bf16.mxu0 %v3763
        %4534 = vmatmul.mubr.bf16.gmra.mxu0 %v3762
        %v4535 = vpop.f32.mrf.mxu0
        %v4536 = vadd.f32 %v4183, %v4535
        %v4537 = vpop.f32.mrf.mxu0
        %v4538 = vadd.f32 %v4185, %v4537
        %v4539 = vpop.f32.mrf.mxu0
        %v4540 = vadd.f32 %v4187, %v4539
        %v4541 = vpop.f32.mrf.mxu0
        %v4542 = vadd.f32 %v4189, %v4541
        %4543 = vmatprep.mubr.bf16.mxu0 %v3767
        %4544 = vmatmul.mubr.bf16.gmra.mxu0 %v3766
        %v4545 = vpop.f32.mrf.mxu0
        %v4546 = vadd.f32 %v4193, %v4545
        %v4547 = vpop.f32.mrf.mxu0
        %v4548 = vadd.f32 %v4195, %v4547
        %v4549 = vpop.f32.mrf.mxu0
        %v4550 = vadd.f32 %v4197, %v4549
        %v4551 = vpop.f32.mrf.mxu0
        %v4552 = vadd.f32 %v4199, %v4551
        %4553 = vmatprep.mubr.bf16.mxu0 %v3771
        %4554 = vmatmul.mubr.bf16.gmra.mxu0 %v3770
        %v4555 = vpop.f32.mrf.mxu0
        %v4556 = vadd.f32 %v4203, %v4555
        %v4557 = vpop.f32.mrf.mxu0
        %v4558 = vadd.f32 %v4205, %v4557
        %v4559 = vpop.f32.mrf.mxu0
        %v4560 = vadd.f32 %v4207, %v4559
        %v4561 = vpop.f32.mrf.mxu0
        %v4562 = vadd.f32 %v4209, %v4561
        %4563 = vmatprep.mubr.bf16.mxu0 %v3775
        %4564 = vmatmul.mubr.bf16.gmra.mxu0 %v3774
        %v4565 = vpop.f32.mrf.mxu0
        %v4566 = vadd.f32 %v4213, %v4565
        %v4567 = vpop.f32.mrf.mxu0
        %v4568 = vadd.f32 %v4215, %v4567
        %v4569 = vpop.f32.mrf.mxu0
        %v4570 = vadd.f32 %v4217, %v4569
        %v4571 = vpop.f32.mrf.mxu0
        %v4572 = vadd.f32 %v4219, %v4571
        %4573 = vmatprep.mubr.bf16.mxu0 %v3779
        %4574 = vmatmul.mubr.bf16.gmra.mxu0 %v3778
        %v4575 = vpop.f32.mrf.mxu0
        %v4576 = vadd.f32 %v4223, %v4575
        %v4577 = vpop.f32.mrf.mxu0
        %v4578 = vadd.f32 %v4225, %v4577
        %v4579 = vpop.f32.mrf.mxu0
        %v4580 = vadd.f32 %v4227, %v4579
        %v4581 = vpop.f32.mrf.mxu0
        %v4582 = vadd.f32 %v4229, %v4581
        %4583 = vmatprep.mubr.bf16.mxu0 %v3783
        %4584 = vmatmul.mubr.bf16.gmra.mxu0 %v3782
        %v4585 = vpop.f32.mrf.mxu0
        %v4586 = vadd.f32 %v4233, %v4585
        %v4587 = vpop.f32.mrf.mxu0
        %v4588 = vadd.f32 %v4235, %v4587
        %v4589 = vpop.f32.mrf.mxu0
        %v4590 = vadd.f32 %v4237, %v4589
        %v4591 = vpop.f32.mrf.mxu0
        %v4592 = vadd.f32 %v4239, %v4591
        %4593 = vmatprep.mubr.bf16.mxu0 %v3787
        %4594 = vmatmul.mubr.bf16.gmra.mxu0 %v3786
        %v4595 = vpop.f32.mrf.mxu0
        %v4596 = vadd.f32 %v4243, %v4595
        %v4597 = vpop.f32.mrf.mxu0
        %v4598 = vadd.f32 %v4245, %v4597
        %v4599 = vpop.f32.mrf.mxu0
        %v4600 = vadd.f32 %v4247, %v4599
        %v4601 = vpop.f32.mrf.mxu0
        %v4602 = vadd.f32 %v4249, %v4601
        %4603 = vmatprep.mubr.bf16.mxu0 %v3791
        %4604 = vmatmul.mubr.bf16.gmra.mxu0 %v3790
        %v4605 = vpop.f32.mrf.mxu0
        %v4606 = vadd.f32 %v4253, %v4605
        %v4607 = vpop.f32.mrf.mxu0
        %v4608 = vadd.f32 %v4255, %v4607
        %v4609 = vpop.f32.mrf.mxu0
        %v4610 = vadd.f32 %v4257, %v4609
        %v4611 = vpop.f32.mrf.mxu0
        %v4612 = vadd.f32 %v4259, %v4611
        %4613 = vmatprep.mubr.bf16.mxu0 %v3795
        %4614 = vmatmul.mubr.bf16.gmra.mxu0 %v3794
        %v4615 = vpop.f32.mrf.mxu0
        %v4616 = vadd.f32 %v4263, %v4615
        %v4617 = vpop.f32.mrf.mxu0
        %v4618 = vadd.f32 %v4265, %v4617
        %v4619 = vpop.f32.mrf.mxu0
        %v4620 = vadd.f32 %v4267, %v4619
        %v4621 = vpop.f32.mrf.mxu0
        %v4622 = vadd.f32 %v4269, %v4621
        %4623 = vmatprep.mubr.bf16.mxu0 %v3799
        %4624 = vmatmul.mubr.bf16.gmra.mxu0 %v3798
        %v4625 = vpop.f32.mrf.mxu0
        %v4626 = vadd.f32 %v4273, %v4625
        %v4627 = vpop.f32.mrf.mxu0
        %v4628 = vadd.f32 %v4275, %v4627
        %v4629 = vpop.f32.mrf.mxu0
        %v4630 = vadd.f32 %v4277, %v4629
        %v4631 = vpop.f32.mrf.mxu0
        %v4632 = vadd.f32 %v4279, %v4631
        %4633 = vdwg.mxu0
        %vm4634 = vcmp.ge.f32.partialorder %v4316, 0.0
        %vm4635 = vcmp.ge.f32.partialorder %v4318, 0.0
        %vm4636 = vcmp.ge.f32.partialorder %v4320, 0.0
        %vm4637 = vcmp.ge.f32.partialorder %v4322, 0.0
        %vm4638 = vcmp.ge.f32.partialorder %v4326, 0.0
        %vm4639 = vcmp.ge.f32.partialorder %v4328, 0.0
        %vm4640 = vcmp.ge.f32.partialorder %v4330, 0.0
        %vm4641 = vcmp.ge.f32.partialorder %v4332, 0.0
        %vm4642 = vcmp.ge.f32.partialorder %v4336, 0.0
        %vm4643 = vcmp.ge.f32.partialorder %v4338, 0.0
        %vm4644 = vcmp.ge.f32.partialorder %v4340, 0.0
        %vm4645 = vcmp.ge.f32.partialorder %v4342, 0.0
        %vm4646 = vcmp.ge.f32.partialorder %v4346, 0.0
        %vm4647 = vcmp.ge.f32.partialorder %v4348, 0.0
        %vm4648 = vcmp.ge.f32.partialorder %v4350, 0.0
        %vm4649 = vcmp.ge.f32.partialorder %v4352, 0.0
        %vm4650 = vcmp.ge.f32.partialorder %v4356, 0.0
        %vm4651 = vcmp.ge.f32.partialorder %v4358, 0.0
        %vm4652 = vcmp.ge.f32.partialorder %v4360, 0.0
        %vm4653 = vcmp.ge.f32.partialorder %v4362, 0.0
        %vm4654 = vcmp.ge.f32.partialorder %v4366, 0.0
        %vm4655 = vcmp.ge.f32.partialorder %v4368, 0.0
        %vm4656 = vcmp.ge.f32.partialorder %v4370, 0.0
        %vm4657 = vcmp.ge.f32.partialorder %v4372, 0.0
        %vm4658 = vcmp.ge.f32.partialorder %v4376, 0.0
        %vm4659 = vcmp.ge.f32.partialorder %v4378, 0.0
        %vm4660 = vcmp.ge.f32.partialorder %v4380, 0.0
        %vm4661 = vcmp.ge.f32.partialorder %v4382, 0.0
        %vm4662 = vcmp.ge.f32.partialorder %v4386, 0.0
        %vm4663 = vcmp.ge.f32.partialorder %v4388, 0.0
        %vm4664 = vcmp.ge.f32.partialorder %v4390, 0.0
        %vm4665 = vcmp.ge.f32.partialorder %v4392, 0.0
        %vm4666 = vcmp.ge.f32.partialorder %v4396, 0.0
        %vm4667 = vcmp.ge.f32.partialorder %v4398, 0.0
        %vm4668 = vcmp.ge.f32.partialorder %v4400, 0.0
        %vm4669 = vcmp.ge.f32.partialorder %v4402, 0.0
        %vm4670 = vcmp.ge.f32.partialorder %v4406, 0.0
        %vm4671 = vcmp.ge.f32.partialorder %v4408, 0.0
        %vm4672 = vcmp.ge.f32.partialorder %v4410, 0.0
        %vm4673 = vcmp.ge.f32.partialorder %v4412, 0.0
        %vm4674 = vcmp.ge.f32.partialorder %v4416, 0.0
        %vm4675 = vcmp.ge.f32.partialorder %v4418, 0.0
        %vm4676 = vcmp.ge.f32.partialorder %v4420, 0.0
        %vm4677 = vcmp.ge.f32.partialorder %v4422, 0.0
        %vm4678 = vcmp.ge.f32.partialorder %v4426, 0.0
        %vm4679 = vcmp.ge.f32.partialorder %v4428, 0.0
        %vm4680 = vcmp.ge.f32.partialorder %v4430, 0.0
        %vm4681 = vcmp.ge.f32.partialorder %v4432, 0.0
        %vm4682 = vcmp.ge.f32.partialorder %v4436, 0.0
        %vm4683 = vcmp.ge.f32.partialorder %v4438, 0.0
        %vm4684 = vcmp.ge.f32.partialorder %v4440, 0.0
        %vm4685 = vcmp.ge.f32.partialorder %v4442, 0.0
        %vm4686 = vcmp.ge.f32.partialorder %v4446, 0.0
        %vm4687 = vcmp.ge.f32.partialorder %v4448, 0.0
        %vm4688 = vcmp.ge.f32.partialorder %v4450, 0.0
        %vm4689 = vcmp.ge.f32.partialorder %v4452, 0.0
        %vm4690 = vcmp.ge.f32.partialorder %v4456, 0.0
        %vm4691 = vcmp.ge.f32.partialorder %v4458, 0.0
        %vm4692 = vcmp.ge.f32.partialorder %v4460, 0.0
        %vm4693 = vcmp.ge.f32.partialorder %v4462, 0.0
        %vm4694 = vcmp.ge.f32.partialorder %v4466, 0.0
        %vm4695 = vcmp.ge.f32.partialorder %v4468, 0.0
        %vm4696 = vcmp.ge.f32.partialorder %v4470, 0.0
        %vm4697 = vcmp.ge.f32.partialorder %v4472, 0.0
        %vm4698 = vcmp.ge.f32.partialorder %v4476, 0.0
        %vm4699 = vcmp.ge.f32.partialorder %v4478, 0.0
        %vm4700 = vcmp.ge.f32.partialorder %v4480, 0.0
        %vm4701 = vcmp.ge.f32.partialorder %v4482, 0.0
        %vm4702 = vcmp.ge.f32.partialorder %v4486, 0.0
        %vm4703 = vcmp.ge.f32.partialorder %v4488, 0.0
        %vm4704 = vcmp.ge.f32.partialorder %v4490, 0.0
        %vm4705 = vcmp.ge.f32.partialorder %v4492, 0.0
        %vm4706 = vcmp.ge.f32.partialorder %v4496, 0.0
        %vm4707 = vcmp.ge.f32.partialorder %v4498, 0.0
        %vm4708 = vcmp.ge.f32.partialorder %v4500, 0.0
        %vm4709 = vcmp.ge.f32.partialorder %v4502, 0.0
        %vm4710 = vcmp.ge.f32.partialorder %v4506, 0.0
        %vm4711 = vcmp.ge.f32.partialorder %v4508, 0.0
        %vm4712 = vcmp.ge.f32.partialorder %v4510, 0.0
        %vm4713 = vcmp.ge.f32.partialorder %v4512, 0.0
        %vm4714 = vcmp.ge.f32.partialorder %v4516, 0.0
        %vm4715 = vcmp.ge.f32.partialorder %v4518, 0.0
        %vm4716 = vcmp.ge.f32.partialorder %v4520, 0.0
        %vm4717 = vcmp.ge.f32.partialorder %v4522, 0.0
        %vm4718 = vcmp.ge.f32.partialorder %v4526, 0.0
        %vm4719 = vcmp.ge.f32.partialorder %v4528, 0.0
        %vm4720 = vcmp.ge.f32.partialorder %v4530, 0.0
        %vm4721 = vcmp.ge.f32.partialorder %v4532, 0.0
        %vm4722 = vcmp.ge.f32.partialorder %v4536, 0.0
        %vm4723 = vcmp.ge.f32.partialorder %v4538, 0.0
        %vm4724 = vcmp.ge.f32.partialorder %v4540, 0.0
        %vm4725 = vcmp.ge.f32.partialorder %v4542, 0.0
        %vm4726 = vcmp.ge.f32.partialorder %v4546, 0.0
        %vm4727 = vcmp.ge.f32.partialorder %v4548, 0.0
        %vm4728 = vcmp.ge.f32.partialorder %v4550, 0.0
        %vm4729 = vcmp.ge.f32.partialorder %v4552, 0.0
        %vm4730 = vcmp.ge.f32.partialorder %v4556, 0.0
        %vm4731 = vcmp.ge.f32.partialorder %v4558, 0.0
        %vm4732 = vcmp.ge.f32.partialorder %v4560, 0.0
        %vm4733 = vcmp.ge.f32.partialorder %v4562, 0.0
        %vm4734 = vcmp.ge.f32.partialorder %v4566, 0.0
        %vm4735 = vcmp.ge.f32.partialorder %v4568, 0.0
        %vm4736 = vcmp.ge.f32.partialorder %v4570, 0.0
        %vm4737 = vcmp.ge.f32.partialorder %v4572, 0.0
        %vm4738 = vcmp.ge.f32.partialorder %v4576, 0.0
        %vm4739 = vcmp.ge.f32.partialorder %v4578, 0.0
        %vm4740 = vcmp.ge.f32.partialorder %v4580, 0.0
        %vm4741 = vcmp.ge.f32.partialorder %v4582, 0.0
        %vm4742 = vcmp.ge.f32.partialorder %v4586, 0.0
        %vm4743 = vcmp.ge.f32.partialorder %v4588, 0.0
        %vm4744 = vcmp.ge.f32.partialorder %v4590, 0.0
        %vm4745 = vcmp.ge.f32.partialorder %v4592, 0.0
        %vm4746 = vcmp.ge.f32.partialorder %v4596, 0.0
        %vm4747 = vcmp.ge.f32.partialorder %v4598, 0.0
        %vm4748 = vcmp.ge.f32.partialorder %v4600, 0.0
        %vm4749 = vcmp.ge.f32.partialorder %v4602, 0.0
        %vm4750 = vcmp.ge.f32.partialorder %v4606, 0.0
        %vm4751 = vcmp.ge.f32.partialorder %v4608, 0.0
        %vm4752 = vcmp.ge.f32.partialorder %v4610, 0.0
        %vm4753 = vcmp.ge.f32.partialorder %v4612, 0.0
        %vm4754 = vcmp.ge.f32.partialorder %v4616, 0.0
        %vm4755 = vcmp.ge.f32.partialorder %v4618, 0.0
        %vm4756 = vcmp.ge.f32.partialorder %v4620, 0.0
        %vm4757 = vcmp.ge.f32.partialorder %v4622, 0.0
        %vm4758 = vcmp.ge.f32.partialorder %v4626, 0.0
        %vm4759 = vcmp.ge.f32.partialorder %v4628, 0.0
        %vm4760 = vcmp.ge.f32.partialorder %v4630, 0.0
        %vm4761 = vcmp.ge.f32.partialorder %v4632, 0.0
        %v4762 = vmul.f32 %v4316, 0.2
        %v4763 = vmul.f32 %v4318, 0.2
        %v4764 = vmul.f32 %v4320, 0.2
        %v4765 = vmul.f32 %v4322, 0.2
        %v4766 = vmul.f32 %v4326, 0.2
        %v4767 = vmul.f32 %v4328, 0.2
        %v4768 = vmul.f32 %v4330, 0.2
        %v4769 = vmul.f32 %v4332, 0.2
        %v4770 = vmul.f32 %v4336, 0.2
        %v4771 = vmul.f32 %v4338, 0.2
        %v4772 = vmul.f32 %v4340, 0.2
        %v4773 = vmul.f32 %v4342, 0.2
        %v4774 = vmul.f32 %v4346, 0.2
        %v4775 = vmul.f32 %v4348, 0.2
        %v4776 = vmul.f32 %v4350, 0.2
        %v4777 = vmul.f32 %v4352, 0.2
        %v4778 = vmul.f32 %v4356, 0.2
        %v4779 = vmul.f32 %v4358, 0.2
        %v4780 = vmul.f32 %v4360, 0.2
        %v4781 = vmul.f32 %v4362, 0.2
        %v4782 = vmul.f32 %v4366, 0.2
        %v4783 = vmul.f32 %v4368, 0.2
        %v4784 = vmul.f32 %v4370, 0.2
        %v4785 = vmul.f32 %v4372, 0.2
        %v4786 = vmul.f32 %v4376, 0.2
        %v4787 = vmul.f32 %v4378, 0.2
        %v4788 = vmul.f32 %v4380, 0.2
        %v4789 = vmul.f32 %v4382, 0.2
        %v4790 = vmul.f32 %v4386, 0.2
        %v4791 = vmul.f32 %v4388, 0.2
        %v4792 = vmul.f32 %v4390, 0.2
        %v4793 = vmul.f32 %v4392, 0.2
        %v4794 = vmul.f32 %v4396, 0.2
        %v4795 = vmul.f32 %v4398, 0.2
        %v4796 = vmul.f32 %v4400, 0.2
        %v4797 = vmul.f32 %v4402, 0.2
        %v4798 = vmul.f32 %v4406, 0.2
        %v4799 = vmul.f32 %v4408, 0.2
        %v4800 = vmul.f32 %v4410, 0.2
        %v4801 = vmul.f32 %v4412, 0.2
        %v4802 = vmul.f32 %v4416, 0.2
        %v4803 = vmul.f32 %v4418, 0.2
        %v4804 = vmul.f32 %v4420, 0.2
        %v4805 = vmul.f32 %v4422, 0.2
        %v4806 = vmul.f32 %v4426, 0.2
        %v4807 = vmul.f32 %v4428, 0.2
        %v4808 = vmul.f32 %v4430, 0.2
        %v4809 = vmul.f32 %v4432, 0.2
        %v4810 = vmul.f32 %v4436, 0.2
        %v4811 = vmul.f32 %v4438, 0.2
        %v4812 = vmul.f32 %v4440, 0.2
        %v4813 = vmul.f32 %v4442, 0.2
        %v4814 = vmul.f32 %v4446, 0.2
        %v4815 = vmul.f32 %v4448, 0.2
        %v4816 = vmul.f32 %v4450, 0.2
        %v4817 = vmul.f32 %v4452, 0.2
        %v4818 = vmul.f32 %v4456, 0.2
        %v4819 = vmul.f32 %v4458, 0.2
        %v4820 = vmul.f32 %v4460, 0.2
        %v4821 = vmul.f32 %v4462, 0.2
        %v4822 = vmul.f32 %v4466, 0.2
        %v4823 = vmul.f32 %v4468, 0.2
        %v4824 = vmul.f32 %v4470, 0.2
        %v4825 = vmul.f32 %v4472, 0.2
        %v4826 = vmul.f32 %v4476, 0.2
        %v4827 = vmul.f32 %v4478, 0.2
        %v4828 = vmul.f32 %v4480, 0.2
        %v4829 = vmul.f32 %v4482, 0.2
        %v4830 = vmul.f32 %v4486, 0.2
        %v4831 = vmul.f32 %v4488, 0.2
        %v4832 = vmul.f32 %v4490, 0.2
        %v4833 = vmul.f32 %v4492, 0.2
        %v4834 = vmul.f32 %v4496, 0.2
        %v4835 = vmul.f32 %v4498, 0.2
        %v4836 = vmul.f32 %v4500, 0.2
        %v4837 = vmul.f32 %v4502, 0.2
        %v4838 = vmul.f32 %v4506, 0.2
        %v4839 = vmul.f32 %v4508, 0.2
        %v4840 = vmul.f32 %v4510, 0.2
        %v4841 = vmul.f32 %v4512, 0.2
        %v4842 = vmul.f32 %v4516, 0.2
        %v4843 = vmul.f32 %v4518, 0.2
        %v4844 = vmul.f32 %v4520, 0.2
        %v4845 = vmul.f32 %v4522, 0.2
        %v4846 = vmul.f32 %v4526, 0.2
        %v4847 = vmul.f32 %v4528, 0.2
        %v4848 = vmul.f32 %v4530, 0.2
        %v4849 = vmul.f32 %v4532, 0.2
        %v4850 = vmul.f32 %v4536, 0.2
        %v4851 = vmul.f32 %v4538, 0.2
        %v4852 = vmul.f32 %v4540, 0.2
        %v4853 = vmul.f32 %v4542, 0.2
        %v4854 = vmul.f32 %v4546, 0.2
        %v4855 = vmul.f32 %v4548, 0.2
        %v4856 = vmul.f32 %v4550, 0.2
        %v4857 = vmul.f32 %v4552, 0.2
        %v4858 = vmul.f32 %v4556, 0.2
        %v4859 = vmul.f32 %v4558, 0.2
        %v4860 = vmul.f32 %v4560, 0.2
        %v4861 = vmul.f32 %v4562, 0.2
        %v4862 = vmul.f32 %v4566, 0.2
        %v4863 = vmul.f32 %v4568, 0.2
        %v4864 = vmul.f32 %v4570, 0.2
        %v4865 = vmul.f32 %v4572, 0.2
        %v4866 = vmul.f32 %v4576, 0.2
        %v4867 = vmul.f32 %v4578, 0.2
        %v4868 = vmul.f32 %v4580, 0.2
        %v4869 = vmul.f32 %v4582, 0.2
        %v4870 = vmul.f32 %v4586, 0.2
        %v4871 = vmul.f32 %v4588, 0.2
        %v4872 = vmul.f32 %v4590, 0.2
        %v4873 = vmul.f32 %v4592, 0.2
        %v4874 = vmul.f32 %v4596, 0.2
        %v4875 = vmul.f32 %v4598, 0.2
        %v4876 = vmul.f32 %v4600, 0.2
        %v4877 = vmul.f32 %v4602, 0.2
        %v4878 = vmul.f32 %v4606, 0.2
        %v4879 = vmul.f32 %v4608, 0.2
        %v4880 = vmul.f32 %v4610, 0.2
        %v4881 = vmul.f32 %v4612, 0.2
        %v4882 = vmul.f32 %v4616, 0.2
        %v4883 = vmul.f32 %v4618, 0.2
        %v4884 = vmul.f32 %v4620, 0.2
        %v4885 = vmul.f32 %v4622, 0.2
        %v4886 = vmul.f32 %v4626, 0.2
        %v4887 = vmul.f32 %v4628, 0.2
        %v4888 = vmul.f32 %v4630, 0.2
        %v4889 = vmul.f32 %v4632, 0.2
        %v4890 = vsel %vm4634, %v4316, %v4762
        %v4891 = vsel %vm4635, %v4318, %v4763
        %v4892 = vsel %vm4636, %v4320, %v4764
        %v4893 = vsel %vm4637, %v4322, %v4765
        %v4894 = vsel %vm4638, %v4326, %v4766
        %v4895 = vsel %vm4639, %v4328, %v4767
        %v4896 = vsel %vm4640, %v4330, %v4768
        %v4897 = vsel %vm4641, %v4332, %v4769
        %v4898 = vsel %vm4642, %v4336, %v4770
        %v4899 = vsel %vm4643, %v4338, %v4771
        %v4900 = vsel %vm4644, %v4340, %v4772
        %v4901 = vsel %vm4645, %v4342, %v4773
        %v4902 = vsel %vm4646, %v4346, %v4774
        %v4903 = vsel %vm4647, %v4348, %v4775
        %v4904 = vsel %vm4648, %v4350, %v4776
        %v4905 = vsel %vm4649, %v4352, %v4777
        %v4906 = vsel %vm4650, %v4356, %v4778
        %v4907 = vsel %vm4651, %v4358, %v4779
        %v4908 = vsel %vm4652, %v4360, %v4780
        %v4909 = vsel %vm4653, %v4362, %v4781
        %v4910 = vsel %vm4654, %v4366, %v4782
        %v4911 = vsel %vm4655, %v4368, %v4783
        %v4912 = vsel %vm4656, %v4370, %v4784
        %v4913 = vsel %vm4657, %v4372, %v4785
        %v4914 = vsel %vm4658, %v4376, %v4786
        %v4915 = vsel %vm4659, %v4378, %v4787
        %v4916 = vsel %vm4660, %v4380, %v4788
        %v4917 = vsel %vm4661, %v4382, %v4789
        %v4918 = vsel %vm4662, %v4386, %v4790
        %v4919 = vsel %vm4663, %v4388, %v4791
        %v4920 = vsel %vm4664, %v4390, %v4792
        %v4921 = vsel %vm4665, %v4392, %v4793
        %v4922 = vsel %vm4666, %v4396, %v4794
        %v4923 = vsel %vm4667, %v4398, %v4795
        %v4924 = vsel %vm4668, %v4400, %v4796
        %v4925 = vsel %vm4669, %v4402, %v4797
        %v4926 = vsel %vm4670, %v4406, %v4798
        %v4927 = vsel %vm4671, %v4408, %v4799
        %v4928 = vsel %vm4672, %v4410, %v4800
        %v4929 = vsel %vm4673, %v4412, %v4801
        %v4930 = vsel %vm4674, %v4416, %v4802
        %v4931 = vsel %vm4675, %v4418, %v4803
        %v4932 = vsel %vm4676, %v4420, %v4804
        %v4933 = vsel %vm4677, %v4422, %v4805
        %v4934 = vsel %vm4678, %v4426, %v4806
        %v4935 = vsel %vm4679, %v4428, %v4807
        %v4936 = vsel %vm4680, %v4430, %v4808
        %v4937 = vsel %vm4681, %v4432, %v4809
        %v4938 = vsel %vm4682, %v4436, %v4810
        %v4939 = vsel %vm4683, %v4438, %v4811
        %v4940 = vsel %vm4684, %v4440, %v4812
        %v4941 = vsel %vm4685, %v4442, %v4813
        %v4942 = vsel %vm4686, %v4446, %v4814
        %v4943 = vsel %vm4687, %v4448, %v4815
        %v4944 = vsel %vm4688, %v4450, %v4816
        %v4945 = vsel %vm4689, %v4452, %v4817
        %v4946 = vsel %vm4690, %v4456, %v4818
        %v4947 = vsel %vm4691, %v4458, %v4819
        %v4948 = vsel %vm4692, %v4460, %v4820
        %v4949 = vsel %vm4693, %v4462, %v4821
        %v4950 = vsel %vm4694, %v4466, %v4822
        %v4951 = vsel %vm4695, %v4468, %v4823
        %v4952 = vsel %vm4696, %v4470, %v4824
        %v4953 = vsel %vm4697, %v4472, %v4825
        %v4954 = vsel %vm4698, %v4476, %v4826
        %v4955 = vsel %vm4699, %v4478, %v4827
        %v4956 = vsel %vm4700, %v4480, %v4828
        %v4957 = vsel %vm4701, %v4482, %v4829
        %v4958 = vsel %vm4702, %v4486, %v4830
        %v4959 = vsel %vm4703, %v4488, %v4831
        %v4960 = vsel %vm4704, %v4490, %v4832
        %v4961 = vsel %vm4705, %v4492, %v4833
        %v4962 = vsel %vm4706, %v4496, %v4834
        %v4963 = vsel %vm4707, %v4498, %v4835
        %v4964 = vsel %vm4708, %v4500, %v4836
        %v4965 = vsel %vm4709, %v4502, %v4837
        %v4966 = vsel %vm4710, %v4506, %v4838
        %v4967 = vsel %vm4711, %v4508, %v4839
        %v4968 = vsel %vm4712, %v4510, %v4840
        %v4969 = vsel %vm4713, %v4512, %v4841
        %v4970 = vsel %vm4714, %v4516, %v4842
        %v4971 = vsel %vm4715, %v4518, %v4843
        %v4972 = vsel %vm4716, %v4520, %v4844
        %v4973 = vsel %vm4717, %v4522, %v4845
        %v4974 = vsel %vm4718, %v4526, %v4846
        %v4975 = vsel %vm4719, %v4528, %v4847
        %v4976 = vsel %vm4720, %v4530, %v4848
        %v4977 = vsel %vm4721, %v4532, %v4849
        %v4978 = vsel %vm4722, %v4536, %v4850
        %v4979 = vsel %vm4723, %v4538, %v4851
        %v4980 = vsel %vm4724, %v4540, %v4852
        %v4981 = vsel %vm4725, %v4542, %v4853
        %v4982 = vsel %vm4726, %v4546, %v4854
        %v4983 = vsel %vm4727, %v4548, %v4855
        %v4984 = vsel %vm4728, %v4550, %v4856
        %v4985 = vsel %vm4729, %v4552, %v4857
        %v4986 = vsel %vm4730, %v4556, %v4858
        %v4987 = vsel %vm4731, %v4558, %v4859
        %v4988 = vsel %vm4732, %v4560, %v4860
        %v4989 = vsel %vm4733, %v4562, %v4861
        %v4990 = vsel %vm4734, %v4566, %v4862
        %v4991 = vsel %vm4735, %v4568, %v4863
        %v4992 = vsel %vm4736, %v4570, %v4864
        %v4993 = vsel %vm4737, %v4572, %v4865
        %v4994 = vsel %vm4738, %v4576, %v4866
        %v4995 = vsel %vm4739, %v4578, %v4867
        %v4996 = vsel %vm4740, %v4580, %v4868
        %v4997 = vsel %vm4741, %v4582, %v4869
        %v4998 = vsel %vm4742, %v4586, %v4870
        %v4999 = vsel %vm4743, %v4588, %v4871
        %v5000 = vsel %vm4744, %v4590, %v4872
        %v5001 = vsel %vm4745, %v4592, %v4873
        %v5002 = vsel %vm4746, %v4596, %v4874
        %v5003 = vsel %vm4747, %v4598, %v4875
        %v5004 = vsel %vm4748, %v4600, %v4876
        %v5005 = vsel %vm4749, %v4602, %v4877
        %v5006 = vsel %vm4750, %v4606, %v4878
        %v5007 = vsel %vm4751, %v4608, %v4879
        %v5008 = vsel %vm4752, %v4610, %v4880
        %v5009 = vsel %vm4753, %v4612, %v4881
        %v5010 = vsel %vm4754, %v4616, %v4882
        %v5011 = vsel %vm4755, %v4618, %v4883
        %v5012 = vsel %vm4756, %v4620, %v4884
        %v5013 = vsel %vm4757, %v4622, %v4885
        %v5014 = vsel %vm4758, %v4626, %v4886
        %v5015 = vsel %vm4759, %v4628, %v4887
        %v5016 = vsel %vm4760, %v4630, %v4888
        %v5017 = vsel %vm4761, %v4632, %v4889
        %5018 = vst [vmem:[%s275] sm:$0xff] %v4890
        %5019 = vst [vmem:[%s275 + $0x8] sm:$0xff] %v4891
        %5020 = vst [vmem:[%s275 + $0x10] sm:$0xff] %v4892
        %5021 = vst [vmem:[%s275 + $0x18] sm:$0xff] %v4893
        %5022 = vst [vmem:[%s275 + $0x20] sm:$0xff] %v4894
        %5023 = vst [vmem:[%s275 + $0x28] sm:$0xff] %v4895
        %5024 = vst [vmem:[%s275 + $0x30] sm:$0xff] %v4896
        %5025 = vst [vmem:[%s275 + $0x38] sm:$0xff] %v4897
        %5026 = vst [vmem:[%s275 + $0x40] sm:$0xff] %v4898
        %5027 = vst [vmem:[%s275 + $0x48] sm:$0xff] %v4899
        %5028 = vst [vmem:[%s275 + $0x50] sm:$0xff] %v4900
        %5029 = vst [vmem:[%s275 + $0x58] sm:$0xff] %v4901
        %5030 = vst [vmem:[%s275 + $0x60] sm:$0xff] %v4902
        %5031 = vst [vmem:[%s275 + $0x68] sm:$0xff] %v4903
        %5032 = vst [vmem:[%s275 + $0x70] sm:$0xff] %v4904
        %5033 = vst [vmem:[%s275 + $0x78] sm:$0xff] %v4905
        %5034 = vst [vmem:[%s275 + $0x80] sm:$0xff] %v4906
        %5035 = vst [vmem:[%s275 + $0x88] sm:$0xff] %v4907
        %5036 = vst [vmem:[%s275 + $0x90] sm:$0xff] %v4908
        %5037 = vst [vmem:[%s275 + $0x98] sm:$0xff] %v4909
        %5038 = vst [vmem:[%s275 + $0xa0] sm:$0xff] %v4910
        %5039 = vst [vmem:[%s275 + $0xa8] sm:$0xff] %v4911
        %5040 = vst [vmem:[%s275 + $0xb0] sm:$0xff] %v4912
        %5041 = vst [vmem:[%s275 + $0xb8] sm:$0xff] %v4913
        %5042 = vst [vmem:[%s275 + $0xc0] sm:$0xff] %v4914
        %5043 = vst [vmem:[%s275 + $0xc8] sm:$0xff] %v4915
        %5044 = vst [vmem:[%s275 + $0xd0] sm:$0xff] %v4916
        %5045 = vst [vmem:[%s275 + $0xd8] sm:$0xff] %v4917
        %5046 = vst [vmem:[%s275 + $0xe0] sm:$0xff] %v4918
        %5047 = vst [vmem:[%s275 + $0xe8] sm:$0xff] %v4919
        %5048 = vst [vmem:[%s275 + $0xf0] sm:$0xff] %v4920
        %5049 = vst [vmem:[%s275 + $0xf8] sm:$0xff] %v4921
        %5050 = vst [vmem:[%s275 + $0x100] sm:$0xff] %v4922
        %5051 = vst [vmem:[%s275 + $0x108] sm:$0xff] %v4923
        %5052 = vst [vmem:[%s275 + $0x110] sm:$0xff] %v4924
        %5053 = vst [vmem:[%s275 + $0x118] sm:$0xff] %v4925
        %5054 = vst [vmem:[%s275 + $0x120] sm:$0xff] %v4926
        %5055 = vst [vmem:[%s275 + $0x128] sm:$0xff] %v4927
        %5056 = vst [vmem:[%s275 + $0x130] sm:$0xff] %v4928
        %5057 = vst [vmem:[%s275 + $0x138] sm:$0xff] %v4929
        %5058 = vst [vmem:[%s275 + $0x140] sm:$0xff] %v4930
        %5059 = vst [vmem:[%s275 + $0x148] sm:$0xff] %v4931
        %5060 = vst [vmem:[%s275 + $0x150] sm:$0xff] %v4932
        %5061 = vst [vmem:[%s275 + $0x158] sm:$0xff] %v4933
        %5062 = vst [vmem:[%s275 + $0x160] sm:$0xff] %v4934
        %5063 = vst [vmem:[%s275 + $0x168] sm:$0xff] %v4935
        %5064 = vst [vmem:[%s275 + $0x170] sm:$0xff] %v4936
        %5065 = vst [vmem:[%s275 + $0x178] sm:$0xff] %v4937
        %5066 = vst [vmem:[%s275 + $0x180] sm:$0xff] %v4938
        %5067 = vst [vmem:[%s275 + $0x188] sm:$0xff] %v4939
        %5068 = vst [vmem:[%s275 + $0x190] sm:$0xff] %v4940
        %5069 = vst [vmem:[%s275 + $0x198] sm:$0xff] %v4941
        %5070 = vst [vmem:[%s275 + $0x1a0] sm:$0xff] %v4942
        %5071 = vst [vmem:[%s275 + $0x1a8] sm:$0xff] %v4943
        %5072 = vst [vmem:[%s275 + $0x1b0] sm:$0xff] %v4944
        %5073 = vst [vmem:[%s275 + $0x1b8] sm:$0xff] %v4945
        %5074 = vst [vmem:[%s275 + $0x1c0] sm:$0xff] %v4946
        %5075 = vst [vmem:[%s275 + $0x1c8] sm:$0xff] %v4947
        %5076 = vst [vmem:[%s275 + $0x1d0] sm:$0xff] %v4948
        %5077 = vst [vmem:[%s275 + $0x1d8] sm:$0xff] %v4949
        %5078 = vst [vmem:[%s275 + $0x1e0] sm:$0xff] %v4950
        %5079 = vst [vmem:[%s275 + $0x1e8] sm:$0xff] %v4951
        %5080 = vst [vmem:[%s275 + $0x1f0] sm:$0xff] %v4952
        %5081 = vst [vmem:[%s275 + $0x1f8] sm:$0xff] %v4953
        %5082 = vst [vmem:[%s275 + $0x200] sm:$0xff] %v4954
        %5083 = vst [vmem:[%s275 + $0x208] sm:$0xff] %v4955
        %5084 = vst [vmem:[%s275 + $0x210] sm:$0xff] %v4956
        %5085 = vst [vmem:[%s275 + $0x218] sm:$0xff] %v4957
        %5086 = vst [vmem:[%s275 + $0x220] sm:$0xff] %v4958
        %5087 = vst [vmem:[%s275 + $0x228] sm:$0xff] %v4959
        %5088 = vst [vmem:[%s275 + $0x230] sm:$0xff] %v4960
        %5089 = vst [vmem:[%s275 + $0x238] sm:$0xff] %v4961
        %5090 = vst [vmem:[%s275 + $0x240] sm:$0xff] %v4962
        %5091 = vst [vmem:[%s275 + $0x248] sm:$0xff] %v4963
        %5092 = vst [vmem:[%s275 + $0x250] sm:$0xff] %v4964
        %5093 = vst [vmem:[%s275 + $0x258] sm:$0xff] %v4965
        %5094 = vst [vmem:[%s275 + $0x260] sm:$0xff] %v4966
        %5095 = vst [vmem:[%s275 + $0x268] sm:$0xff] %v4967
        %5096 = vst [vmem:[%s275 + $0x270] sm:$0xff] %v4968
        %5097 = vst [vmem:[%s275 + $0x278] sm:$0xff] %v4969
        %5098 = vst [vmem:[%s275 + $0x280] sm:$0xff] %v4970
        %5099 = vst [vmem:[%s275 + $0x288] sm:$0xff] %v4971
        %5100 = vst [vmem:[%s275 + $0x290] sm:$0xff] %v4972
        %5101 = vst [vmem:[%s275 + $0x298] sm:$0xff] %v4973
        %5102 = vst [vmem:[%s275 + $0x2a0] sm:$0xff] %v4974
        %5103 = vst [vmem:[%s275 + $0x2a8] sm:$0xff] %v4975
        %5104 = vst [vmem:[%s275 + $0x2b0] sm:$0xff] %v4976
        %5105 = vst [vmem:[%s275 + $0x2b8] sm:$0xff] %v4977
        %5106 = vst [vmem:[%s275 + $0x2c0] sm:$0xff] %v4978
        %5107 = vst [vmem:[%s275 + $0x2c8] sm:$0xff] %v4979
        %5108 = vst [vmem:[%s275 + $0x2d0] sm:$0xff] %v4980
        %5109 = vst [vmem:[%s275 + $0x2d8] sm:$0xff] %v4981
        %5110 = vst [vmem:[%s275 + $0x2e0] sm:$0xff] %v4982
        %5111 = vst [vmem:[%s275 + $0x2e8] sm:$0xff] %v4983
        %5112 = vst [vmem:[%s275 + $0x2f0] sm:$0xff] %v4984
        %5113 = vst [vmem:[%s275 + $0x2f8] sm:$0xff] %v4985
        %5114 = vst [vmem:[%s275 + $0x300] sm:$0xff] %v4986
        %5115 = vst [vmem:[%s275 + $0x308] sm:$0xff] %v4987
        %5116 = vst [vmem:[%s275 + $0x310] sm:$0xff] %v4988
        %5117 = vst [vmem:[%s275 + $0x318] sm:$0xff] %v4989
        %5118 = vst [vmem:[%s275 + $0x320] sm:$0xff] %v4990
        %5119 = vst [vmem:[%s275 + $0x328] sm:$0xff] %v4991
        %5120 = vst [vmem:[%s275 + $0x330] sm:$0xff] %v4992
        %5121 = vst [vmem:[%s275 + $0x338] sm:$0xff] %v4993
        %5122 = vst [vmem:[%s275 + $0x340] sm:$0xff] %v4994
        %5123 = vst [vmem:[%s275 + $0x348] sm:$0xff] %v4995
        %5124 = vst [vmem:[%s275 + $0x350] sm:$0xff] %v4996
        %5125 = vst [vmem:[%s275 + $0x358] sm:$0xff] %v4997
        %5126 = vst [vmem:[%s275 + $0x360] sm:$0xff] %v4998
        %5127 = vst [vmem:[%s275 + $0x368] sm:$0xff] %v4999
        %5128 = vst [vmem:[%s275 + $0x370] sm:$0xff] %v5000
        %5129 = vst [vmem:[%s275 + $0x378] sm:$0xff] %v5001
        %5130 = vst [vmem:[%s275 + $0x380] sm:$0xff] %v5002
        %5131 = vst [vmem:[%s275 + $0x388] sm:$0xff] %v5003
        %5132 = vst [vmem:[%s275 + $0x390] sm:$0xff] %v5004
        %5133 = vst [vmem:[%s275 + $0x398] sm:$0xff] %v5005
        %5134 = vst [vmem:[%s275 + $0x3a0] sm:$0xff] %v5006
        %5135 = vst [vmem:[%s275 + $0x3a8] sm:$0xff] %v5007
        %5136 = vst [vmem:[%s275 + $0x3b0] sm:$0xff] %v5008
        %5137 = vst [vmem:[%s275 + $0x3b8] sm:$0xff] %v5009
        %5138 = vst [vmem:[%s275 + $0x3c0] sm:$0xff] %v5010
        %5139 = vst [vmem:[%s275 + $0x3c8] sm:$0xff] %v5011
        %5140 = vst [vmem:[%s275 + $0x3d0] sm:$0xff] %v5012
        %5141 = vst [vmem:[%s275 + $0x3d8] sm:$0xff] %v5013
        %5142 = vst [vmem:[%s275 + $0x3e0] sm:$0xff] %v5014
        %5143 = vst [vmem:[%s275 + $0x3e8] sm:$0xff] %v5015
        %5144 = vst [vmem:[%s275 + $0x3f0] sm:$0xff] %v5016
        %5145 = vst [vmem:[%s275 + $0x3f8] sm:$0xff] %v5017
        %s5146 = sand.u32 %s157, 1
        %s5147 = scalar_lea.sflag [#allocation4], %s5146
        %s5148 = sand.u32 %s157, 1
        %s5149 = smul.addr %s5148, 1024
        %s5150 = scalar_lea.vmem [#allocation7], %s5149
        // Predicated region
        $region49: #{tpu_custom_call.1} parent=39 // pred_check
          %p5151 = pneg %p167
        $region50: #{tpu_custom_call.1} parent=39 // pred_check_branch
          %5153 = sbr.rel (%p5151) target = $region52
        $region51: #{tpu_custom_call.1} parent=39 // pred_region
          %s5154 = smul.u32 2, %s28
          %s5156 = ssub.s32 16384, 16384
          %5157 = vsyncadd %s5147, %s5156
          %s5158 = smul.addr %s27, 128
          %s5159 = sadd.s32 %s5154, %s5158
          %s5160 = smul.addr %s5159, 128
          %s5161 = scalar_lea.hbm %s5, %s5160
          %s5162 = sshll.u32 %s5150, 4
          %s5163 = int_to_ptr.vmem [resolvable:$true] %s5162
          %5168 = dma.vmem_to_hbm [thread:$0]  %s5163, 16384, %s5161, %s5147, 256, 256, 16
        $region52: #{tpu_custom_call.1} parent=39 // pred_fallthru
          _
      $region40: #{tpu_custom_call.1} parent=5 // pred_fallthru
        _
      %p5169 = scmp.le.s32.totalorder 2, %s18
      // Predicated region
      $region53: #{tpu_custom_call.1} parent=5 // pred_check
        %p5170 = pneg %p5169
      $region54: #{tpu_custom_call.1} parent=5 // pred_check_branch
        %5172 = sbr.rel (%p5170) target = $region56
      $region55: #{tpu_custom_call.1} parent=5 // pred_region
        %s5173 = ssub.s32 %s18, 2
        // Predicated region
        $region57: #{tpu_custom_call.1} parent=55 // pred_check
          %p5174 = pneg %p173
        $region58: #{tpu_custom_call.1} parent=55 // pred_check_branch
          %5176 = sbr.rel (%p5174) target = $region60
        $region59: #{tpu_custom_call.1} parent=55 // pred_region
          %s5177 = sand.u32 %s158, 1
          %s5178 = scalar_lea.sflag [#allocation4], %s5177
          %s5179 = sand.u32 %s158, 1
          %s5180 = smul.addr %s5179, 1024
          %s5181 = scalar_lea.vmem [#allocation7], %s5180
          %5182 = dma.done %s5178, 16384
        $region60: #{tpu_custom_call.1} parent=55 // pred_fallthru
          _
      $region56: #{tpu_custom_call.1} parent=5 // pred_fallthru
        _
    $region6: #{tpu_custom_call.1} parent=1 // loop_footer
      %s22 = sadd.s32 1, %s18
    $region7: #{tpu_custom_call.1} parent=1 // loop_footer_branch
      %17 = sbr.rel target = $region3
    $region8: #{tpu_custom_call.1} parent=1 // loop_exit
      _
    %5183 = vsyncpa [#allocation3], 1
    %s5184 = scalar_lea.sflag [#allocation3], 1
    %5185 = vsyncpa %s5184, 1
    %5186 = vsyncpa [#allocation6], 1
    %5187 = vsyncpa [#allocation4], 1
    %s5188 = scalar_lea.sflag [#allocation4], 1
    %5189 = vsyncpa %s5188, 1

</llo_original>
